<compile_context>
chip_gen: v7x
topology: tpu7x:2x2x1
jax: 0.10.0
libtpu: 0.0.40
codegen_flags: <defaults>
</compile_context>

<pallas_src>
import functools

import jax
import jax.numpy as jnp
from jax import lax
from jax.experimental import pallas as pl
from jax.experimental.pallas import tpu as pltpu

EPS = 1e-5          # nn.BatchNorm2d default eps
EXPANSION = 4
LANE = 128


# ------------------------------ small helpers ------------------------------ #

def _round_up(n, m=LANE):
    return ((n + m - 1) // m) * m


def _vmem_capacity_bytes():
    try:
        info = pltpu.get_tpu_info()
        return int(getattr(info, "vmem_capacity_bytes", 128 * 2 ** 20))
    except Exception:
        return 128 * 2 ** 20


def _pick_tile(m, cap):
    # Largest row-tile <= cap that divides M and still gives >= 2 grid steps.
    for t in (4096, 2048, 1024, 512, 256, 128, 64, 32, 16, 8):
        if t <= cap and m % t == 0 and m // t >= 2:
            return t
    return m


def _pad_last(x, target):
    pad = target - x.shape[-1]
    if pad == 0:
        return x
    return jnp.pad(x, [(0, 0)] * (x.ndim - 1) + [(0, pad)])


def _pad2d(w, rows, cols):
    return jnp.pad(w, ((0, rows - w.shape[0]), (0, cols - w.shape[1])))


def _stats_rows(h):
    """(8, C) block: row0 = per-channel sum, row1 = per-channel sum-of-squares."""
    s = jnp.sum(h, axis=0, keepdims=True)
    ss = jnp.sum(h * h, axis=0, keepdims=True)
    return jnp.concatenate([s, ss, jnp.zeros((6, h.shape[1]), jnp.float32)], axis=0)


def _affine_from_stats(stats, gamma_p, beta_p, m):
    """Fold global batch stats into a per-channel (scale, shift) for BN."""
    st = stats.reshape(-1, 8, stats.shape[-1])
    mean = st[:, 0, :].sum(axis=0, keepdims=True) / m
    var = jnp.maximum(st[:, 1, :].sum(axis=0, keepdims=True) / m - mean * mean, 0.0)
    scale = gamma_p * lax.rsqrt(var + EPS)
    shift = beta_p - mean * scale
    return scale, shift


# ----------------------------- Pallas kernels ------------------------------ #

def _conv1_kernel(x_ref, w1_ref, h1_ref, st_ref):
    # conv1 (1x1 == channel matmul) + BN1 partial statistics of this M-tile.
    h = jnp.dot(x_ref[...], w1_ref[...], preferred_element_type=jnp.float32)
    h1_ref[...] = h.astype(h1_ref.dtype)
    st_ref[...] = _stats_rows(h)


def _conv2_kernel(h1_ref, sc_ref, sh_ref, w2_ref, h2_ref, st_ref, pad_ref):
    # bn1(affine) + relu, then 3x3 conv as THREE row-grouped (K=3*C) matmuls
    # accumulated in f32, per image.  Halo scratch is bf16 and its zero border
    # is written only once (interior fully overwritten every grid step).
    hp2, wp2, c = pad_ref.shape
    hh, ww = hp2 - 2, wp2 - 2
    cout = w2_ref.shape[1]

    @pl.when(pl.program_id(0) == 0)
    def _():
        pad_ref[...] = jnp.zeros_like(pad_ref)

    a = jnp.maximum(h1_ref[0].astype(jnp.float32) * sc_ref[...] + sh_ref[...], 0.0)
    pad_ref[1:hh + 1, 1:ww + 1, :] = a.astype(pad_ref.dtype)

    acc = jnp.zeros((hh * ww, cout), jnp.float32)
    for dy in range(3):
        row = jnp.concatenate(
            [pad_ref[dy:dy + hh, dx:dx + ww, :] for dx in range(3)],
            axis=-1).reshape(hh * ww, 3 * c)
        acc += jnp.dot(row, w2_ref[dy * 3 * c:(dy + 1) * 3 * c, :],
                       preferred_element_type=jnp.float32)
    h2_ref[...] = acc.astype(h2_ref.dtype)
    st_ref[...] = _stats_rows(acc)


def _conv3_kernel(h2_ref, sc_ref, sh_ref, w3_ref, h3_ref, st_ref):
    # bn2(affine) + relu + conv3 (1x1) + BN3 partial statistics.
    a = jnp.maximum(h2_ref[...].astype(jnp.float32) * sc_ref[...] + sh_ref[...], 0.0)
    h3 = jnp.dot(a.astype(jnp.bfloat16), w3_ref[...],
                 preferred_element_type=jnp.float32)
    h3_ref[...] = h3.astype(h3_ref.dtype)
    st_ref[...] = _stats_rows(h3)


def _residual_kernel(h3_ref, idn_ref, sc_ref, sh_ref, y_ref):
    # bn3(affine) + residual add + relu.
    y = (h3_ref[...].astype(jnp.float32) * sc_ref[...] + sh_ref[...]
         + idn_ref[...].astype(jnp.float32))
    y_ref[...] = jnp.maximum(y, 0.0)


# ------------------------------ host wrapper ------------------------------- #

@functools.partial(jax.jit, static_argnames=("stride",))
def bottleneck_forward(x_nchw, params, *, stride=1):
    assert stride == 1, "downsample=None requires stride=1 for the residual add"
    w1, g1, b1, w2, g2, b2, w3, g3, b3 = params
    n, cin, hgt, wid = x_nchw.shape
    cmid = w1.shape[1]
    cout = w3.shape[1]
    assert cin == cout, "downsample=None requires in_channel == out_channel*expansion"
    m = n * hgt * wid

    cin_p, cmid_p, cout_p = _round_up(cin), _round_up(cmid), _round_up(cout)

    # Generation-aware tiling: bigger M-tiles + VMEM limit on 128-MiB chips
    # (v5e/v6e), conservative on 64-MiB v7x.
    vmem_cap = _vmem_capacity_bytes()
    big_vmem = vmem_cap >= 96 * 2 ** 20
    tm = _pick_tile(m, 2048 if big_vmem else 1024)
    nt = m // tm
    vmem_limit = min(int(0.75 * vmem_cap), (100 if big_vmem else 48) * 2 ** 20)

    # activations: NCHW -> NHWC -> (M, C), channel axis padded to lane width;
    # cast to bf16 inside the already-materializing transpose+pad fusion.
    x2d = _pad_last(jnp.transpose(x_nchw, (0, 2, 3, 1)).reshape(m, cin),
                    cin_p).astype(jnp.bfloat16)

    # weights: zero-pad channels + cast to bf16 (MXU native); BN params zero-padded
    w1p = _pad2d(w1, cin_p, cmid_p).astype(jnp.bfloat16)
    w2p = (jnp.pad(w2, ((0, 0), (0, cmid_p - cmid), (0, cmid_p - cmid)))
           .reshape(9 * cmid_p, cmid_p).astype(jnp.bfloat16))
    w3p = _pad2d(w3, cmid_p, cout_p).astype(jnp.bfloat16)
    g1p, b1p = _pad_last(g1, cmid_p), _pad_last(b1, cmid_p)
    g2p, b2p = _pad_last(g2, cmid_p), _pad_last(b2, cmid_p)
    g3p, b3p = _pad_last(g3, cout_p), _pad_last(b3, cout_p)

    cp = pltpu.CompilerParams(dimension_semantics=("parallel",),
                              vmem_limit_bytes=vmem_limit)

    # ---- stage 1: conv1 (1x1) + BN1 partial stats, tiled over M -------------
    h1, st1 = pl.pallas_call(
        _conv1_kernel,
        out_shape=(jax.ShapeDtypeStruct((m, cmid_p), jnp.bfloat16),
                   jax.ShapeDtypeStruct((nt * 8, cmid_p), jnp.float32)),
        grid=(nt,),
        in_specs=[pl.BlockSpec((tm, cin_p), lambda i: (i, 0)),
                  pl.BlockSpec((cin_p, cmid_p), lambda i: (0, 0))],
        out_specs=(pl.BlockSpec((tm, cmid_p), lambda i: (i, 0)),
                   pl.BlockSpec((8, cmid_p), lambda i: (i, 0))),
        compiler_params=cp,
    )(x2d, w1p)
    sc1, sh1 = _affine_from_stats(st1, g1p, b1p, m)

    # ---- stage 2: bn1+relu + conv2 (3x3 as 3 row-grouped matmuls), per image -
    h1_img = h1.reshape(n, hgt, wid, cmid_p)
    h2, st2 = pl.pallas_call(
        _conv2_kernel,
        out_shape=(jax.ShapeDtypeStruct((m, cmid_p), jnp.bfloat16),
                   jax.ShapeDtypeStruct((n * 8, cmid_p), jnp.float32)),
        grid=(n,),
        in_specs=[pl.BlockSpec((1, hgt, wid, cmid_p), lambda i: (i, 0, 0, 0)),
                  pl.BlockSpec((1, cmid_p), lambda i: (0, 0)),
                  pl.BlockSpec((1, cmid_p), lambda i: (0, 0)),
                  pl.BlockSpec((9 * cmid_p, cmid_p), lambda i: (0, 0))],
        out_specs=(pl.BlockSpec((hgt * wid, cmid_p), lambda i: (i, 0)),
                   pl.BlockSpec((8, cmid_p), lambda i: (i, 0))),
        scratch_shapes=[pltpu.VMEM((hgt + 2, wid + 2, cmid_p), jnp.bfloat16)],
        compiler_params=cp,
    )(h1_img, sc1, sh1, w2p)
    sc2, sh2 = _affine_from_stats(st2, g2p, b2p, m)

    # ---- stage 3: bn2+relu + conv3 (1x1) + BN3 partial stats, tiled over M --
    h3, st3 = pl.pallas_call(
        _conv3_kernel,
        out_shape=(jax.ShapeDtypeStruct((m, cout_p), jnp.bfloat16),
                   jax.ShapeDtypeStruct((nt * 8, cout_p), jnp.float32)),
        grid=(nt,),
        in_specs=[pl.BlockSpec((tm, cmid_p), lambda i: (i, 0)),
                  pl.BlockSpec((1, cmid_p), lambda i: (0, 0)),
                  pl.BlockSpec((1, cmid_p), lambda i: (0, 0)),
                  pl.BlockSpec((cmid_p, cout_p), lambda i: (0, 0))],
        out_specs=(pl.BlockSpec((tm, cout_p), lambda i: (i, 0)),
                   pl.BlockSpec((8, cout_p), lambda i: (i, 0))),
        compiler_params=cp,
    )(h2, sc2, sh2, w3p)
    sc3, sh3 = _affine_from_stats(st3, g3p, b3p, m)

    # ---- stage 4: bn3 + residual add + relu, tiled over M -------------------
    y2d = pl.pallas_call(
        _residual_kernel,
        out_shape=jax.ShapeDtypeStruct((m, cout_p), jnp.float32),
        grid=(nt,),
        in_specs=[pl.BlockSpec((tm, cout_p), lambda i: (i, 0)),
                  pl.BlockSpec((tm, cout_p), lambda i: (i, 0)),
                  pl.BlockSpec((1, cout_p), lambda i: (0, 0)),
                  pl.BlockSpec((1, cout_p), lambda i: (0, 0))],
        out_specs=pl.BlockSpec((tm, cout_p), lambda i: (i, 0)),
        compiler_params=cp,
    )(h3, x2d, sc3, sh3)

    # NOTE: if the consumer can take NHWC (and cout % 128 == 0), this slice +
    # transpose back to NCHW could be skipped to save an HBM round trip.
    y = y2d[:, :cout].reshape(n, hgt, wid, cout)
    return jnp.transpose(y, (0, 3, 1, 2))


# --------------------------- parameters (synthetic) ------------------------ #

def init_params(key, in_channel, out_channel):
    cmid = out_channel
    cout = out_channel * EXPANSION
    ks = jax.random.split(key, 9)
    # PyTorch weight layouts, then converted to kernel (matmul) layouts.
    w1_t = jax.random.normal(ks[0], (cmid, in_channel, 1, 1), jnp.float32) * 0.1
    w2_t = jax.random.normal(ks[1], (cmid, cmid, 3, 3), jnp.float32) * 0.1
    w3_t = jax.random.normal(ks[2], (cout, cmid, 1, 1), jnp.float32) * 0.1
    g1 = 1.0 + 0.1 * jax.random.normal(ks[3], (cmid,), jnp.float32)
    b1 = 0.1 * jax.random.normal(ks[4], (cmid,), jnp.float32)
    g2 = 1.0 + 0.1 * jax.random.normal(ks[5], (cmid,), jnp.float32)
    b2 = 0.1 * jax.random.normal(ks[6], (cmid,), jnp.float32)
    g3 = 1.0 + 0.1 * jax.random.normal(ks[7], (cout,), jnp.float32)
    b3 = 0.1 * jax.random.normal(ks[8], (cout,), jnp.float32)

    w1 = jnp.transpose(w1_t[:, :, 0, 0], (1, 0))                     # (Cin, Cmid)
    w2 = jnp.transpose(w2_t, (2, 3, 1, 0)).reshape(9, cmid, cmid)    # (kh*kw, Cin, Cout)
    w3 = jnp.transpose(w3_t[:, :, 0, 0], (1, 0))                     # (Cmid, Cout)
    return (w1, g1.reshape(1, -1), b1.reshape(1, -1),
            w2, g2.reshape(1, -1), b2.reshape(1, -1),
            w3, g3.reshape(1, -1), b3.reshape(1, -1))


# ------------------------------ pure-JAX ref ------------------------------- #

def reference_forward(x_nchw, params):
    w1, g1, b1, w2, g2, b2, w3, g3, b3 = params
    x = jnp.transpose(x_nchw, (0, 2, 3, 1))

    def bn(h, g, b):
        mean = h.mean(axis=(0, 1, 2), keepdims=True)
        var = ((h - mean) ** 2).mean(axis=(0, 1, 2), keepdims=True)
        return ((h - mean) / jnp.sqrt(var + EPS) * g.reshape(1, 1, 1, -1)
                + b.reshape(1, 1, 1, -1))

    h = jnp.einsum('nhwc,cd->nhwd', x, w1)
    h = jax.nn.relu(bn(h, g1, b1))
    w2_hwio = w2.reshape(3, 3, w2.shape[1], w2.shape[2])
    h = lax.conv_general_dilated(h, w2_hwio, window_strides=(1, 1),
                                 padding=((1, 1), (1, 1)),
                                 dimension_numbers=('NHWC', 'HWIO', 'NHWC'))
    h = jax.nn.relu(bn(h, g2, b2))
    h = jnp.einsum('nhwc,cd->nhwd', h, w3)
    h = jax.nn.relu(bn(h, g3, b3) + x)
    return jnp.transpose(h, (0, 3, 1, 2))


if __name__ == "__main__":
    key = jax.random.PRNGKey(0)
    kx, kp = jax.random.split(key)
    # in_channel == out_channel * expansion, stride=1, downsample=None
    N, IN_CH, OUT_CH, H, W = 2, 16, 4, 16, 16
    x = jax.random.normal(kx, (N, IN_CH, H, W), jnp.float32)
    params = init_params(kp, IN_CH, OUT_CH)

    out = bottleneck_forward(x, params)
    out = jax.block_until_ready(out)

    assert out.shape == (N, OUT_CH * EXPANSION, H, W)
    ref = reference_forward(x, params)
    assert jnp.allclose(out, ref, atol=5e-2, rtol=5e-2), \
        float(jnp.max(jnp.abs(out - ref)))
    print("KERNEL_OK")
</pallas_src>

<mosaic_0001>
module attributes {stable_mosaic.version = 11 : i64} {
  func.func @_conv1_kernel(%arg0: i32, %arg1: memref<256x128xbf16, #tpu.memory_space<vmem>>, %arg2: memref<128x128xbf16, #tpu.memory_space<vmem>>, %arg3: memref<256x128xbf16, #tpu.memory_space<vmem>>, %arg4: memref<8x128xf32, #tpu.memory_space<vmem>>) attributes {dimension_semantics = [#tpu.dimension_semantics<parallel>], iteration_bounds = array<i64: 2>, scalar_prefetch = 0 : i64, scratch_operands = 0 : i64, tpu.core_type = #tpu.core_type<tc>, window_params = [{transform_indices = @transform_0, window_bounds = array<i64: 256, 128>}, {pipeline_mode = #tpu.pipeline_mode<synchronous>, transform_indices = @transform_1, window_bounds = array<i64: 128, 128>}, {transform_indices = @transform_2, window_bounds = array<i64: 256, 128>}, {transform_indices = @transform_3, window_bounds = array<i64: 8, 128>}]} {
    %c0 = arith.constant 0 : index
    %c0_0 = arith.constant 0 : index
    %0 = vector.load %arg1[%c0, %c0_0] : memref<256x128xbf16, #tpu.memory_space<vmem>>, vector<256x128xbf16>
    %c0_1 = arith.constant 0 : index
    %c0_2 = arith.constant 0 : index
    %1 = vector.load %arg2[%c0_1, %c0_2] : memref<128x128xbf16, #tpu.memory_space<vmem>>, vector<128x128xbf16>
    %cst = arith.constant dense<0.000000e+00> : vector<256x128xf32>
    %2 = tpu.matmul %0, %1, %cst {dimension_numbers = #tpu.dot_dimension_numbers<[1], [0], [0], [1], [0, 0, 1, 1], [], []>} : vector<256x128xbf16>, vector<128x128xbf16>, vector<256x128xf32> -> vector<256x128xf32>
    %3 = arith.truncf %2 : vector<256x128xf32> to vector<256x128xbf16>
    %c0_3 = arith.constant 0 : index
    %c0_4 = arith.constant 0 : index
    %4 = vector.load %arg3[%c0_3, %c0_4] : memref<256x128xbf16, #tpu.memory_space<vmem>>, vector<256x128xbf16>
    tpu.vector_store %arg3[%c0_3, %c0_4], %3 {strides = array<i32>} : memref<256x128xbf16, #tpu.memory_space<vmem>>, vector<256x128xbf16>,
    %cst_5 = arith.constant dense<0.000000e+00> : vector<128xf32>
    %5 = vector.multi_reduction <add>, %2, %cst_5 [0] : vector<256x128xf32> to vector<128xf32>
    %6 = vector.shape_cast %5 : vector<128xf32> to vector<1x128xf32>
    %7 = arith.mulf %2, %2 : vector<256x128xf32>
    %cst_6 = arith.constant dense<0.000000e+00> : vector<128xf32>
    %8 = vector.multi_reduction <add>, %7, %cst_6 [0] : vector<256x128xf32> to vector<128xf32>
    %9 = vector.shape_cast %8 : vector<128xf32> to vector<1x128xf32>
    %cst_7 = arith.constant 0.000000e+00 : f32
    %10 = vector.broadcast %cst_7 : f32 to vector<6x128xf32>
    %11 = tpu.concatenate %6, %9, %10 in 0 : vector<1x128xf32>, vector<1x128xf32>, vector<6x128xf32> -> vector<8x128xf32>
    %c0_8 = arith.constant 0 : index
    %c0_9 = arith.constant 0 : index
    %12 = vector.load %arg4[%c0_8, %c0_9] : memref<8x128xf32, #tpu.memory_space<vmem>>, vector<8x128xf32>
    tpu.vector_store %arg4[%c0_8, %c0_9], %11 {strides = array<i32>} : memref<8x128xf32, #tpu.memory_space<vmem>>, vector<8x128xf32>,
    return
  }
  func.func @transform_0(%arg0: i32) -> (i32, i32) {
    %c0_i32 = arith.constant 0 : i32
    %c0_i32_0 = arith.constant 0 : i32
    return %arg0, %c0_i32 : i32, i32
  }
  func.func @transform_1(%arg0: i32) -> (i32, i32) {
    %c0_i32 = arith.constant 0 : i32
    %c0_i32_0 = arith.constant 0 : i32
    %c0_i32_1 = arith.constant 0 : i32
    return %c0_i32, %c0_i32_0 : i32, i32
  }
  func.func @transform_2(%arg0: i32) -> (i32, i32) {
    %c0_i32 = arith.constant 0 : i32
    %c0_i32_0 = arith.constant 0 : i32
    return %arg0, %c0_i32 : i32, i32
  }
  func.func @transform_3(%arg0: i32) -> (i32, i32) {
    %c0_i32 = arith.constant 0 : i32
    %c0_i32_0 = arith.constant 0 : i32
    return %arg0, %c0_i32 : i32, i32
  }
}

module attributes {stable_mosaic.version = 11 : i64} {
  func.func @_conv2_kernel(%arg0: i32, %arg1: memref<1x16x16x128xbf16, #tpu.memory_space<vmem>>, %arg2: memref<1x128xf32, #tpu.memory_space<vmem>>, %arg3: memref<1x128xf32, #tpu.memory_space<vmem>>, %arg4: memref<1152x128xbf16, #tpu.memory_space<vmem>>, %arg5: memref<256x128xbf16, #tpu.memory_space<vmem>>, %arg6: memref<8x128xf32, #tpu.memory_space<vmem>>, %arg7: memref<18x18x128xbf16, #tpu.memory_space<vmem>>) attributes {dimension_semantics = [#tpu.dimension_semantics<parallel>], iteration_bounds = array<i64: 2>, scalar_prefetch = 0 : i64, scratch_operands = 1 : i64, tpu.core_type = #tpu.core_type<tc>, window_params = [{transform_indices = @transform_0, window_bounds = array<i64: 1, 16, 16, 128>}, {pipeline_mode = #tpu.pipeline_mode<synchronous>, transform_indices = @transform_1, window_bounds = array<i64: 1, 128>}, {pipeline_mode = #tpu.pipeline_mode<synchronous>, transform_indices = @transform_2, window_bounds = array<i64: 1, 128>}, {pipeline_mode = #tpu.pipeline_mode<synchronous>, transform_indices = @transform_3, window_bounds = array<i64: 1152, 128>}, {transform_indices = @transform_4, window_bounds = array<i64: 256, 128>}, {transform_indices = @transform_5, window_bounds = array<i64: 8, 128>}]} {
    %c0_i32 = arith.constant 0 : i32
    %0 = arith.cmpi eq, %arg0, %c0_i32 : i32
    %1 = arith.extui %0 : i1 to i32
    %c0_i32_0 = arith.constant 0 : i32
    %2 = arith.cmpi ne, %1, %c0_i32_0 : i32
    scf.if %2 {
      %cst_51 = arith.constant 0.000000e+00 : bf16
      %53 = vector.broadcast %cst_51 : bf16 to vector<18x18x128xbf16>
      %c0_52 = arith.constant 0 : index
      %c0_53 = arith.constant 0 : index
      %c0_54 = arith.constant 0 : index
      %54 = vector.load %arg7[%c0_52, %c0_53, %c0_54] : memref<18x18x128xbf16, #tpu.memory_space<vmem>>, vector<18x18x128xbf16>
      tpu.vector_store %arg7[%c0_52, %c0_53, %c0_54], %53 {strides = array<i32>} : memref<18x18x128xbf16, #tpu.memory_space<vmem>>, vector<18x18x128xbf16>,
    } else {
    }
    %c0 = arith.constant 0 : index
    %c0_1 = arith.constant 0 : index
    %c0_2 = arith.constant 0 : index
    %c0_3 = arith.constant 0 : index
    %3 = vector.load %arg1[%c0, %c0_1, %c0_2, %c0_3] : memref<1x16x16x128xbf16, #tpu.memory_space<vmem>>, vector<1x16x16x128xbf16>
    %4 = vector.shape_cast %3 : vector<1x16x16x128xbf16> to vector<16x16x128xbf16>
    %5 = arith.extf %4 : vector<16x16x128xbf16> to vector<16x16x128xf32>
    %c0_4 = arith.constant 0 : index
    %c0_5 = arith.constant 0 : index
    %6 = vector.load %arg2[%c0_4, %c0_5] : memref<1x128xf32, #tpu.memory_space<vmem>>, vector<1x128xf32>
    %7 = vector.shape_cast %6 : vector<1x128xf32> to vector<1x1x128xf32>
    %8 = vector.broadcast %7 : vector<1x1x128xf32> to vector<16x16x128xf32>
    %9 = arith.mulf %5, %8 : vector<16x16x128xf32>
    %c0_6 = arith.constant 0 : index
    %c0_7 = arith.constant 0 : index
    %10 = vector.load %arg3[%c0_6, %c0_7] : memref<1x128xf32, #tpu.memory_space<vmem>>, vector<1x128xf32>
    %11 = vector.shape_cast %10 : vector<1x128xf32> to vector<1x1x128xf32>
    %12 = vector.broadcast %11 : vector<1x1x128xf32> to vector<16x16x128xf32>
    %13 = arith.addf %9, %12 : vector<16x16x128xf32>
    %cst = arith.constant 0.000000e+00 : f32
    %14 = vector.broadcast %cst : f32 to vector<16x16x128xf32>
    %15 = arith.maximumf %13, %14 : vector<16x16x128xf32>
    %16 = arith.truncf %15 : vector<16x16x128xf32> to vector<16x16x128xbf16>
    %c1 = arith.constant 1 : index
    %c1_8 = arith.constant 1 : index
    %c0_9 = arith.constant 0 : index
    %17 = vector.load %arg7[%c1, %c1_8, %c0_9] : memref<18x18x128xbf16, #tpu.memory_space<vmem>>, vector<16x16x128xbf16>
    tpu.vector_store %arg7[%c1, %c1_8, %c0_9], %16 {strides = array<i32>} : memref<18x18x128xbf16, #tpu.memory_space<vmem>>, vector<16x16x128xbf16>,
    %cst_10 = arith.constant 0.000000e+00 : f32
    %18 = vector.broadcast %cst_10 : f32 to vector<256x128xf32>
    %c0_11 = arith.constant 0 : index
    %c0_12 = arith.constant 0 : index
    %c0_13 = arith.constant 0 : index
    %19 = vector.load %arg7[%c0_11, %c0_12, %c0_13] : memref<18x18x128xbf16, #tpu.memory_space<vmem>>, vector<16x16x128xbf16>
    %c0_14 = arith.constant 0 : index
    %c1_15 = arith.constant 1 : index
    %c0_16 = arith.constant 0 : index
    %20 = vector.load %arg7[%c0_14, %c1_15, %c0_16] : memref<18x18x128xbf16, #tpu.memory_space<vmem>>, vector<16x16x128xbf16>
    %c0_17 = arith.constant 0 : index
    %c2 = arith.constant 2 : index
    %c0_18 = arith.constant 0 : index
    %21 = vector.load %arg7[%c0_17, %c2, %c0_18] : memref<18x18x128xbf16, #tpu.memory_space<vmem>>, vector<16x16x128xbf16>
    %22 = tpu.concatenate %19, %20, %21 in 2 : vector<16x16x128xbf16>, vector<16x16x128xbf16>, vector<16x16x128xbf16> -> vector<16x16x384xbf16>
    %23 = vector.shape_cast %22 : vector<16x16x384xbf16> to vector<256x384xbf16>
    %c0_19 = arith.constant 0 : index
    %c0_20 = arith.constant 0 : index
    %24 = vector.load %arg4[%c0_19, %c0_20] : memref<1152x128xbf16, #tpu.memory_space<vmem>>, vector<384x128xbf16>
    %cst_21 = arith.constant dense<0.000000e+00> : vector<256x128xf32>
    %25 = tpu.matmul %23, %24, %cst_21 {dimension_numbers = #tpu.dot_dimension_numbers<[1], [0], [0], [1], [0, 0, 1, 1], [], []>} : vector<256x384xbf16>, vector<384x128xbf16>, vector<256x128xf32> -> vector<256x128xf32>
    %26 = arith.addf %18, %25 : vector<256x128xf32>
    %c1_22 = arith.constant 1 : index
    %c0_23 = arith.constant 0 : index
    %c0_24 = arith.constant 0 : index
    %27 = vector.load %arg7[%c1_22, %c0_23, %c0_24] : memref<18x18x128xbf16, #tpu.memory_space<vmem>>, vector<16x16x128xbf16>
    %c1_25 = arith.constant 1 : index
    %c1_26 = arith.constant 1 : index
    %c0_27 = arith.constant 0 : index
    %28 = vector.load %arg7[%c1_25, %c1_26, %c0_27] : memref<18x18x128xbf16, #tpu.memory_space<vmem>>, vector<16x16x128xbf16>
    %c1_28 = arith.constant 1 : index
    %c2_29 = arith.constant 2 : index
    %c0_30 = arith.constant 0 : index
    %29 = vector.load %arg7[%c1_28, %c2_29, %c0_30] : memref<18x18x128xbf16, #tpu.memory_space<vmem>>, vector<16x16x128xbf16>
    %30 = tpu.concatenate %27, %28, %29 in 2 : vector<16x16x128xbf16>, vector<16x16x128xbf16>, vector<16x16x128xbf16> -> vector<16x16x384xbf16>
    %31 = vector.shape_cast %30 : vector<16x16x384xbf16> to vector<256x384xbf16>
    %c384 = arith.constant 384 : index
    %c0_31 = arith.constant 0 : index
    %32 = vector.load %arg4[%c384, %c0_31] : memref<1152x128xbf16, #tpu.memory_space<vmem>>, vector<384x128xbf16>
    %cst_32 = arith.constant dense<0.000000e+00> : vector<256x128xf32>
    %33 = tpu.matmul %31, %32, %cst_32 {dimension_numbers = #tpu.dot_dimension_numbers<[1], [0], [0], [1], [0, 0, 1, 1], [], []>} : vector<256x384xbf16>, vector<384x128xbf16>, vector<256x128xf32> -> vector<256x128xf32>
    %34 = arith.addf %26, %33 : vector<256x128xf32>
    %c2_33 = arith.constant 2 : index
    %c0_34 = arith.constant 0 : index
    %c0_35 = arith.constant 0 : index
    %35 = vector.load %arg7[%c2_33, %c0_34, %c0_35] : memref<18x18x128xbf16, #tpu.memory_space<vmem>>, vector<16x16x128xbf16>
    %c2_36 = arith.constant 2 : index
    %c1_37 = arith.constant 1 : index
    %c0_38 = arith.constant 0 : index
    %36 = vector.load %arg7[%c2_36, %c1_37, %c0_38] : memref<18x18x128xbf16, #tpu.memory_space<vmem>>, vector<16x16x128xbf16>
    %c2_39 = arith.constant 2 : index
    %c2_40 = arith.constant 2 : index
    %c0_41 = arith.constant 0 : index
    %37 = vector.load %arg7[%c2_39, %c2_40, %c0_41] : memref<18x18x128xbf16, #tpu.memory_space<vmem>>, vector<16x16x128xbf16>
    %38 = tpu.concatenate %35, %36, %37 in 2 : vector<16x16x128xbf16>, vector<16x16x128xbf16>, vector<16x16x128xbf16> -> vector<16x16x384xbf16>
    %39 = vector.shape_cast %38 : vector<16x16x384xbf16> to vector<256x384xbf16>
    %c768 = arith.constant 768 : index
    %c0_42 = arith.constant 0 : index
    %40 = vector.load %arg4[%c768, %c0_42] : memref<1152x128xbf16, #tpu.memory_space<vmem>>, vector<384x128xbf16>
    %cst_43 = arith.constant dense<0.000000e+00> : vector<256x128xf32>
    %41 = tpu.matmul %39, %40, %cst_43 {dimension_numbers = #tpu.dot_dimension_numbers<[1], [0], [0], [1], [0, 0, 1, 1], [], []>} : vector<256x384xbf16>, vector<384x128xbf16>, vector<256x128xf32> -> vector<256x128xf32>
    %42 = arith.addf %34, %41 : vector<256x128xf32>
    %43 = arith.truncf %42 : vector<256x128xf32> to vector<256x128xbf16>
    %c0_44 = arith.constant 0 : index
    %c0_45 = arith.constant 0 : index
    %44 = vector.load %arg5[%c0_44, %c0_45] : memref<256x128xbf16, #tpu.memory_space<vmem>>, vector<256x128xbf16>
    tpu.vector_store %arg5[%c0_44, %c0_45], %43 {strides = array<i32>} : memref<256x128xbf16, #tpu.memory_space<vmem>>, vector<256x128xbf16>,
    %cst_46 = arith.constant dense<0.000000e+00> : vector<128xf32>
    %45 = vector.multi_reduction <add>, %42, %cst_46 [0] : vector<256x128xf32> to vector<128xf32>
    %46 = vector.shape_cast %45 : vector<128xf32> to vector<1x128xf32>
    %47 = arith.mulf %42, %42 : vector<256x128xf32>
    %cst_47 = arith.constant dense<0.000000e+00> : vector<128xf32>
    %48 = vector.multi_reduction <add>, %47, %cst_47 [0] : vector<256x128xf32> to vector<128xf32>
    %49 = vector.shape_cast %48 : vector<128xf32> to vector<1x128xf32>
    %cst_48 = arith.constant 0.000000e+00 : f32
    %50 = vector.broadcast %cst_48 : f32 to vector<6x128xf32>
    %51 = tpu.concatenate %46, %49, %50 in 0 : vector<1x128xf32>, vector<1x128xf32>, vector<6x128xf32> -> vector<8x128xf32>
    %c0_49 = arith.constant 0 : index
    %c0_50 = arith.constant 0 : index
    %52 = vector.load %arg6[%c0_49, %c0_50] : memref<8x128xf32, #tpu.memory_space<vmem>>, vector<8x128xf32>
    tpu.vector_store %arg6[%c0_49, %c0_50], %51 {strides = array<i32>} : memref<8x128xf32, #tpu.memory_space<vmem>>, vector<8x128xf32>,
    return
  }
  func.func @transform_0(%arg0: i32) -> (i32, i32, i32, i32) {
    %c0_i32 = arith.constant 0 : i32
    %c0_i32_0 = arith.constant 0 : i32
    %c0_i32_1 = arith.constant 0 : i32
    %c0_i32_2 = arith.constant 0 : i32
    return %arg0, %c0_i32, %c0_i32_0, %c0_i32_1 : i32, i32, i32, i32
  }
  func.func @transform_1(%arg0: i32) -> (i32, i32) {
    %c0_i32 = arith.constant 0 : i32
    %c0_i32_0 = arith.constant 0 : i32
    %c0_i32_1 = arith.constant 0 : i32
    return %c0_i32, %c0_i32_0 : i32, i32
  }
  func.func @transform_2(%arg0: i32) -> (i32, i32) {
    %c0_i32 = arith.constant 0 : i32
    %c0_i32_0 = arith.constant 0 : i32
    %c0_i32_1 = arith.constant 0 : i32
    return %c0_i32, %c0_i32_0 : i32, i32
  }
  func.func @transform_3(%arg0: i32) -> (i32, i32) {
    %c0_i32 = arith.constant 0 : i32
    %c0_i32_0 = arith.constant 0 : i32
    %c0_i32_1 = arith.constant 0 : i32
    return %c0_i32, %c0_i32_0 : i32, i32
  }
  func.func @transform_4(%arg0: i32) -> (i32, i32) {
    %c0_i32 = arith.constant 0 : i32
    %c0_i32_0 = arith.constant 0 : i32
    return %arg0, %c0_i32 : i32, i32
  }
  func.func @transform_5(%arg0: i32) -> (i32, i32) {
    %c0_i32 = arith.constant 0 : i32
    %c0_i32_0 = arith.constant 0 : i32
    return %arg0, %c0_i32 : i32, i32
  }
}

module attributes {stable_mosaic.version = 11 : i64} {
  func.func @_conv3_kernel(%arg0: i32, %arg1: memref<256x128xbf16, #tpu.memory_space<vmem>>, %arg2: memref<1x128xf32, #tpu.memory_space<vmem>>, %arg3: memref<1x128xf32, #tpu.memory_space<vmem>>, %arg4: memref<128x128xbf16, #tpu.memory_space<vmem>>, %arg5: memref<256x128xbf16, #tpu.memory_space<vmem>>, %arg6: memref<8x128xf32, #tpu.memory_space<vmem>>) attributes {dimension_semantics = [#tpu.dimension_semantics<parallel>], iteration_bounds = array<i64: 2>, scalar_prefetch = 0 : i64, scratch_operands = 0 : i64, tpu.core_type = #tpu.core_type<tc>, window_params = [{transform_indices = @transform_0, window_bounds = array<i64: 256, 128>}, {pipeline_mode = #tpu.pipeline_mode<synchronous>, transform_indices = @transform_1, window_bounds = array<i64: 1, 128>}, {pipeline_mode = #tpu.pipeline_mode<synchronous>, transform_indices = @transform_2, window_bounds = array<i64: 1, 128>}, {pipeline_mode = #tpu.pipeline_mode<synchronous>, transform_indices = @transform_3, window_bounds = array<i64: 128, 128>}, {transform_indices = @transform_4, window_bounds = array<i64: 256, 128>}, {transform_indices = @transform_5, window_bounds = array<i64: 8, 128>}]} {
    %c0 = arith.constant 0 : index
    %c0_0 = arith.constant 0 : index
    %0 = vector.load %arg1[%c0, %c0_0] : memref<256x128xbf16, #tpu.memory_space<vmem>>, vector<256x128xbf16>
    %1 = arith.extf %0 : vector<256x128xbf16> to vector<256x128xf32>
    %c0_1 = arith.constant 0 : index
    %c0_2 = arith.constant 0 : index
    %2 = vector.load %arg2[%c0_1, %c0_2] : memref<1x128xf32, #tpu.memory_space<vmem>>, vector<1x128xf32>
    %3 = vector.broadcast %2 : vector<1x128xf32> to vector<256x128xf32>
    %4 = arith.mulf %1, %3 : vector<256x128xf32>
    %c0_3 = arith.constant 0 : index
    %c0_4 = arith.constant 0 : index
    %5 = vector.load %arg3[%c0_3, %c0_4] : memref<1x128xf32, #tpu.memory_space<vmem>>, vector<1x128xf32>
    %6 = vector.broadcast %5 : vector<1x128xf32> to vector<256x128xf32>
    %7 = arith.addf %4, %6 : vector<256x128xf32>
    %cst = arith.constant 0.000000e+00 : f32
    %8 = vector.broadcast %cst : f32 to vector<256x128xf32>
    %9 = arith.maximumf %7, %8 : vector<256x128xf32>
    %10 = arith.truncf %9 : vector<256x128xf32> to vector<256x128xbf16>
    %c0_5 = arith.constant 0 : index
    %c0_6 = arith.constant 0 : index
    %11 = vector.load %arg4[%c0_5, %c0_6] : memref<128x128xbf16, #tpu.memory_space<vmem>>, vector<128x128xbf16>
    %cst_7 = arith.constant dense<0.000000e+00> : vector<256x128xf32>
    %12 = tpu.matmul %10, %11, %cst_7 {dimension_numbers = #tpu.dot_dimension_numbers<[1], [0], [0], [1], [0, 0, 1, 1], [], []>} : vector<256x128xbf16>, vector<128x128xbf16>, vector<256x128xf32> -> vector<256x128xf32>
    %13 = arith.truncf %12 : vector<256x128xf32> to vector<256x128xbf16>
    %c0_8 = arith.constant 0 : index
    %c0_9 = arith.constant 0 : index
    %14 = vector.load %arg5[%c0_8, %c0_9] : memref<256x128xbf16, #tpu.memory_space<vmem>>, vector<256x128xbf16>
    tpu.vector_store %arg5[%c0_8, %c0_9], %13 {strides = array<i32>} : memref<256x128xbf16, #tpu.memory_space<vmem>>, vector<256x128xbf16>,
    %cst_10 = arith.constant dense<0.000000e+00> : vector<128xf32>
    %15 = vector.multi_reduction <add>, %12, %cst_10 [0] : vector<256x128xf32> to vector<128xf32>
    %16 = vector.shape_cast %15 : vector<128xf32> to vector<1x128xf32>
    %17 = arith.mulf %12, %12 : vector<256x128xf32>
    %cst_11 = arith.constant dense<0.000000e+00> : vector<128xf32>
    %18 = vector.multi_reduction <add>, %17, %cst_11 [0] : vector<256x128xf32> to vector<128xf32>
    %19 = vector.shape_cast %18 : vector<128xf32> to vector<1x128xf32>
    %cst_12 = arith.constant 0.000000e+00 : f32
    %20 = vector.broadcast %cst_12 : f32 to vector<6x128xf32>
    %21 = tpu.concatenate %16, %19, %20 in 0 : vector<1x128xf32>, vector<1x128xf32>, vector<6x128xf32> -> vector<8x128xf32>
    %c0_13 = arith.constant 0 : index
    %c0_14 = arith.constant 0 : index
    %22 = vector.load %arg6[%c0_13, %c0_14] : memref<8x128xf32, #tpu.memory_space<vmem>>, vector<8x128xf32>
    tpu.vector_store %arg6[%c0_13, %c0_14], %21 {strides = array<i32>} : memref<8x128xf32, #tpu.memory_space<vmem>>, vector<8x128xf32>,
    return
  }
  func.func @transform_0(%arg0: i32) -> (i32, i32) {
    %c0_i32 = arith.constant 0 : i32
    %c0_i32_0 = arith.constant 0 : i32
    return %arg0, %c0_i32 : i32, i32
  }
  func.func @transform_1(%arg0: i32) -> (i32, i32) {
    %c0_i32 = arith.constant 0 : i32
    %c0_i32_0 = arith.constant 0 : i32
    %c0_i32_1 = arith.constant 0 : i32
    return %c0_i32, %c0_i32_0 : i32, i32
  }
  func.func @transform_2(%arg0: i32) -> (i32, i32) {
    %c0_i32 = arith.constant 0 : i32
    %c0_i32_0 = arith.constant 0 : i32
    %c0_i32_1 = arith.constant 0 : i32
    return %c0_i32, %c0_i32_0 : i32, i32
  }
  func.func @transform_3(%arg0: i32) -> (i32, i32) {
    %c0_i32 = arith.constant 0 : i32
    %c0_i32_0 = arith.constant 0 : i32
    %c0_i32_1 = arith.constant 0 : i32
    return %c0_i32, %c0_i32_0 : i32, i32
  }
  func.func @transform_4(%arg0: i32) -> (i32, i32) {
    %c0_i32 = arith.constant 0 : i32
    %c0_i32_0 = arith.constant 0 : i32
    return %arg0, %c0_i32 : i32, i32
  }
  func.func @transform_5(%arg0: i32) -> (i32, i32) {
    %c0_i32 = arith.constant 0 : i32
    %c0_i32_0 = arith.constant 0 : i32
    return %arg0, %c0_i32 : i32, i32
  }
}

module attributes {stable_mosaic.version = 11 : i64} {
  func.func @_residual_kernel(%arg0: i32, %arg1: memref<256x128xbf16, #tpu.memory_space<vmem>>, %arg2: memref<256x128xbf16, #tpu.memory_space<vmem>>, %arg3: memref<1x128xf32, #tpu.memory_space<vmem>>, %arg4: memref<1x128xf32, #tpu.memory_space<vmem>>, %arg5: memref<256x128xf32, #tpu.memory_space<vmem>>) attributes {dimension_semantics = [#tpu.dimension_semantics<parallel>], iteration_bounds = array<i64: 2>, scalar_prefetch = 0 : i64, scratch_operands = 0 : i64, tpu.core_type = #tpu.core_type<tc>, window_params = [{transform_indices = @transform_0, window_bounds = array<i64: 256, 128>}, {transform_indices = @transform_1, window_bounds = array<i64: 256, 128>}, {pipeline_mode = #tpu.pipeline_mode<synchronous>, transform_indices = @transform_2, window_bounds = array<i64: 1, 128>}, {pipeline_mode = #tpu.pipeline_mode<synchronous>, transform_indices = @transform_3, window_bounds = array<i64: 1, 128>}, {transform_indices = @transform_4, window_bounds = array<i64: 256, 128>}]} {
    %c0 = arith.constant 0 : index
    %c0_0 = arith.constant 0 : index
    %0 = vector.load %arg1[%c0, %c0_0] : memref<256x128xbf16, #tpu.memory_space<vmem>>, vector<256x128xbf16>
    %1 = arith.extf %0 : vector<256x128xbf16> to vector<256x128xf32>
    %c0_1 = arith.constant 0 : index
    %c0_2 = arith.constant 0 : index
    %2 = vector.load %arg3[%c0_1, %c0_2] : memref<1x128xf32, #tpu.memory_space<vmem>>, vector<1x128xf32>
    %3 = vector.broadcast %2 : vector<1x128xf32> to vector<256x128xf32>
    %4 = arith.mulf %1, %3 : vector<256x128xf32>
    %c0_3 = arith.constant 0 : index
    %c0_4 = arith.constant 0 : index
    %5 = vector.load %arg4[%c0_3, %c0_4] : memref<1x128xf32, #tpu.memory_space<vmem>>, vector<1x128xf32>
    %6 = vector.broadcast %5 : vector<1x128xf32> to vector<256x128xf32>
    %7 = arith.addf %4, %6 : vector<256x128xf32>
    %c0_5 = arith.constant 0 : index
    %c0_6 = arith.constant 0 : index
    %8 = vector.load %arg2[%c0_5, %c0_6] : memref<256x128xbf16, #tpu.memory_space<vmem>>, vector<256x128xbf16>
    %9 = arith.extf %8 : vector<256x128xbf16> to vector<256x128xf32>
    %10 = arith.addf %7, %9 : vector<256x128xf32>
    %cst = arith.constant 0.000000e+00 : f32
    %11 = vector.broadcast %cst : f32 to vector<256x128xf32>
    %12 = arith.maximumf %10, %11 : vector<256x128xf32>
    %c0_7 = arith.constant 0 : index
    %c0_8 = arith.constant 0 : index
    %13 = vector.load %arg5[%c0_7, %c0_8] : memref<256x128xf32, #tpu.memory_space<vmem>>, vector<256x128xf32>
    tpu.vector_store %arg5[%c0_7, %c0_8], %12 {strides = array<i32>} : memref<256x128xf32, #tpu.memory_space<vmem>>, vector<256x128xf32>,
    return
  }
  func.func @transform_0(%arg0: i32) -> (i32, i32) {
    %c0_i32 = arith.constant 0 : i32
    %c0_i32_0 = arith.constant 0 : i32
    return %arg0, %c0_i32 : i32, i32
  }
  func.func @transform_1(%arg0: i32) -> (i32, i32) {
    %c0_i32 = arith.constant 0 : i32
    %c0_i32_0 = arith.constant 0 : i32
    return %arg0, %c0_i32 : i32, i32
  }
  func.func @transform_2(%arg0: i32) -> (i32, i32) {
    %c0_i32 = arith.constant 0 : i32
    %c0_i32_0 = arith.constant 0 : i32
    %c0_i32_1 = arith.constant 0 : i32
    return %c0_i32, %c0_i32_0 : i32, i32
  }
  func.func @transform_3(%arg0: i32) -> (i32, i32) {
    %c0_i32 = arith.constant 0 : i32
    %c0_i32_0 = arith.constant 0 : i32
    %c0_i32_1 = arith.constant 0 : i32
    return %c0_i32, %c0_i32_0 : i32, i32
  }
  func.func @transform_4(%arg0: i32) -> (i32, i32) {
    %c0_i32 = arith.constant 0 : i32
    %c0_i32_0 = arith.constant 0 : i32
    return %arg0, %c0_i32 : i32, i32
  }
}

</mosaic_0001>

<llo_original>
// kernel: bottleneck_forward.7
$region0: #{bottleneck_forward.7}
  #allocation0 [shape = 'u32[]', space=smem, size = 0x4, offset = 0x4, fixed_abs, tag = 'smem constant byte address 0x4 - core index']
  #allocation1 [shape = 'u32[144,128]{1,0:T(1,128)}', space=vmem, size = 0x12000, scoped, tag = 'internal scratch']
  %s0 = inlined_call_operand.hbm [shape: bf16[512,128], index: 0, kind: input, shape index: {}]
  %s1 = inlined_call_operand.hbm [shape: bf16[512,128], index: 1, kind: input, shape index: {}]
  %s2 = inlined_call_operand.hbm [shape: f32[1,128], index: 2, kind: input, shape index: {}]
  %s3 = inlined_call_operand.hbm [shape: f32[1,128], index: 3, kind: input, shape index: {}]
  %s4 = inlined_call_operand.hbm [shape: f32[512,128], index: 4, kind: output, shape index: {}]
  %s5 = sld [smem:[#allocation0]]
  $region65: #{bottleneck_forward.7} parent=0
    _
  %s7 = ssub.s32 1, %s5
  %s8 = scalar_select 0, %s7, %s5
  $region1: #{bottleneck_forward.7} parent=0
    #allocation2 [shape = 'u8[131072]{0}', space=vmem, size = 0x20000, scoped, tag = 'input window, operand 0']
    #allocation3 [shape = 's32[2]{0}', space=sflag, size = 0x8, scoped, tag = 'scoped memory for bottleneck_forward.7']
    #allocation4 [shape = 's32[2]{0}', space=sflag, size = 0x8, scoped, tag = 'scoped memory for bottleneck_forward.7']
    #allocation5 [shape = 'u8[131072]{0}', space=vmem, size = 0x20000, scoped, tag = 'input window, operand 1']
    #allocation6 [shape = 's32[2]{0}', space=sflag, size = 0x8, scoped, tag = 'scoped memory for bottleneck_forward.7']
    #allocation7 [shape = 'u8[512]{0}', space=vmem, size = 0x400, scoped, tag = 'input window, operand 2, single buffered']
    #allocation8 [shape = 'u8[512]{0}', space=vmem, size = 0x400, scoped, tag = 'input window, operand 3, single buffered']
    #allocation9 [shape = 's32[1]{0}', space=sflag, size = 0x4, scoped, tag = 'scoped memory for bottleneck_forward.7']
    #allocation10 [shape = 'u8[262144]{0}', space=vmem, size = 0x40000, scoped, tag = 'output window, operand 0']
    %9 = vsyncpa [#allocation3], 0
    %s10 = scalar_lea.sflag [#allocation3], 1
    %11 = vsyncpa %s10, 0
    %12 = vsyncpa [#allocation6], 0
    %s13 = scalar_lea.sflag [#allocation6], 1
    %14 = vsyncpa %s13, 0
    %15 = vsyncpa [#allocation9], 0
    %16 = vsyncpa [#allocation4], 0
    %s17 = scalar_lea.sflag [#allocation4], 1
    %18 = vsyncpa %s17, 0
    loop: start=0, step=1, limit=4
    $region2: #{bottleneck_forward.7} parent=1 // loop_pre_header
      _
    $region3: #{bottleneck_forward.7} parent=1 // loop_header
      %s20 = sphi 0, %s24
      %p21 = scmp.ge.s32.totalorder %s20, 4
      %s30 = sphi 0, %s32
      %s33 = sphi 0, %s30
      %s34 = sphi 0, %s33
      %s50 = sphi 0, %s34
      %s56 = sphi 0, %s58
      %s59 = sphi 0, %s56
      %s60 = sphi 0, %s59
      %s76 = sphi 0, %s60
      %s80 = sphi 0, %s80
      %s82 = sphi 0, %s80
      %s83 = sphi 0, %s82
      %s97 = sphi 0, %s83
      %s101 = sphi 0, %s101
      %s103 = sphi 0, %s101
      %s104 = sphi 0, %s103
      %s118 = sphi 0, %s104
      %s124 = sphi 0, %s126
      %s127 = sphi 0, %s124
      %s128 = sphi 0, %s127
      %s144 = sphi 0, %s128
    $region4: #{bottleneck_forward.7} parent=1 // loop_header_branch
      %23 = sbr.rel (%p21) target = $region8
    $region5: #{bottleneck_forward.7} parent=1 // loop_body
      %s25 = ssub.s32 %s20, 1
      %s26 = ssub.s32 %s20, 2
      %s27 = sadd.s32 %s20, 1
      %s28 = ssub.s32 %s20, %s27
      %p29 = scmp.eq.s32.totalorder %s28, 0
      %s31 = sadd.s32 %s30, 1
      %s32 = scalar_select %p29, %s30, %s31
      %p35 = pneg %p29
      %p36 = scmp.eq.s32.totalorder %s20, 1
      %p37 = por %p35, %p36
      %p38 = scmp.ne.s32.totalorder %s30, %s33
      %p39 = scmp.eq.s32.totalorder %s20, 0
      %p40 = por %p38, %p39
      %p41 = scmp.ne.s32.totalorder %s30, %s33
      %p42 = scmp.eq.s32.totalorder %s25, 1
      %p43 = por %p41, %p42
      %p44 = scmp.ne.s32.totalorder %s33, %s34
      %p45 = scmp.eq.s32.totalorder %s25, 0
      %p46 = por %p44, %p45
      %p47 = scmp.ne.s32.totalorder %s33, %s34
      %p48 = scmp.eq.s32.totalorder %s26, 1
      %p49 = por %p47, %p48
      %p51 = scmp.ne.s32.totalorder %s34, %s50
      %p52 = scmp.eq.s32.totalorder %s26, 0
      %p53 = por %p51, %p52
      %s54 = ssub.s32 %s20, %s27
      %p55 = scmp.eq.s32.totalorder %s54, 0
      %s57 = sadd.s32 %s56, 1
      %s58 = scalar_select %p55, %s56, %s57
      %p61 = pneg %p55
      %p62 = scmp.eq.s32.totalorder %s20, 1
      %p63 = por %p61, %p62
      %p64 = scmp.ne.s32.totalorder %s56, %s59
      %p65 = scmp.eq.s32.totalorder %s20, 0
      %p66 = por %p64, %p65
      %p67 = scmp.ne.s32.totalorder %s56, %s59
      %p68 = scmp.eq.s32.totalorder %s25, 1
      %p69 = por %p67, %p68
      %p70 = scmp.ne.s32.totalorder %s59, %s60
      %p71 = scmp.eq.s32.totalorder %s25, 0
      %p72 = por %p70, %p71
      %p73 = scmp.ne.s32.totalorder %s59, %s60
      %p74 = scmp.eq.s32.totalorder %s26, 1
      %p75 = por %p73, %p74
      %p77 = scmp.ne.s32.totalorder %s60, %s76
      %p78 = scmp.eq.s32.totalorder %s26, 0
      %p79 = por %p77, %p78
      %s81 = sadd.s32 %s80, 1
      %p84 = scmp.eq.s32.totalorder %s20, 1
      %p85 = scmp.ne.s32.totalorder %s80, %s82
      %p86 = scmp.eq.s32.totalorder %s20, 0
      %p87 = por %p85, %p86
      %p88 = scmp.ne.s32.totalorder %s80, %s82
      %p89 = scmp.eq.s32.totalorder %s25, 1
      %p90 = por %p88, %p89
      %p91 = scmp.ne.s32.totalorder %s82, %s83
      %p92 = scmp.eq.s32.totalorder %s25, 0
      %p93 = por %p91, %p92
      %p94 = scmp.ne.s32.totalorder %s82, %s83
      %p95 = scmp.eq.s32.totalorder %s26, 1
      %p96 = por %p94, %p95
      %p98 = scmp.ne.s32.totalorder %s83, %s97
      %p99 = scmp.eq.s32.totalorder %s26, 0
      %p100 = por %p98, %p99
      %s102 = sadd.s32 %s101, 1
      %p105 = scmp.eq.s32.totalorder %s20, 1
      %p106 = scmp.ne.s32.totalorder %s101, %s103
      %p107 = scmp.eq.s32.totalorder %s20, 0
      %p108 = por %p106, %p107
      %p109 = scmp.ne.s32.totalorder %s101, %s103
      %p110 = scmp.eq.s32.totalorder %s25, 1
      %p111 = por %p109, %p110
      %p112 = scmp.ne.s32.totalorder %s103, %s104
      %p113 = scmp.eq.s32.totalorder %s25, 0
      %p114 = por %p112, %p113
      %p115 = scmp.ne.s32.totalorder %s103, %s104
      %p116 = scmp.eq.s32.totalorder %s26, 1
      %p117 = por %p115, %p116
      %p119 = scmp.ne.s32.totalorder %s104, %s118
      %p120 = scmp.eq.s32.totalorder %s26, 0
      %p121 = por %p119, %p120
      %s122 = ssub.s32 %s20, %s27
      %p123 = scmp.eq.s32.totalorder %s122, 0
      %s125 = sadd.s32 %s124, 1
      %s126 = scalar_select %p123, %s124, %s125
      %p129 = pneg %p123
      %p130 = scmp.eq.s32.totalorder %s20, 1
      %p131 = por %p129, %p130
      %p132 = scmp.ne.s32.totalorder %s124, %s127
      %p133 = scmp.eq.s32.totalorder %s20, 0
      %p134 = por %p132, %p133
      %p135 = scmp.ne.s32.totalorder %s124, %s127
      %p136 = scmp.eq.s32.totalorder %s25, 1
      %p137 = por %p135, %p136
      %p138 = scmp.ne.s32.totalorder %s127, %s128
      %p139 = scmp.eq.s32.totalorder %s25, 0
      %p140 = por %p138, %p139
      %p141 = scmp.ne.s32.totalorder %s127, %s128
      %p142 = scmp.eq.s32.totalorder %s26, 1
      %p143 = por %p141, %p142
      %p145 = scmp.ne.s32.totalorder %s128, %s144
      %p146 = scmp.eq.s32.totalorder %s26, 0
      %p147 = por %p145, %p146
      %p148 = scmp.le.s32.totalorder 1, %s20
      %p149 = scmp.lt.s32.totalorder %s20, 3
      %p150 = pnand %p148, %p149
      %p151 = pneg %p150
      // Predicated region
      $region9: #{bottleneck_forward.7} parent=5 // pred_check
        _
      $region10: #{bottleneck_forward.7} parent=5 // pred_check_branch
        %153 = sbr.rel (%p150) target = $region12
      $region11: #{bottleneck_forward.7} parent=5 // pred_region
        %s154 = ssub.s32 %s20, 1
        // Predicated region
        $region13: #{bottleneck_forward.7} parent=11 // pred_check
          %p155 = pneg %p93
        $region14: #{bottleneck_forward.7} parent=11 // pred_check_branch
          %157 = sbr.rel (%p155) target = $region16
        $region15: #{bottleneck_forward.7} parent=11 // pred_region
          %s159 = ssub.s32 16, 16
          %160 = vsyncadd [#allocation6], %s159
          %s162 = sshll.u32 [#allocation7], 4
          %s163 = int_to_ptr.vmem [resolvable:$true] %s162
          %165 = dma.hbm_to_vmem [thread:$0]  %s2, 16, %s163, [#allocation6]
        $region16: #{bottleneck_forward.7} parent=11 // pred_fallthru
          _
        // Predicated region
        $region17: #{bottleneck_forward.7} parent=11 // pred_check
          %p166 = pneg %p114
        $region18: #{bottleneck_forward.7} parent=11 // pred_check_branch
          %168 = sbr.rel (%p166) target = $region20
        $region19: #{bottleneck_forward.7} parent=11 // pred_region
          %s170 = ssub.s32 16, 16
          %171 = vsyncadd [#allocation9], %s170
          %s173 = sshll.u32 [#allocation8], 4
          %s174 = int_to_ptr.vmem [resolvable:$true] %s173
          %176 = dma.hbm_to_vmem [thread:$0]  %s3, 16, %s174, [#allocation9]
        $region20: #{bottleneck_forward.7} parent=11 // pred_fallthru
          _
      $region12: #{bottleneck_forward.7} parent=5 // pred_fallthru
        _
      %p177 = scmp.lt.s32.totalorder %s20, 2
      // Predicated region
      $region21: #{bottleneck_forward.7} parent=5 // pred_check
        %p178 = pneg %p177
      $region22: #{bottleneck_forward.7} parent=5 // pred_check_branch
        %180 = sbr.rel (%p178) target = $region24
      $region23: #{bottleneck_forward.7} parent=5 // pred_region
        // Predicated region
        $region25: #{bottleneck_forward.7} parent=23 // pred_check
          %p181 = pneg %p40
        $region26: #{bottleneck_forward.7} parent=23 // pred_check_branch
          %183 = sbr.rel (%p181) target = $region28
        $region27: #{bottleneck_forward.7} parent=23 // pred_region
          %s184 = sand.u32 %s30, 1
          %s185 = scalar_lea.sflag [#allocation3], %s184
          %s186 = sand.u32 %s30, 1
          %s187 = smul.addr %s186, 128
          %s188 = scalar_lea.vmem [#allocation2], %s187
          %s189 = smul.u32 32, %s20
          %s191 = ssub.s32 2048, 2048
          %192 = vsyncadd %s185, %s191
          %s193 = smul.addr %s189, 64
          %s194 = scalar_lea.hbm %s0, %s193
          %s195 = sshll.u32 %s188, 4
          %s196 = int_to_ptr.vmem [resolvable:$true] %s195
          %201 = dma.hbm_to_vmem [thread:$0]  %s194, 2048, %s196, %s185, 64, 64, 4
        $region28: #{bottleneck_forward.7} parent=23 // pred_fallthru
          _
        // Predicated region
        $region29: #{bottleneck_forward.7} parent=23 // pred_check
          %p202 = pneg %p66
        $region30: #{bottleneck_forward.7} parent=23 // pred_check_branch
          %204 = sbr.rel (%p202) target = $region32
        $region31: #{bottleneck_forward.7} parent=23 // pred_region
          %s205 = sand.u32 %s20, 1
          %s206 = scalar_lea.sflag [#allocation6], %s205
          %s207 = sand.u32 %s56, 1
          %s208 = smul.addr %s207, 128
          %s209 = scalar_lea.vmem [#allocation5], %s208
          %s210 = smul.u32 32, %s20
          %s212 = ssub.s32 2048, 2048
          %213 = vsyncadd %s206, %s212
          %s214 = smul.addr %s210, 64
          %s215 = scalar_lea.hbm %s1, %s214
          %s216 = sshll.u32 %s209, 4
          %s217 = int_to_ptr.vmem [resolvable:$true] %s216
          %222 = dma.hbm_to_vmem [thread:$0]  %s215, 2048, %s217, %s206, 64, 64, 4
        $region32: #{bottleneck_forward.7} parent=23 // pred_fallthru
          _
      $region24: #{bottleneck_forward.7} parent=5 // pred_fallthru
        _
      %p223 = scmp.le.s32.totalorder 1, %s20
      %p224 = scmp.lt.s32.totalorder %s20, 3
      %p225 = pnand %p223, %p224
      %p226 = pneg %p225
      // Predicated region
      $region33: #{bottleneck_forward.7} parent=5 // pred_check
        _
      $region34: #{bottleneck_forward.7} parent=5 // pred_check_branch
        %228 = sbr.rel (%p225) target = $region36
      $region35: #{bottleneck_forward.7} parent=5 // pred_region
        %s229 = ssub.s32 %s20, 1
        %s230 = sand.u32 %s33, 1
        %s231 = scalar_lea.sflag [#allocation3], %s230
        %s232 = sand.u32 %s33, 1
        %s233 = smul.addr %s232, 128
        %s234 = scalar_lea.vmem [#allocation2], %s233
        // Predicated region
        $region37: #{bottleneck_forward.7} parent=35 // pred_check
          %p235 = pneg %p46
        $region38: #{bottleneck_forward.7} parent=35 // pred_check_branch
          %237 = sbr.rel (%p235) target = $region40
        $region39: #{bottleneck_forward.7} parent=35 // pred_region
          %238 = dma.done %s231, 2048
        $region40: #{bottleneck_forward.7} parent=35 // pred_fallthru
          _
        %s239 = sand.u32 %s25, 1
        %s240 = scalar_lea.sflag [#allocation6], %s239
        %s241 = sand.u32 %s59, 1
        %s242 = smul.addr %s241, 128
        %s243 = scalar_lea.vmem [#allocation5], %s242
        // Predicated region
        $region41: #{bottleneck_forward.7} parent=35 // pred_check
          %p244 = pneg %p72
        $region42: #{bottleneck_forward.7} parent=35 // pred_check_branch
          %246 = sbr.rel (%p244) target = $region44
        $region43: #{bottleneck_forward.7} parent=35 // pred_region
          %247 = dma.done %s240, 2048
        $region44: #{bottleneck_forward.7} parent=35 // pred_fallthru
          _
        // Predicated region
        $region45: #{bottleneck_forward.7} parent=35 // pred_check
          %p248 = pneg %p93
        $region46: #{bottleneck_forward.7} parent=35 // pred_check_branch
          %250 = sbr.rel (%p248) target = $region48
        $region47: #{bottleneck_forward.7} parent=35 // pred_region
          %251 = dma.done [#allocation6], 16
        $region48: #{bottleneck_forward.7} parent=35 // pred_fallthru
          _
        // Predicated region
        $region49: #{bottleneck_forward.7} parent=35 // pred_check
          %p252 = pneg %p114
        $region50: #{bottleneck_forward.7} parent=35 // pred_check_branch
          %254 = sbr.rel (%p252) target = $region52
        $region51: #{bottleneck_forward.7} parent=35 // pred_region
          %255 = dma.done [#allocation9], 16
        $region52: #{bottleneck_forward.7} parent=35 // pred_fallthru
          _
        %s256 = sand.u32 %s33, 1
        %s257 = scalar_lea.sflag [#allocation3], %s256
        %s258 = sand.u32 %s33, 1
        %s259 = smul.addr %s258, 128
        %s260 = scalar_lea.vmem [#allocation2], %s259
        %p261 = pneg %p46
        %p262 = pneg %p43
        %s263 = sand.u32 %s25, 1
        %s264 = scalar_lea.sflag [#allocation6], %s263
        %s265 = sand.u32 %s59, 1
        %s266 = smul.addr %s265, 128
        %s267 = scalar_lea.vmem [#allocation5], %s266
        %p268 = pneg %p72
        %p269 = pneg %p69
        %p270 = pneg %p93
        %p271 = pneg %p90
        %p272 = pneg %p114
        %p273 = pneg %p111
        %p274 = pneg %p140
        %p275 = pneg %p137
        %s276 = sand.u32 %s127, 1
        %s277 = scalar_lea.sflag [#allocation4], %s276
        %s278 = sand.u32 %s127, 1
        %s279 = smul.addr %s278, 256
        %s280 = scalar_lea.vmem [#allocation10], %s279
        %s281 = smul.u32 32, %s25
        %s282 = smul.u32 32, %s25
        %s283 = smul.u32 32, %s25
        %v284 = vld [vmem:[%s234] sm:$0xf]
        %v285 = vld [vmem:[%s234 + $0x4] sm:$0xf]
        %v286 = vld [vmem:[%s234 + $0x8] sm:$0xf]
        %v287 = vld [vmem:[%s234 + $0xc] sm:$0xf]
        %v288 = vld [vmem:[%s234 + $0x10] sm:$0xf]
        %v289 = vld [vmem:[%s234 + $0x14] sm:$0xf]
        %v290 = vld [vmem:[%s234 + $0x18] sm:$0xf]
        %v291 = vld [vmem:[%s234 + $0x1c] sm:$0xf]
        %v292 = vld [vmem:[%s234 + $0x20] sm:$0xf]
        %v293 = vld [vmem:[%s234 + $0x24] sm:$0xf]
        %v294 = vld [vmem:[%s234 + $0x28] sm:$0xf]
        %v295 = vld [vmem:[%s234 + $0x2c] sm:$0xf]
        %v296 = vld [vmem:[%s234 + $0x30] sm:$0xf]
        %v297 = vld [vmem:[%s234 + $0x34] sm:$0xf]
        %v298 = vld [vmem:[%s234 + $0x38] sm:$0xf]
        %v299 = vld [vmem:[%s234 + $0x3c] sm:$0xf]
        %v300 = vld [vmem:[%s234 + $0x40] sm:$0xf]
        %v301 = vld [vmem:[%s234 + $0x44] sm:$0xf]
        %v302 = vld [vmem:[%s234 + $0x48] sm:$0xf]
        %v303 = vld [vmem:[%s234 + $0x4c] sm:$0xf]
        %v304 = vld [vmem:[%s234 + $0x50] sm:$0xf]
        %v305 = vld [vmem:[%s234 + $0x54] sm:$0xf]
        %v306 = vld [vmem:[%s234 + $0x58] sm:$0xf]
        %v307 = vld [vmem:[%s234 + $0x5c] sm:$0xf]
        %v308 = vld [vmem:[%s234 + $0x60] sm:$0xf]
        %v309 = vld [vmem:[%s234 + $0x64] sm:$0xf]
        %v310 = vld [vmem:[%s234 + $0x68] sm:$0xf]
        %v311 = vld [vmem:[%s234 + $0x6c] sm:$0xf]
        %v312 = vld [vmem:[%s234 + $0x70] sm:$0xf]
        %v313 = vld [vmem:[%s234 + $0x74] sm:$0xf]
        %v314 = vld [vmem:[%s234 + $0x78] sm:$0xf]
        %v315 = vld [vmem:[%s234 + $0x7c] sm:$0xf]
        %v316 = vunpack.c.l.bf16 %v284
        %v317 = vunpack.c.l.bf16 %v285
        %v318 = vunpack.c.l.bf16 %v286
        %v319 = vunpack.c.l.bf16 %v287
        %v320 = vunpack.c.l.bf16 %v288
        %v321 = vunpack.c.l.bf16 %v289
        %v322 = vunpack.c.l.bf16 %v290
        %v323 = vunpack.c.l.bf16 %v291
        %v324 = vunpack.c.l.bf16 %v292
        %v325 = vunpack.c.l.bf16 %v293
        %v326 = vunpack.c.l.bf16 %v294
        %v327 = vunpack.c.l.bf16 %v295
        %v328 = vunpack.c.l.bf16 %v296
        %v329 = vunpack.c.l.bf16 %v297
        %v330 = vunpack.c.l.bf16 %v298
        %v331 = vunpack.c.l.bf16 %v299
        %v332 = vunpack.c.l.bf16 %v300
        %v333 = vunpack.c.l.bf16 %v301
        %v334 = vunpack.c.l.bf16 %v302
        %v335 = vunpack.c.l.bf16 %v303
        %v336 = vunpack.c.l.bf16 %v304
        %v337 = vunpack.c.l.bf16 %v305
        %v338 = vunpack.c.l.bf16 %v306
        %v339 = vunpack.c.l.bf16 %v307
        %v340 = vunpack.c.l.bf16 %v308
        %v341 = vunpack.c.l.bf16 %v309
        %v342 = vunpack.c.l.bf16 %v310
        %v343 = vunpack.c.l.bf16 %v311
        %v344 = vunpack.c.l.bf16 %v312
        %v345 = vunpack.c.l.bf16 %v313
        %v346 = vunpack.c.l.bf16 %v314
        %v347 = vunpack.c.l.bf16 %v315
        %v348 = vld [vmem:[#allocation7] sm:$0x1]
        %v350 = vlaneseq
        %v351 = vshrl.u32 %v350, 7
        %v352 = vsub.s32 0, %v351
        %v353 = vrot.slane %v348, %v352
        %v355 = vmul.f32 %v316, %v353
        %v356 = vmul.f32 %v317, %v353
        %v357 = vmul.f32 %v318, %v353
        %v358 = vmul.f32 %v319, %v353
        %v359 = vmul.f32 %v320, %v353
        %v360 = vmul.f32 %v321, %v353
        %v361 = vmul.f32 %v322, %v353
        %v362 = vmul.f32 %v323, %v353
        %v363 = vmul.f32 %v324, %v353
        %v364 = vmul.f32 %v325, %v353
        %v365 = vmul.f32 %v326, %v353
        %v366 = vmul.f32 %v327, %v353
        %v367 = vmul.f32 %v328, %v353
        %v368 = vmul.f32 %v329, %v353
        %v369 = vmul.f32 %v330, %v353
        %v370 = vmul.f32 %v331, %v353
        %v371 = vmul.f32 %v332, %v353
        %v372 = vmul.f32 %v333, %v353
        %v373 = vmul.f32 %v334, %v353
        %v374 = vmul.f32 %v335, %v353
        %v375 = vmul.f32 %v336, %v353
        %v376 = vmul.f32 %v337, %v353
        %v377 = vmul.f32 %v338, %v353
        %v378 = vmul.f32 %v339, %v353
        %v379 = vmul.f32 %v340, %v353
        %v380 = vmul.f32 %v341, %v353
        %v381 = vmul.f32 %v342, %v353
        %v382 = vmul.f32 %v343, %v353
        %v383 = vmul.f32 %v344, %v353
        %v384 = vmul.f32 %v345, %v353
        %v385 = vmul.f32 %v346, %v353
        %v386 = vmul.f32 %v347, %v353
        %v387 = vld [vmem:[#allocation8] sm:$0x1]
        %v389 = vlaneseq
        %v390 = vshrl.u32 %v389, 7
        %v391 = vsub.s32 0, %v390
        %v392 = vrot.slane %v387, %v391
        %v394 = vadd.f32 %v355, %v392
        %v395 = vadd.f32 %v356, %v392
        %v396 = vadd.f32 %v357, %v392
        %v397 = vadd.f32 %v358, %v392
        %v398 = vadd.f32 %v359, %v392
        %v399 = vadd.f32 %v360, %v392
        %v400 = vadd.f32 %v361, %v392
        %v401 = vadd.f32 %v362, %v392
        %v402 = vadd.f32 %v363, %v392
        %v403 = vadd.f32 %v364, %v392
        %v404 = vadd.f32 %v365, %v392
        %v405 = vadd.f32 %v366, %v392
        %v406 = vadd.f32 %v367, %v392
        %v407 = vadd.f32 %v368, %v392
        %v408 = vadd.f32 %v369, %v392
        %v409 = vadd.f32 %v370, %v392
        %v410 = vadd.f32 %v371, %v392
        %v411 = vadd.f32 %v372, %v392
        %v412 = vadd.f32 %v373, %v392
        %v413 = vadd.f32 %v374, %v392
        %v414 = vadd.f32 %v375, %v392
        %v415 = vadd.f32 %v376, %v392
        %v416 = vadd.f32 %v377, %v392
        %v417 = vadd.f32 %v378, %v392
        %v418 = vadd.f32 %v379, %v392
        %v419 = vadd.f32 %v380, %v392
        %v420 = vadd.f32 %v381, %v392
        %v421 = vadd.f32 %v382, %v392
        %v422 = vadd.f32 %v383, %v392
        %v423 = vadd.f32 %v384, %v392
        %v424 = vadd.f32 %v385, %v392
        %v425 = vadd.f32 %v386, %v392
        %v426 = vld [vmem:[%s243] sm:$0xf]
        %v427 = vld [vmem:[%s243 + $0x4] sm:$0xf]
        %v428 = vld [vmem:[%s243 + $0x8] sm:$0xf]
        %v429 = vld [vmem:[%s243 + $0xc] sm:$0xf]
        %v430 = vld [vmem:[%s243 + $0x10] sm:$0xf]
        %v431 = vld [vmem:[%s243 + $0x14] sm:$0xf]
        %v432 = vld [vmem:[%s243 + $0x18] sm:$0xf]
        %v433 = vld [vmem:[%s243 + $0x1c] sm:$0xf]
        %v434 = vld [vmem:[%s243 + $0x20] sm:$0xf]
        %v435 = vld [vmem:[%s243 + $0x24] sm:$0xf]
        %v436 = vld [vmem:[%s243 + $0x28] sm:$0xf]
        %v437 = vld [vmem:[%s243 + $0x2c] sm:$0xf]
        %v438 = vld [vmem:[%s243 + $0x30] sm:$0xf]
        %v439 = vld [vmem:[%s243 + $0x34] sm:$0xf]
        %v440 = vld [vmem:[%s243 + $0x38] sm:$0xf]
        %v441 = vld [vmem:[%s243 + $0x3c] sm:$0xf]
        %v442 = vld [vmem:[%s243 + $0x40] sm:$0xf]
        %v443 = vld [vmem:[%s243 + $0x44] sm:$0xf]
        %v444 = vld [vmem:[%s243 + $0x48] sm:$0xf]
        %v445 = vld [vmem:[%s243 + $0x4c] sm:$0xf]
        %v446 = vld [vmem:[%s243 + $0x50] sm:$0xf]
        %v447 = vld [vmem:[%s243 + $0x54] sm:$0xf]
        %v448 = vld [vmem:[%s243 + $0x58] sm:$0xf]
        %v449 = vld [vmem:[%s243 + $0x5c] sm:$0xf]
        %v450 = vld [vmem:[%s243 + $0x60] sm:$0xf]
        %v451 = vld [vmem:[%s243 + $0x64] sm:$0xf]
        %v452 = vld [vmem:[%s243 + $0x68] sm:$0xf]
        %v453 = vld [vmem:[%s243 + $0x6c] sm:$0xf]
        %v454 = vld [vmem:[%s243 + $0x70] sm:$0xf]
        %v455 = vld [vmem:[%s243 + $0x74] sm:$0xf]
        %v456 = vld [vmem:[%s243 + $0x78] sm:$0xf]
        %v457 = vld [vmem:[%s243 + $0x7c] sm:$0xf]
        %v458 = vunpack.c.l.bf16 %v426
        %v459 = vunpack.c.l.bf16 %v427
        %v460 = vunpack.c.l.bf16 %v428
        %v461 = vunpack.c.l.bf16 %v429
        %v462 = vunpack.c.l.bf16 %v430
        %v463 = vunpack.c.l.bf16 %v431
        %v464 = vunpack.c.l.bf16 %v432
        %v465 = vunpack.c.l.bf16 %v433
        %v466 = vunpack.c.l.bf16 %v434
        %v467 = vunpack.c.l.bf16 %v435
        %v468 = vunpack.c.l.bf16 %v436
        %v469 = vunpack.c.l.bf16 %v437
        %v470 = vunpack.c.l.bf16 %v438
        %v471 = vunpack.c.l.bf16 %v439
        %v472 = vunpack.c.l.bf16 %v440
        %v473 = vunpack.c.l.bf16 %v441
        %v474 = vunpack.c.l.bf16 %v442
        %v475 = vunpack.c.l.bf16 %v443
        %v476 = vunpack.c.l.bf16 %v444
        %v477 = vunpack.c.l.bf16 %v445
        %v478 = vunpack.c.l.bf16 %v446
        %v479 = vunpack.c.l.bf16 %v447
        %v480 = vunpack.c.l.bf16 %v448
        %v481 = vunpack.c.l.bf16 %v449
        %v482 = vunpack.c.l.bf16 %v450
        %v483 = vunpack.c.l.bf16 %v451
        %v484 = vunpack.c.l.bf16 %v452
        %v485 = vunpack.c.l.bf16 %v453
        %v486 = vunpack.c.l.bf16 %v454
        %v487 = vunpack.c.l.bf16 %v455
        %v488 = vunpack.c.l.bf16 %v456
        %v489 = vunpack.c.l.bf16 %v457
        %v490 = vadd.f32 %v394, %v458
        %v491 = vadd.f32 %v395, %v459
        %v492 = vadd.f32 %v396, %v460
        %v493 = vadd.f32 %v397, %v461
        %v494 = vadd.f32 %v398, %v462
        %v495 = vadd.f32 %v399, %v463
        %v496 = vadd.f32 %v400, %v464
        %v497 = vadd.f32 %v401, %v465
        %v498 = vadd.f32 %v402, %v466
        %v499 = vadd.f32 %v403, %v467
        %v500 = vadd.f32 %v404, %v468
        %v501 = vadd.f32 %v405, %v469
        %v502 = vadd.f32 %v406, %v470
        %v503 = vadd.f32 %v407, %v471
        %v504 = vadd.f32 %v408, %v472
        %v505 = vadd.f32 %v409, %v473
        %v506 = vadd.f32 %v410, %v474
        %v507 = vadd.f32 %v411, %v475
        %v508 = vadd.f32 %v412, %v476
        %v509 = vadd.f32 %v413, %v477
        %v510 = vadd.f32 %v414, %v478
        %v511 = vadd.f32 %v415, %v479
        %v512 = vadd.f32 %v416, %v480
        %v513 = vadd.f32 %v417, %v481
        %v514 = vadd.f32 %v418, %v482
        %v515 = vadd.f32 %v419, %v483
        %v516 = vadd.f32 %v420, %v484
        %v517 = vadd.f32 %v421, %v485
        %v518 = vadd.f32 %v422, %v486
        %v519 = vadd.f32 %v423, %v487
        %v520 = vadd.f32 %v424, %v488
        %v521 = vadd.f32 %v425, %v489
        %v522 = vmax.f32 %v490, 0.0
        %v523 = vmax.f32 %v491, 0.0
        %v524 = vmax.f32 %v492, 0.0
        %v525 = vmax.f32 %v493, 0.0
        %v526 = vmax.f32 %v494, 0.0
        %v527 = vmax.f32 %v495, 0.0
        %v528 = vmax.f32 %v496, 0.0
        %v529 = vmax.f32 %v497, 0.0
        %v530 = vmax.f32 %v498, 0.0
        %v531 = vmax.f32 %v499, 0.0
        %v532 = vmax.f32 %v500, 0.0
        %v533 = vmax.f32 %v501, 0.0
        %v534 = vmax.f32 %v502, 0.0
        %v535 = vmax.f32 %v503, 0.0
        %v536 = vmax.f32 %v504, 0.0
        %v537 = vmax.f32 %v505, 0.0
        %v538 = vmax.f32 %v506, 0.0
        %v539 = vmax.f32 %v507, 0.0
        %v540 = vmax.f32 %v508, 0.0
        %v541 = vmax.f32 %v509, 0.0
        %v542 = vmax.f32 %v510, 0.0
        %v543 = vmax.f32 %v511, 0.0
        %v544 = vmax.f32 %v512, 0.0
        %v545 = vmax.f32 %v513, 0.0
        %v546 = vmax.f32 %v514, 0.0
        %v547 = vmax.f32 %v515, 0.0
        %v548 = vmax.f32 %v516, 0.0
        %v549 = vmax.f32 %v517, 0.0
        %v550 = vmax.f32 %v518, 0.0
        %v551 = vmax.f32 %v519, 0.0
        %v552 = vmax.f32 %v520, 0.0
        %v553 = vmax.f32 %v521, 0.0
        %554 = vst [vmem:[%s280] sm:$0xff] %v522
        %555 = vst [vmem:[%s280 + $0x8] sm:$0xff] %v523
        %556 = vst [vmem:[%s280 + $0x10] sm:$0xff] %v524
        %557 = vst [vmem:[%s280 + $0x18] sm:$0xff] %v525
        %558 = vst [vmem:[%s280 + $0x20] sm:$0xff] %v526
        %559 = vst [vmem:[%s280 + $0x28] sm:$0xff] %v527
        %560 = vst [vmem:[%s280 + $0x30] sm:$0xff] %v528
        %561 = vst [vmem:[%s280 + $0x38] sm:$0xff] %v529
        %562 = vst [vmem:[%s280 + $0x40] sm:$0xff] %v530
        %563 = vst [vmem:[%s280 + $0x48] sm:$0xff] %v531
        %564 = vst [vmem:[%s280 + $0x50] sm:$0xff] %v532
        %565 = vst [vmem:[%s280 + $0x58] sm:$0xff] %v533
        %566 = vst [vmem:[%s280 + $0x60] sm:$0xff] %v534
        %567 = vst [vmem:[%s280 + $0x68] sm:$0xff] %v535
        %568 = vst [vmem:[%s280 + $0x70] sm:$0xff] %v536
        %569 = vst [vmem:[%s280 + $0x78] sm:$0xff] %v537
        %570 = vst [vmem:[%s280 + $0x80] sm:$0xff] %v538
        %571 = vst [vmem:[%s280 + $0x88] sm:$0xff] %v539
        %572 = vst [vmem:[%s280 + $0x90] sm:$0xff] %v540
        %573 = vst [vmem:[%s280 + $0x98] sm:$0xff] %v541
        %574 = vst [vmem:[%s280 + $0xa0] sm:$0xff] %v542
        %575 = vst [vmem:[%s280 + $0xa8] sm:$0xff] %v543
        %576 = vst [vmem:[%s280 + $0xb0] sm:$0xff] %v544
        %577 = vst [vmem:[%s280 + $0xb8] sm:$0xff] %v545
        %578 = vst [vmem:[%s280 + $0xc0] sm:$0xff] %v546
        %579 = vst [vmem:[%s280 + $0xc8] sm:$0xff] %v547
        %580 = vst [vmem:[%s280 + $0xd0] sm:$0xff] %v548
        %581 = vst [vmem:[%s280 + $0xd8] sm:$0xff] %v549
        %582 = vst [vmem:[%s280 + $0xe0] sm:$0xff] %v550
        %583 = vst [vmem:[%s280 + $0xe8] sm:$0xff] %v551
        %584 = vst [vmem:[%s280 + $0xf0] sm:$0xff] %v552
        %585 = vst [vmem:[%s280 + $0xf8] sm:$0xff] %v553
        %s586 = sand.u32 %s127, 1
        %s587 = scalar_lea.sflag [#allocation4], %s586
        %s588 = sand.u32 %s127, 1
        %s589 = smul.addr %s588, 256
        %s590 = scalar_lea.vmem [#allocation10], %s589
        // Predicated region
        $region53: #{bottleneck_forward.7} parent=35 // pred_check
          %p591 = pneg %p137
        $region54: #{bottleneck_forward.7} parent=35 // pred_check_branch
          %593 = sbr.rel (%p591) target = $region56
        $region55: #{bottleneck_forward.7} parent=35 // pred_region
          %s594 = smul.u32 32, %s25
          %s596 = ssub.s32 4096, 4096
          %597 = vsyncadd %s587, %s596
          %s598 = smul.addr %s594, 128
          %s599 = scalar_lea.hbm %s4, %s598
          %s600 = sshll.u32 %s590, 4
          %s601 = int_to_ptr.vmem [resolvable:$true] %s600
          %606 = dma.vmem_to_hbm [thread:$0]  %s601, 4096, %s599, %s587, 128, 128, 8
        $region56: #{bottleneck_forward.7} parent=35 // pred_fallthru
          _
      $region36: #{bottleneck_forward.7} parent=5 // pred_fallthru
        _
      %p607 = scmp.le.s32.totalorder 2, %s20
      // Predicated region
      $region57: #{bottleneck_forward.7} parent=5 // pred_check
        %p608 = pneg %p607
      $region58: #{bottleneck_forward.7} parent=5 // pred_check_branch
        %610 = sbr.rel (%p608) target = $region60
      $region59: #{bottleneck_forward.7} parent=5 // pred_region
        %s611 = ssub.s32 %s20, 2
        // Predicated region
        $region61: #{bottleneck_forward.7} parent=59 // pred_check
          %p612 = pneg %p143
        $region62: #{bottleneck_forward.7} parent=59 // pred_check_branch
          %614 = sbr.rel (%p612) target = $region64
        $region63: #{bottleneck_forward.7} parent=59 // pred_region
          %s615 = sand.u32 %s128, 1
          %s616 = scalar_lea.sflag [#allocation4], %s615
          %s617 = sand.u32 %s128, 1
          %s618 = smul.addr %s617, 256
          %s619 = scalar_lea.vmem [#allocation10], %s618
          %620 = dma.done %s616, 4096
        $region64: #{bottleneck_forward.7} parent=59 // pred_fallthru
          _
      $region60: #{bottleneck_forward.7} parent=5 // pred_fallthru
        _
    $region6: #{bottleneck_forward.7} parent=1 // loop_footer
      %s24 = sadd.s32 1, %s20
    $region7: #{bottleneck_forward.7} parent=1 // loop_footer_branch
      %19 = sbr.rel target = $region3
    $region8: #{bottleneck_forward.7} parent=1 // loop_exit
      _
    %621 = vsyncpa [#allocation3], 1
    %s622 = scalar_lea.sflag [#allocation3], 1
    %623 = vsyncpa %s622, 1
    %624 = vsyncpa [#allocation6], 1
    %s625 = scalar_lea.sflag [#allocation6], 1
    %626 = vsyncpa %s625, 1
    %627 = vsyncpa [#allocation9], 1
    %628 = vsyncpa [#allocation4], 1
    %s629 = scalar_lea.sflag [#allocation4], 1
    %630 = vsyncpa %s629, 1

// kernel: bottleneck_forward.4
$region0: #{bottleneck_forward.4}
  #allocation0 [shape = 'u32[]', space=smem, size = 0x4, offset = 0x4, fixed_abs, tag = 'smem constant byte address 0x4 - core index']
  #allocation1 [shape = 'u32[144,128]{1,0:T(1,128)}', space=vmem, size = 0x12000, scoped, tag = 'internal scratch']
  %s0 = inlined_call_operand.hbm [shape: bf16[512,128], index: 0, kind: input, shape index: {}]
  %s1 = inlined_call_operand.hbm [shape: bf16[128,128], index: 1, kind: input, shape index: {}]
  %s2 = inlined_call_operand.hbm [shape: bf16[512,128], index: 2, kind: output, shape index: {0}]
  %s3 = inlined_call_operand.hbm [shape: f32[16,128], index: 3, kind: output, shape index: {1}]
  %4 = xla_tuple %s2, %s3
  %s5 = sld [smem:[#allocation0]]
  $region57: #{bottleneck_forward.4} parent=0
    _
  %s7 = ssub.s32 1, %s5
  %s8 = scalar_select 0, %s7, %s5
  $region1: #{bottleneck_forward.4} parent=0
    #allocation2 [shape = 'u8[131072]{0}', space=vmem, size = 0x20000, scoped, tag = 'input window, operand 0']
    #allocation3 [shape = 's32[2]{0}', space=sflag, size = 0x8, scoped, tag = 'scoped memory for bottleneck_forward.4']
    #allocation4 [shape = 's32[2]{0}', space=sflag, size = 0x8, scoped, tag = 'scoped memory for bottleneck_forward.4']
    #allocation5 [shape = 'u8[32768]{0}', space=vmem, size = 0x8000, scoped, tag = 'input window, operand 1, single buffered']
    #allocation6 [shape = 's32[1]{0}', space=sflag, size = 0x4, scoped, tag = 'scoped memory for bottleneck_forward.4']
    #allocation7 [shape = 'u8[131072]{0}', space=vmem, size = 0x20000, scoped, tag = 'output window, operand 0']
    #allocation8 [shape = 'u8[8192]{0}', space=vmem, size = 0x2000, scoped, tag = 'output window, operand 1']
    #allocation9 [shape = 's32[2]{0}', space=sflag, size = 0x8, scoped, tag = 'scoped memory for bottleneck_forward.4']
    %9 = vsyncpa [#allocation3], 0
    %s10 = scalar_lea.sflag [#allocation3], 1
    %11 = vsyncpa %s10, 0
    %12 = vsyncpa [#allocation6], 0
    %13 = vsyncpa [#allocation4], 0
    %s14 = scalar_lea.sflag [#allocation4], 1
    %15 = vsyncpa %s14, 0
    %16 = vsyncpa [#allocation9], 0
    %s17 = scalar_lea.sflag [#allocation9], 1
    %18 = vsyncpa %s17, 0
    loop: start=0, step=1, limit=4
    $region2: #{bottleneck_forward.4} parent=1 // loop_pre_header
      _
    $region3: #{bottleneck_forward.4} parent=1 // loop_header
      %s20 = sphi 0, %s24
      %p21 = scmp.ge.s32.totalorder %s20, 4
      %s30 = sphi 0, %s32
      %s33 = sphi 0, %s30
      %s34 = sphi 0, %s33
      %s50 = sphi 0, %s34
      %s54 = sphi 0, %s54
      %s56 = sphi 0, %s54
      %s57 = sphi 0, %s56
      %s71 = sphi 0, %s57
      %s77 = sphi 0, %s79
      %s80 = sphi 0, %s77
      %s81 = sphi 0, %s80
      %s97 = sphi 0, %s81
      %s103 = sphi 0, %s105
      %s106 = sphi 0, %s103
      %s107 = sphi 0, %s106
      %s123 = sphi 0, %s107
    $region4: #{bottleneck_forward.4} parent=1 // loop_header_branch
      %23 = sbr.rel (%p21) target = $region8
    $region5: #{bottleneck_forward.4} parent=1 // loop_body
      %s25 = ssub.s32 %s20, 1
      %s26 = ssub.s32 %s20, 2
      %s27 = sadd.s32 %s20, 1
      %s28 = ssub.s32 %s20, %s27
      %p29 = scmp.eq.s32.totalorder %s28, 0
      %s31 = sadd.s32 %s30, 1
      %s32 = scalar_select %p29, %s30, %s31
      %p35 = pneg %p29
      %p36 = scmp.eq.s32.totalorder %s20, 1
      %p37 = por %p35, %p36
      %p38 = scmp.ne.s32.totalorder %s30, %s33
      %p39 = scmp.eq.s32.totalorder %s20, 0
      %p40 = por %p38, %p39
      %p41 = scmp.ne.s32.totalorder %s30, %s33
      %p42 = scmp.eq.s32.totalorder %s25, 1
      %p43 = por %p41, %p42
      %p44 = scmp.ne.s32.totalorder %s33, %s34
      %p45 = scmp.eq.s32.totalorder %s25, 0
      %p46 = por %p44, %p45
      %p47 = scmp.ne.s32.totalorder %s33, %s34
      %p48 = scmp.eq.s32.totalorder %s26, 1
      %p49 = por %p47, %p48
      %p51 = scmp.ne.s32.totalorder %s34, %s50
      %p52 = scmp.eq.s32.totalorder %s26, 0
      %p53 = por %p51, %p52
      %s55 = sadd.s32 %s54, 1
      %p58 = scmp.eq.s32.totalorder %s20, 1
      %p59 = scmp.ne.s32.totalorder %s54, %s56
      %p60 = scmp.eq.s32.totalorder %s20, 0
      %p61 = por %p59, %p60
      %p62 = scmp.ne.s32.totalorder %s54, %s56
      %p63 = scmp.eq.s32.totalorder %s25, 1
      %p64 = por %p62, %p63
      %p65 = scmp.ne.s32.totalorder %s56, %s57
      %p66 = scmp.eq.s32.totalorder %s25, 0
      %p67 = por %p65, %p66
      %p68 = scmp.ne.s32.totalorder %s56, %s57
      %p69 = scmp.eq.s32.totalorder %s26, 1
      %p70 = por %p68, %p69
      %p72 = scmp.ne.s32.totalorder %s57, %s71
      %p73 = scmp.eq.s32.totalorder %s26, 0
      %p74 = por %p72, %p73
      %s75 = ssub.s32 %s20, %s27
      %p76 = scmp.eq.s32.totalorder %s75, 0
      %s78 = sadd.s32 %s77, 1
      %s79 = scalar_select %p76, %s77, %s78
      %p82 = pneg %p76
      %p83 = scmp.eq.s32.totalorder %s20, 1
      %p84 = por %p82, %p83
      %p85 = scmp.ne.s32.totalorder %s77, %s80
      %p86 = scmp.eq.s32.totalorder %s20, 0
      %p87 = por %p85, %p86
      %p88 = scmp.ne.s32.totalorder %s77, %s80
      %p89 = scmp.eq.s32.totalorder %s25, 1
      %p90 = por %p88, %p89
      %p91 = scmp.ne.s32.totalorder %s80, %s81
      %p92 = scmp.eq.s32.totalorder %s25, 0
      %p93 = por %p91, %p92
      %p94 = scmp.ne.s32.totalorder %s80, %s81
      %p95 = scmp.eq.s32.totalorder %s26, 1
      %p96 = por %p94, %p95
      %p98 = scmp.ne.s32.totalorder %s81, %s97
      %p99 = scmp.eq.s32.totalorder %s26, 0
      %p100 = por %p98, %p99
      %s101 = ssub.s32 %s20, %s27
      %p102 = scmp.eq.s32.totalorder %s101, 0
      %s104 = sadd.s32 %s103, 1
      %s105 = scalar_select %p102, %s103, %s104
      %p108 = pneg %p102
      %p109 = scmp.eq.s32.totalorder %s20, 1
      %p110 = por %p108, %p109
      %p111 = scmp.ne.s32.totalorder %s103, %s106
      %p112 = scmp.eq.s32.totalorder %s20, 0
      %p113 = por %p111, %p112
      %p114 = scmp.ne.s32.totalorder %s103, %s106
      %p115 = scmp.eq.s32.totalorder %s25, 1
      %p116 = por %p114, %p115
      %p117 = scmp.ne.s32.totalorder %s106, %s107
      %p118 = scmp.eq.s32.totalorder %s25, 0
      %p119 = por %p117, %p118
      %p120 = scmp.ne.s32.totalorder %s106, %s107
      %p121 = scmp.eq.s32.totalorder %s26, 1
      %p122 = por %p120, %p121
      %p124 = scmp.ne.s32.totalorder %s107, %s123
      %p125 = scmp.eq.s32.totalorder %s26, 0
      %p126 = por %p124, %p125
      %p127 = scmp.le.s32.totalorder 1, %s20
      %p128 = scmp.lt.s32.totalorder %s20, 3
      %p129 = pnand %p127, %p128
      %p130 = pneg %p129
      // Predicated region
      $region9: #{bottleneck_forward.4} parent=5 // pred_check
        _
      $region10: #{bottleneck_forward.4} parent=5 // pred_check_branch
        %132 = sbr.rel (%p129) target = $region12
      $region11: #{bottleneck_forward.4} parent=5 // pred_region
        %s133 = ssub.s32 %s20, 1
        // Predicated region
        $region13: #{bottleneck_forward.4} parent=11 // pred_check
          %p134 = pneg %p67
        $region14: #{bottleneck_forward.4} parent=11 // pred_check_branch
          %136 = sbr.rel (%p134) target = $region16
        $region15: #{bottleneck_forward.4} parent=11 // pred_region
          %s138 = ssub.s32 1024, 1024
          %139 = vsyncadd [#allocation6], %s138
          %s140 = sshll.u32 [#allocation5], 4
          %s141 = int_to_ptr.vmem [resolvable:$true] %s140
          %146 = dma.hbm_to_vmem [thread:$0]  %s1, 1024, %s141, [#allocation6], 64, 64, 4
        $region16: #{bottleneck_forward.4} parent=11 // pred_fallthru
          _
      $region12: #{bottleneck_forward.4} parent=5 // pred_fallthru
        _
      %p147 = scmp.lt.s32.totalorder %s20, 2
      // Predicated region
      $region17: #{bottleneck_forward.4} parent=5 // pred_check
        %p148 = pneg %p147
      $region18: #{bottleneck_forward.4} parent=5 // pred_check_branch
        %150 = sbr.rel (%p148) target = $region20
      $region19: #{bottleneck_forward.4} parent=5 // pred_region
        // Predicated region
        $region21: #{bottleneck_forward.4} parent=19 // pred_check
          %p151 = pneg %p40
        $region22: #{bottleneck_forward.4} parent=19 // pred_check_branch
          %153 = sbr.rel (%p151) target = $region24
        $region23: #{bottleneck_forward.4} parent=19 // pred_region
          %s154 = sand.u32 %s30, 1
          %s155 = scalar_lea.sflag [#allocation3], %s154
          %s156 = sand.u32 %s30, 1
          %s157 = smul.addr %s156, 128
          %s158 = scalar_lea.vmem [#allocation2], %s157
          %s159 = smul.u32 32, %s20
          %s161 = ssub.s32 2048, 2048
          %162 = vsyncadd %s155, %s161
          %s163 = smul.addr %s159, 64
          %s164 = scalar_lea.hbm %s0, %s163
          %s165 = sshll.u32 %s158, 4
          %s166 = int_to_ptr.vmem [resolvable:$true] %s165
          %171 = dma.hbm_to_vmem [thread:$0]  %s164, 2048, %s166, %s155, 64, 64, 4
        $region24: #{bottleneck_forward.4} parent=19 // pred_fallthru
          _
      $region20: #{bottleneck_forward.4} parent=5 // pred_fallthru
        _
      %p172 = scmp.le.s32.totalorder 1, %s20
      %p173 = scmp.lt.s32.totalorder %s20, 3
      %p174 = pnand %p172, %p173
      %p175 = pneg %p174
      // Predicated region
      $region25: #{bottleneck_forward.4} parent=5 // pred_check
        _
      $region26: #{bottleneck_forward.4} parent=5 // pred_check_branch
        %177 = sbr.rel (%p174) target = $region28
      $region27: #{bottleneck_forward.4} parent=5 // pred_region
        %s178 = ssub.s32 %s20, 1
        %s179 = sand.u32 %s33, 1
        %s180 = scalar_lea.sflag [#allocation3], %s179
        %s181 = sand.u32 %s33, 1
        %s182 = smul.addr %s181, 128
        %s183 = scalar_lea.vmem [#allocation2], %s182
        // Predicated region
        $region29: #{bottleneck_forward.4} parent=27 // pred_check
          %p184 = pneg %p46
        $region30: #{bottleneck_forward.4} parent=27 // pred_check_branch
          %186 = sbr.rel (%p184) target = $region32
        $region31: #{bottleneck_forward.4} parent=27 // pred_region
          %187 = dma.done %s180, 2048
        $region32: #{bottleneck_forward.4} parent=27 // pred_fallthru
          _
        // Predicated region
        $region33: #{bottleneck_forward.4} parent=27 // pred_check
          %p188 = pneg %p67
        $region34: #{bottleneck_forward.4} parent=27 // pred_check_branch
          %190 = sbr.rel (%p188) target = $region36
        $region35: #{bottleneck_forward.4} parent=27 // pred_region
          %191 = dma.done [#allocation6], 1024
        $region36: #{bottleneck_forward.4} parent=27 // pred_fallthru
          _
        %s192 = sand.u32 %s33, 1
        %s193 = scalar_lea.sflag [#allocation3], %s192
        %s194 = sand.u32 %s33, 1
        %s195 = smul.addr %s194, 128
        %s196 = scalar_lea.vmem [#allocation2], %s195
        %p197 = pneg %p46
        %p198 = pneg %p43
        %p199 = pneg %p67
        %p200 = pneg %p64
        %p201 = pneg %p93
        %p202 = pneg %p90
        %s203 = sand.u32 %s80, 1
        %s204 = scalar_lea.sflag [#allocation4], %s203
        %s205 = sand.u32 %s80, 1
        %s206 = smul.addr %s205, 128
        %s207 = scalar_lea.vmem [#allocation7], %s206
        %p208 = pneg %p119
        %p209 = pneg %p116
        %s210 = sand.u32 %s106, 1
        %s211 = scalar_lea.sflag [#allocation9], %s210
        %s212 = sand.u32 %s106, 1
        %s213 = smul.addr %s212, 8
        %s214 = scalar_lea.vmem [#allocation8], %s213
        %s215 = smul.u32 32, %s25
        %s216 = smul.u32 32, %s25
        %v218 = vld [vmem:[%s183] sm:$0xf]
        %v219 = vld [vmem:[%s183 + $0x4] sm:$0xf]
        %v220 = vld [vmem:[%s183 + $0x8] sm:$0xf]
        %v221 = vld [vmem:[%s183 + $0xc] sm:$0xf]
        %v222 = vld [vmem:[%s183 + $0x10] sm:$0xf]
        %v223 = vld [vmem:[%s183 + $0x14] sm:$0xf]
        %v224 = vld [vmem:[%s183 + $0x18] sm:$0xf]
        %v225 = vld [vmem:[%s183 + $0x1c] sm:$0xf]
        %v226 = vld [vmem:[%s183 + $0x20] sm:$0xf]
        %v227 = vld [vmem:[%s183 + $0x24] sm:$0xf]
        %v228 = vld [vmem:[%s183 + $0x28] sm:$0xf]
        %v229 = vld [vmem:[%s183 + $0x2c] sm:$0xf]
        %v230 = vld [vmem:[%s183 + $0x30] sm:$0xf]
        %v231 = vld [vmem:[%s183 + $0x34] sm:$0xf]
        %v232 = vld [vmem:[%s183 + $0x38] sm:$0xf]
        %v233 = vld [vmem:[%s183 + $0x3c] sm:$0xf]
        %v234 = vld [vmem:[%s183 + $0x40] sm:$0xf]
        %v235 = vld [vmem:[%s183 + $0x44] sm:$0xf]
        %v236 = vld [vmem:[%s183 + $0x48] sm:$0xf]
        %v237 = vld [vmem:[%s183 + $0x4c] sm:$0xf]
        %v238 = vld [vmem:[%s183 + $0x50] sm:$0xf]
        %v239 = vld [vmem:[%s183 + $0x54] sm:$0xf]
        %v240 = vld [vmem:[%s183 + $0x58] sm:$0xf]
        %v241 = vld [vmem:[%s183 + $0x5c] sm:$0xf]
        %v242 = vld [vmem:[%s183 + $0x60] sm:$0xf]
        %v243 = vld [vmem:[%s183 + $0x64] sm:$0xf]
        %v244 = vld [vmem:[%s183 + $0x68] sm:$0xf]
        %v245 = vld [vmem:[%s183 + $0x6c] sm:$0xf]
        %v246 = vld [vmem:[%s183 + $0x70] sm:$0xf]
        %v247 = vld [vmem:[%s183 + $0x74] sm:$0xf]
        %v248 = vld [vmem:[%s183 + $0x78] sm:$0xf]
        %v249 = vld [vmem:[%s183 + $0x7c] sm:$0xf]
        %v250 = vld [vmem:[#allocation5] sm:$0xf]
        %v251 = vld [vmem:[#allocation5 + $0x4] sm:$0xf]
        %v252 = vld [vmem:[#allocation5 + $0x8] sm:$0xf]
        %v253 = vld [vmem:[#allocation5 + $0xc] sm:$0xf]
        %v254 = vld [vmem:[#allocation5 + $0x10] sm:$0xf]
        %v255 = vld [vmem:[#allocation5 + $0x14] sm:$0xf]
        %v256 = vld [vmem:[#allocation5 + $0x18] sm:$0xf]
        %v257 = vld [vmem:[#allocation5 + $0x1c] sm:$0xf]
        %v258 = vld [vmem:[#allocation5 + $0x20] sm:$0xf]
        %v259 = vld [vmem:[#allocation5 + $0x24] sm:$0xf]
        %v260 = vld [vmem:[#allocation5 + $0x28] sm:$0xf]
        %v261 = vld [vmem:[#allocation5 + $0x2c] sm:$0xf]
        %v262 = vld [vmem:[#allocation5 + $0x30] sm:$0xf]
        %v263 = vld [vmem:[#allocation5 + $0x34] sm:$0xf]
        %v264 = vld [vmem:[#allocation5 + $0x38] sm:$0xf]
        %v265 = vld [vmem:[#allocation5 + $0x3c] sm:$0xf]
        %v298 = vunpack.c.l.b16 %v218
        %v299 = vunpack.c.l.b16 %v219
        %v300 = vunpack.c.l.b16 %v220
        %v301 = vunpack.c.l.b16 %v221
        %v302 = vunpack.c.l.b16 %v222
        %v303 = vunpack.c.l.b16 %v223
        %v304 = vunpack.c.l.b16 %v224
        %v305 = vunpack.c.l.b16 %v225
        %v306 = vunpack.c.l.b16 %v226
        %v307 = vunpack.c.l.b16 %v227
        %v308 = vunpack.c.l.b16 %v228
        %v309 = vunpack.c.l.b16 %v229
        %v310 = vunpack.c.l.b16 %v230
        %v311 = vunpack.c.l.b16 %v231
        %v312 = vunpack.c.l.b16 %v232
        %v313 = vunpack.c.l.b16 %v233
        %v314 = vunpack.c.l.b16 %v234
        %v315 = vunpack.c.l.b16 %v235
        %v316 = vunpack.c.l.b16 %v236
        %v317 = vunpack.c.l.b16 %v237
        %v318 = vunpack.c.l.b16 %v238
        %v319 = vunpack.c.l.b16 %v239
        %v320 = vunpack.c.l.b16 %v240
        %v321 = vunpack.c.l.b16 %v241
        %v322 = vunpack.c.l.b16 %v242
        %v323 = vunpack.c.l.b16 %v243
        %v324 = vunpack.c.l.b16 %v244
        %v325 = vunpack.c.l.b16 %v245
        %v326 = vunpack.c.l.b16 %v246
        %v327 = vunpack.c.l.b16 %v247
        %v328 = vunpack.c.l.b16 %v248
        %v329 = vunpack.c.l.b16 %v249
        %v330 = vpack.c.b16 %v299, %v298
        %v331 = vpack.c.b16 %v301, %v300
        %v332 = vpack.c.b16 %v303, %v302
        %v333 = vpack.c.b16 %v305, %v304
        %v334 = vpack.c.b16 %v307, %v306
        %v335 = vpack.c.b16 %v309, %v308
        %v336 = vpack.c.b16 %v311, %v310
        %v337 = vpack.c.b16 %v313, %v312
        %v338 = vpack.c.b16 %v315, %v314
        %v339 = vpack.c.b16 %v317, %v316
        %v340 = vpack.c.b16 %v319, %v318
        %v341 = vpack.c.b16 %v321, %v320
        %v342 = vpack.c.b16 %v323, %v322
        %v343 = vpack.c.b16 %v325, %v324
        %v344 = vpack.c.b16 %v327, %v326
        %v345 = vpack.c.b16 %v329, %v328
        %v378 = vunpack.c.l.b16 %v250
        %v379 = vunpack.c.l.b16 %v251
        %v380 = vunpack.c.l.b16 %v252
        %v381 = vunpack.c.l.b16 %v253
        %v382 = vunpack.c.l.b16 %v254
        %v383 = vunpack.c.l.b16 %v255
        %v384 = vunpack.c.l.b16 %v256
        %v385 = vunpack.c.l.b16 %v257
        %v386 = vunpack.c.l.b16 %v258
        %v387 = vunpack.c.l.b16 %v259
        %v388 = vunpack.c.l.b16 %v260
        %v389 = vunpack.c.l.b16 %v261
        %v390 = vunpack.c.l.b16 %v262
        %v391 = vunpack.c.l.b16 %v263
        %v392 = vunpack.c.l.b16 %v264
        %v393 = vunpack.c.l.b16 %v265
        %v394 = vpack.c.b16 %v379, %v378
        %v395 = vpack.c.b16 %v381, %v380
        %v396 = vpack.c.b16 %v383, %v382
        %v397 = vpack.c.b16 %v385, %v384
        %v398 = vpack.c.b16 %v387, %v386
        %v399 = vpack.c.b16 %v389, %v388
        %v400 = vpack.c.b16 %v391, %v390
        %v401 = vpack.c.b16 %v393, %v392
        %410 = vmatprep.subr.bf16.mxu0 0
        %411 = vmatpush1.bf16.msra.mxu0 %v394
        %412 = vmatprep.subr.bf16.mxu0 0
        %413 = vmatpush1.bf16.msra.mxu0 %v395
        %414 = vmatprep.subr.bf16.mxu0 0
        %415 = vmatpush1.bf16.msra.mxu0 %v396
        %416 = vmatprep.subr.bf16.mxu0 0
        %417 = vmatpush1.bf16.msra.mxu0 %v397
        %418 = vmatprep.subr.bf16.mxu0 0
        %419 = vmatpush1.bf16.msra.mxu0 %v398
        %420 = vmatprep.subr.bf16.mxu0 0
        %421 = vmatpush1.bf16.msra.mxu0 %v399
        %422 = vmatprep.subr.bf16.mxu0 0
        %423 = vmatpush1.bf16.msra.mxu0 %v400
        %424 = vmatprep.subr.bf16.mxu0 0
        %425 = vmatpush1.bf16.msra.mxu0 %v401
        %426 = vmatprep.subr.bf16.mxu0 0
        %427 = vmatpush1.bf16.msra.mxu0 0
        %428 = vmatprep.subr.bf16.mxu0 0
        %429 = vmatpush1.bf16.msra.mxu0 0
        %430 = vmatprep.subr.bf16.mxu0 0
        %431 = vmatpush1.bf16.msra.mxu0 0
        %432 = vmatprep.subr.bf16.mxu0 0
        %433 = vmatpush1.bf16.msra.mxu0 0
        %434 = vmatprep.subr.bf16.mxu0 0
        %435 = vmatpush1.bf16.msra.mxu0 0
        %436 = vmatprep.subr.bf16.mxu0 0
        %437 = vmatpush1.bf16.msra.mxu0 0
        %438 = vmatprep.subr.bf16.mxu0 0
        %439 = vmatpush1.bf16.msra.mxu0 0
        %440 = vmatprep.subr.bf16.mxu0 0
        %441 = vmatpush1.bf16.msra.mxu0 0
        %442 = vmatprep.mubr.bf16.mxu0 0
        %443 = vmatmul.mubr.bf16.gmra.mrb[0].mxu0 %v330
        %v444 = vpop.f32.mrb[0].mxu0
        %v445 = vadd.f32 0.0, %v444
        %v446 = vpop.f32.mrb[0].mxu0
        %v447 = vpop.f32.mrb[0].mxu0
        %v448 = vadd.f32 0.0, %v447
        %v449 = vpop.f32.mrb[0].mxu0
        %450 = vmatprep.mubr.bf16.mxu0 0
        %451 = vmatmul.mubr.bf16.gmra.mrb[0].mxu0 %v331
        %v452 = vpop.f32.mrb[0].mxu0
        %v453 = vadd.f32 0.0, %v452
        %v454 = vpop.f32.mrb[0].mxu0
        %v455 = vpop.f32.mrb[0].mxu0
        %v456 = vadd.f32 0.0, %v455
        %v457 = vpop.f32.mrb[0].mxu0
        %458 = vmatprep.mubr.bf16.mxu0 0
        %459 = vmatmul.mubr.bf16.gmra.mrb[0].mxu0 %v332
        %v460 = vpop.f32.mrb[0].mxu0
        %v461 = vadd.f32 0.0, %v460
        %v462 = vpop.f32.mrb[0].mxu0
        %v463 = vpop.f32.mrb[0].mxu0
        %v464 = vadd.f32 0.0, %v463
        %v465 = vpop.f32.mrb[0].mxu0
        %466 = vmatprep.mubr.bf16.mxu0 0
        %467 = vmatmul.mubr.bf16.gmra.mrb[0].mxu0 %v333
        %v468 = vpop.f32.mrb[0].mxu0
        %v469 = vadd.f32 0.0, %v468
        %v470 = vpop.f32.mrb[0].mxu0
        %v471 = vpop.f32.mrb[0].mxu0
        %v472 = vadd.f32 0.0, %v471
        %v473 = vpop.f32.mrb[0].mxu0
        %474 = vmatprep.mubr.bf16.mxu0 0
        %475 = vmatmul.mubr.bf16.gmra.mrb[0].mxu0 %v334
        %v476 = vpop.f32.mrb[0].mxu0
        %v477 = vadd.f32 0.0, %v476
        %v478 = vpop.f32.mrb[0].mxu0
        %v479 = vpop.f32.mrb[0].mxu0
        %v480 = vadd.f32 0.0, %v479
        %v481 = vpop.f32.mrb[0].mxu0
        %482 = vmatprep.mubr.bf16.mxu0 0
        %483 = vmatmul.mubr.bf16.gmra.mrb[0].mxu0 %v335
        %v484 = vpop.f32.mrb[0].mxu0
        %v485 = vadd.f32 0.0, %v484
        %v486 = vpop.f32.mrb[0].mxu0
        %v487 = vpop.f32.mrb[0].mxu0
        %v488 = vadd.f32 0.0, %v487
        %v489 = vpop.f32.mrb[0].mxu0
        %490 = vmatprep.mubr.bf16.mxu0 0
        %491 = vmatmul.mubr.bf16.gmra.mrb[0].mxu0 %v336
        %v492 = vpop.f32.mrb[0].mxu0
        %v493 = vadd.f32 0.0, %v492
        %v494 = vpop.f32.mrb[0].mxu0
        %v495 = vpop.f32.mrb[0].mxu0
        %v496 = vadd.f32 0.0, %v495
        %v497 = vpop.f32.mrb[0].mxu0
        %498 = vmatprep.mubr.bf16.mxu0 0
        %499 = vmatmul.mubr.bf16.gmra.mrb[0].mxu0 %v337
        %v500 = vpop.f32.mrb[0].mxu0
        %v501 = vadd.f32 0.0, %v500
        %v502 = vpop.f32.mrb[0].mxu0
        %v503 = vpop.f32.mrb[0].mxu0
        %v504 = vadd.f32 0.0, %v503
        %v505 = vpop.f32.mrb[0].mxu0
        %506 = vmatprep.mubr.bf16.mxu0 0
        %507 = vmatmul.mubr.bf16.gmra.mrb[0].mxu0 %v338
        %v508 = vpop.f32.mrb[0].mxu0
        %v509 = vadd.f32 0.0, %v508
        %v510 = vpop.f32.mrb[0].mxu0
        %v511 = vpop.f32.mrb[0].mxu0
        %v512 = vadd.f32 0.0, %v511
        %v513 = vpop.f32.mrb[0].mxu0
        %514 = vmatprep.mubr.bf16.mxu0 0
        %515 = vmatmul.mubr.bf16.gmra.mrb[0].mxu0 %v339
        %v516 = vpop.f32.mrb[0].mxu0
        %v517 = vadd.f32 0.0, %v516
        %v518 = vpop.f32.mrb[0].mxu0
        %v519 = vpop.f32.mrb[0].mxu0
        %v520 = vadd.f32 0.0, %v519
        %v521 = vpop.f32.mrb[0].mxu0
        %522 = vmatprep.mubr.bf16.mxu0 0
        %523 = vmatmul.mubr.bf16.gmra.mrb[0].mxu0 %v340
        %v524 = vpop.f32.mrb[0].mxu0
        %v525 = vadd.f32 0.0, %v524
        %v526 = vpop.f32.mrb[0].mxu0
        %v527 = vpop.f32.mrb[0].mxu0
        %v528 = vadd.f32 0.0, %v527
        %v529 = vpop.f32.mrb[0].mxu0
        %530 = vmatprep.mubr.bf16.mxu0 0
        %531 = vmatmul.mubr.bf16.gmra.mrb[0].mxu0 %v341
        %v532 = vpop.f32.mrb[0].mxu0
        %v533 = vadd.f32 0.0, %v532
        %v534 = vpop.f32.mrb[0].mxu0
        %v535 = vpop.f32.mrb[0].mxu0
        %v536 = vadd.f32 0.0, %v535
        %v537 = vpop.f32.mrb[0].mxu0
        %538 = vmatprep.mubr.bf16.mxu0 0
        %539 = vmatmul.mubr.bf16.gmra.mrb[0].mxu0 %v342
        %v540 = vpop.f32.mrb[0].mxu0
        %v541 = vadd.f32 0.0, %v540
        %v542 = vpop.f32.mrb[0].mxu0
        %v543 = vpop.f32.mrb[0].mxu0
        %v544 = vadd.f32 0.0, %v543
        %v545 = vpop.f32.mrb[0].mxu0
        %546 = vmatprep.mubr.bf16.mxu0 0
        %547 = vmatmul.mubr.bf16.gmra.mrb[0].mxu0 %v343
        %v548 = vpop.f32.mrb[0].mxu0
        %v549 = vadd.f32 0.0, %v548
        %v550 = vpop.f32.mrb[0].mxu0
        %v551 = vpop.f32.mrb[0].mxu0
        %v552 = vadd.f32 0.0, %v551
        %v553 = vpop.f32.mrb[0].mxu0
        %554 = vmatprep.mubr.bf16.mxu0 0
        %555 = vmatmul.mubr.bf16.gmra.mrb[0].mxu0 %v344
        %v556 = vpop.f32.mrb[0].mxu0
        %v557 = vadd.f32 0.0, %v556
        %v558 = vpop.f32.mrb[0].mxu0
        %v559 = vpop.f32.mrb[0].mxu0
        %v560 = vadd.f32 0.0, %v559
        %v561 = vpop.f32.mrb[0].mxu0
        %562 = vmatprep.mubr.bf16.mxu0 0
        %563 = vmatmul.mubr.bf16.gmra.mrb[0].mxu0 %v345
        %v564 = vpop.f32.mrb[0].mxu0
        %v565 = vadd.f32 0.0, %v564
        %v566 = vpop.f32.mrb[0].mxu0
        %v567 = vpop.f32.mrb[0].mxu0
        %v568 = vadd.f32 0.0, %v567
        %v569 = vpop.f32.mrb[0].mxu0
        %570 = vdwg.mxu0
        %v571 = vpack.c.bf16 %v448, %v445
        %v572 = vpack.c.bf16 %v456, %v453
        %v573 = vpack.c.bf16 %v464, %v461
        %v574 = vpack.c.bf16 %v472, %v469
        %v575 = vpack.c.bf16 %v480, %v477
        %v576 = vpack.c.bf16 %v488, %v485
        %v577 = vpack.c.bf16 %v496, %v493
        %v578 = vpack.c.bf16 %v504, %v501
        %v579 = vpack.c.bf16 %v512, %v509
        %v580 = vpack.c.bf16 %v520, %v517
        %v581 = vpack.c.bf16 %v528, %v525
        %v582 = vpack.c.bf16 %v536, %v533
        %v583 = vpack.c.bf16 %v544, %v541
        %v584 = vpack.c.bf16 %v552, %v549
        %v585 = vpack.c.bf16 %v560, %v557
        %v586 = vpack.c.bf16 %v568, %v565
        %v603 = vunpack.c.l.b16 %v571
        %v604 = vunpack.c.h.b16 %v571
        %v605 = vunpack.c.l.b16 %v572
        %v606 = vunpack.c.h.b16 %v572
        %v607 = vunpack.c.l.b16 %v573
        %v608 = vunpack.c.h.b16 %v573
        %v609 = vunpack.c.l.b16 %v574
        %v610 = vunpack.c.h.b16 %v574
        %v611 = vunpack.c.l.b16 %v575
        %v612 = vunpack.c.h.b16 %v575
        %v613 = vunpack.c.l.b16 %v576
        %v614 = vunpack.c.h.b16 %v576
        %v615 = vunpack.c.l.b16 %v577
        %v616 = vunpack.c.h.b16 %v577
        %v617 = vunpack.c.l.b16 %v578
        %v618 = vunpack.c.h.b16 %v578
        %v619 = vunpack.c.l.b16 %v579
        %v620 = vunpack.c.h.b16 %v579
        %v621 = vunpack.c.l.b16 %v580
        %v622 = vunpack.c.h.b16 %v580
        %v623 = vunpack.c.l.b16 %v581
        %v624 = vunpack.c.h.b16 %v581
        %v625 = vunpack.c.l.b16 %v582
        %v626 = vunpack.c.h.b16 %v582
        %v627 = vunpack.c.l.b16 %v583
        %v628 = vunpack.c.h.b16 %v583
        %v629 = vunpack.c.l.b16 %v584
        %v630 = vunpack.c.h.b16 %v584
        %v631 = vunpack.c.l.b16 %v585
        %v632 = vunpack.c.h.b16 %v585
        %v633 = vunpack.c.l.b16 %v586
        %v634 = vunpack.c.h.b16 %v586
        %v635 = vpack.c.b16 %v603, %v603
        %v636 = vpack.c.b16 %v604, %v604
        %v637 = vpack.c.b16 %v605, %v605
        %v638 = vpack.c.b16 %v606, %v606
        %v639 = vpack.c.b16 %v607, %v607
        %v640 = vpack.c.b16 %v608, %v608
        %v641 = vpack.c.b16 %v609, %v609
        %v642 = vpack.c.b16 %v610, %v610
        %v643 = vpack.c.b16 %v611, %v611
        %v644 = vpack.c.b16 %v612, %v612
        %v645 = vpack.c.b16 %v613, %v613
        %v646 = vpack.c.b16 %v614, %v614
        %v647 = vpack.c.b16 %v615, %v615
        %v648 = vpack.c.b16 %v616, %v616
        %v649 = vpack.c.b16 %v617, %v617
        %v650 = vpack.c.b16 %v618, %v618
        %v651 = vpack.c.b16 %v619, %v619
        %v652 = vpack.c.b16 %v620, %v620
        %v653 = vpack.c.b16 %v621, %v621
        %v654 = vpack.c.b16 %v622, %v622
        %v655 = vpack.c.b16 %v623, %v623
        %v656 = vpack.c.b16 %v624, %v624
        %v657 = vpack.c.b16 %v625, %v625
        %v658 = vpack.c.b16 %v626, %v626
        %v659 = vpack.c.b16 %v627, %v627
        %v660 = vpack.c.b16 %v628, %v628
        %v661 = vpack.c.b16 %v629, %v629
        %v662 = vpack.c.b16 %v630, %v630
        %v663 = vpack.c.b16 %v631, %v631
        %v664 = vpack.c.b16 %v632, %v632
        %v665 = vpack.c.b16 %v633, %v633
        %v666 = vpack.c.b16 %v634, %v634
        %699 = vst [vmem:[%s207] sm:$0xf] %v635
        %700 = vst [vmem:[%s207 + $0x4] sm:$0xf] %v636
        %701 = vst [vmem:[%s207 + $0x8] sm:$0xf] %v637
        %702 = vst [vmem:[%s207 + $0xc] sm:$0xf] %v638
        %703 = vst [vmem:[%s207 + $0x10] sm:$0xf] %v639
        %704 = vst [vmem:[%s207 + $0x14] sm:$0xf] %v640
        %705 = vst [vmem:[%s207 + $0x18] sm:$0xf] %v641
        %706 = vst [vmem:[%s207 + $0x1c] sm:$0xf] %v642
        %707 = vst [vmem:[%s207 + $0x20] sm:$0xf] %v643
        %708 = vst [vmem:[%s207 + $0x24] sm:$0xf] %v644
        %709 = vst [vmem:[%s207 + $0x28] sm:$0xf] %v645
        %710 = vst [vmem:[%s207 + $0x2c] sm:$0xf] %v646
        %711 = vst [vmem:[%s207 + $0x30] sm:$0xf] %v647
        %712 = vst [vmem:[%s207 + $0x34] sm:$0xf] %v648
        %713 = vst [vmem:[%s207 + $0x38] sm:$0xf] %v649
        %714 = vst [vmem:[%s207 + $0x3c] sm:$0xf] %v650
        %715 = vst [vmem:[%s207 + $0x40] sm:$0xf] %v651
        %716 = vst [vmem:[%s207 + $0x44] sm:$0xf] %v652
        %717 = vst [vmem:[%s207 + $0x48] sm:$0xf] %v653
        %718 = vst [vmem:[%s207 + $0x4c] sm:$0xf] %v654
        %719 = vst [vmem:[%s207 + $0x50] sm:$0xf] %v655
        %720 = vst [vmem:[%s207 + $0x54] sm:$0xf] %v656
        %721 = vst [vmem:[%s207 + $0x58] sm:$0xf] %v657
        %722 = vst [vmem:[%s207 + $0x5c] sm:$0xf] %v658
        %723 = vst [vmem:[%s207 + $0x60] sm:$0xf] %v659
        %724 = vst [vmem:[%s207 + $0x64] sm:$0xf] %v660
        %725 = vst [vmem:[%s207 + $0x68] sm:$0xf] %v661
        %726 = vst [vmem:[%s207 + $0x6c] sm:$0xf] %v662
        %727 = vst [vmem:[%s207 + $0x70] sm:$0xf] %v663
        %728 = vst [vmem:[%s207 + $0x74] sm:$0xf] %v664
        %729 = vst [vmem:[%s207 + $0x78] sm:$0xf] %v665
        %730 = vst [vmem:[%s207 + $0x7c] sm:$0xf] %v666
        %v731 = vadd.f32 %v445, %v448
        %v732 = vadd.f32 %v731, %v453
        %v733 = vadd.f32 %v732, %v456
        %v734 = vadd.f32 %v733, %v461
        %v735 = vadd.f32 %v734, %v464
        %v736 = vadd.f32 %v735, %v469
        %v737 = vadd.f32 %v736, %v472
        %v738 = vadd.f32 %v737, %v477
        %v739 = vadd.f32 %v738, %v480
        %v740 = vadd.f32 %v739, %v485
        %v741 = vadd.f32 %v740, %v488
        %v742 = vadd.f32 %v741, %v493
        %v743 = vadd.f32 %v742, %v496
        %v744 = vadd.f32 %v743, %v501
        %v745 = vadd.f32 %v744, %v504
        %v746 = vadd.f32 %v745, %v509
        %v747 = vadd.f32 %v746, %v512
        %v748 = vadd.f32 %v747, %v517
        %v749 = vadd.f32 %v748, %v520
        %v750 = vadd.f32 %v749, %v525
        %v751 = vadd.f32 %v750, %v528
        %v752 = vadd.f32 %v751, %v533
        %v753 = vadd.f32 %v752, %v536
        %v754 = vadd.f32 %v753, %v541
        %v755 = vadd.f32 %v754, %v544
        %v756 = vadd.f32 %v755, %v549
        %v757 = vadd.f32 %v756, %v552
        %v758 = vadd.f32 %v757, %v557
        %v759 = vadd.f32 %v758, %v560
        %v760 = vadd.f32 %v759, %v565
        %v761 = vadd.f32 %v760, %v568
        %v762 = vrot.slane %v761, 4
        %v763 = vadd.f32 %v761, %v762
        %v764 = vrot.slane %v763, 2
        %v765 = vadd.f32 %v763, %v764
        %v766 = vrot.slane %v765, 1
        %v767 = vadd.f32 %v765, %v766
        %v768 = vmul.f32 %v445, %v445
        %v769 = vmul.f32 %v448, %v448
        %v770 = vmul.f32 %v453, %v453
        %v771 = vmul.f32 %v456, %v456
        %v772 = vmul.f32 %v461, %v461
        %v773 = vmul.f32 %v464, %v464
        %v774 = vmul.f32 %v469, %v469
        %v775 = vmul.f32 %v472, %v472
        %v776 = vmul.f32 %v477, %v477
        %v777 = vmul.f32 %v480, %v480
        %v778 = vmul.f32 %v485, %v485
        %v779 = vmul.f32 %v488, %v488
        %v780 = vmul.f32 %v493, %v493
        %v781 = vmul.f32 %v496, %v496
        %v782 = vmul.f32 %v501, %v501
        %v783 = vmul.f32 %v504, %v504
        %v784 = vmul.f32 %v509, %v509
        %v785 = vmul.f32 %v512, %v512
        %v786 = vmul.f32 %v517, %v517
        %v787 = vmul.f32 %v520, %v520
        %v788 = vmul.f32 %v525, %v525
        %v789 = vmul.f32 %v528, %v528
        %v790 = vmul.f32 %v533, %v533
        %v791 = vmul.f32 %v536, %v536
        %v792 = vmul.f32 %v541, %v541
        %v793 = vmul.f32 %v544, %v544
        %v794 = vmul.f32 %v549, %v549
        %v795 = vmul.f32 %v552, %v552
        %v796 = vmul.f32 %v557, %v557
        %v797 = vmul.f32 %v560, %v560
        %v798 = vmul.f32 %v565, %v565
        %v799 = vmul.f32 %v568, %v568
        %v800 = vadd.f32 %v768, %v769
        %v801 = vadd.f32 %v800, %v770
        %v802 = vadd.f32 %v801, %v771
        %v803 = vadd.f32 %v802, %v772
        %v804 = vadd.f32 %v803, %v773
        %v805 = vadd.f32 %v804, %v774
        %v806 = vadd.f32 %v805, %v775
        %v807 = vadd.f32 %v806, %v776
        %v808 = vadd.f32 %v807, %v777
        %v809 = vadd.f32 %v808, %v778
        %v810 = vadd.f32 %v809, %v779
        %v811 = vadd.f32 %v810, %v780
        %v812 = vadd.f32 %v811, %v781
        %v813 = vadd.f32 %v812, %v782
        %v814 = vadd.f32 %v813, %v783
        %v815 = vadd.f32 %v814, %v784
        %v816 = vadd.f32 %v815, %v785
        %v817 = vadd.f32 %v816, %v786
        %v818 = vadd.f32 %v817, %v787
        %v819 = vadd.f32 %v818, %v788
        %v820 = vadd.f32 %v819, %v789
        %v821 = vadd.f32 %v820, %v790
        %v822 = vadd.f32 %v821, %v791
        %v823 = vadd.f32 %v822, %v792
        %v824 = vadd.f32 %v823, %v793
        %v825 = vadd.f32 %v824, %v794
        %v826 = vadd.f32 %v825, %v795
        %v827 = vadd.f32 %v826, %v796
        %v828 = vadd.f32 %v827, %v797
        %v829 = vadd.f32 %v828, %v798
        %v830 = vadd.f32 %v829, %v799
        %v831 = vrot.slane %v830, 4
        %v832 = vadd.f32 %v830, %v831
        %v833 = vrot.slane %v832, 2
        %v834 = vadd.f32 %v832, %v833
        %v835 = vrot.slane %v834, 1
        %v836 = vadd.f32 %v834, %v835
        %vm837 = vcmask 1040384
        %v838 = vsel %vm837, %v767, %v836
        %vm839 = vcmask 1041408
        %v840 = vsel %vm839, %v838, 0.0
        %841 = vst [vmem:[%s214] sm:$0xff] %v840
        %s842 = sand.u32 %s80, 1
        %s843 = scalar_lea.sflag [#allocation4], %s842
        %s844 = sand.u32 %s80, 1
        %s845 = smul.addr %s844, 128
        %s846 = scalar_lea.vmem [#allocation7], %s845
        %s847 = sand.u32 %s106, 1
        %s848 = scalar_lea.sflag [#allocation9], %s847
        %s849 = sand.u32 %s106, 1
        %s850 = smul.addr %s849, 8
        %s851 = scalar_lea.vmem [#allocation8], %s850
        // Predicated region
        $region37: #{bottleneck_forward.4} parent=27 // pred_check
          %p852 = pneg %p90
        $region38: #{bottleneck_forward.4} parent=27 // pred_check_branch
          %854 = sbr.rel (%p852) target = $region40
        $region39: #{bottleneck_forward.4} parent=27 // pred_region
          %s855 = smul.u32 32, %s25
          %s857 = ssub.s32 2048, 2048
          %858 = vsyncadd %s843, %s857
          %s859 = smul.addr %s855, 64
          %s860 = scalar_lea.hbm %s2, %s859
          %s861 = sshll.u32 %s846, 4
          %s862 = int_to_ptr.vmem [resolvable:$true] %s861
          %867 = dma.vmem_to_hbm [thread:$0]  %s862, 2048, %s860, %s843, 64, 64, 4
        $region40: #{bottleneck_forward.4} parent=27 // pred_fallthru
          _
        // Predicated region
        $region41: #{bottleneck_forward.4} parent=27 // pred_check
          %p868 = pneg %p116
        $region42: #{bottleneck_forward.4} parent=27 // pred_check_branch
          %870 = sbr.rel (%p868) target = $region44
        $region43: #{bottleneck_forward.4} parent=27 // pred_region
          %s872 = ssub.s32 128, 128
          %873 = vsyncadd %s848, %s872
          %s874 = smul.addr %s25, 128
          %s875 = scalar_lea.hbm %s3, %s874
          %s877 = sshll.u32 %s851, 4
          %s878 = int_to_ptr.vmem [resolvable:$true] %s877
          %880 = dma.vmem_to_hbm [thread:$0]  %s878, 128, %s875, %s848
        $region44: #{bottleneck_forward.4} parent=27 // pred_fallthru
          _
      $region28: #{bottleneck_forward.4} parent=5 // pred_fallthru
        _
      %p881 = scmp.le.s32.totalorder 2, %s20
      // Predicated region
      $region45: #{bottleneck_forward.4} parent=5 // pred_check
        %p882 = pneg %p881
      $region46: #{bottleneck_forward.4} parent=5 // pred_check_branch
        %884 = sbr.rel (%p882) target = $region48
      $region47: #{bottleneck_forward.4} parent=5 // pred_region
        %s885 = ssub.s32 %s20, 2
        // Predicated region
        $region49: #{bottleneck_forward.4} parent=47 // pred_check
          %p886 = pneg %p96
        $region50: #{bottleneck_forward.4} parent=47 // pred_check_branch
          %888 = sbr.rel (%p886) target = $region52
        $region51: #{bottleneck_forward.4} parent=47 // pred_region
          %s889 = sand.u32 %s81, 1
          %s890 = scalar_lea.sflag [#allocation4], %s889
          %s891 = sand.u32 %s81, 1
          %s892 = smul.addr %s891, 128
          %s893 = scalar_lea.vmem [#allocation7], %s892
          %894 = dma.done %s890, 2048
        $region52: #{bottleneck_forward.4} parent=47 // pred_fallthru
          _
        // Predicated region
        $region53: #{bottleneck_forward.4} parent=47 // pred_check
          %p895 = pneg %p122
        $region54: #{bottleneck_forward.4} parent=47 // pred_check_branch
          %897 = sbr.rel (%p895) target = $region56
        $region55: #{bottleneck_forward.4} parent=47 // pred_region
          %s898 = sand.u32 %s107, 1
          %s899 = scalar_lea.sflag [#allocation9], %s898
          %s900 = sand.u32 %s107, 1
          %s901 = smul.addr %s900, 8
          %s902 = scalar_lea.vmem [#allocation8], %s901
          %903 = dma.done %s899, 128
        $region56: #{bottleneck_forward.4} parent=47 // pred_fallthru
          _
      $region48: #{bottleneck_forward.4} parent=5 // pred_fallthru
        _
    $region6: #{bottleneck_forward.4} parent=1 // loop_footer
      %s24 = sadd.s32 1, %s20
    $region7: #{bottleneck_forward.4} parent=1 // loop_footer_branch
      %19 = sbr.rel target = $region3
    $region8: #{bottleneck_forward.4} parent=1 // loop_exit
      _
    %904 = vsyncpa [#allocation3], 1
    %s905 = scalar_lea.sflag [#allocation3], 1
    %906 = vsyncpa %s905, 1
    %907 = vsyncpa [#allocation6], 1
    %908 = vsyncpa [#allocation4], 1
    %s909 = scalar_lea.sflag [#allocation4], 1
    %910 = vsyncpa %s909, 1
    %911 = vsyncpa [#allocation9], 1
    %s912 = scalar_lea.sflag [#allocation9], 1
    %913 = vsyncpa %s912, 1

// kernel: bottleneck_forward.6
$region0: #{bottleneck_forward.6}
  #allocation0 [shape = 'u32[]', space=smem, size = 0x4, offset = 0x4, fixed_abs, tag = 'smem constant byte address 0x4 - core index']
  #allocation1 [shape = 'u32[144,128]{1,0:T(1,128)}', space=vmem, size = 0x12000, scoped, tag = 'internal scratch']
  %s0 = inlined_call_operand.hbm [shape: bf16[512,128], index: 0, kind: input, shape index: {}]
  %s1 = inlined_call_operand.hbm [shape: f32[1,128], index: 1, kind: input, shape index: {}]
  %s2 = inlined_call_operand.hbm [shape: f32[1,128], index: 2, kind: input, shape index: {}]
  %s3 = inlined_call_operand.hbm [shape: bf16[128,128], index: 3, kind: input, shape index: {}]
  %s4 = inlined_call_operand.hbm [shape: bf16[512,128], index: 4, kind: output, shape index: {0}]
  %s5 = inlined_call_operand.hbm [shape: f32[16,128], index: 5, kind: output, shape index: {1}]
  %6 = xla_tuple %s4, %s5
  %s7 = sld [smem:[#allocation0]]
  $region73: #{bottleneck_forward.6} parent=0
    _
  %s9 = ssub.s32 1, %s7
  %s10 = scalar_select 0, %s9, %s7
  $region1: #{bottleneck_forward.6} parent=0
    #allocation2 [shape = 'u8[131072]{0}', space=vmem, size = 0x20000, scoped, tag = 'input window, operand 0']
    #allocation3 [shape = 's32[2]{0}', space=sflag, size = 0x8, scoped, tag = 'scoped memory for bottleneck_forward.6']
    #allocation4 [shape = 's32[2]{0}', space=sflag, size = 0x8, scoped, tag = 'scoped memory for bottleneck_forward.6']
    #allocation5 [shape = 'u8[512]{0}', space=vmem, size = 0x400, scoped, tag = 'input window, operand 1, single buffered']
    #allocation6 [shape = 's32[1]{0}', space=sflag, size = 0x4, scoped, tag = 'scoped memory for bottleneck_forward.6']
    #allocation7 [shape = 'u8[512]{0}', space=vmem, size = 0x400, scoped, tag = 'input window, operand 2, single buffered']
    #allocation8 [shape = 'u8[32768]{0}', space=vmem, size = 0x8000, scoped, tag = 'input window, operand 3, single buffered']
    #allocation9 [shape = 's32[1]{0}', space=sflag, size = 0x4, scoped, tag = 'scoped memory for bottleneck_forward.6']
    #allocation10 [shape = 'u8[131072]{0}', space=vmem, size = 0x20000, scoped, tag = 'output window, operand 0']
    #allocation11 [shape = 'u8[8192]{0}', space=vmem, size = 0x2000, scoped, tag = 'output window, operand 1']
    #allocation12 [shape = 's32[2]{0}', space=sflag, size = 0x8, scoped, tag = 'scoped memory for bottleneck_forward.6']
    %11 = vsyncpa [#allocation3], 0
    %s12 = scalar_lea.sflag [#allocation3], 1
    %13 = vsyncpa %s12, 0
    %14 = vsyncpa [#allocation6], 0
    %15 = vsyncpa [#allocation9], 0
    %16 = vsyncpa [#allocation4], 0
    %s17 = scalar_lea.sflag [#allocation4], 1
    %18 = vsyncpa %s17, 0
    %19 = vsyncpa [#allocation12], 0
    %s20 = scalar_lea.sflag [#allocation12], 1
    %21 = vsyncpa %s20, 0
    loop: start=0, step=1, limit=4
    $region2: #{bottleneck_forward.6} parent=1 // loop_pre_header
      _
    $region3: #{bottleneck_forward.6} parent=1 // loop_header
      %s23 = sphi 0, %s27
      %p24 = scmp.ge.s32.totalorder %s23, 4
      %s33 = sphi 0, %s35
      %s36 = sphi 0, %s33
      %s37 = sphi 0, %s36
      %s53 = sphi 0, %s37
      %s57 = sphi 0, %s57
      %s59 = sphi 0, %s57
      %s60 = sphi 0, %s59
      %s74 = sphi 0, %s60
      %s78 = sphi 0, %s78
      %s80 = sphi 0, %s78
      %s81 = sphi 0, %s80
      %s95 = sphi 0, %s81
      %s99 = sphi 0, %s99
      %s101 = sphi 0, %s99
      %s102 = sphi 0, %s101
      %s116 = sphi 0, %s102
      %s122 = sphi 0, %s124
      %s125 = sphi 0, %s122
      %s126 = sphi 0, %s125
      %s142 = sphi 0, %s126
      %s148 = sphi 0, %s150
      %s151 = sphi 0, %s148
      %s152 = sphi 0, %s151
      %s168 = sphi 0, %s152
    $region4: #{bottleneck_forward.6} parent=1 // loop_header_branch
      %26 = sbr.rel (%p24) target = $region8
    $region5: #{bottleneck_forward.6} parent=1 // loop_body
      %s28 = ssub.s32 %s23, 1
      %s29 = ssub.s32 %s23, 2
      %s30 = sadd.s32 %s23, 1
      %s31 = ssub.s32 %s23, %s30
      %p32 = scmp.eq.s32.totalorder %s31, 0
      %s34 = sadd.s32 %s33, 1
      %s35 = scalar_select %p32, %s33, %s34
      %p38 = pneg %p32
      %p39 = scmp.eq.s32.totalorder %s23, 1
      %p40 = por %p38, %p39
      %p41 = scmp.ne.s32.totalorder %s33, %s36
      %p42 = scmp.eq.s32.totalorder %s23, 0
      %p43 = por %p41, %p42
      %p44 = scmp.ne.s32.totalorder %s33, %s36
      %p45 = scmp.eq.s32.totalorder %s28, 1
      %p46 = por %p44, %p45
      %p47 = scmp.ne.s32.totalorder %s36, %s37
      %p48 = scmp.eq.s32.totalorder %s28, 0
      %p49 = por %p47, %p48
      %p50 = scmp.ne.s32.totalorder %s36, %s37
      %p51 = scmp.eq.s32.totalorder %s29, 1
      %p52 = por %p50, %p51
      %p54 = scmp.ne.s32.totalorder %s37, %s53
      %p55 = scmp.eq.s32.totalorder %s29, 0
      %p56 = por %p54, %p55
      %s58 = sadd.s32 %s57, 1
      %p61 = scmp.eq.s32.totalorder %s23, 1
      %p62 = scmp.ne.s32.totalorder %s57, %s59
      %p63 = scmp.eq.s32.totalorder %s23, 0
      %p64 = por %p62, %p63
      %p65 = scmp.ne.s32.totalorder %s57, %s59
      %p66 = scmp.eq.s32.totalorder %s28, 1
      %p67 = por %p65, %p66
      %p68 = scmp.ne.s32.totalorder %s59, %s60
      %p69 = scmp.eq.s32.totalorder %s28, 0
      %p70 = por %p68, %p69
      %p71 = scmp.ne.s32.totalorder %s59, %s60
      %p72 = scmp.eq.s32.totalorder %s29, 1
      %p73 = por %p71, %p72
      %p75 = scmp.ne.s32.totalorder %s60, %s74
      %p76 = scmp.eq.s32.totalorder %s29, 0
      %p77 = por %p75, %p76
      %s79 = sadd.s32 %s78, 1
      %p82 = scmp.eq.s32.totalorder %s23, 1
      %p83 = scmp.ne.s32.totalorder %s78, %s80
      %p84 = scmp.eq.s32.totalorder %s23, 0
      %p85 = por %p83, %p84
      %p86 = scmp.ne.s32.totalorder %s78, %s80
      %p87 = scmp.eq.s32.totalorder %s28, 1
      %p88 = por %p86, %p87
      %p89 = scmp.ne.s32.totalorder %s80, %s81
      %p90 = scmp.eq.s32.totalorder %s28, 0
      %p91 = por %p89, %p90
      %p92 = scmp.ne.s32.totalorder %s80, %s81
      %p93 = scmp.eq.s32.totalorder %s29, 1
      %p94 = por %p92, %p93
      %p96 = scmp.ne.s32.totalorder %s81, %s95
      %p97 = scmp.eq.s32.totalorder %s29, 0
      %p98 = por %p96, %p97
      %s100 = sadd.s32 %s99, 1
      %p103 = scmp.eq.s32.totalorder %s23, 1
      %p104 = scmp.ne.s32.totalorder %s99, %s101
      %p105 = scmp.eq.s32.totalorder %s23, 0
      %p106 = por %p104, %p105
      %p107 = scmp.ne.s32.totalorder %s99, %s101
      %p108 = scmp.eq.s32.totalorder %s28, 1
      %p109 = por %p107, %p108
      %p110 = scmp.ne.s32.totalorder %s101, %s102
      %p111 = scmp.eq.s32.totalorder %s28, 0
      %p112 = por %p110, %p111
      %p113 = scmp.ne.s32.totalorder %s101, %s102
      %p114 = scmp.eq.s32.totalorder %s29, 1
      %p115 = por %p113, %p114
      %p117 = scmp.ne.s32.totalorder %s102, %s116
      %p118 = scmp.eq.s32.totalorder %s29, 0
      %p119 = por %p117, %p118
      %s120 = ssub.s32 %s23, %s30
      %p121 = scmp.eq.s32.totalorder %s120, 0
      %s123 = sadd.s32 %s122, 1
      %s124 = scalar_select %p121, %s122, %s123
      %p127 = pneg %p121
      %p128 = scmp.eq.s32.totalorder %s23, 1
      %p129 = por %p127, %p128
      %p130 = scmp.ne.s32.totalorder %s122, %s125
      %p131 = scmp.eq.s32.totalorder %s23, 0
      %p132 = por %p130, %p131
      %p133 = scmp.ne.s32.totalorder %s122, %s125
      %p134 = scmp.eq.s32.totalorder %s28, 1
      %p135 = por %p133, %p134
      %p136 = scmp.ne.s32.totalorder %s125, %s126
      %p137 = scmp.eq.s32.totalorder %s28, 0
      %p138 = por %p136, %p137
      %p139 = scmp.ne.s32.totalorder %s125, %s126
      %p140 = scmp.eq.s32.totalorder %s29, 1
      %p141 = por %p139, %p140
      %p143 = scmp.ne.s32.totalorder %s126, %s142
      %p144 = scmp.eq.s32.totalorder %s29, 0
      %p145 = por %p143, %p144
      %s146 = ssub.s32 %s23, %s30
      %p147 = scmp.eq.s32.totalorder %s146, 0
      %s149 = sadd.s32 %s148, 1
      %s150 = scalar_select %p147, %s148, %s149
      %p153 = pneg %p147
      %p154 = scmp.eq.s32.totalorder %s23, 1
      %p155 = por %p153, %p154
      %p156 = scmp.ne.s32.totalorder %s148, %s151
      %p157 = scmp.eq.s32.totalorder %s23, 0
      %p158 = por %p156, %p157
      %p159 = scmp.ne.s32.totalorder %s148, %s151
      %p160 = scmp.eq.s32.totalorder %s28, 1
      %p161 = por %p159, %p160
      %p162 = scmp.ne.s32.totalorder %s151, %s152
      %p163 = scmp.eq.s32.totalorder %s28, 0
      %p164 = por %p162, %p163
      %p165 = scmp.ne.s32.totalorder %s151, %s152
      %p166 = scmp.eq.s32.totalorder %s29, 1
      %p167 = por %p165, %p166
      %p169 = scmp.ne.s32.totalorder %s152, %s168
      %p170 = scmp.eq.s32.totalorder %s29, 0
      %p171 = por %p169, %p170
      %p172 = scmp.le.s32.totalorder 1, %s23
      %p173 = scmp.lt.s32.totalorder %s23, 3
      %p174 = pnand %p172, %p173
      %p175 = pneg %p174
      // Predicated region
      $region9: #{bottleneck_forward.6} parent=5 // pred_check
        _
      $region10: #{bottleneck_forward.6} parent=5 // pred_check_branch
        %177 = sbr.rel (%p174) target = $region12
      $region11: #{bottleneck_forward.6} parent=5 // pred_region
        %s178 = ssub.s32 %s23, 1
        // Predicated region
        $region13: #{bottleneck_forward.6} parent=11 // pred_check
          %p179 = pneg %p70
        $region14: #{bottleneck_forward.6} parent=11 // pred_check_branch
          %181 = sbr.rel (%p179) target = $region16
        $region15: #{bottleneck_forward.6} parent=11 // pred_region
          %s183 = ssub.s32 16, 16
          %184 = vsyncadd [#allocation6], %s183
          %s186 = sshll.u32 [#allocation5], 4
          %s187 = int_to_ptr.vmem [resolvable:$true] %s186
          %189 = dma.hbm_to_vmem [thread:$0]  %s1, 16, %s187, [#allocation6]
        $region16: #{bottleneck_forward.6} parent=11 // pred_fallthru
          _
        // Predicated region
        $region17: #{bottleneck_forward.6} parent=11 // pred_check
          %p190 = pneg %p91
        $region18: #{bottleneck_forward.6} parent=11 // pred_check_branch
          %192 = sbr.rel (%p190) target = $region20
        $region19: #{bottleneck_forward.6} parent=11 // pred_region
          %s194 = ssub.s32 16, 16
          %195 = vsyncadd [#allocation6], %s194
          %s197 = sshll.u32 [#allocation7], 4
          %s198 = int_to_ptr.vmem [resolvable:$true] %s197
          %200 = dma.hbm_to_vmem [thread:$0]  %s2, 16, %s198, [#allocation6]
        $region20: #{bottleneck_forward.6} parent=11 // pred_fallthru
          _
        // Predicated region
        $region21: #{bottleneck_forward.6} parent=11 // pred_check
          %p201 = pneg %p112
        $region22: #{bottleneck_forward.6} parent=11 // pred_check_branch
          %203 = sbr.rel (%p201) target = $region24
        $region23: #{bottleneck_forward.6} parent=11 // pred_region
          %s205 = ssub.s32 1024, 1024
          %206 = vsyncadd [#allocation9], %s205
          %s207 = sshll.u32 [#allocation8], 4
          %s208 = int_to_ptr.vmem [resolvable:$true] %s207
          %213 = dma.hbm_to_vmem [thread:$0]  %s3, 1024, %s208, [#allocation9], 64, 64, 4
        $region24: #{bottleneck_forward.6} parent=11 // pred_fallthru
          _
      $region12: #{bottleneck_forward.6} parent=5 // pred_fallthru
        _
      %p214 = scmp.lt.s32.totalorder %s23, 2
      // Predicated region
      $region25: #{bottleneck_forward.6} parent=5 // pred_check
        %p215 = pneg %p214
      $region26: #{bottleneck_forward.6} parent=5 // pred_check_branch
        %217 = sbr.rel (%p215) target = $region28
      $region27: #{bottleneck_forward.6} parent=5 // pred_region
        // Predicated region
        $region29: #{bottleneck_forward.6} parent=27 // pred_check
          %p218 = pneg %p43
        $region30: #{bottleneck_forward.6} parent=27 // pred_check_branch
          %220 = sbr.rel (%p218) target = $region32
        $region31: #{bottleneck_forward.6} parent=27 // pred_region
          %s221 = sand.u32 %s33, 1
          %s222 = scalar_lea.sflag [#allocation3], %s221
          %s223 = sand.u32 %s33, 1
          %s224 = smul.addr %s223, 128
          %s225 = scalar_lea.vmem [#allocation2], %s224
          %s226 = smul.u32 32, %s23
          %s228 = ssub.s32 2048, 2048
          %229 = vsyncadd %s222, %s228
          %s230 = smul.addr %s226, 64
          %s231 = scalar_lea.hbm %s0, %s230
          %s232 = sshll.u32 %s225, 4
          %s233 = int_to_ptr.vmem [resolvable:$true] %s232
          %238 = dma.hbm_to_vmem [thread:$0]  %s231, 2048, %s233, %s222, 64, 64, 4
        $region32: #{bottleneck_forward.6} parent=27 // pred_fallthru
          _
      $region28: #{bottleneck_forward.6} parent=5 // pred_fallthru
        _
      %p239 = scmp.le.s32.totalorder 1, %s23
      %p240 = scmp.lt.s32.totalorder %s23, 3
      %p241 = pnand %p239, %p240
      %p242 = pneg %p241
      // Predicated region
      $region33: #{bottleneck_forward.6} parent=5 // pred_check
        _
      $region34: #{bottleneck_forward.6} parent=5 // pred_check_branch
        %244 = sbr.rel (%p241) target = $region36
      $region35: #{bottleneck_forward.6} parent=5 // pred_region
        %s245 = ssub.s32 %s23, 1
        %s246 = sand.u32 %s36, 1
        %s247 = scalar_lea.sflag [#allocation3], %s246
        %s248 = sand.u32 %s36, 1
        %s249 = smul.addr %s248, 128
        %s250 = scalar_lea.vmem [#allocation2], %s249
        // Predicated region
        $region37: #{bottleneck_forward.6} parent=35 // pred_check
          %p251 = pneg %p49
        $region38: #{bottleneck_forward.6} parent=35 // pred_check_branch
          %253 = sbr.rel (%p251) target = $region40
        $region39: #{bottleneck_forward.6} parent=35 // pred_region
          %254 = dma.done %s247, 2048
        $region40: #{bottleneck_forward.6} parent=35 // pred_fallthru
          _
        // Predicated region
        $region41: #{bottleneck_forward.6} parent=35 // pred_check
          %p255 = pneg %p70
        $region42: #{bottleneck_forward.6} parent=35 // pred_check_branch
          %257 = sbr.rel (%p255) target = $region44
        $region43: #{bottleneck_forward.6} parent=35 // pred_region
          %258 = dma.done [#allocation6], 16
        $region44: #{bottleneck_forward.6} parent=35 // pred_fallthru
          _
        // Predicated region
        $region45: #{bottleneck_forward.6} parent=35 // pred_check
          %p259 = pneg %p91
        $region46: #{bottleneck_forward.6} parent=35 // pred_check_branch
          %261 = sbr.rel (%p259) target = $region48
        $region47: #{bottleneck_forward.6} parent=35 // pred_region
          %262 = dma.done [#allocation6], 16
        $region48: #{bottleneck_forward.6} parent=35 // pred_fallthru
          _
        // Predicated region
        $region49: #{bottleneck_forward.6} parent=35 // pred_check
          %p263 = pneg %p112
        $region50: #{bottleneck_forward.6} parent=35 // pred_check_branch
          %265 = sbr.rel (%p263) target = $region52
        $region51: #{bottleneck_forward.6} parent=35 // pred_region
          %266 = dma.done [#allocation9], 1024
        $region52: #{bottleneck_forward.6} parent=35 // pred_fallthru
          _
        %s267 = sand.u32 %s36, 1
        %s268 = scalar_lea.sflag [#allocation3], %s267
        %s269 = sand.u32 %s36, 1
        %s270 = smul.addr %s269, 128
        %s271 = scalar_lea.vmem [#allocation2], %s270
        %p272 = pneg %p49
        %p273 = pneg %p46
        %p274 = pneg %p70
        %p275 = pneg %p67
        %p276 = pneg %p91
        %p277 = pneg %p88
        %p278 = pneg %p112
        %p279 = pneg %p109
        %p280 = pneg %p138
        %p281 = pneg %p135
        %s282 = sand.u32 %s125, 1
        %s283 = scalar_lea.sflag [#allocation4], %s282
        %s284 = sand.u32 %s125, 1
        %s285 = smul.addr %s284, 128
        %s286 = scalar_lea.vmem [#allocation10], %s285
        %p287 = pneg %p164
        %p288 = pneg %p161
        %s289 = sand.u32 %s151, 1
        %s290 = scalar_lea.sflag [#allocation12], %s289
        %s291 = sand.u32 %s151, 1
        %s292 = smul.addr %s291, 8
        %s293 = scalar_lea.vmem [#allocation11], %s292
        %s294 = smul.u32 32, %s28
        %s295 = smul.u32 32, %s28
        %v297 = vld [vmem:[%s250] sm:$0xf]
        %v298 = vld [vmem:[%s250 + $0x4] sm:$0xf]
        %v299 = vld [vmem:[%s250 + $0x8] sm:$0xf]
        %v300 = vld [vmem:[%s250 + $0xc] sm:$0xf]
        %v301 = vld [vmem:[%s250 + $0x10] sm:$0xf]
        %v302 = vld [vmem:[%s250 + $0x14] sm:$0xf]
        %v303 = vld [vmem:[%s250 + $0x18] sm:$0xf]
        %v304 = vld [vmem:[%s250 + $0x1c] sm:$0xf]
        %v305 = vld [vmem:[%s250 + $0x20] sm:$0xf]
        %v306 = vld [vmem:[%s250 + $0x24] sm:$0xf]
        %v307 = vld [vmem:[%s250 + $0x28] sm:$0xf]
        %v308 = vld [vmem:[%s250 + $0x2c] sm:$0xf]
        %v309 = vld [vmem:[%s250 + $0x30] sm:$0xf]
        %v310 = vld [vmem:[%s250 + $0x34] sm:$0xf]
        %v311 = vld [vmem:[%s250 + $0x38] sm:$0xf]
        %v312 = vld [vmem:[%s250 + $0x3c] sm:$0xf]
        %v313 = vld [vmem:[%s250 + $0x40] sm:$0xf]
        %v314 = vld [vmem:[%s250 + $0x44] sm:$0xf]
        %v315 = vld [vmem:[%s250 + $0x48] sm:$0xf]
        %v316 = vld [vmem:[%s250 + $0x4c] sm:$0xf]
        %v317 = vld [vmem:[%s250 + $0x50] sm:$0xf]
        %v318 = vld [vmem:[%s250 + $0x54] sm:$0xf]
        %v319 = vld [vmem:[%s250 + $0x58] sm:$0xf]
        %v320 = vld [vmem:[%s250 + $0x5c] sm:$0xf]
        %v321 = vld [vmem:[%s250 + $0x60] sm:$0xf]
        %v322 = vld [vmem:[%s250 + $0x64] sm:$0xf]
        %v323 = vld [vmem:[%s250 + $0x68] sm:$0xf]
        %v324 = vld [vmem:[%s250 + $0x6c] sm:$0xf]
        %v325 = vld [vmem:[%s250 + $0x70] sm:$0xf]
        %v326 = vld [vmem:[%s250 + $0x74] sm:$0xf]
        %v327 = vld [vmem:[%s250 + $0x78] sm:$0xf]
        %v328 = vld [vmem:[%s250 + $0x7c] sm:$0xf]
        %v329 = vunpack.c.l.bf16 %v297
        %v330 = vunpack.c.l.bf16 %v298
        %v331 = vunpack.c.l.bf16 %v299
        %v332 = vunpack.c.l.bf16 %v300
        %v333 = vunpack.c.l.bf16 %v301
        %v334 = vunpack.c.l.bf16 %v302
        %v335 = vunpack.c.l.bf16 %v303
        %v336 = vunpack.c.l.bf16 %v304
        %v337 = vunpack.c.l.bf16 %v305
        %v338 = vunpack.c.l.bf16 %v306
        %v339 = vunpack.c.l.bf16 %v307
        %v340 = vunpack.c.l.bf16 %v308
        %v341 = vunpack.c.l.bf16 %v309
        %v342 = vunpack.c.l.bf16 %v310
        %v343 = vunpack.c.l.bf16 %v311
        %v344 = vunpack.c.l.bf16 %v312
        %v345 = vunpack.c.l.bf16 %v313
        %v346 = vunpack.c.l.bf16 %v314
        %v347 = vunpack.c.l.bf16 %v315
        %v348 = vunpack.c.l.bf16 %v316
        %v349 = vunpack.c.l.bf16 %v317
        %v350 = vunpack.c.l.bf16 %v318
        %v351 = vunpack.c.l.bf16 %v319
        %v352 = vunpack.c.l.bf16 %v320
        %v353 = vunpack.c.l.bf16 %v321
        %v354 = vunpack.c.l.bf16 %v322
        %v355 = vunpack.c.l.bf16 %v323
        %v356 = vunpack.c.l.bf16 %v324
        %v357 = vunpack.c.l.bf16 %v325
        %v358 = vunpack.c.l.bf16 %v326
        %v359 = vunpack.c.l.bf16 %v327
        %v360 = vunpack.c.l.bf16 %v328
        %v361 = vld [vmem:[#allocation5] sm:$0x1]
        %v363 = vlaneseq
        %v364 = vshrl.u32 %v363, 7
        %v365 = vsub.s32 0, %v364
        %v366 = vrot.slane %v361, %v365
        %v368 = vmul.f32 %v329, %v366
        %v369 = vmul.f32 %v330, %v366
        %v370 = vmul.f32 %v331, %v366
        %v371 = vmul.f32 %v332, %v366
        %v372 = vmul.f32 %v333, %v366
        %v373 = vmul.f32 %v334, %v366
        %v374 = vmul.f32 %v335, %v366
        %v375 = vmul.f32 %v336, %v366
        %v376 = vmul.f32 %v337, %v366
        %v377 = vmul.f32 %v338, %v366
        %v378 = vmul.f32 %v339, %v366
        %v379 = vmul.f32 %v340, %v366
        %v380 = vmul.f32 %v341, %v366
        %v381 = vmul.f32 %v342, %v366
        %v382 = vmul.f32 %v343, %v366
        %v383 = vmul.f32 %v344, %v366
        %v384 = vmul.f32 %v345, %v366
        %v385 = vmul.f32 %v346, %v366
        %v386 = vmul.f32 %v347, %v366
        %v387 = vmul.f32 %v348, %v366
        %v388 = vmul.f32 %v349, %v366
        %v389 = vmul.f32 %v350, %v366
        %v390 = vmul.f32 %v351, %v366
        %v391 = vmul.f32 %v352, %v366
        %v392 = vmul.f32 %v353, %v366
        %v393 = vmul.f32 %v354, %v366
        %v394 = vmul.f32 %v355, %v366
        %v395 = vmul.f32 %v356, %v366
        %v396 = vmul.f32 %v357, %v366
        %v397 = vmul.f32 %v358, %v366
        %v398 = vmul.f32 %v359, %v366
        %v399 = vmul.f32 %v360, %v366
        %v400 = vld [vmem:[#allocation7] sm:$0x1]
        %v402 = vlaneseq
        %v403 = vshrl.u32 %v402, 7
        %v404 = vsub.s32 0, %v403
        %v405 = vrot.slane %v400, %v404
        %v407 = vadd.f32 %v368, %v405
        %v408 = vadd.f32 %v369, %v405
        %v409 = vadd.f32 %v370, %v405
        %v410 = vadd.f32 %v371, %v405
        %v411 = vadd.f32 %v372, %v405
        %v412 = vadd.f32 %v373, %v405
        %v413 = vadd.f32 %v374, %v405
        %v414 = vadd.f32 %v375, %v405
        %v415 = vadd.f32 %v376, %v405
        %v416 = vadd.f32 %v377, %v405
        %v417 = vadd.f32 %v378, %v405
        %v418 = vadd.f32 %v379, %v405
        %v419 = vadd.f32 %v380, %v405
        %v420 = vadd.f32 %v381, %v405
        %v421 = vadd.f32 %v382, %v405
        %v422 = vadd.f32 %v383, %v405
        %v423 = vadd.f32 %v384, %v405
        %v424 = vadd.f32 %v385, %v405
        %v425 = vadd.f32 %v386, %v405
        %v426 = vadd.f32 %v387, %v405
        %v427 = vadd.f32 %v388, %v405
        %v428 = vadd.f32 %v389, %v405
        %v429 = vadd.f32 %v390, %v405
        %v430 = vadd.f32 %v391, %v405
        %v431 = vadd.f32 %v392, %v405
        %v432 = vadd.f32 %v393, %v405
        %v433 = vadd.f32 %v394, %v405
        %v434 = vadd.f32 %v395, %v405
        %v435 = vadd.f32 %v396, %v405
        %v436 = vadd.f32 %v397, %v405
        %v437 = vadd.f32 %v398, %v405
        %v438 = vadd.f32 %v399, %v405
        %v439 = vmax.f32 %v407, 0.0
        %v440 = vmax.f32 %v408, 0.0
        %v441 = vmax.f32 %v409, 0.0
        %v442 = vmax.f32 %v410, 0.0
        %v443 = vmax.f32 %v411, 0.0
        %v444 = vmax.f32 %v412, 0.0
        %v445 = vmax.f32 %v413, 0.0
        %v446 = vmax.f32 %v414, 0.0
        %v447 = vmax.f32 %v415, 0.0
        %v448 = vmax.f32 %v416, 0.0
        %v449 = vmax.f32 %v417, 0.0
        %v450 = vmax.f32 %v418, 0.0
        %v451 = vmax.f32 %v419, 0.0
        %v452 = vmax.f32 %v420, 0.0
        %v453 = vmax.f32 %v421, 0.0
        %v454 = vmax.f32 %v422, 0.0
        %v455 = vmax.f32 %v423, 0.0
        %v456 = vmax.f32 %v424, 0.0
        %v457 = vmax.f32 %v425, 0.0
        %v458 = vmax.f32 %v426, 0.0
        %v459 = vmax.f32 %v427, 0.0
        %v460 = vmax.f32 %v428, 0.0
        %v461 = vmax.f32 %v429, 0.0
        %v462 = vmax.f32 %v430, 0.0
        %v463 = vmax.f32 %v431, 0.0
        %v464 = vmax.f32 %v432, 0.0
        %v465 = vmax.f32 %v433, 0.0
        %v466 = vmax.f32 %v434, 0.0
        %v467 = vmax.f32 %v435, 0.0
        %v468 = vmax.f32 %v436, 0.0
        %v469 = vmax.f32 %v437, 0.0
        %v470 = vmax.f32 %v438, 0.0
        %v471 = vpack.c.bf16 %v440, %v439
        %v472 = vpack.c.bf16 %v442, %v441
        %v473 = vpack.c.bf16 %v444, %v443
        %v474 = vpack.c.bf16 %v446, %v445
        %v475 = vpack.c.bf16 %v448, %v447
        %v476 = vpack.c.bf16 %v450, %v449
        %v477 = vpack.c.bf16 %v452, %v451
        %v478 = vpack.c.bf16 %v454, %v453
        %v479 = vpack.c.bf16 %v456, %v455
        %v480 = vpack.c.bf16 %v458, %v457
        %v481 = vpack.c.bf16 %v460, %v459
        %v482 = vpack.c.bf16 %v462, %v461
        %v483 = vpack.c.bf16 %v464, %v463
        %v484 = vpack.c.bf16 %v466, %v465
        %v485 = vpack.c.bf16 %v468, %v467
        %v486 = vpack.c.bf16 %v470, %v469
        %v487 = vld [vmem:[#allocation8] sm:$0xf]
        %v488 = vld [vmem:[#allocation8 + $0x4] sm:$0xf]
        %v489 = vld [vmem:[#allocation8 + $0x8] sm:$0xf]
        %v490 = vld [vmem:[#allocation8 + $0xc] sm:$0xf]
        %v491 = vld [vmem:[#allocation8 + $0x10] sm:$0xf]
        %v492 = vld [vmem:[#allocation8 + $0x14] sm:$0xf]
        %v493 = vld [vmem:[#allocation8 + $0x18] sm:$0xf]
        %v494 = vld [vmem:[#allocation8 + $0x1c] sm:$0xf]
        %v495 = vld [vmem:[#allocation8 + $0x20] sm:$0xf]
        %v496 = vld [vmem:[#allocation8 + $0x24] sm:$0xf]
        %v497 = vld [vmem:[#allocation8 + $0x28] sm:$0xf]
        %v498 = vld [vmem:[#allocation8 + $0x2c] sm:$0xf]
        %v499 = vld [vmem:[#allocation8 + $0x30] sm:$0xf]
        %v500 = vld [vmem:[#allocation8 + $0x34] sm:$0xf]
        %v501 = vld [vmem:[#allocation8 + $0x38] sm:$0xf]
        %v502 = vld [vmem:[#allocation8 + $0x3c] sm:$0xf]
        %v519 = vunpack.c.l.b16 %v487
        %v520 = vunpack.c.l.b16 %v488
        %v521 = vunpack.c.l.b16 %v489
        %v522 = vunpack.c.l.b16 %v490
        %v523 = vunpack.c.l.b16 %v491
        %v524 = vunpack.c.l.b16 %v492
        %v525 = vunpack.c.l.b16 %v493
        %v526 = vunpack.c.l.b16 %v494
        %v527 = vunpack.c.l.b16 %v495
        %v528 = vunpack.c.l.b16 %v496
        %v529 = vunpack.c.l.b16 %v497
        %v530 = vunpack.c.l.b16 %v498
        %v531 = vunpack.c.l.b16 %v499
        %v532 = vunpack.c.l.b16 %v500
        %v533 = vunpack.c.l.b16 %v501
        %v534 = vunpack.c.l.b16 %v502
        %v535 = vpack.c.b16 %v520, %v519
        %v536 = vpack.c.b16 %v522, %v521
        %v537 = vpack.c.b16 %v524, %v523
        %v538 = vpack.c.b16 %v526, %v525
        %v539 = vpack.c.b16 %v528, %v527
        %v540 = vpack.c.b16 %v530, %v529
        %v541 = vpack.c.b16 %v532, %v531
        %v542 = vpack.c.b16 %v534, %v533
        %551 = vmatprep.subr.bf16.mxu0 0
        %552 = vmatpush1.bf16.msra.mxu0 %v535
        %553 = vmatprep.subr.bf16.mxu0 0
        %554 = vmatpush1.bf16.msra.mxu0 %v536
        %555 = vmatprep.subr.bf16.mxu0 0
        %556 = vmatpush1.bf16.msra.mxu0 %v537
        %557 = vmatprep.subr.bf16.mxu0 0
        %558 = vmatpush1.bf16.msra.mxu0 %v538
        %559 = vmatprep.subr.bf16.mxu0 0
        %560 = vmatpush1.bf16.msra.mxu0 %v539
        %561 = vmatprep.subr.bf16.mxu0 0
        %562 = vmatpush1.bf16.msra.mxu0 %v540
        %563 = vmatprep.subr.bf16.mxu0 0
        %564 = vmatpush1.bf16.msra.mxu0 %v541
        %565 = vmatprep.subr.bf16.mxu0 0
        %566 = vmatpush1.bf16.msra.mxu0 %v542
        %567 = vmatprep.subr.bf16.mxu0 0
        %568 = vmatpush1.bf16.msra.mxu0 0
        %569 = vmatprep.subr.bf16.mxu0 0
        %570 = vmatpush1.bf16.msra.mxu0 0
        %571 = vmatprep.subr.bf16.mxu0 0
        %572 = vmatpush1.bf16.msra.mxu0 0
        %573 = vmatprep.subr.bf16.mxu0 0
        %574 = vmatpush1.bf16.msra.mxu0 0
        %575 = vmatprep.subr.bf16.mxu0 0
        %576 = vmatpush1.bf16.msra.mxu0 0
        %577 = vmatprep.subr.bf16.mxu0 0
        %578 = vmatpush1.bf16.msra.mxu0 0
        %579 = vmatprep.subr.bf16.mxu0 0
        %580 = vmatpush1.bf16.msra.mxu0 0
        %581 = vmatprep.subr.bf16.mxu0 0
        %582 = vmatpush1.bf16.msra.mxu0 0
        %583 = vmatprep.mubr.bf16.mxu0 0
        %584 = vmatmul.mubr.bf16.gmra.mrb[0].mxu0 %v471
        %v585 = vpop.f32.mrb[0].mxu0
        %v586 = vadd.f32 0.0, %v585
        %v587 = vpop.f32.mrb[0].mxu0
        %v588 = vpop.f32.mrb[0].mxu0
        %v589 = vadd.f32 0.0, %v588
        %v590 = vpop.f32.mrb[0].mxu0
        %591 = vmatprep.mubr.bf16.mxu0 0
        %592 = vmatmul.mubr.bf16.gmra.mrb[0].mxu0 %v472
        %v593 = vpop.f32.mrb[0].mxu0
        %v594 = vadd.f32 0.0, %v593
        %v595 = vpop.f32.mrb[0].mxu0
        %v596 = vpop.f32.mrb[0].mxu0
        %v597 = vadd.f32 0.0, %v596
        %v598 = vpop.f32.mrb[0].mxu0
        %599 = vmatprep.mubr.bf16.mxu0 0
        %600 = vmatmul.mubr.bf16.gmra.mrb[0].mxu0 %v473
        %v601 = vpop.f32.mrb[0].mxu0
        %v602 = vadd.f32 0.0, %v601
        %v603 = vpop.f32.mrb[0].mxu0
        %v604 = vpop.f32.mrb[0].mxu0
        %v605 = vadd.f32 0.0, %v604
        %v606 = vpop.f32.mrb[0].mxu0
        %607 = vmatprep.mubr.bf16.mxu0 0
        %608 = vmatmul.mubr.bf16.gmra.mrb[0].mxu0 %v474
        %v609 = vpop.f32.mrb[0].mxu0
        %v610 = vadd.f32 0.0, %v609
        %v611 = vpop.f32.mrb[0].mxu0
        %v612 = vpop.f32.mrb[0].mxu0
        %v613 = vadd.f32 0.0, %v612
        %v614 = vpop.f32.mrb[0].mxu0
        %615 = vmatprep.mubr.bf16.mxu0 0
        %616 = vmatmul.mubr.bf16.gmra.mrb[0].mxu0 %v475
        %v617 = vpop.f32.mrb[0].mxu0
        %v618 = vadd.f32 0.0, %v617
        %v619 = vpop.f32.mrb[0].mxu0
        %v620 = vpop.f32.mrb[0].mxu0
        %v621 = vadd.f32 0.0, %v620
        %v622 = vpop.f32.mrb[0].mxu0
        %623 = vmatprep.mubr.bf16.mxu0 0
        %624 = vmatmul.mubr.bf16.gmra.mrb[0].mxu0 %v476
        %v625 = vpop.f32.mrb[0].mxu0
        %v626 = vadd.f32 0.0, %v625
        %v627 = vpop.f32.mrb[0].mxu0
        %v628 = vpop.f32.mrb[0].mxu0
        %v629 = vadd.f32 0.0, %v628
        %v630 = vpop.f32.mrb[0].mxu0
        %631 = vmatprep.mubr.bf16.mxu0 0
        %632 = vmatmul.mubr.bf16.gmra.mrb[0].mxu0 %v477
        %v633 = vpop.f32.mrb[0].mxu0
        %v634 = vadd.f32 0.0, %v633
        %v635 = vpop.f32.mrb[0].mxu0
        %v636 = vpop.f32.mrb[0].mxu0
        %v637 = vadd.f32 0.0, %v636
        %v638 = vpop.f32.mrb[0].mxu0
        %639 = vmatprep.mubr.bf16.mxu0 0
        %640 = vmatmul.mubr.bf16.gmra.mrb[0].mxu0 %v478
        %v641 = vpop.f32.mrb[0].mxu0
        %v642 = vadd.f32 0.0, %v641
        %v643 = vpop.f32.mrb[0].mxu0
        %v644 = vpop.f32.mrb[0].mxu0
        %v645 = vadd.f32 0.0, %v644
        %v646 = vpop.f32.mrb[0].mxu0
        %647 = vmatprep.mubr.bf16.mxu0 0
        %648 = vmatmul.mubr.bf16.gmra.mrb[0].mxu0 %v479
        %v649 = vpop.f32.mrb[0].mxu0
        %v650 = vadd.f32 0.0, %v649
        %v651 = vpop.f32.mrb[0].mxu0
        %v652 = vpop.f32.mrb[0].mxu0
        %v653 = vadd.f32 0.0, %v652
        %v654 = vpop.f32.mrb[0].mxu0
        %655 = vmatprep.mubr.bf16.mxu0 0
        %656 = vmatmul.mubr.bf16.gmra.mrb[0].mxu0 %v480
        %v657 = vpop.f32.mrb[0].mxu0
        %v658 = vadd.f32 0.0, %v657
        %v659 = vpop.f32.mrb[0].mxu0
        %v660 = vpop.f32.mrb[0].mxu0
        %v661 = vadd.f32 0.0, %v660
        %v662 = vpop.f32.mrb[0].mxu0
        %663 = vmatprep.mubr.bf16.mxu0 0
        %664 = vmatmul.mubr.bf16.gmra.mrb[0].mxu0 %v481
        %v665 = vpop.f32.mrb[0].mxu0
        %v666 = vadd.f32 0.0, %v665
        %v667 = vpop.f32.mrb[0].mxu0
        %v668 = vpop.f32.mrb[0].mxu0
        %v669 = vadd.f32 0.0, %v668
        %v670 = vpop.f32.mrb[0].mxu0
        %671 = vmatprep.mubr.bf16.mxu0 0
        %672 = vmatmul.mubr.bf16.gmra.mrb[0].mxu0 %v482
        %v673 = vpop.f32.mrb[0].mxu0
        %v674 = vadd.f32 0.0, %v673
        %v675 = vpop.f32.mrb[0].mxu0
        %v676 = vpop.f32.mrb[0].mxu0
        %v677 = vadd.f32 0.0, %v676
        %v678 = vpop.f32.mrb[0].mxu0
        %679 = vmatprep.mubr.bf16.mxu0 0
        %680 = vmatmul.mubr.bf16.gmra.mrb[0].mxu0 %v483
        %v681 = vpop.f32.mrb[0].mxu0
        %v682 = vadd.f32 0.0, %v681
        %v683 = vpop.f32.mrb[0].mxu0
        %v684 = vpop.f32.mrb[0].mxu0
        %v685 = vadd.f32 0.0, %v684
        %v686 = vpop.f32.mrb[0].mxu0
        %687 = vmatprep.mubr.bf16.mxu0 0
        %688 = vmatmul.mubr.bf16.gmra.mrb[0].mxu0 %v484
        %v689 = vpop.f32.mrb[0].mxu0
        %v690 = vadd.f32 0.0, %v689
        %v691 = vpop.f32.mrb[0].mxu0
        %v692 = vpop.f32.mrb[0].mxu0
        %v693 = vadd.f32 0.0, %v692
        %v694 = vpop.f32.mrb[0].mxu0
        %695 = vmatprep.mubr.bf16.mxu0 0
        %696 = vmatmul.mubr.bf16.gmra.mrb[0].mxu0 %v485
        %v697 = vpop.f32.mrb[0].mxu0
        %v698 = vadd.f32 0.0, %v697
        %v699 = vpop.f32.mrb[0].mxu0
        %v700 = vpop.f32.mrb[0].mxu0
        %v701 = vadd.f32 0.0, %v700
        %v702 = vpop.f32.mrb[0].mxu0
        %703 = vmatprep.mubr.bf16.mxu0 0
        %704 = vmatmul.mubr.bf16.gmra.mrb[0].mxu0 %v486
        %v705 = vpop.f32.mrb[0].mxu0
        %v706 = vadd.f32 0.0, %v705
        %v707 = vpop.f32.mrb[0].mxu0
        %v708 = vpop.f32.mrb[0].mxu0
        %v709 = vadd.f32 0.0, %v708
        %v710 = vpop.f32.mrb[0].mxu0
        %711 = vdwg.mxu0
        %v712 = vpack.c.bf16 %v589, %v586
        %v713 = vpack.c.bf16 %v597, %v594
        %v714 = vpack.c.bf16 %v605, %v602
        %v715 = vpack.c.bf16 %v613, %v610
        %v716 = vpack.c.bf16 %v621, %v618
        %v717 = vpack.c.bf16 %v629, %v626
        %v718 = vpack.c.bf16 %v637, %v634
        %v719 = vpack.c.bf16 %v645, %v642
        %v720 = vpack.c.bf16 %v653, %v650
        %v721 = vpack.c.bf16 %v661, %v658
        %v722 = vpack.c.bf16 %v669, %v666
        %v723 = vpack.c.bf16 %v677, %v674
        %v724 = vpack.c.bf16 %v685, %v682
        %v725 = vpack.c.bf16 %v693, %v690
        %v726 = vpack.c.bf16 %v701, %v698
        %v727 = vpack.c.bf16 %v709, %v706
        %v744 = vunpack.c.l.b16 %v712
        %v745 = vunpack.c.h.b16 %v712
        %v746 = vunpack.c.l.b16 %v713
        %v747 = vunpack.c.h.b16 %v713
        %v748 = vunpack.c.l.b16 %v714
        %v749 = vunpack.c.h.b16 %v714
        %v750 = vunpack.c.l.b16 %v715
        %v751 = vunpack.c.h.b16 %v715
        %v752 = vunpack.c.l.b16 %v716
        %v753 = vunpack.c.h.b16 %v716
        %v754 = vunpack.c.l.b16 %v717
        %v755 = vunpack.c.h.b16 %v717
        %v756 = vunpack.c.l.b16 %v718
        %v757 = vunpack.c.h.b16 %v718
        %v758 = vunpack.c.l.b16 %v719
        %v759 = vunpack.c.h.b16 %v719
        %v760 = vunpack.c.l.b16 %v720
        %v761 = vunpack.c.h.b16 %v720
        %v762 = vunpack.c.l.b16 %v721
        %v763 = vunpack.c.h.b16 %v721
        %v764 = vunpack.c.l.b16 %v722
        %v765 = vunpack.c.h.b16 %v722
        %v766 = vunpack.c.l.b16 %v723
        %v767 = vunpack.c.h.b16 %v723
        %v768 = vunpack.c.l.b16 %v724
        %v769 = vunpack.c.h.b16 %v724
        %v770 = vunpack.c.l.b16 %v725
        %v771 = vunpack.c.h.b16 %v725
        %v772 = vunpack.c.l.b16 %v726
        %v773 = vunpack.c.h.b16 %v726
        %v774 = vunpack.c.l.b16 %v727
        %v775 = vunpack.c.h.b16 %v727
        %v776 = vpack.c.b16 %v744, %v744
        %v777 = vpack.c.b16 %v745, %v745
        %v778 = vpack.c.b16 %v746, %v746
        %v779 = vpack.c.b16 %v747, %v747
        %v780 = vpack.c.b16 %v748, %v748
        %v781 = vpack.c.b16 %v749, %v749
        %v782 = vpack.c.b16 %v750, %v750
        %v783 = vpack.c.b16 %v751, %v751
        %v784 = vpack.c.b16 %v752, %v752
        %v785 = vpack.c.b16 %v753, %v753
        %v786 = vpack.c.b16 %v754, %v754
        %v787 = vpack.c.b16 %v755, %v755
        %v788 = vpack.c.b16 %v756, %v756
        %v789 = vpack.c.b16 %v757, %v757
        %v790 = vpack.c.b16 %v758, %v758
        %v791 = vpack.c.b16 %v759, %v759
        %v792 = vpack.c.b16 %v760, %v760
        %v793 = vpack.c.b16 %v761, %v761
        %v794 = vpack.c.b16 %v762, %v762
        %v795 = vpack.c.b16 %v763, %v763
        %v796 = vpack.c.b16 %v764, %v764
        %v797 = vpack.c.b16 %v765, %v765
        %v798 = vpack.c.b16 %v766, %v766
        %v799 = vpack.c.b16 %v767, %v767
        %v800 = vpack.c.b16 %v768, %v768
        %v801 = vpack.c.b16 %v769, %v769
        %v802 = vpack.c.b16 %v770, %v770
        %v803 = vpack.c.b16 %v771, %v771
        %v804 = vpack.c.b16 %v772, %v772
        %v805 = vpack.c.b16 %v773, %v773
        %v806 = vpack.c.b16 %v774, %v774
        %v807 = vpack.c.b16 %v775, %v775
        %840 = vst [vmem:[%s286] sm:$0xf] %v776
        %841 = vst [vmem:[%s286 + $0x4] sm:$0xf] %v777
        %842 = vst [vmem:[%s286 + $0x8] sm:$0xf] %v778
        %843 = vst [vmem:[%s286 + $0xc] sm:$0xf] %v779
        %844 = vst [vmem:[%s286 + $0x10] sm:$0xf] %v780
        %845 = vst [vmem:[%s286 + $0x14] sm:$0xf] %v781
        %846 = vst [vmem:[%s286 + $0x18] sm:$0xf] %v782
        %847 = vst [vmem:[%s286 + $0x1c] sm:$0xf] %v783
        %848 = vst [vmem:[%s286 + $0x20] sm:$0xf] %v784
        %849 = vst [vmem:[%s286 + $0x24] sm:$0xf] %v785
        %850 = vst [vmem:[%s286 + $0x28] sm:$0xf] %v786
        %851 = vst [vmem:[%s286 + $0x2c] sm:$0xf] %v787
        %852 = vst [vmem:[%s286 + $0x30] sm:$0xf] %v788
        %853 = vst [vmem:[%s286 + $0x34] sm:$0xf] %v789
        %854 = vst [vmem:[%s286 + $0x38] sm:$0xf] %v790
        %855 = vst [vmem:[%s286 + $0x3c] sm:$0xf] %v791
        %856 = vst [vmem:[%s286 + $0x40] sm:$0xf] %v792
        %857 = vst [vmem:[%s286 + $0x44] sm:$0xf] %v793
        %858 = vst [vmem:[%s286 + $0x48] sm:$0xf] %v794
        %859 = vst [vmem:[%s286 + $0x4c] sm:$0xf] %v795
        %860 = vst [vmem:[%s286 + $0x50] sm:$0xf] %v796
        %861 = vst [vmem:[%s286 + $0x54] sm:$0xf] %v797
        %862 = vst [vmem:[%s286 + $0x58] sm:$0xf] %v798
        %863 = vst [vmem:[%s286 + $0x5c] sm:$0xf] %v799
        %864 = vst [vmem:[%s286 + $0x60] sm:$0xf] %v800
        %865 = vst [vmem:[%s286 + $0x64] sm:$0xf] %v801
        %866 = vst [vmem:[%s286 + $0x68] sm:$0xf] %v802
        %867 = vst [vmem:[%s286 + $0x6c] sm:$0xf] %v803
        %868 = vst [vmem:[%s286 + $0x70] sm:$0xf] %v804
        %869 = vst [vmem:[%s286 + $0x74] sm:$0xf] %v805
        %870 = vst [vmem:[%s286 + $0x78] sm:$0xf] %v806
        %871 = vst [vmem:[%s286 + $0x7c] sm:$0xf] %v807
        %v872 = vadd.f32 %v586, %v589
        %v873 = vadd.f32 %v872, %v594
        %v874 = vadd.f32 %v873, %v597
        %v875 = vadd.f32 %v874, %v602
        %v876 = vadd.f32 %v875, %v605
        %v877 = vadd.f32 %v876, %v610
        %v878 = vadd.f32 %v877, %v613
        %v879 = vadd.f32 %v878, %v618
        %v880 = vadd.f32 %v879, %v621
        %v881 = vadd.f32 %v880, %v626
        %v882 = vadd.f32 %v881, %v629
        %v883 = vadd.f32 %v882, %v634
        %v884 = vadd.f32 %v883, %v637
        %v885 = vadd.f32 %v884, %v642
        %v886 = vadd.f32 %v885, %v645
        %v887 = vadd.f32 %v886, %v650
        %v888 = vadd.f32 %v887, %v653
        %v889 = vadd.f32 %v888, %v658
        %v890 = vadd.f32 %v889, %v661
        %v891 = vadd.f32 %v890, %v666
        %v892 = vadd.f32 %v891, %v669
        %v893 = vadd.f32 %v892, %v674
        %v894 = vadd.f32 %v893, %v677
        %v895 = vadd.f32 %v894, %v682
        %v896 = vadd.f32 %v895, %v685
        %v897 = vadd.f32 %v896, %v690
        %v898 = vadd.f32 %v897, %v693
        %v899 = vadd.f32 %v898, %v698
        %v900 = vadd.f32 %v899, %v701
        %v901 = vadd.f32 %v900, %v706
        %v902 = vadd.f32 %v901, %v709
        %v903 = vrot.slane %v902, 4
        %v904 = vadd.f32 %v902, %v903
        %v905 = vrot.slane %v904, 2
        %v906 = vadd.f32 %v904, %v905
        %v907 = vrot.slane %v906, 1
        %v908 = vadd.f32 %v906, %v907
        %v909 = vmul.f32 %v586, %v586
        %v910 = vmul.f32 %v589, %v589
        %v911 = vmul.f32 %v594, %v594
        %v912 = vmul.f32 %v597, %v597
        %v913 = vmul.f32 %v602, %v602
        %v914 = vmul.f32 %v605, %v605
        %v915 = vmul.f32 %v610, %v610
        %v916 = vmul.f32 %v613, %v613
        %v917 = vmul.f32 %v618, %v618
        %v918 = vmul.f32 %v621, %v621
        %v919 = vmul.f32 %v626, %v626
        %v920 = vmul.f32 %v629, %v629
        %v921 = vmul.f32 %v634, %v634
        %v922 = vmul.f32 %v637, %v637
        %v923 = vmul.f32 %v642, %v642
        %v924 = vmul.f32 %v645, %v645
        %v925 = vmul.f32 %v650, %v650
        %v926 = vmul.f32 %v653, %v653
        %v927 = vmul.f32 %v658, %v658
        %v928 = vmul.f32 %v661, %v661
        %v929 = vmul.f32 %v666, %v666
        %v930 = vmul.f32 %v669, %v669
        %v931 = vmul.f32 %v674, %v674
        %v932 = vmul.f32 %v677, %v677
        %v933 = vmul.f32 %v682, %v682
        %v934 = vmul.f32 %v685, %v685
        %v935 = vmul.f32 %v690, %v690
        %v936 = vmul.f32 %v693, %v693
        %v937 = vmul.f32 %v698, %v698
        %v938 = vmul.f32 %v701, %v701
        %v939 = vmul.f32 %v706, %v706
        %v940 = vmul.f32 %v709, %v709
        %v941 = vadd.f32 %v909, %v910
        %v942 = vadd.f32 %v941, %v911
        %v943 = vadd.f32 %v942, %v912
        %v944 = vadd.f32 %v943, %v913
        %v945 = vadd.f32 %v944, %v914
        %v946 = vadd.f32 %v945, %v915
        %v947 = vadd.f32 %v946, %v916
        %v948 = vadd.f32 %v947, %v917
        %v949 = vadd.f32 %v948, %v918
        %v950 = vadd.f32 %v949, %v919
        %v951 = vadd.f32 %v950, %v920
        %v952 = vadd.f32 %v951, %v921
        %v953 = vadd.f32 %v952, %v922
        %v954 = vadd.f32 %v953, %v923
        %v955 = vadd.f32 %v954, %v924
        %v956 = vadd.f32 %v955, %v925
        %v957 = vadd.f32 %v956, %v926
        %v958 = vadd.f32 %v957, %v927
        %v959 = vadd.f32 %v958, %v928
        %v960 = vadd.f32 %v959, %v929
        %v961 = vadd.f32 %v960, %v930
        %v962 = vadd.f32 %v961, %v931
        %v963 = vadd.f32 %v962, %v932
        %v964 = vadd.f32 %v963, %v933
        %v965 = vadd.f32 %v964, %v934
        %v966 = vadd.f32 %v965, %v935
        %v967 = vadd.f32 %v966, %v936
        %v968 = vadd.f32 %v967, %v937
        %v969 = vadd.f32 %v968, %v938
        %v970 = vadd.f32 %v969, %v939
        %v971 = vadd.f32 %v970, %v940
        %v972 = vrot.slane %v971, 4
        %v973 = vadd.f32 %v971, %v972
        %v974 = vrot.slane %v973, 2
        %v975 = vadd.f32 %v973, %v974
        %v976 = vrot.slane %v975, 1
        %v977 = vadd.f32 %v975, %v976
        %vm978 = vcmask 1040384
        %v979 = vsel %vm978, %v908, %v977
        %vm980 = vcmask 1041408
        %v981 = vsel %vm980, %v979, 0.0
        %982 = vst [vmem:[%s293] sm:$0xff] %v981
        %s983 = sand.u32 %s125, 1
        %s984 = scalar_lea.sflag [#allocation4], %s983
        %s985 = sand.u32 %s125, 1
        %s986 = smul.addr %s985, 128
        %s987 = scalar_lea.vmem [#allocation10], %s986
        %s988 = sand.u32 %s151, 1
        %s989 = scalar_lea.sflag [#allocation12], %s988
        %s990 = sand.u32 %s151, 1
        %s991 = smul.addr %s990, 8
        %s992 = scalar_lea.vmem [#allocation11], %s991
        // Predicated region
        $region53: #{bottleneck_forward.6} parent=35 // pred_check
          %p993 = pneg %p135
        $region54: #{bottleneck_forward.6} parent=35 // pred_check_branch
          %995 = sbr.rel (%p993) target = $region56
        $region55: #{bottleneck_forward.6} parent=35 // pred_region
          %s996 = smul.u32 32, %s28
          %s998 = ssub.s32 2048, 2048
          %999 = vsyncadd %s984, %s998
          %s1000 = smul.addr %s996, 64
          %s1001 = scalar_lea.hbm %s4, %s1000
          %s1002 = sshll.u32 %s987, 4
          %s1003 = int_to_ptr.vmem [resolvable:$true] %s1002
          %1008 = dma.vmem_to_hbm [thread:$0]  %s1003, 2048, %s1001, %s984, 64, 64, 4
        $region56: #{bottleneck_forward.6} parent=35 // pred_fallthru
          _
        // Predicated region
        $region57: #{bottleneck_forward.6} parent=35 // pred_check
          %p1009 = pneg %p161
        $region58: #{bottleneck_forward.6} parent=35 // pred_check_branch
          %1011 = sbr.rel (%p1009) target = $region60
        $region59: #{bottleneck_forward.6} parent=35 // pred_region
          %s1013 = ssub.s32 128, 128
          %1014 = vsyncadd %s989, %s1013
          %s1015 = smul.addr %s28, 128
          %s1016 = scalar_lea.hbm %s5, %s1015
          %s1018 = sshll.u32 %s992, 4
          %s1019 = int_to_ptr.vmem [resolvable:$true] %s1018
          %1021 = dma.vmem_to_hbm [thread:$0]  %s1019, 128, %s1016, %s989
        $region60: #{bottleneck_forward.6} parent=35 // pred_fallthru
          _
      $region36: #{bottleneck_forward.6} parent=5 // pred_fallthru
        _
      %p1022 = scmp.le.s32.totalorder 2, %s23
      // Predicated region
      $region61: #{bottleneck_forward.6} parent=5 // pred_check
        %p1023 = pneg %p1022
      $region62: #{bottleneck_forward.6} parent=5 // pred_check_branch
        %1025 = sbr.rel (%p1023) target = $region64
      $region63: #{bottleneck_forward.6} parent=5 // pred_region
        %s1026 = ssub.s32 %s23, 2
        // Predicated region
        $region65: #{bottleneck_forward.6} parent=63 // pred_check
          %p1027 = pneg %p141
        $region66: #{bottleneck_forward.6} parent=63 // pred_check_branch
          %1029 = sbr.rel (%p1027) target = $region68
        $region67: #{bottleneck_forward.6} parent=63 // pred_region
          %s1030 = sand.u32 %s126, 1
          %s1031 = scalar_lea.sflag [#allocation4], %s1030
          %s1032 = sand.u32 %s126, 1
          %s1033 = smul.addr %s1032, 128
          %s1034 = scalar_lea.vmem [#allocation10], %s1033
          %1035 = dma.done %s1031, 2048
        $region68: #{bottleneck_forward.6} parent=63 // pred_fallthru
          _
        // Predicated region
        $region69: #{bottleneck_forward.6} parent=63 // pred_check
          %p1036 = pneg %p167
        $region70: #{bottleneck_forward.6} parent=63 // pred_check_branch
          %1038 = sbr.rel (%p1036) target = $region72
        $region71: #{bottleneck_forward.6} parent=63 // pred_region
          %s1039 = sand.u32 %s152, 1
          %s1040 = scalar_lea.sflag [#allocation12], %s1039
          %s1041 = sand.u32 %s152, 1
          %s1042 = smul.addr %s1041, 8
          %s1043 = scalar_lea.vmem [#allocation11], %s1042
          %1044 = dma.done %s1040, 128
        $region72: #{bottleneck_forward.6} parent=63 // pred_fallthru
          _
      $region64: #{bottleneck_forward.6} parent=5 // pred_fallthru
        _
    $region6: #{bottleneck_forward.6} parent=1 // loop_footer
      %s27 = sadd.s32 1, %s23
    $region7: #{bottleneck_forward.6} parent=1 // loop_footer_branch
      %22 = sbr.rel target = $region3
    $region8: #{bottleneck_forward.6} parent=1 // loop_exit
      _
    %1045 = vsyncpa [#allocation3], 1
    %s1046 = scalar_lea.sflag [#allocation3], 1
    %1047 = vsyncpa %s1046, 1
    %1048 = vsyncpa [#allocation6], 1
    %1049 = vsyncpa [#allocation9], 1
    %1050 = vsyncpa [#allocation4], 1
    %s1051 = scalar_lea.sflag [#allocation4], 1
    %1052 = vsyncpa %s1051, 1
    %1053 = vsyncpa [#allocation12], 1
    %s1054 = scalar_lea.sflag [#allocation12], 1
    %1055 = vsyncpa %s1054, 1

// kernel: bottleneck_forward.5
$region0: #{bottleneck_forward.5}
  #allocation0 [shape = 'u32[]', space=smem, size = 0x4, offset = 0x4, fixed_abs, tag = 'smem constant byte address 0x4 - core index']
  #allocation1 [shape = 'u32[144,128]{1,0:T(1,128)}', space=vmem, size = 0x12000, scoped, tag = 'internal scratch']
  #allocation2 [shape = 'bf16[18,18,128]{2,1,0:T(8,128)(2,1)}', space=vmem, size = 0x1b000, scoped, tag = 'scratch operand']
  %s0 = inlined_call_operand.hbm [shape: bf16[2,16,16,128], index: 0, kind: input, shape index: {}]
  %s1 = inlined_call_operand.hbm [shape: f32[1,128], index: 1, kind: input, shape index: {}]
  %s2 = inlined_call_operand.hbm [shape: f32[1,128], index: 2, kind: input, shape index: {}]
  %s3 = inlined_call_operand.hbm [shape: bf16[1152,128], index: 3, kind: input, shape index: {}]
  %s4 = inlined_call_operand.hbm [shape: bf16[512,128], index: 4, kind: output, shape index: {0}]
  %s5 = inlined_call_operand.hbm [shape: f32[16,128], index: 5, kind: output, shape index: {1}]
  %6 = xla_tuple %s4, %s5
  %s7 = sld [smem:[#allocation0]]
  $region77: #{bottleneck_forward.5} parent=0
    _
  %s9 = ssub.s32 1, %s7
  %s10 = scalar_select 0, %s9, %s7
  $region1: #{bottleneck_forward.5} parent=0
    #allocation3 [shape = 'u8[131072]{0}', space=vmem, size = 0x20000, scoped, tag = 'input window, operand 0']
    #allocation4 [shape = 's32[2]{0}', space=sflag, size = 0x8, scoped, tag = 'scoped memory for bottleneck_forward.5']
    #allocation5 [shape = 's32[2]{0}', space=sflag, size = 0x8, scoped, tag = 'scoped memory for bottleneck_forward.5']
    #allocation6 [shape = 'u8[512]{0}', space=vmem, size = 0x400, scoped, tag = 'input window, operand 1, single buffered']
    #allocation7 [shape = 's32[1]{0}', space=sflag, size = 0x4, scoped, tag = 'scoped memory for bottleneck_forward.5']
    #allocation8 [shape = 'u8[512]{0}', space=vmem, size = 0x400, scoped, tag = 'input window, operand 2, single buffered']
    #allocation9 [shape = 'u8[294912]{0}', space=vmem, size = 0x48000, scoped, tag = 'input window, operand 3, single buffered']
    #allocation10 [shape = 's32[1]{0}', space=sflag, size = 0x4, scoped, tag = 'scoped memory for bottleneck_forward.5']
    #allocation11 [shape = 'u8[131072]{0}', space=vmem, size = 0x20000, scoped, tag = 'output window, operand 0']
    #allocation12 [shape = 'u8[8192]{0}', space=vmem, size = 0x2000, scoped, tag = 'output window, operand 1']
    #allocation13 [shape = 's32[2]{0}', space=sflag, size = 0x8, scoped, tag = 'scoped memory for bottleneck_forward.5']
    %11 = vsyncpa [#allocation4], 0
    %s12 = scalar_lea.sflag [#allocation4], 1
    %13 = vsyncpa %s12, 0
    %14 = vsyncpa [#allocation7], 0
    %15 = vsyncpa [#allocation10], 0
    %16 = vsyncpa [#allocation5], 0
    %s17 = scalar_lea.sflag [#allocation5], 1
    %18 = vsyncpa %s17, 0
    %19 = vsyncpa [#allocation13], 0
    %s20 = scalar_lea.sflag [#allocation13], 1
    %21 = vsyncpa %s20, 0
    loop: start=0, step=1, limit=4
    $region2: #{bottleneck_forward.5} parent=1 // loop_pre_header
      _
    $region3: #{bottleneck_forward.5} parent=1 // loop_header
      %s23 = sphi 0, %s27
      %p24 = scmp.ge.s32.totalorder %s23, 4
      %s33 = sphi 0, %s35
      %s36 = sphi 0, %s33
      %s37 = sphi 0, %s36
      %s53 = sphi 0, %s37
      %s57 = sphi 0, %s57
      %s59 = sphi 0, %s57
      %s60 = sphi 0, %s59
      %s74 = sphi 0, %s60
      %s78 = sphi 0, %s78
      %s80 = sphi 0, %s78
      %s81 = sphi 0, %s80
      %s95 = sphi 0, %s81
      %s99 = sphi 0, %s99
      %s101 = sphi 0, %s99
      %s102 = sphi 0, %s101
      %s116 = sphi 0, %s102
      %s122 = sphi 0, %s124
      %s125 = sphi 0, %s122
      %s126 = sphi 0, %s125
      %s142 = sphi 0, %s126
      %s148 = sphi 0, %s150
      %s151 = sphi 0, %s148
      %s152 = sphi 0, %s151
      %s168 = sphi 0, %s152
    $region4: #{bottleneck_forward.5} parent=1 // loop_header_branch
      %26 = sbr.rel (%p24) target = $region8
    $region5: #{bottleneck_forward.5} parent=1 // loop_body
      %s28 = ssub.s32 %s23, 1
      %s29 = ssub.s32 %s23, 2
      %s30 = sadd.s32 %s23, 1
      %s31 = ssub.s32 %s23, %s30
      %p32 = scmp.eq.s32.totalorder %s31, 0
      %s34 = sadd.s32 %s33, 1
      %s35 = scalar_select %p32, %s33, %s34
      %p38 = pneg %p32
      %p39 = scmp.eq.s32.totalorder %s23, 1
      %p40 = por %p38, %p39
      %p41 = scmp.ne.s32.totalorder %s33, %s36
      %p42 = scmp.eq.s32.totalorder %s23, 0
      %p43 = por %p41, %p42
      %p44 = scmp.ne.s32.totalorder %s33, %s36
      %p45 = scmp.eq.s32.totalorder %s28, 1
      %p46 = por %p44, %p45
      %p47 = scmp.ne.s32.totalorder %s36, %s37
      %p48 = scmp.eq.s32.totalorder %s28, 0
      %p49 = por %p47, %p48
      %p50 = scmp.ne.s32.totalorder %s36, %s37
      %p51 = scmp.eq.s32.totalorder %s29, 1
      %p52 = por %p50, %p51
      %p54 = scmp.ne.s32.totalorder %s37, %s53
      %p55 = scmp.eq.s32.totalorder %s29, 0
      %p56 = por %p54, %p55
      %s58 = sadd.s32 %s57, 1
      %p61 = scmp.eq.s32.totalorder %s23, 1
      %p62 = scmp.ne.s32.totalorder %s57, %s59
      %p63 = scmp.eq.s32.totalorder %s23, 0
      %p64 = por %p62, %p63
      %p65 = scmp.ne.s32.totalorder %s57, %s59
      %p66 = scmp.eq.s32.totalorder %s28, 1
      %p67 = por %p65, %p66
      %p68 = scmp.ne.s32.totalorder %s59, %s60
      %p69 = scmp.eq.s32.totalorder %s28, 0
      %p70 = por %p68, %p69
      %p71 = scmp.ne.s32.totalorder %s59, %s60
      %p72 = scmp.eq.s32.totalorder %s29, 1
      %p73 = por %p71, %p72
      %p75 = scmp.ne.s32.totalorder %s60, %s74
      %p76 = scmp.eq.s32.totalorder %s29, 0
      %p77 = por %p75, %p76
      %s79 = sadd.s32 %s78, 1
      %p82 = scmp.eq.s32.totalorder %s23, 1
      %p83 = scmp.ne.s32.totalorder %s78, %s80
      %p84 = scmp.eq.s32.totalorder %s23, 0
      %p85 = por %p83, %p84
      %p86 = scmp.ne.s32.totalorder %s78, %s80
      %p87 = scmp.eq.s32.totalorder %s28, 1
      %p88 = por %p86, %p87
      %p89 = scmp.ne.s32.totalorder %s80, %s81
      %p90 = scmp.eq.s32.totalorder %s28, 0
      %p91 = por %p89, %p90
      %p92 = scmp.ne.s32.totalorder %s80, %s81
      %p93 = scmp.eq.s32.totalorder %s29, 1
      %p94 = por %p92, %p93
      %p96 = scmp.ne.s32.totalorder %s81, %s95
      %p97 = scmp.eq.s32.totalorder %s29, 0
      %p98 = por %p96, %p97
      %s100 = sadd.s32 %s99, 1
      %p103 = scmp.eq.s32.totalorder %s23, 1
      %p104 = scmp.ne.s32.totalorder %s99, %s101
      %p105 = scmp.eq.s32.totalorder %s23, 0
      %p106 = por %p104, %p105
      %p107 = scmp.ne.s32.totalorder %s99, %s101
      %p108 = scmp.eq.s32.totalorder %s28, 1
      %p109 = por %p107, %p108
      %p110 = scmp.ne.s32.totalorder %s101, %s102
      %p111 = scmp.eq.s32.totalorder %s28, 0
      %p112 = por %p110, %p111
      %p113 = scmp.ne.s32.totalorder %s101, %s102
      %p114 = scmp.eq.s32.totalorder %s29, 1
      %p115 = por %p113, %p114
      %p117 = scmp.ne.s32.totalorder %s102, %s116
      %p118 = scmp.eq.s32.totalorder %s29, 0
      %p119 = por %p117, %p118
      %s120 = ssub.s32 %s23, %s30
      %p121 = scmp.eq.s32.totalorder %s120, 0
      %s123 = sadd.s32 %s122, 1
      %s124 = scalar_select %p121, %s122, %s123
      %p127 = pneg %p121
      %p128 = scmp.eq.s32.totalorder %s23, 1
      %p129 = por %p127, %p128
      %p130 = scmp.ne.s32.totalorder %s122, %s125
      %p131 = scmp.eq.s32.totalorder %s23, 0
      %p132 = por %p130, %p131
      %p133 = scmp.ne.s32.totalorder %s122, %s125
      %p134 = scmp.eq.s32.totalorder %s28, 1
      %p135 = por %p133, %p134
      %p136 = scmp.ne.s32.totalorder %s125, %s126
      %p137 = scmp.eq.s32.totalorder %s28, 0
      %p138 = por %p136, %p137
      %p139 = scmp.ne.s32.totalorder %s125, %s126
      %p140 = scmp.eq.s32.totalorder %s29, 1
      %p141 = por %p139, %p140
      %p143 = scmp.ne.s32.totalorder %s126, %s142
      %p144 = scmp.eq.s32.totalorder %s29, 0
      %p145 = por %p143, %p144
      %s146 = ssub.s32 %s23, %s30
      %p147 = scmp.eq.s32.totalorder %s146, 0
      %s149 = sadd.s32 %s148, 1
      %s150 = scalar_select %p147, %s148, %s149
      %p153 = pneg %p147
      %p154 = scmp.eq.s32.totalorder %s23, 1
      %p155 = por %p153, %p154
      %p156 = scmp.ne.s32.totalorder %s148, %s151
      %p157 = scmp.eq.s32.totalorder %s23, 0
      %p158 = por %p156, %p157
      %p159 = scmp.ne.s32.totalorder %s148, %s151
      %p160 = scmp.eq.s32.totalorder %s28, 1
      %p161 = por %p159, %p160
      %p162 = scmp.ne.s32.totalorder %s151, %s152
      %p163 = scmp.eq.s32.totalorder %s28, 0
      %p164 = por %p162, %p163
      %p165 = scmp.ne.s32.totalorder %s151, %s152
      %p166 = scmp.eq.s32.totalorder %s29, 1
      %p167 = por %p165, %p166
      %p169 = scmp.ne.s32.totalorder %s152, %s168
      %p170 = scmp.eq.s32.totalorder %s29, 0
      %p171 = por %p169, %p170
      %p172 = scmp.le.s32.totalorder 1, %s23
      %p173 = scmp.lt.s32.totalorder %s23, 3
      %p174 = pnand %p172, %p173
      %p175 = pneg %p174
      // Predicated region
      $region9: #{bottleneck_forward.5} parent=5 // pred_check
        _
      $region10: #{bottleneck_forward.5} parent=5 // pred_check_branch
        %177 = sbr.rel (%p174) target = $region12
      $region11: #{bottleneck_forward.5} parent=5 // pred_region
        %s178 = ssub.s32 %s23, 1
        // Predicated region
        $region13: #{bottleneck_forward.5} parent=11 // pred_check
          %p179 = pneg %p70
        $region14: #{bottleneck_forward.5} parent=11 // pred_check_branch
          %181 = sbr.rel (%p179) target = $region16
        $region15: #{bottleneck_forward.5} parent=11 // pred_region
          %s183 = ssub.s32 16, 16
          %184 = vsyncadd [#allocation7], %s183
          %s186 = sshll.u32 [#allocation6], 4
          %s187 = int_to_ptr.vmem [resolvable:$true] %s186
          %189 = dma.hbm_to_vmem [thread:$0]  %s1, 16, %s187, [#allocation7]
        $region16: #{bottleneck_forward.5} parent=11 // pred_fallthru
          _
        // Predicated region
        $region17: #{bottleneck_forward.5} parent=11 // pred_check
          %p190 = pneg %p91
        $region18: #{bottleneck_forward.5} parent=11 // pred_check_branch
          %192 = sbr.rel (%p190) target = $region20
        $region19: #{bottleneck_forward.5} parent=11 // pred_region
          %s194 = ssub.s32 16, 16
          %195 = vsyncadd [#allocation7], %s194
          %s197 = sshll.u32 [#allocation8], 4
          %s198 = int_to_ptr.vmem [resolvable:$true] %s197
          %200 = dma.hbm_to_vmem [thread:$0]  %s2, 16, %s198, [#allocation7]
        $region20: #{bottleneck_forward.5} parent=11 // pred_fallthru
          _
        // Predicated region
        $region21: #{bottleneck_forward.5} parent=11 // pred_check
          %p201 = pneg %p112
        $region22: #{bottleneck_forward.5} parent=11 // pred_check_branch
          %203 = sbr.rel (%p201) target = $region24
        $region23: #{bottleneck_forward.5} parent=11 // pred_region
          %s205 = ssub.s32 9216, 9216
          %206 = vsyncadd [#allocation10], %s205
          %s207 = sshll.u32 [#allocation9], 4
          %s208 = int_to_ptr.vmem [resolvable:$true] %s207
          %213 = dma.hbm_to_vmem [thread:$0]  %s3, 9216, %s208, [#allocation10], 64, 64, 4
        $region24: #{bottleneck_forward.5} parent=11 // pred_fallthru
          _
      $region12: #{bottleneck_forward.5} parent=5 // pred_fallthru
        _
      %p214 = scmp.lt.s32.totalorder %s23, 2
      // Predicated region
      $region25: #{bottleneck_forward.5} parent=5 // pred_check
        %p215 = pneg %p214
      $region26: #{bottleneck_forward.5} parent=5 // pred_check_branch
        %217 = sbr.rel (%p215) target = $region28
      $region27: #{bottleneck_forward.5} parent=5 // pred_region
        // Predicated region
        $region29: #{bottleneck_forward.5} parent=27 // pred_check
          %p218 = pneg %p43
        $region30: #{bottleneck_forward.5} parent=27 // pred_check_branch
          %220 = sbr.rel (%p218) target = $region32
        $region31: #{bottleneck_forward.5} parent=27 // pred_region
          %s221 = sand.u32 %s33, 1
          %s222 = scalar_lea.sflag [#allocation4], %s221
          %s223 = sand.u32 %s33, 1
          %s224 = smul.addr %s223, 128
          %s225 = scalar_lea.vmem [#allocation3], %s224
          %s227 = ssub.s32 2048, 2048
          %228 = vsyncadd %s222, %s227
          %s229 = smul.addr %s23, 32
          %s230 = smul.addr %s229, 64
          %s231 = scalar_lea.hbm %s0, %s230
          %s232 = sshll.u32 %s225, 4
          %s233 = int_to_ptr.vmem [resolvable:$true] %s232
          %238 = dma.hbm_to_vmem [thread:$0]  %s231, 2048, %s233, %s222, 64, 64, 4
        $region32: #{bottleneck_forward.5} parent=27 // pred_fallthru
          _
      $region28: #{bottleneck_forward.5} parent=5 // pred_fallthru
        _
      %p239 = scmp.le.s32.totalorder 1, %s23
      %p240 = scmp.lt.s32.totalorder %s23, 3
      %p241 = pnand %p239, %p240
      %p242 = pneg %p241
      // Predicated region
      $region33: #{bottleneck_forward.5} parent=5 // pred_check
        _
      $region34: #{bottleneck_forward.5} parent=5 // pred_check_branch
        %244 = sbr.rel (%p241) target = $region36
      $region35: #{bottleneck_forward.5} parent=5 // pred_region
        %s245 = ssub.s32 %s23, 1
        %s246 = sand.u32 %s36, 1
        %s247 = scalar_lea.sflag [#allocation4], %s246
        %s248 = sand.u32 %s36, 1
        %s249 = smul.addr %s248, 128
        %s250 = scalar_lea.vmem [#allocation3], %s249
        // Predicated region
        $region37: #{bottleneck_forward.5} parent=35 // pred_check
          %p251 = pneg %p49
        $region38: #{bottleneck_forward.5} parent=35 // pred_check_branch
          %253 = sbr.rel (%p251) target = $region40
        $region39: #{bottleneck_forward.5} parent=35 // pred_region
          %254 = dma.done %s247, 2048
        $region40: #{bottleneck_forward.5} parent=35 // pred_fallthru
          _
        // Predicated region
        $region41: #{bottleneck_forward.5} parent=35 // pred_check
          %p255 = pneg %p70
        $region42: #{bottleneck_forward.5} parent=35 // pred_check_branch
          %257 = sbr.rel (%p255) target = $region44
        $region43: #{bottleneck_forward.5} parent=35 // pred_region
          %258 = dma.done [#allocation7], 16
        $region44: #{bottleneck_forward.5} parent=35 // pred_fallthru
          _
        // Predicated region
        $region45: #{bottleneck_forward.5} parent=35 // pred_check
          %p259 = pneg %p91
        $region46: #{bottleneck_forward.5} parent=35 // pred_check_branch
          %261 = sbr.rel (%p259) target = $region48
        $region47: #{bottleneck_forward.5} parent=35 // pred_region
          %262 = dma.done [#allocation7], 16
        $region48: #{bottleneck_forward.5} parent=35 // pred_fallthru
          _
        // Predicated region
        $region49: #{bottleneck_forward.5} parent=35 // pred_check
          %p263 = pneg %p112
        $region50: #{bottleneck_forward.5} parent=35 // pred_check_branch
          %265 = sbr.rel (%p263) target = $region52
        $region51: #{bottleneck_forward.5} parent=35 // pred_region
          %266 = dma.done [#allocation10], 9216
        $region52: #{bottleneck_forward.5} parent=35 // pred_fallthru
          _
        %s267 = sand.u32 %s36, 1
        %s268 = scalar_lea.sflag [#allocation4], %s267
        %s269 = sand.u32 %s36, 1
        %s270 = smul.addr %s269, 128
        %s271 = scalar_lea.vmem [#allocation3], %s270
        %p272 = pneg %p49
        %p273 = pneg %p46
        %p274 = pneg %p70
        %p275 = pneg %p67
        %p276 = pneg %p91
        %p277 = pneg %p88
        %p278 = pneg %p112
        %p279 = pneg %p109
        %p280 = pneg %p138
        %p281 = pneg %p135
        %s282 = sand.u32 %s125, 1
        %s283 = scalar_lea.sflag [#allocation5], %s282
        %s284 = sand.u32 %s125, 1
        %s285 = smul.addr %s284, 128
        %s286 = scalar_lea.vmem [#allocation11], %s285
        %p287 = pneg %p164
        %p288 = pneg %p161
        %s289 = sand.u32 %s151, 1
        %s290 = scalar_lea.sflag [#allocation13], %s289
        %s291 = sand.u32 %s151, 1
        %s292 = smul.addr %s291, 8
        %s293 = scalar_lea.vmem [#allocation12], %s292
        %s294 = smul.u32 32, %s28
        %p296 = scmp.eq.s32.totalorder %s28, 0
        // Predicated region
        $region53: #{bottleneck_forward.5} parent=35 // pred_check
          %p297 = pneg %p296
        $region54: #{bottleneck_forward.5} parent=35 // pred_check_branch
          %299 = sbr.rel (%p297) target = $region56
        $region55: #{bottleneck_forward.5} parent=35 // pred_region
          %300 = vst [vmem:[#allocation2] sm:$0xf] 0
          %301 = vst [vmem:[#allocation2 + $0x4] sm:$0xf] 0
          %302 = vst [vmem:[#allocation2 + $0x8] sm:$0x1] 0
          %303 = vst [vmem:[#allocation2 + $0xc] sm:$0xf] 0
          %304 = vst [vmem:[#allocation2 + $0x10] sm:$0xf] 0
          %305 = vst [vmem:[#allocation2 + $0x14] sm:$0x1] 0
          %306 = vst [vmem:[#allocation2 + $0x18] sm:$0xf] 0
          %307 = vst [vmem:[#allocation2 + $0x1c] sm:$0xf] 0
          %308 = vst [vmem:[#allocation2 + $0x20] sm:$0x1] 0
          %309 = vst [vmem:[#allocation2 + $0x24] sm:$0xf] 0
          %310 = vst [vmem:[#allocation2 + $0x28] sm:$0xf] 0
          %311 = vst [vmem:[#allocation2 + $0x2c] sm:$0x1] 0
          %312 = vst [vmem:[#allocation2 + $0x30] sm:$0xf] 0
          %313 = vst [vmem:[#allocation2 + $0x34] sm:$0xf] 0
          %314 = vst [vmem:[#allocation2 + $0x38] sm:$0x1] 0
          %315 = vst [vmem:[#allocation2 + $0x3c] sm:$0xf] 0
          %316 = vst [vmem:[#allocation2 + $0x40] sm:$0xf] 0
          %317 = vst [vmem:[#allocation2 + $0x44] sm:$0x1] 0
          %318 = vst [vmem:[#allocation2 + $0x48] sm:$0xf] 0
          %319 = vst [vmem:[#allocation2 + $0x4c] sm:$0xf] 0
          %320 = vst [vmem:[#allocation2 + $0x50] sm:$0x1] 0
          %321 = vst [vmem:[#allocation2 + $0x54] sm:$0xf] 0
          %322 = vst [vmem:[#allocation2 + $0x58] sm:$0xf] 0
          %323 = vst [vmem:[#allocation2 + $0x5c] sm:$0x1] 0
          %324 = vst [vmem:[#allocation2 + $0x60] sm:$0xf] 0
          %325 = vst [vmem:[#allocation2 + $0x64] sm:$0xf] 0
          %326 = vst [vmem:[#allocation2 + $0x68] sm:$0x1] 0
          %327 = vst [vmem:[#allocation2 + $0x6c] sm:$0xf] 0
          %328 = vst [vmem:[#allocation2 + $0x70] sm:$0xf] 0
          %329 = vst [vmem:[#allocation2 + $0x74] sm:$0x1] 0
          %330 = vst [vmem:[#allocation2 + $0x78] sm:$0xf] 0
          %331 = vst [vmem:[#allocation2 + $0x7c] sm:$0xf] 0
          %332 = vst [vmem:[#allocation2 + $0x80] sm:$0x1] 0
          %333 = vst [vmem:[#allocation2 + $0x84] sm:$0xf] 0
          %334 = vst [vmem:[#allocation2 + $0x88] sm:$0xf] 0
          %335 = vst [vmem:[#allocation2 + $0x8c] sm:$0x1] 0
          %336 = vst [vmem:[#allocation2 + $0x90] sm:$0xf] 0
          %337 = vst [vmem:[#allocation2 + $0x94] sm:$0xf] 0
          %338 = vst [vmem:[#allocation2 + $0x98] sm:$0x1] 0
          %339 = vst [vmem:[#allocation2 + $0x9c] sm:$0xf] 0
          %340 = vst [vmem:[#allocation2 + $0xa0] sm:$0xf] 0
          %341 = vst [vmem:[#allocation2 + $0xa4] sm:$0x1] 0
          %342 = vst [vmem:[#allocation2 + $0xa8] sm:$0xf] 0
          %343 = vst [vmem:[#allocation2 + $0xac] sm:$0xf] 0
          %344 = vst [vmem:[#allocation2 + $0xb0] sm:$0x1] 0
          %345 = vst [vmem:[#allocation2 + $0xb4] sm:$0xf] 0
          %346 = vst [vmem:[#allocation2 + $0xb8] sm:$0xf] 0
          %347 = vst [vmem:[#allocation2 + $0xbc] sm:$0x1] 0
          %348 = vst [vmem:[#allocation2 + $0xc0] sm:$0xf] 0
          %349 = vst [vmem:[#allocation2 + $0xc4] sm:$0xf] 0
          %350 = vst [vmem:[#allocation2 + $0xc8] sm:$0x1] 0
          %351 = vst [vmem:[#allocation2 + $0xcc] sm:$0xf] 0
          %352 = vst [vmem:[#allocation2 + $0xd0] sm:$0xf] 0
          %353 = vst [vmem:[#allocation2 + $0xd4] sm:$0x1] 0
        $region56: #{bottleneck_forward.5} parent=35 // pred_fallthru
          _
        %v354 = vld [vmem:[%s250] sm:$0xf]
        %v355 = vld [vmem:[%s250 + $0x4] sm:$0xf]
        %v356 = vld [vmem:[%s250 + $0x8] sm:$0xf]
        %v357 = vld [vmem:[%s250 + $0xc] sm:$0xf]
        %v358 = vld [vmem:[%s250 + $0x10] sm:$0xf]
        %v359 = vld [vmem:[%s250 + $0x14] sm:$0xf]
        %v360 = vld [vmem:[%s250 + $0x18] sm:$0xf]
        %v361 = vld [vmem:[%s250 + $0x1c] sm:$0xf]
        %v362 = vld [vmem:[%s250 + $0x20] sm:$0xf]
        %v363 = vld [vmem:[%s250 + $0x24] sm:$0xf]
        %v364 = vld [vmem:[%s250 + $0x28] sm:$0xf]
        %v365 = vld [vmem:[%s250 + $0x2c] sm:$0xf]
        %v366 = vld [vmem:[%s250 + $0x30] sm:$0xf]
        %v367 = vld [vmem:[%s250 + $0x34] sm:$0xf]
        %v368 = vld [vmem:[%s250 + $0x38] sm:$0xf]
        %v369 = vld [vmem:[%s250 + $0x3c] sm:$0xf]
        %v370 = vld [vmem:[%s250 + $0x40] sm:$0xf]
        %v371 = vld [vmem:[%s250 + $0x44] sm:$0xf]
        %v372 = vld [vmem:[%s250 + $0x48] sm:$0xf]
        %v373 = vld [vmem:[%s250 + $0x4c] sm:$0xf]
        %v374 = vld [vmem:[%s250 + $0x50] sm:$0xf]
        %v375 = vld [vmem:[%s250 + $0x54] sm:$0xf]
        %v376 = vld [vmem:[%s250 + $0x58] sm:$0xf]
        %v377 = vld [vmem:[%s250 + $0x5c] sm:$0xf]
        %v378 = vld [vmem:[%s250 + $0x60] sm:$0xf]
        %v379 = vld [vmem:[%s250 + $0x64] sm:$0xf]
        %v380 = vld [vmem:[%s250 + $0x68] sm:$0xf]
        %v381 = vld [vmem:[%s250 + $0x6c] sm:$0xf]
        %v382 = vld [vmem:[%s250 + $0x70] sm:$0xf]
        %v383 = vld [vmem:[%s250 + $0x74] sm:$0xf]
        %v384 = vld [vmem:[%s250 + $0x78] sm:$0xf]
        %v385 = vld [vmem:[%s250 + $0x7c] sm:$0xf]
        %v386 = vunpack.c.l.bf16 %v354
        %v387 = vunpack.c.l.bf16 %v355
        %v388 = vunpack.c.l.bf16 %v356
        %v389 = vunpack.c.l.bf16 %v357
        %v390 = vunpack.c.l.bf16 %v358
        %v391 = vunpack.c.l.bf16 %v359
        %v392 = vunpack.c.l.bf16 %v360
        %v393 = vunpack.c.l.bf16 %v361
        %v394 = vunpack.c.l.bf16 %v362
        %v395 = vunpack.c.l.bf16 %v363
        %v396 = vunpack.c.l.bf16 %v364
        %v397 = vunpack.c.l.bf16 %v365
        %v398 = vunpack.c.l.bf16 %v366
        %v399 = vunpack.c.l.bf16 %v367
        %v400 = vunpack.c.l.bf16 %v368
        %v401 = vunpack.c.l.bf16 %v369
        %v402 = vunpack.c.l.bf16 %v370
        %v403 = vunpack.c.l.bf16 %v371
        %v404 = vunpack.c.l.bf16 %v372
        %v405 = vunpack.c.l.bf16 %v373
        %v406 = vunpack.c.l.bf16 %v374
        %v407 = vunpack.c.l.bf16 %v375
        %v408 = vunpack.c.l.bf16 %v376
        %v409 = vunpack.c.l.bf16 %v377
        %v410 = vunpack.c.l.bf16 %v378
        %v411 = vunpack.c.l.bf16 %v379
        %v412 = vunpack.c.l.bf16 %v380
        %v413 = vunpack.c.l.bf16 %v381
        %v414 = vunpack.c.l.bf16 %v382
        %v415 = vunpack.c.l.bf16 %v383
        %v416 = vunpack.c.l.bf16 %v384
        %v417 = vunpack.c.l.bf16 %v385
        %v418 = vld [vmem:[#allocation6] sm:$0x1]
        %v420 = vlaneseq
        %v421 = vshrl.u32 %v420, 7
        %v422 = vsub.s32 0, %v421
        %v423 = vrot.slane %v418, %v422
        %v425 = vmul.f32 %v386, %v423
        %v426 = vmul.f32 %v387, %v423
        %v427 = vmul.f32 %v388, %v423
        %v428 = vmul.f32 %v389, %v423
        %v429 = vmul.f32 %v390, %v423
        %v430 = vmul.f32 %v391, %v423
        %v431 = vmul.f32 %v392, %v423
        %v432 = vmul.f32 %v393, %v423
        %v433 = vmul.f32 %v394, %v423
        %v434 = vmul.f32 %v395, %v423
        %v435 = vmul.f32 %v396, %v423
        %v436 = vmul.f32 %v397, %v423
        %v437 = vmul.f32 %v398, %v423
        %v438 = vmul.f32 %v399, %v423
        %v439 = vmul.f32 %v400, %v423
        %v440 = vmul.f32 %v401, %v423
        %v441 = vmul.f32 %v402, %v423
        %v442 = vmul.f32 %v403, %v423
        %v443 = vmul.f32 %v404, %v423
        %v444 = vmul.f32 %v405, %v423
        %v445 = vmul.f32 %v406, %v423
        %v446 = vmul.f32 %v407, %v423
        %v447 = vmul.f32 %v408, %v423
        %v448 = vmul.f32 %v409, %v423
        %v449 = vmul.f32 %v410, %v423
        %v450 = vmul.f32 %v411, %v423
        %v451 = vmul.f32 %v412, %v423
        %v452 = vmul.f32 %v413, %v423
        %v453 = vmul.f32 %v414, %v423
        %v454 = vmul.f32 %v415, %v423
        %v455 = vmul.f32 %v416, %v423
        %v456 = vmul.f32 %v417, %v423
        %v457 = vld [vmem:[#allocation8] sm:$0x1]
        %v459 = vlaneseq
        %v460 = vshrl.u32 %v459, 7
        %v461 = vsub.s32 0, %v460
        %v462 = vrot.slane %v457, %v461
        %v464 = vadd.f32 %v425, %v462
        %v465 = vadd.f32 %v426, %v462
        %v466 = vadd.f32 %v427, %v462
        %v467 = vadd.f32 %v428, %v462
        %v468 = vadd.f32 %v429, %v462
        %v469 = vadd.f32 %v430, %v462
        %v470 = vadd.f32 %v431, %v462
        %v471 = vadd.f32 %v432, %v462
        %v472 = vadd.f32 %v433, %v462
        %v473 = vadd.f32 %v434, %v462
        %v474 = vadd.f32 %v435, %v462
        %v475 = vadd.f32 %v436, %v462
        %v476 = vadd.f32 %v437, %v462
        %v477 = vadd.f32 %v438, %v462
        %v478 = vadd.f32 %v439, %v462
        %v479 = vadd.f32 %v440, %v462
        %v480 = vadd.f32 %v441, %v462
        %v481 = vadd.f32 %v442, %v462
        %v482 = vadd.f32 %v443, %v462
        %v483 = vadd.f32 %v444, %v462
        %v484 = vadd.f32 %v445, %v462
        %v485 = vadd.f32 %v446, %v462
        %v486 = vadd.f32 %v447, %v462
        %v487 = vadd.f32 %v448, %v462
        %v488 = vadd.f32 %v449, %v462
        %v489 = vadd.f32 %v450, %v462
        %v490 = vadd.f32 %v451, %v462
        %v491 = vadd.f32 %v452, %v462
        %v492 = vadd.f32 %v453, %v462
        %v493 = vadd.f32 %v454, %v462
        %v494 = vadd.f32 %v455, %v462
        %v495 = vadd.f32 %v456, %v462
        %v496 = vmax.f32 %v464, 0.0
        %v497 = vmax.f32 %v465, 0.0
        %v498 = vmax.f32 %v466, 0.0
        %v499 = vmax.f32 %v467, 0.0
        %v500 = vmax.f32 %v468, 0.0
        %v501 = vmax.f32 %v469, 0.0
        %v502 = vmax.f32 %v470, 0.0
        %v503 = vmax.f32 %v471, 0.0
        %v504 = vmax.f32 %v472, 0.0
        %v505 = vmax.f32 %v473, 0.0
        %v506 = vmax.f32 %v474, 0.0
        %v507 = vmax.f32 %v475, 0.0
        %v508 = vmax.f32 %v476, 0.0
        %v509 = vmax.f32 %v477, 0.0
        %v510 = vmax.f32 %v478, 0.0
        %v511 = vmax.f32 %v479, 0.0
        %v512 = vmax.f32 %v480, 0.0
        %v513 = vmax.f32 %v481, 0.0
        %v514 = vmax.f32 %v482, 0.0
        %v515 = vmax.f32 %v483, 0.0
        %v516 = vmax.f32 %v484, 0.0
        %v517 = vmax.f32 %v485, 0.0
        %v518 = vmax.f32 %v486, 0.0
        %v519 = vmax.f32 %v487, 0.0
        %v520 = vmax.f32 %v488, 0.0
        %v521 = vmax.f32 %v489, 0.0
        %v522 = vmax.f32 %v490, 0.0
        %v523 = vmax.f32 %v491, 0.0
        %v524 = vmax.f32 %v492, 0.0
        %v525 = vmax.f32 %v493, 0.0
        %v526 = vmax.f32 %v494, 0.0
        %v527 = vmax.f32 %v495, 0.0
        %v528 = vpack.c.bf16 %v497, %v496
        %v529 = vpack.c.bf16 %v499, %v498
        %v530 = vpack.c.bf16 %v501, %v500
        %v531 = vpack.c.bf16 %v503, %v502
        %v532 = vpack.c.bf16 %v505, %v504
        %v533 = vpack.c.bf16 %v507, %v506
        %v534 = vpack.c.bf16 %v509, %v508
        %v535 = vpack.c.bf16 %v511, %v510
        %v536 = vpack.c.bf16 %v513, %v512
        %v537 = vpack.c.bf16 %v515, %v514
        %v538 = vpack.c.bf16 %v517, %v516
        %v539 = vpack.c.bf16 %v519, %v518
        %v540 = vpack.c.bf16 %v521, %v520
        %v541 = vpack.c.bf16 %v523, %v522
        %v542 = vpack.c.bf16 %v525, %v524
        %v543 = vpack.c.bf16 %v527, %v526
        %v560 = vunpack.c.l.b16 %v528
        %v561 = vunpack.c.h.b16 %v528
        %v562 = vunpack.c.l.b16 %v529
        %v563 = vunpack.c.h.b16 %v529
        %v564 = vunpack.c.l.b16 %v530
        %v565 = vunpack.c.h.b16 %v530
        %v566 = vunpack.c.l.b16 %v531
        %v567 = vunpack.c.h.b16 %v531
        %v568 = vunpack.c.l.b16 %v532
        %v569 = vunpack.c.h.b16 %v532
        %v570 = vunpack.c.l.b16 %v533
        %v571 = vunpack.c.h.b16 %v533
        %v572 = vunpack.c.l.b16 %v534
        %v573 = vunpack.c.h.b16 %v534
        %v574 = vunpack.c.l.b16 %v535
        %v575 = vunpack.c.h.b16 %v535
        %v576 = vunpack.c.l.b16 %v536
        %v577 = vunpack.c.h.b16 %v536
        %v578 = vunpack.c.l.b16 %v537
        %v579 = vunpack.c.h.b16 %v537
        %v580 = vunpack.c.l.b16 %v538
        %v581 = vunpack.c.h.b16 %v538
        %v582 = vunpack.c.l.b16 %v539
        %v583 = vunpack.c.h.b16 %v539
        %v584 = vunpack.c.l.b16 %v540
        %v585 = vunpack.c.h.b16 %v540
        %v586 = vunpack.c.l.b16 %v541
        %v587 = vunpack.c.h.b16 %v541
        %v588 = vunpack.c.l.b16 %v542
        %v589 = vunpack.c.h.b16 %v542
        %v590 = vunpack.c.l.b16 %v543
        %v591 = vunpack.c.h.b16 %v543
        %v592 = vpack.c.b16 %v560, %v560
        %v593 = vpack.c.b16 %v561, %v561
        %v594 = vpack.c.b16 %v562, %v562
        %v595 = vpack.c.b16 %v563, %v563
        %v596 = vpack.c.b16 %v564, %v564
        %v597 = vpack.c.b16 %v565, %v565
        %v598 = vpack.c.b16 %v566, %v566
        %v599 = vpack.c.b16 %v567, %v567
        %v600 = vpack.c.b16 %v568, %v568
        %v601 = vpack.c.b16 %v569, %v569
        %v602 = vpack.c.b16 %v570, %v570
        %v603 = vpack.c.b16 %v571, %v571
        %v604 = vpack.c.b16 %v572, %v572
        %v605 = vpack.c.b16 %v573, %v573
        %v606 = vpack.c.b16 %v574, %v574
        %v607 = vpack.c.b16 %v575, %v575
        %v608 = vpack.c.b16 %v576, %v576
        %v609 = vpack.c.b16 %v577, %v577
        %v610 = vpack.c.b16 %v578, %v578
        %v611 = vpack.c.b16 %v579, %v579
        %v612 = vpack.c.b16 %v580, %v580
        %v613 = vpack.c.b16 %v581, %v581
        %v614 = vpack.c.b16 %v582, %v582
        %v615 = vpack.c.b16 %v583, %v583
        %v616 = vpack.c.b16 %v584, %v584
        %v617 = vpack.c.b16 %v585, %v585
        %v618 = vpack.c.b16 %v586, %v586
        %v619 = vpack.c.b16 %v587, %v587
        %v620 = vpack.c.b16 %v588, %v588
        %v621 = vpack.c.b16 %v589, %v589
        %v622 = vpack.c.b16 %v590, %v590
        %v623 = vpack.c.b16 %v591, %v591
        %vm624 = vsmask.f32 256
        %vm625 = vsmask.f32 4368
        %vm626 = vmor %vm624, %vm625
        %v628 = vshrl.u32 %v592, 16
        %v630 = vrot.slane %v628, 7
        %v631 = vshll.u32 %v592, 16
        %v633 = vor.u32 %v630, %v631
        %v634 = vrot.slane %v630, 4
        %v636 = vshrl.u32 %v593, 16
        %v638 = vrot.slane %v636, 7
        %v639 = vshll.u32 %v593, 16
        %v641 = vor.u32 %v638, %v639
        %v642 = vsel %vm626, %v634, %v641
        %v643 = vrot.slane %v638, 4
        %v645 = vshrl.u32 %v594, 16
        %v647 = vrot.slane %v645, 7
        %v648 = vshll.u32 %v594, 16
        %v650 = vor.u32 %v647, %v648
        %v651 = vrot.slane %v647, 4
        %v653 = vshrl.u32 %v595, 16
        %v655 = vrot.slane %v653, 7
        %v656 = vshll.u32 %v595, 16
        %v658 = vor.u32 %v655, %v656
        %v659 = vsel %vm626, %v651, %v658
        %v660 = vrot.slane %v655, 4
        %v662 = vshrl.u32 %v596, 16
        %v664 = vrot.slane %v662, 7
        %v665 = vshll.u32 %v596, 16
        %v667 = vor.u32 %v664, %v665
        %v668 = vrot.slane %v664, 4
        %v670 = vshrl.u32 %v597, 16
        %v672 = vrot.slane %v670, 7
        %v673 = vshll.u32 %v597, 16
        %v675 = vor.u32 %v672, %v673
        %v676 = vsel %vm626, %v668, %v675
        %v677 = vrot.slane %v672, 4
        %v679 = vshrl.u32 %v598, 16
        %v681 = vrot.slane %v679, 7
        %v682 = vshll.u32 %v598, 16
        %v684 = vor.u32 %v681, %v682
        %v685 = vrot.slane %v681, 4
        %v687 = vshrl.u32 %v599, 16
        %v689 = vrot.slane %v687, 7
        %v690 = vshll.u32 %v599, 16
        %v692 = vor.u32 %v689, %v690
        %v693 = vsel %vm626, %v685, %v692
        %v694 = vrot.slane %v689, 4
        %v696 = vshrl.u32 %v600, 16
        %v698 = vrot.slane %v696, 7
        %v699 = vshll.u32 %v600, 16
        %v701 = vor.u32 %v698, %v699
        %v702 = vrot.slane %v698, 4
        %v704 = vshrl.u32 %v601, 16
        %v706 = vrot.slane %v704, 7
        %v707 = vshll.u32 %v601, 16
        %v709 = vor.u32 %v706, %v707
        %v710 = vsel %vm626, %v702, %v709
        %v711 = vrot.slane %v706, 4
        %v713 = vshrl.u32 %v602, 16
        %v715 = vrot.slane %v713, 7
        %v716 = vshll.u32 %v602, 16
        %v718 = vor.u32 %v715, %v716
        %v719 = vrot.slane %v715, 4
        %v721 = vshrl.u32 %v603, 16
        %v723 = vrot.slane %v721, 7
        %v724 = vshll.u32 %v603, 16
        %v726 = vor.u32 %v723, %v724
        %v727 = vsel %vm626, %v719, %v726
        %v728 = vrot.slane %v723, 4
        %v730 = vshrl.u32 %v604, 16
        %v732 = vrot.slane %v730, 7
        %v733 = vshll.u32 %v604, 16
        %v735 = vor.u32 %v732, %v733
        %v736 = vrot.slane %v732, 4
        %v738 = vshrl.u32 %v605, 16
        %v740 = vrot.slane %v738, 7
        %v741 = vshll.u32 %v605, 16
        %v743 = vor.u32 %v740, %v741
        %v744 = vsel %vm626, %v736, %v743
        %v745 = vrot.slane %v740, 4
        %v747 = vshrl.u32 %v606, 16
        %v749 = vrot.slane %v747, 7
        %v750 = vshll.u32 %v606, 16
        %v752 = vor.u32 %v749, %v750
        %v753 = vrot.slane %v749, 4
        %v755 = vshrl.u32 %v607, 16
        %v757 = vrot.slane %v755, 7
        %v758 = vshll.u32 %v607, 16
        %v760 = vor.u32 %v757, %v758
        %v761 = vsel %vm626, %v753, %v760
        %v762 = vrot.slane %v757, 4
        %v764 = vshrl.u32 %v608, 16
        %v766 = vrot.slane %v764, 7
        %v767 = vshll.u32 %v608, 16
        %v769 = vor.u32 %v766, %v767
        %v770 = vrot.slane %v766, 4
        %v772 = vshrl.u32 %v609, 16
        %v774 = vrot.slane %v772, 7
        %v775 = vshll.u32 %v609, 16
        %v777 = vor.u32 %v774, %v775
        %v778 = vsel %vm626, %v770, %v777
        %v779 = vrot.slane %v774, 4
        %v781 = vshrl.u32 %v610, 16
        %v783 = vrot.slane %v781, 7
        %v784 = vshll.u32 %v610, 16
        %v786 = vor.u32 %v783, %v784
        %v787 = vrot.slane %v783, 4
        %v789 = vshrl.u32 %v611, 16
        %v791 = vrot.slane %v789, 7
        %v792 = vshll.u32 %v611, 16
        %v794 = vor.u32 %v791, %v792
        %v795 = vsel %vm626, %v787, %v794
        %v796 = vrot.slane %v791, 4
        %v798 = vshrl.u32 %v612, 16
        %v800 = vrot.slane %v798, 7
        %v801 = vshll.u32 %v612, 16
        %v803 = vor.u32 %v800, %v801
        %v804 = vrot.slane %v800, 4
        %v806 = vshrl.u32 %v613, 16
        %v808 = vrot.slane %v806, 7
        %v809 = vshll.u32 %v613, 16
        %v811 = vor.u32 %v808, %v809
        %v812 = vsel %vm626, %v804, %v811
        %v813 = vrot.slane %v808, 4
        %v815 = vshrl.u32 %v614, 16
        %v817 = vrot.slane %v815, 7
        %v818 = vshll.u32 %v614, 16
        %v820 = vor.u32 %v817, %v818
        %v821 = vrot.slane %v817, 4
        %v823 = vshrl.u32 %v615, 16
        %v825 = vrot.slane %v823, 7
        %v826 = vshll.u32 %v615, 16
        %v828 = vor.u32 %v825, %v826
        %v829 = vsel %vm626, %v821, %v828
        %v830 = vrot.slane %v825, 4
        %v832 = vshrl.u32 %v616, 16
        %v834 = vrot.slane %v832, 7
        %v835 = vshll.u32 %v616, 16
        %v837 = vor.u32 %v834, %v835
        %v838 = vrot.slane %v834, 4
        %v840 = vshrl.u32 %v617, 16
        %v842 = vrot.slane %v840, 7
        %v843 = vshll.u32 %v617, 16
        %v845 = vor.u32 %v842, %v843
        %v846 = vsel %vm626, %v838, %v845
        %v847 = vrot.slane %v842, 4
        %v849 = vshrl.u32 %v618, 16
        %v851 = vrot.slane %v849, 7
        %v852 = vshll.u32 %v618, 16
        %v854 = vor.u32 %v851, %v852
        %v855 = vrot.slane %v851, 4
        %v857 = vshrl.u32 %v619, 16
        %v859 = vrot.slane %v857, 7
        %v860 = vshll.u32 %v619, 16
        %v862 = vor.u32 %v859, %v860
        %v863 = vsel %vm626, %v855, %v862
        %v864 = vrot.slane %v859, 4
        %v866 = vshrl.u32 %v620, 16
        %v868 = vrot.slane %v866, 7
        %v869 = vshll.u32 %v620, 16
        %v871 = vor.u32 %v868, %v869
        %v872 = vrot.slane %v868, 4
        %v874 = vshrl.u32 %v621, 16
        %v876 = vrot.slane %v874, 7
        %v877 = vshll.u32 %v621, 16
        %v879 = vor.u32 %v876, %v877
        %v880 = vsel %vm626, %v872, %v879
        %v881 = vrot.slane %v876, 4
        %v883 = vshrl.u32 %v622, 16
        %v885 = vrot.slane %v883, 7
        %v886 = vshll.u32 %v622, 16
        %v888 = vor.u32 %v885, %v886
        %v889 = vrot.slane %v885, 4
        %v891 = vshrl.u32 %v623, 16
        %v893 = vrot.slane %v891, 7
        %v894 = vshll.u32 %v623, 16
        %v896 = vor.u32 %v893, %v894
        %v897 = vsel %vm626, %v889, %v896
        %v898 = vrot.slane %v893, 4
        %s947 = scalar_lea.vmem [#allocation2], 12
        %vm948 = vcmask 1043456
        %vm949 = vsmask.f32 7938
        %vm950 = vmand %vm948, %vm949
        %v951 = vld [vmem:[%s947] sm:$0xf]
        %v952 = vsel %vm950, %v633, %v951
        %953 = vst [vmem:[%s947] sm:$0xf] %v952
        %954 = vst [vmem:[%s947 + $0x4] sm:$0xf] %v642
        %vm955 = vcmask 1040384
        %vm956 = vmand %vm955, %vm624
        %v957 = vld [vmem:[%s947 + $0x8] sm:$0x1]
        %v958 = vsel %vm956, %v643, %v957
        %959 = vst [vmem:[%s947 + $0x8] sm:$0x1] %v958
        %v960 = vld [vmem:[%s947 + $0xc] sm:$0xf]
        %v961 = vsel %vm950, %v650, %v960
        %962 = vst [vmem:[%s947 + $0xc] sm:$0xf] %v961
        %963 = vst [vmem:[%s947 + $0x10] sm:$0xf] %v659
        %v964 = vld [vmem:[%s947 + $0x14] sm:$0x1]
        %v965 = vsel %vm956, %v660, %v964
        %966 = vst [vmem:[%s947 + $0x14] sm:$0x1] %v965
        %v967 = vld [vmem:[%s947 + $0x18] sm:$0xf]
        %v968 = vsel %vm950, %v667, %v967
        %969 = vst [vmem:[%s947 + $0x18] sm:$0xf] %v968
        %970 = vst [vmem:[%s947 + $0x1c] sm:$0xf] %v676
        %v971 = vld [vmem:[%s947 + $0x20] sm:$0x1]
        %v972 = vsel %vm956, %v677, %v971
        %973 = vst [vmem:[%s947 + $0x20] sm:$0x1] %v972
        %v974 = vld [vmem:[%s947 + $0x24] sm:$0xf]
        %v975 = vsel %vm950, %v684, %v974
        %976 = vst [vmem:[%s947 + $0x24] sm:$0xf] %v975
        %977 = vst [vmem:[%s947 + $0x28] sm:$0xf] %v693
        %v978 = vld [vmem:[%s947 + $0x2c] sm:$0x1]
        %v979 = vsel %vm956, %v694, %v978
        %980 = vst [vmem:[%s947 + $0x2c] sm:$0x1] %v979
        %v981 = vld [vmem:[%s947 + $0x30] sm:$0xf]
        %v982 = vsel %vm950, %v701, %v981
        %983 = vst [vmem:[%s947 + $0x30] sm:$0xf] %v982
        %984 = vst [vmem:[%s947 + $0x34] sm:$0xf] %v710
        %v985 = vld [vmem:[%s947 + $0x38] sm:$0x1]
        %v986 = vsel %vm956, %v711, %v985
        %987 = vst [vmem:[%s947 + $0x38] sm:$0x1] %v986
        %v988 = vld [vmem:[%s947 + $0x3c] sm:$0xf]
        %v989 = vsel %vm950, %v718, %v988
        %990 = vst [vmem:[%s947 + $0x3c] sm:$0xf] %v989
        %991 = vst [vmem:[%s947 + $0x40] sm:$0xf] %v727
        %v992 = vld [vmem:[%s947 + $0x44] sm:$0x1]
        %v993 = vsel %vm956, %v728, %v992
        %994 = vst [vmem:[%s947 + $0x44] sm:$0x1] %v993
        %v995 = vld [vmem:[%s947 + $0x48] sm:$0xf]
        %v996 = vsel %vm950, %v735, %v995
        %997 = vst [vmem:[%s947 + $0x48] sm:$0xf] %v996
        %998 = vst [vmem:[%s947 + $0x4c] sm:$0xf] %v744
        %v999 = vld [vmem:[%s947 + $0x50] sm:$0x1]
        %v1000 = vsel %vm956, %v745, %v999
        %1001 = vst [vmem:[%s947 + $0x50] sm:$0x1] %v1000
        %v1002 = vld [vmem:[%s947 + $0x54] sm:$0xf]
        %v1003 = vsel %vm950, %v752, %v1002
        %1004 = vst [vmem:[%s947 + $0x54] sm:$0xf] %v1003
        %1005 = vst [vmem:[%s947 + $0x58] sm:$0xf] %v761
        %v1006 = vld [vmem:[%s947 + $0x5c] sm:$0x1]
        %v1007 = vsel %vm956, %v762, %v1006
        %1008 = vst [vmem:[%s947 + $0x5c] sm:$0x1] %v1007
        %v1009 = vld [vmem:[%s947 + $0x60] sm:$0xf]
        %v1010 = vsel %vm950, %v769, %v1009
        %1011 = vst [vmem:[%s947 + $0x60] sm:$0xf] %v1010
        %1012 = vst [vmem:[%s947 + $0x64] sm:$0xf] %v778
        %v1013 = vld [vmem:[%s947 + $0x68] sm:$0x1]
        %v1014 = vsel %vm956, %v779, %v1013
        %1015 = vst [vmem:[%s947 + $0x68] sm:$0x1] %v1014
        %v1016 = vld [vmem:[%s947 + $0x6c] sm:$0xf]
        %v1017 = vsel %vm950, %v786, %v1016
        %1018 = vst [vmem:[%s947 + $0x6c] sm:$0xf] %v1017
        %1019 = vst [vmem:[%s947 + $0x70] sm:$0xf] %v795
        %v1020 = vld [vmem:[%s947 + $0x74] sm:$0x1]
        %v1021 = vsel %vm956, %v796, %v1020
        %1022 = vst [vmem:[%s947 + $0x74] sm:$0x1] %v1021
        %v1023 = vld [vmem:[%s947 + $0x78] sm:$0xf]
        %v1024 = vsel %vm950, %v803, %v1023
        %1025 = vst [vmem:[%s947 + $0x78] sm:$0xf] %v1024
        %1026 = vst [vmem:[%s947 + $0x7c] sm:$0xf] %v812
        %v1027 = vld [vmem:[%s947 + $0x80] sm:$0x1]
        %v1028 = vsel %vm956, %v813, %v1027
        %1029 = vst [vmem:[%s947 + $0x80] sm:$0x1] %v1028
        %v1030 = vld [vmem:[%s947 + $0x84] sm:$0xf]
        %v1031 = vsel %vm950, %v820, %v1030
        %1032 = vst [vmem:[%s947 + $0x84] sm:$0xf] %v1031
        %1033 = vst [vmem:[%s947 + $0x88] sm:$0xf] %v829
        %v1034 = vld [vmem:[%s947 + $0x8c] sm:$0x1]
        %v1035 = vsel %vm956, %v830, %v1034
        %1036 = vst [vmem:[%s947 + $0x8c] sm:$0x1] %v1035
        %v1037 = vld [vmem:[%s947 + $0x90] sm:$0xf]
        %v1038 = vsel %vm950, %v837, %v1037
        %1039 = vst [vmem:[%s947 + $0x90] sm:$0xf] %v1038
        %1040 = vst [vmem:[%s947 + $0x94] sm:$0xf] %v846
        %v1041 = vld [vmem:[%s947 + $0x98] sm:$0x1]
        %v1042 = vsel %vm956, %v847, %v1041
        %1043 = vst [vmem:[%s947 + $0x98] sm:$0x1] %v1042
        %v1044 = vld [vmem:[%s947 + $0x9c] sm:$0xf]
        %v1045 = vsel %vm950, %v854, %v1044
        %1046 = vst [vmem:[%s947 + $0x9c] sm:$0xf] %v1045
        %1047 = vst [vmem:[%s947 + $0xa0] sm:$0xf] %v863
        %v1048 = vld [vmem:[%s947 + $0xa4] sm:$0x1]
        %v1049 = vsel %vm956, %v864, %v1048
        %1050 = vst [vmem:[%s947 + $0xa4] sm:$0x1] %v1049
        %v1051 = vld [vmem:[%s947 + $0xa8] sm:$0xf]
        %v1052 = vsel %vm950, %v871, %v1051
        %1053 = vst [vmem:[%s947 + $0xa8] sm:$0xf] %v1052
        %1054 = vst [vmem:[%s947 + $0xac] sm:$0xf] %v880
        %v1055 = vld [vmem:[%s947 + $0xb0] sm:$0x1]
        %v1056 = vsel %vm956, %v881, %v1055
        %1057 = vst [vmem:[%s947 + $0xb0] sm:$0x1] %v1056
        %v1058 = vld [vmem:[%s947 + $0xb4] sm:$0xf]
        %v1059 = vsel %vm950, %v888, %v1058
        %1060 = vst [vmem:[%s947 + $0xb4] sm:$0xf] %v1059
        %1061 = vst [vmem:[%s947 + $0xb8] sm:$0xf] %v897
        %v1062 = vld [vmem:[%s947 + $0xbc] sm:$0x1]
        %v1063 = vsel %vm956, %v898, %v1062
        %1064 = vst [vmem:[%s947 + $0xbc] sm:$0x1] %v1063
        %v1065 = vld [vmem:[#allocation2] sm:$0xf]
        %v1066 = vld [vmem:[#allocation2 + $0x4] sm:$0xf]
        %v1067 = vld [vmem:[#allocation2 + $0xc] sm:$0xf]
        %v1068 = vld [vmem:[#allocation2 + $0x10] sm:$0xf]
        %v1069 = vld [vmem:[#allocation2 + $0x18] sm:$0xf]
        %v1070 = vld [vmem:[#allocation2 + $0x1c] sm:$0xf]
        %v1071 = vld [vmem:[#allocation2 + $0x24] sm:$0xf]
        %v1072 = vld [vmem:[#allocation2 + $0x28] sm:$0xf]
        %v1073 = vld [vmem:[#allocation2 + $0x30] sm:$0xf]
        %v1074 = vld [vmem:[#allocation2 + $0x34] sm:$0xf]
        %v1075 = vld [vmem:[#allocation2 + $0x3c] sm:$0xf]
        %v1076 = vld [vmem:[#allocation2 + $0x40] sm:$0xf]
        %v1077 = vld [vmem:[#allocation2 + $0x48] sm:$0xf]
        %v1078 = vld [vmem:[#allocation2 + $0x4c] sm:$0xf]
        %v1079 = vld [vmem:[#allocation2 + $0x54] sm:$0xf]
        %v1080 = vld [vmem:[#allocation2 + $0x58] sm:$0xf]
        %v1081 = vld [vmem:[#allocation2 + $0x60] sm:$0xf]
        %v1082 = vld [vmem:[#allocation2 + $0x64] sm:$0xf]
        %v1083 = vld [vmem:[#allocation2 + $0x6c] sm:$0xf]
        %v1084 = vld [vmem:[#allocation2 + $0x70] sm:$0xf]
        %v1085 = vld [vmem:[#allocation2 + $0x78] sm:$0xf]
        %v1086 = vld [vmem:[#allocation2 + $0x7c] sm:$0xf]
        %v1087 = vld [vmem:[#allocation2 + $0x84] sm:$0xf]
        %v1088 = vld [vmem:[#allocation2 + $0x88] sm:$0xf]
        %v1089 = vld [vmem:[#allocation2 + $0x90] sm:$0xf]
        %v1090 = vld [vmem:[#allocation2 + $0x94] sm:$0xf]
        %v1091 = vld [vmem:[#allocation2 + $0x9c] sm:$0xf]
        %v1092 = vld [vmem:[#allocation2 + $0xa0] sm:$0xf]
        %v1093 = vld [vmem:[#allocation2 + $0xa8] sm:$0xf]
        %v1094 = vld [vmem:[#allocation2 + $0xac] sm:$0xf]
        %v1095 = vld [vmem:[#allocation2 + $0xb4] sm:$0xf]
        %v1096 = vld [vmem:[#allocation2 + $0xb8] sm:$0xf]
        %v1097 = vld [vmem:[#allocation2 + $0x8] sm:$0x1]
        %v1098 = vld [vmem:[#allocation2 + $0x14] sm:$0x1]
        %v1099 = vld [vmem:[#allocation2 + $0x20] sm:$0x1]
        %v1100 = vld [vmem:[#allocation2 + $0x2c] sm:$0x1]
        %v1101 = vld [vmem:[#allocation2 + $0x38] sm:$0x1]
        %v1102 = vld [vmem:[#allocation2 + $0x44] sm:$0x1]
        %v1103 = vld [vmem:[#allocation2 + $0x50] sm:$0x1]
        %v1104 = vld [vmem:[#allocation2 + $0x5c] sm:$0x1]
        %v1105 = vld [vmem:[#allocation2 + $0x68] sm:$0x1]
        %v1106 = vld [vmem:[#allocation2 + $0x74] sm:$0x1]
        %v1107 = vld [vmem:[#allocation2 + $0x80] sm:$0x1]
        %v1108 = vld [vmem:[#allocation2 + $0x8c] sm:$0x1]
        %v1109 = vld [vmem:[#allocation2 + $0x98] sm:$0x1]
        %v1110 = vld [vmem:[#allocation2 + $0xa4] sm:$0x1]
        %v1111 = vld [vmem:[#allocation2 + $0xb0] sm:$0x1]
        %v1112 = vld [vmem:[#allocation2 + $0xbc] sm:$0x1]
        %v1113 = vld [vmem:[#allocation2] sm:$0xe]
        %v1114 = vld [vmem:[#allocation2 + $0xc] sm:$0xe]
        %v1115 = vld [vmem:[#allocation2 + $0x18] sm:$0xe]
        %v1116 = vld [vmem:[#allocation2 + $0x24] sm:$0xe]
        %v1117 = vld [vmem:[#allocation2 + $0x30] sm:$0xe]
        %v1118 = vld [vmem:[#allocation2 + $0x3c] sm:$0xe]
        %v1119 = vld [vmem:[#allocation2 + $0x48] sm:$0xe]
        %v1120 = vld [vmem:[#allocation2 + $0x54] sm:$0xe]
        %v1121 = vld [vmem:[#allocation2 + $0x60] sm:$0xe]
        %v1122 = vld [vmem:[#allocation2 + $0x6c] sm:$0xe]
        %v1123 = vld [vmem:[#allocation2 + $0x78] sm:$0xe]
        %v1124 = vld [vmem:[#allocation2 + $0x84] sm:$0xe]
        %v1125 = vld [vmem:[#allocation2 + $0x90] sm:$0xe]
        %v1126 = vld [vmem:[#allocation2 + $0x9c] sm:$0xe]
        %v1127 = vld [vmem:[#allocation2 + $0xa8] sm:$0xe]
        %v1128 = vld [vmem:[#allocation2 + $0xb4] sm:$0xe]
        %v1161 = vunpack.c.l.b16 %v1065
        %v1162 = vunpack.c.l.b16 %v1066
        %v1163 = vunpack.c.l.b16 %v1067
        %v1164 = vunpack.c.l.b16 %v1068
        %v1165 = vunpack.c.l.b16 %v1069
        %v1166 = vunpack.c.l.b16 %v1070
        %v1167 = vunpack.c.l.b16 %v1071
        %v1168 = vunpack.c.l.b16 %v1072
        %v1169 = vunpack.c.l.b16 %v1073
        %v1170 = vunpack.c.l.b16 %v1074
        %v1171 = vunpack.c.l.b16 %v1075
        %v1172 = vunpack.c.l.b16 %v1076
        %v1173 = vunpack.c.l.b16 %v1077
        %v1174 = vunpack.c.l.b16 %v1078
        %v1175 = vunpack.c.l.b16 %v1079
        %v1176 = vunpack.c.l.b16 %v1080
        %v1177 = vunpack.c.l.b16 %v1081
        %v1178 = vunpack.c.l.b16 %v1082
        %v1179 = vunpack.c.l.b16 %v1083
        %v1180 = vunpack.c.l.b16 %v1084
        %v1181 = vunpack.c.l.b16 %v1085
        %v1182 = vunpack.c.l.b16 %v1086
        %v1183 = vunpack.c.l.b16 %v1087
        %v1184 = vunpack.c.l.b16 %v1088
        %v1185 = vunpack.c.l.b16 %v1089
        %v1186 = vunpack.c.l.b16 %v1090
        %v1187 = vunpack.c.l.b16 %v1091
        %v1188 = vunpack.c.l.b16 %v1092
        %v1189 = vunpack.c.l.b16 %v1093
        %v1190 = vunpack.c.l.b16 %v1094
        %v1191 = vunpack.c.l.b16 %v1095
        %v1192 = vunpack.c.l.b16 %v1096
        %v1193 = vpack.c.b16 %v1162, %v1161
        %v1194 = vpack.c.b16 %v1164, %v1163
        %v1195 = vpack.c.b16 %v1166, %v1165
        %v1196 = vpack.c.b16 %v1168, %v1167
        %v1197 = vpack.c.b16 %v1170, %v1169
        %v1198 = vpack.c.b16 %v1172, %v1171
        %v1199 = vpack.c.b16 %v1174, %v1173
        %v1200 = vpack.c.b16 %v1176, %v1175
        %v1201 = vpack.c.b16 %v1178, %v1177
        %v1202 = vpack.c.b16 %v1180, %v1179
        %v1203 = vpack.c.b16 %v1182, %v1181
        %v1204 = vpack.c.b16 %v1184, %v1183
        %v1205 = vpack.c.b16 %v1186, %v1185
        %v1206 = vpack.c.b16 %v1188, %v1187
        %v1207 = vpack.c.b16 %v1190, %v1189
        %v1208 = vpack.c.b16 %v1192, %v1191
        %v1241 = vunpack.c.l.b16 %v1097
        %v1242 = vunpack.c.l.b16 %v1098
        %v1243 = vunpack.c.l.b16 %v1099
        %v1244 = vunpack.c.l.b16 %v1100
        %v1245 = vunpack.c.l.b16 %v1101
        %v1246 = vunpack.c.l.b16 %v1102
        %v1247 = vunpack.c.l.b16 %v1103
        %v1248 = vunpack.c.l.b16 %v1104
        %v1249 = vunpack.c.l.b16 %v1105
        %v1250 = vunpack.c.l.b16 %v1106
        %v1251 = vunpack.c.l.b16 %v1107
        %v1252 = vunpack.c.l.b16 %v1108
        %v1253 = vunpack.c.l.b16 %v1109
        %v1254 = vunpack.c.l.b16 %v1110
        %v1255 = vunpack.c.l.b16 %v1111
        %v1256 = vunpack.c.l.b16 %v1112
        %v1257 = vpack.c.b16 %v1241, %v1241
        %v1258 = vpack.c.b16 %v1242, %v1242
        %v1259 = vpack.c.b16 %v1243, %v1243
        %v1260 = vpack.c.b16 %v1244, %v1244
        %v1261 = vpack.c.b16 %v1245, %v1245
        %v1262 = vpack.c.b16 %v1246, %v1246
        %v1263 = vpack.c.b16 %v1247, %v1247
        %v1264 = vpack.c.b16 %v1248, %v1248
        %v1265 = vpack.c.b16 %v1249, %v1249
        %v1266 = vpack.c.b16 %v1250, %v1250
        %v1267 = vpack.c.b16 %v1251, %v1251
        %v1268 = vpack.c.b16 %v1252, %v1252
        %v1269 = vpack.c.b16 %v1253, %v1253
        %v1270 = vpack.c.b16 %v1254, %v1254
        %v1271 = vpack.c.b16 %v1255, %v1255
        %v1272 = vpack.c.b16 %v1256, %v1256
        %vm1273 = vsmask.f32 7424
        %v1275 = vshrl.u32 %v1193, 16
        %v1277 = vshll.u32 %v1193, 16
        %v1279 = vrot.slane %v1277, 1
        %v1280 = vor.u32 %v1275, %v1279
        %v1282 = vshll.u32 %v1257, 16
        %v1284 = vrot.slane %v1282, 1
        %v1285 = vsel %vm1273, %v1280, %v1284
        %v1287 = vshrl.u32 %v1194, 16
        %v1289 = vshll.u32 %v1194, 16
        %v1291 = vrot.slane %v1289, 1
        %v1292 = vor.u32 %v1287, %v1291
        %v1294 = vshll.u32 %v1258, 16
        %v1296 = vrot.slane %v1294, 1
        %v1297 = vsel %vm1273, %v1292, %v1296
        %v1299 = vshrl.u32 %v1195, 16
        %v1301 = vshll.u32 %v1195, 16
        %v1303 = vrot.slane %v1301, 1
        %v1304 = vor.u32 %v1299, %v1303
        %v1306 = vshll.u32 %v1259, 16
        %v1308 = vrot.slane %v1306, 1
        %v1309 = vsel %vm1273, %v1304, %v1308
        %v1311 = vshrl.u32 %v1196, 16
        %v1313 = vshll.u32 %v1196, 16
        %v1315 = vrot.slane %v1313, 1
        %v1316 = vor.u32 %v1311, %v1315
        %v1318 = vshll.u32 %v1260, 16
        %v1320 = vrot.slane %v1318, 1
        %v1321 = vsel %vm1273, %v1316, %v1320
        %v1323 = vshrl.u32 %v1197, 16
        %v1325 = vshll.u32 %v1197, 16
        %v1327 = vrot.slane %v1325, 1
        %v1328 = vor.u32 %v1323, %v1327
        %v1330 = vshll.u32 %v1261, 16
        %v1332 = vrot.slane %v1330, 1
        %v1333 = vsel %vm1273, %v1328, %v1332
        %v1335 = vshrl.u32 %v1198, 16
        %v1337 = vshll.u32 %v1198, 16
        %v1339 = vrot.slane %v1337, 1
        %v1340 = vor.u32 %v1335, %v1339
        %v1342 = vshll.u32 %v1262, 16
        %v1344 = vrot.slane %v1342, 1
        %v1345 = vsel %vm1273, %v1340, %v1344
        %v1347 = vshrl.u32 %v1199, 16
        %v1349 = vshll.u32 %v1199, 16
        %v1351 = vrot.slane %v1349, 1
        %v1352 = vor.u32 %v1347, %v1351
        %v1354 = vshll.u32 %v1263, 16
        %v1356 = vrot.slane %v1354, 1
        %v1357 = vsel %vm1273, %v1352, %v1356
        %v1359 = vshrl.u32 %v1200, 16
        %v1361 = vshll.u32 %v1200, 16
        %v1363 = vrot.slane %v1361, 1
        %v1364 = vor.u32 %v1359, %v1363
        %v1366 = vshll.u32 %v1264, 16
        %v1368 = vrot.slane %v1366, 1
        %v1369 = vsel %vm1273, %v1364, %v1368
        %v1371 = vshrl.u32 %v1201, 16
        %v1373 = vshll.u32 %v1201, 16
        %v1375 = vrot.slane %v1373, 1
        %v1376 = vor.u32 %v1371, %v1375
        %v1378 = vshll.u32 %v1265, 16
        %v1380 = vrot.slane %v1378, 1
        %v1381 = vsel %vm1273, %v1376, %v1380
        %v1383 = vshrl.u32 %v1202, 16
        %v1385 = vshll.u32 %v1202, 16
        %v1387 = vrot.slane %v1385, 1
        %v1388 = vor.u32 %v1383, %v1387
        %v1390 = vshll.u32 %v1266, 16
        %v1392 = vrot.slane %v1390, 1
        %v1393 = vsel %vm1273, %v1388, %v1392
        %v1395 = vshrl.u32 %v1203, 16
        %v1397 = vshll.u32 %v1203, 16
        %v1399 = vrot.slane %v1397, 1
        %v1400 = vor.u32 %v1395, %v1399
        %v1402 = vshll.u32 %v1267, 16
        %v1404 = vrot.slane %v1402, 1
        %v1405 = vsel %vm1273, %v1400, %v1404
        %v1407 = vshrl.u32 %v1204, 16
        %v1409 = vshll.u32 %v1204, 16
        %v1411 = vrot.slane %v1409, 1
        %v1412 = vor.u32 %v1407, %v1411
        %v1414 = vshll.u32 %v1268, 16
        %v1416 = vrot.slane %v1414, 1
        %v1417 = vsel %vm1273, %v1412, %v1416
        %v1419 = vshrl.u32 %v1205, 16
        %v1421 = vshll.u32 %v1205, 16
        %v1423 = vrot.slane %v1421, 1
        %v1424 = vor.u32 %v1419, %v1423
        %v1426 = vshll.u32 %v1269, 16
        %v1428 = vrot.slane %v1426, 1
        %v1429 = vsel %vm1273, %v1424, %v1428
        %v1431 = vshrl.u32 %v1206, 16
        %v1433 = vshll.u32 %v1206, 16
        %v1435 = vrot.slane %v1433, 1
        %v1436 = vor.u32 %v1431, %v1435
        %v1438 = vshll.u32 %v1270, 16
        %v1440 = vrot.slane %v1438, 1
        %v1441 = vsel %vm1273, %v1436, %v1440
        %v1443 = vshrl.u32 %v1207, 16
        %v1445 = vshll.u32 %v1207, 16
        %v1447 = vrot.slane %v1445, 1
        %v1448 = vor.u32 %v1443, %v1447
        %v1450 = vshll.u32 %v1271, 16
        %v1452 = vrot.slane %v1450, 1
        %v1453 = vsel %vm1273, %v1448, %v1452
        %v1455 = vshrl.u32 %v1208, 16
        %v1457 = vshll.u32 %v1208, 16
        %v1459 = vrot.slane %v1457, 1
        %v1460 = vor.u32 %v1455, %v1459
        %v1462 = vshll.u32 %v1272, 16
        %v1464 = vrot.slane %v1462, 1
        %v1465 = vsel %vm1273, %v1460, %v1464
        %v1498 = vunpack.c.l.b16 %v1113
        %v1499 = vunpack.c.l.b16 %v1114
        %v1500 = vunpack.c.l.b16 %v1115
        %v1501 = vunpack.c.l.b16 %v1116
        %v1502 = vunpack.c.l.b16 %v1117
        %v1503 = vunpack.c.l.b16 %v1118
        %v1504 = vunpack.c.l.b16 %v1119
        %v1505 = vunpack.c.l.b16 %v1120
        %v1506 = vunpack.c.l.b16 %v1121
        %v1507 = vunpack.c.l.b16 %v1122
        %v1508 = vunpack.c.l.b16 %v1123
        %v1509 = vunpack.c.l.b16 %v1124
        %v1510 = vunpack.c.l.b16 %v1125
        %v1511 = vunpack.c.l.b16 %v1126
        %v1512 = vunpack.c.l.b16 %v1127
        %v1513 = vunpack.c.l.b16 %v1128
        %v1514 = vpack.c.b16 %v1162, %v1498
        %v1515 = vpack.c.b16 %v1164, %v1499
        %v1516 = vpack.c.b16 %v1166, %v1500
        %v1517 = vpack.c.b16 %v1168, %v1501
        %v1518 = vpack.c.b16 %v1170, %v1502
        %v1519 = vpack.c.b16 %v1172, %v1503
        %v1520 = vpack.c.b16 %v1174, %v1504
        %v1521 = vpack.c.b16 %v1176, %v1505
        %v1522 = vpack.c.b16 %v1178, %v1506
        %v1523 = vpack.c.b16 %v1180, %v1507
        %v1524 = vpack.c.b16 %v1182, %v1508
        %v1525 = vpack.c.b16 %v1184, %v1509
        %v1526 = vpack.c.b16 %v1186, %v1510
        %v1527 = vpack.c.b16 %v1188, %v1511
        %v1528 = vpack.c.b16 %v1190, %v1512
        %v1529 = vpack.c.b16 %v1192, %v1513
        %vm1530 = vcmask 1046528
        %v1531 = vrot.slane %v1514, 1
        %v1532 = vrot.slane %v1257, 1
        %v1533 = vsel %vm1530, %v1531, %v1532
        %v1534 = vrot.slane %v1515, 1
        %v1535 = vrot.slane %v1258, 1
        %v1536 = vsel %vm1530, %v1534, %v1535
        %v1537 = vrot.slane %v1516, 1
        %v1538 = vrot.slane %v1259, 1
        %v1539 = vsel %vm1530, %v1537, %v1538
        %v1540 = vrot.slane %v1517, 1
        %v1541 = vrot.slane %v1260, 1
        %v1542 = vsel %vm1530, %v1540, %v1541
        %v1543 = vrot.slane %v1518, 1
        %v1544 = vrot.slane %v1261, 1
        %v1545 = vsel %vm1530, %v1543, %v1544
        %v1546 = vrot.slane %v1519, 1
        %v1547 = vrot.slane %v1262, 1
        %v1548 = vsel %vm1530, %v1546, %v1547
        %v1549 = vrot.slane %v1520, 1
        %v1550 = vrot.slane %v1263, 1
        %v1551 = vsel %vm1530, %v1549, %v1550
        %v1552 = vrot.slane %v1521, 1
        %v1553 = vrot.slane %v1264, 1
        %v1554 = vsel %vm1530, %v1552, %v1553
        %v1555 = vrot.slane %v1522, 1
        %v1556 = vrot.slane %v1265, 1
        %v1557 = vsel %vm1530, %v1555, %v1556
        %v1558 = vrot.slane %v1523, 1
        %v1559 = vrot.slane %v1266, 1
        %v1560 = vsel %vm1530, %v1558, %v1559
        %v1561 = vrot.slane %v1524, 1
        %v1562 = vrot.slane %v1267, 1
        %v1563 = vsel %vm1530, %v1561, %v1562
        %v1564 = vrot.slane %v1525, 1
        %v1565 = vrot.slane %v1268, 1
        %v1566 = vsel %vm1530, %v1564, %v1565
        %v1567 = vrot.slane %v1526, 1
        %v1568 = vrot.slane %v1269, 1
        %v1569 = vsel %vm1530, %v1567, %v1568
        %v1570 = vrot.slane %v1527, 1
        %v1571 = vrot.slane %v1270, 1
        %v1572 = vsel %vm1530, %v1570, %v1571
        %v1573 = vrot.slane %v1528, 1
        %v1574 = vrot.slane %v1271, 1
        %v1575 = vsel %vm1530, %v1573, %v1574
        %v1576 = vrot.slane %v1529, 1
        %v1577 = vrot.slane %v1272, 1
        %v1578 = vsel %vm1530, %v1576, %v1577
        %v1595 = vld [vmem:[#allocation9] sm:$0xf]
        %v1596 = vld [vmem:[#allocation9 + $0x4] sm:$0xf]
        %v1597 = vld [vmem:[#allocation9 + $0x8] sm:$0xf]
        %v1598 = vld [vmem:[#allocation9 + $0xc] sm:$0xf]
        %v1599 = vld [vmem:[#allocation9 + $0x10] sm:$0xf]
        %v1600 = vld [vmem:[#allocation9 + $0x14] sm:$0xf]
        %v1601 = vld [vmem:[#allocation9 + $0x18] sm:$0xf]
        %v1602 = vld [vmem:[#allocation9 + $0x1c] sm:$0xf]
        %v1603 = vld [vmem:[#allocation9 + $0x20] sm:$0xf]
        %v1604 = vld [vmem:[#allocation9 + $0x24] sm:$0xf]
        %v1605 = vld [vmem:[#allocation9 + $0x28] sm:$0xf]
        %v1606 = vld [vmem:[#allocation9 + $0x2c] sm:$0xf]
        %v1607 = vld [vmem:[#allocation9 + $0x30] sm:$0xf]
        %v1608 = vld [vmem:[#allocation9 + $0x34] sm:$0xf]
        %v1609 = vld [vmem:[#allocation9 + $0x38] sm:$0xf]
        %v1610 = vld [vmem:[#allocation9 + $0x3c] sm:$0xf]
        %v1611 = vld [vmem:[#allocation9 + $0x40] sm:$0xf]
        %v1612 = vld [vmem:[#allocation9 + $0x44] sm:$0xf]
        %v1613 = vld [vmem:[#allocation9 + $0x48] sm:$0xf]
        %v1614 = vld [vmem:[#allocation9 + $0x4c] sm:$0xf]
        %v1615 = vld [vmem:[#allocation9 + $0x50] sm:$0xf]
        %v1616 = vld [vmem:[#allocation9 + $0x54] sm:$0xf]
        %v1617 = vld [vmem:[#allocation9 + $0x58] sm:$0xf]
        %v1618 = vld [vmem:[#allocation9 + $0x5c] sm:$0xf]
        %v1619 = vld [vmem:[#allocation9 + $0x60] sm:$0xf]
        %v1620 = vld [vmem:[#allocation9 + $0x64] sm:$0xf]
        %v1621 = vld [vmem:[#allocation9 + $0x68] sm:$0xf]
        %v1622 = vld [vmem:[#allocation9 + $0x6c] sm:$0xf]
        %v1623 = vld [vmem:[#allocation9 + $0x70] sm:$0xf]
        %v1624 = vld [vmem:[#allocation9 + $0x74] sm:$0xf]
        %v1625 = vld [vmem:[#allocation9 + $0x78] sm:$0xf]
        %v1626 = vld [vmem:[#allocation9 + $0x7c] sm:$0xf]
        %v1627 = vld [vmem:[#allocation9 + $0x80] sm:$0xf]
        %v1628 = vld [vmem:[#allocation9 + $0x84] sm:$0xf]
        %v1629 = vld [vmem:[#allocation9 + $0x88] sm:$0xf]
        %v1630 = vld [vmem:[#allocation9 + $0x8c] sm:$0xf]
        %v1631 = vld [vmem:[#allocation9 + $0x90] sm:$0xf]
        %v1632 = vld [vmem:[#allocation9 + $0x94] sm:$0xf]
        %v1633 = vld [vmem:[#allocation9 + $0x98] sm:$0xf]
        %v1634 = vld [vmem:[#allocation9 + $0x9c] sm:$0xf]
        %v1635 = vld [vmem:[#allocation9 + $0xa0] sm:$0xf]
        %v1636 = vld [vmem:[#allocation9 + $0xa4] sm:$0xf]
        %v1637 = vld [vmem:[#allocation9 + $0xa8] sm:$0xf]
        %v1638 = vld [vmem:[#allocation9 + $0xac] sm:$0xf]
        %v1639 = vld [vmem:[#allocation9 + $0xb0] sm:$0xf]
        %v1640 = vld [vmem:[#allocation9 + $0xb4] sm:$0xf]
        %v1641 = vld [vmem:[#allocation9 + $0xb8] sm:$0xf]
        %v1642 = vld [vmem:[#allocation9 + $0xbc] sm:$0xf]
        %v1643 = vld [vmem:[%s947] sm:$0xf]
        %v1644 = vld [vmem:[%s947 + $0x4] sm:$0xf]
        %v1645 = vld [vmem:[%s947 + $0xc] sm:$0xf]
        %v1646 = vld [vmem:[%s947 + $0x10] sm:$0xf]
        %v1647 = vld [vmem:[%s947 + $0x18] sm:$0xf]
        %v1648 = vld [vmem:[%s947 + $0x1c] sm:$0xf]
        %v1649 = vld [vmem:[%s947 + $0x24] sm:$0xf]
        %v1650 = vld [vmem:[%s947 + $0x28] sm:$0xf]
        %v1651 = vld [vmem:[%s947 + $0x30] sm:$0xf]
        %v1652 = vld [vmem:[%s947 + $0x34] sm:$0xf]
        %v1653 = vld [vmem:[%s947 + $0x3c] sm:$0xf]
        %v1654 = vld [vmem:[%s947 + $0x40] sm:$0xf]
        %v1655 = vld [vmem:[%s947 + $0x48] sm:$0xf]
        %v1656 = vld [vmem:[%s947 + $0x4c] sm:$0xf]
        %v1657 = vld [vmem:[%s947 + $0x54] sm:$0xf]
        %v1658 = vld [vmem:[%s947 + $0x58] sm:$0xf]
        %v1659 = vld [vmem:[%s947 + $0x60] sm:$0xf]
        %v1660 = vld [vmem:[%s947 + $0x64] sm:$0xf]
        %v1661 = vld [vmem:[%s947 + $0x6c] sm:$0xf]
        %v1662 = vld [vmem:[%s947 + $0x70] sm:$0xf]
        %v1663 = vld [vmem:[%s947 + $0x78] sm:$0xf]
        %v1664 = vld [vmem:[%s947 + $0x7c] sm:$0xf]
        %v1665 = vld [vmem:[%s947 + $0x84] sm:$0xf]
        %v1666 = vld [vmem:[%s947 + $0x88] sm:$0xf]
        %v1667 = vld [vmem:[%s947 + $0x90] sm:$0xf]
        %v1668 = vld [vmem:[%s947 + $0x94] sm:$0xf]
        %v1669 = vld [vmem:[%s947 + $0x9c] sm:$0xf]
        %v1670 = vld [vmem:[%s947 + $0xa0] sm:$0xf]
        %v1671 = vld [vmem:[%s947 + $0xa8] sm:$0xf]
        %v1672 = vld [vmem:[%s947 + $0xac] sm:$0xf]
        %v1673 = vld [vmem:[%s947 + $0xb4] sm:$0xf]
        %v1674 = vld [vmem:[%s947 + $0xb8] sm:$0xf]
        %v1675 = vld [vmem:[%s947 + $0x8] sm:$0x1]
        %v1676 = vld [vmem:[%s947 + $0x14] sm:$0x1]
        %v1677 = vld [vmem:[%s947 + $0x20] sm:$0x1]
        %v1678 = vld [vmem:[%s947 + $0x2c] sm:$0x1]
        %v1679 = vld [vmem:[%s947 + $0x38] sm:$0x1]
        %v1680 = vld [vmem:[%s947 + $0x44] sm:$0x1]
        %v1681 = vld [vmem:[%s947 + $0x50] sm:$0x1]
        %v1682 = vld [vmem:[%s947 + $0x5c] sm:$0x1]
        %v1683 = vld [vmem:[%s947 + $0x68] sm:$0x1]
        %v1684 = vld [vmem:[%s947 + $0x74] sm:$0x1]
        %v1685 = vld [vmem:[%s947 + $0x80] sm:$0x1]
        %v1686 = vld [vmem:[%s947 + $0x8c] sm:$0x1]
        %v1687 = vld [vmem:[%s947 + $0x98] sm:$0x1]
        %v1688 = vld [vmem:[%s947 + $0xa4] sm:$0x1]
        %v1689 = vld [vmem:[%s947 + $0xb0] sm:$0x1]
        %v1690 = vld [vmem:[%s947 + $0xbc] sm:$0x1]
        %v1691 = vld [vmem:[%s947] sm:$0xe]
        %v1692 = vld [vmem:[%s947 + $0xc] sm:$0xe]
        %v1693 = vld [vmem:[%s947 + $0x18] sm:$0xe]
        %v1694 = vld [vmem:[%s947 + $0x24] sm:$0xe]
        %v1695 = vld [vmem:[%s947 + $0x30] sm:$0xe]
        %v1696 = vld [vmem:[%s947 + $0x3c] sm:$0xe]
        %v1697 = vld [vmem:[%s947 + $0x48] sm:$0xe]
        %v1698 = vld [vmem:[%s947 + $0x54] sm:$0xe]
        %v1699 = vld [vmem:[%s947 + $0x60] sm:$0xe]
        %v1700 = vld [vmem:[%s947 + $0x6c] sm:$0xe]
        %v1701 = vld [vmem:[%s947 + $0x78] sm:$0xe]
        %v1702 = vld [vmem:[%s947 + $0x84] sm:$0xe]
        %v1703 = vld [vmem:[%s947 + $0x90] sm:$0xe]
        %v1704 = vld [vmem:[%s947 + $0x9c] sm:$0xe]
        %v1705 = vld [vmem:[%s947 + $0xa8] sm:$0xe]
        %v1706 = vld [vmem:[%s947 + $0xb4] sm:$0xe]
        %v1739 = vunpack.c.l.b16 %v1643
        %v1740 = vunpack.c.l.b16 %v1644
        %v1741 = vunpack.c.l.b16 %v1645
        %v1742 = vunpack.c.l.b16 %v1646
        %v1743 = vunpack.c.l.b16 %v1647
        %v1744 = vunpack.c.l.b16 %v1648
        %v1745 = vunpack.c.l.b16 %v1649
        %v1746 = vunpack.c.l.b16 %v1650
        %v1747 = vunpack.c.l.b16 %v1651
        %v1748 = vunpack.c.l.b16 %v1652
        %v1749 = vunpack.c.l.b16 %v1653
        %v1750 = vunpack.c.l.b16 %v1654
        %v1751 = vunpack.c.l.b16 %v1655
        %v1752 = vunpack.c.l.b16 %v1656
        %v1753 = vunpack.c.l.b16 %v1657
        %v1754 = vunpack.c.l.b16 %v1658
        %v1755 = vunpack.c.l.b16 %v1659
        %v1756 = vunpack.c.l.b16 %v1660
        %v1757 = vunpack.c.l.b16 %v1661
        %v1758 = vunpack.c.l.b16 %v1662
        %v1759 = vunpack.c.l.b16 %v1663
        %v1760 = vunpack.c.l.b16 %v1664
        %v1761 = vunpack.c.l.b16 %v1665
        %v1762 = vunpack.c.l.b16 %v1666
        %v1763 = vunpack.c.l.b16 %v1667
        %v1764 = vunpack.c.l.b16 %v1668
        %v1765 = vunpack.c.l.b16 %v1669
        %v1766 = vunpack.c.l.b16 %v1670
        %v1767 = vunpack.c.l.b16 %v1671
        %v1768 = vunpack.c.l.b16 %v1672
        %v1769 = vunpack.c.l.b16 %v1673
        %v1770 = vunpack.c.l.b16 %v1674
        %v1771 = vpack.c.b16 %v1740, %v1739
        %v1772 = vpack.c.b16 %v1742, %v1741
        %v1773 = vpack.c.b16 %v1744, %v1743
        %v1774 = vpack.c.b16 %v1746, %v1745
        %v1775 = vpack.c.b16 %v1748, %v1747
        %v1776 = vpack.c.b16 %v1750, %v1749
        %v1777 = vpack.c.b16 %v1752, %v1751
        %v1778 = vpack.c.b16 %v1754, %v1753
        %v1779 = vpack.c.b16 %v1756, %v1755
        %v1780 = vpack.c.b16 %v1758, %v1757
        %v1781 = vpack.c.b16 %v1760, %v1759
        %v1782 = vpack.c.b16 %v1762, %v1761
        %v1783 = vpack.c.b16 %v1764, %v1763
        %v1784 = vpack.c.b16 %v1766, %v1765
        %v1785 = vpack.c.b16 %v1768, %v1767
        %v1786 = vpack.c.b16 %v1770, %v1769
        %v1819 = vunpack.c.l.b16 %v1675
        %v1820 = vunpack.c.l.b16 %v1676
        %v1821 = vunpack.c.l.b16 %v1677
        %v1822 = vunpack.c.l.b16 %v1678
        %v1823 = vunpack.c.l.b16 %v1679
        %v1824 = vunpack.c.l.b16 %v1680
        %v1825 = vunpack.c.l.b16 %v1681
        %v1826 = vunpack.c.l.b16 %v1682
        %v1827 = vunpack.c.l.b16 %v1683
        %v1828 = vunpack.c.l.b16 %v1684
        %v1829 = vunpack.c.l.b16 %v1685
        %v1830 = vunpack.c.l.b16 %v1686
        %v1831 = vunpack.c.l.b16 %v1687
        %v1832 = vunpack.c.l.b16 %v1688
        %v1833 = vunpack.c.l.b16 %v1689
        %v1834 = vunpack.c.l.b16 %v1690
        %v1835 = vpack.c.b16 %v1819, %v1819
        %v1836 = vpack.c.b16 %v1820, %v1820
        %v1837 = vpack.c.b16 %v1821, %v1821
        %v1838 = vpack.c.b16 %v1822, %v1822
        %v1839 = vpack.c.b16 %v1823, %v1823
        %v1840 = vpack.c.b16 %v1824, %v1824
        %v1841 = vpack.c.b16 %v1825, %v1825
        %v1842 = vpack.c.b16 %v1826, %v1826
        %v1843 = vpack.c.b16 %v1827, %v1827
        %v1844 = vpack.c.b16 %v1828, %v1828
        %v1845 = vpack.c.b16 %v1829, %v1829
        %v1846 = vpack.c.b16 %v1830, %v1830
        %v1847 = vpack.c.b16 %v1831, %v1831
        %v1848 = vpack.c.b16 %v1832, %v1832
        %v1849 = vpack.c.b16 %v1833, %v1833
        %v1850 = vpack.c.b16 %v1834, %v1834
        %v1852 = vshrl.u32 %v1771, 16
        %v1854 = vshll.u32 %v1771, 16
        %v1856 = vrot.slane %v1854, 1
        %v1857 = vor.u32 %v1852, %v1856
        %v1859 = vshll.u32 %v1835, 16
        %v1861 = vrot.slane %v1859, 1
        %v1862 = vsel %vm1273, %v1857, %v1861
        %v1864 = vshrl.u32 %v1772, 16
        %v1866 = vshll.u32 %v1772, 16
        %v1868 = vrot.slane %v1866, 1
        %v1869 = vor.u32 %v1864, %v1868
        %v1871 = vshll.u32 %v1836, 16
        %v1873 = vrot.slane %v1871, 1
        %v1874 = vsel %vm1273, %v1869, %v1873
        %v1876 = vshrl.u32 %v1773, 16
        %v1878 = vshll.u32 %v1773, 16
        %v1880 = vrot.slane %v1878, 1
        %v1881 = vor.u32 %v1876, %v1880
        %v1883 = vshll.u32 %v1837, 16
        %v1885 = vrot.slane %v1883, 1
        %v1886 = vsel %vm1273, %v1881, %v1885
        %v1888 = vshrl.u32 %v1774, 16
        %v1890 = vshll.u32 %v1774, 16
        %v1892 = vrot.slane %v1890, 1
        %v1893 = vor.u32 %v1888, %v1892
        %v1895 = vshll.u32 %v1838, 16
        %v1897 = vrot.slane %v1895, 1
        %v1898 = vsel %vm1273, %v1893, %v1897
        %v1900 = vshrl.u32 %v1775, 16
        %v1902 = vshll.u32 %v1775, 16
        %v1904 = vrot.slane %v1902, 1
        %v1905 = vor.u32 %v1900, %v1904
        %v1907 = vshll.u32 %v1839, 16
        %v1909 = vrot.slane %v1907, 1
        %v1910 = vsel %vm1273, %v1905, %v1909
        %v1912 = vshrl.u32 %v1776, 16
        %v1914 = vshll.u32 %v1776, 16
        %v1916 = vrot.slane %v1914, 1
        %v1917 = vor.u32 %v1912, %v1916
        %v1919 = vshll.u32 %v1840, 16
        %v1921 = vrot.slane %v1919, 1
        %v1922 = vsel %vm1273, %v1917, %v1921
        %v1924 = vshrl.u32 %v1777, 16
        %v1926 = vshll.u32 %v1777, 16
        %v1928 = vrot.slane %v1926, 1
        %v1929 = vor.u32 %v1924, %v1928
        %v1931 = vshll.u32 %v1841, 16
        %v1933 = vrot.slane %v1931, 1
        %v1934 = vsel %vm1273, %v1929, %v1933
        %v1936 = vshrl.u32 %v1778, 16
        %v1938 = vshll.u32 %v1778, 16
        %v1940 = vrot.slane %v1938, 1
        %v1941 = vor.u32 %v1936, %v1940
        %v1943 = vshll.u32 %v1842, 16
        %v1945 = vrot.slane %v1943, 1
        %v1946 = vsel %vm1273, %v1941, %v1945
        %v1948 = vshrl.u32 %v1779, 16
        %v1950 = vshll.u32 %v1779, 16
        %v1952 = vrot.slane %v1950, 1
        %v1953 = vor.u32 %v1948, %v1952
        %v1955 = vshll.u32 %v1843, 16
        %v1957 = vrot.slane %v1955, 1
        %v1958 = vsel %vm1273, %v1953, %v1957
        %v1960 = vshrl.u32 %v1780, 16
        %v1962 = vshll.u32 %v1780, 16
        %v1964 = vrot.slane %v1962, 1
        %v1965 = vor.u32 %v1960, %v1964
        %v1967 = vshll.u32 %v1844, 16
        %v1969 = vrot.slane %v1967, 1
        %v1970 = vsel %vm1273, %v1965, %v1969
        %v1972 = vshrl.u32 %v1781, 16
        %v1974 = vshll.u32 %v1781, 16
        %v1976 = vrot.slane %v1974, 1
        %v1977 = vor.u32 %v1972, %v1976
        %v1979 = vshll.u32 %v1845, 16
        %v1981 = vrot.slane %v1979, 1
        %v1982 = vsel %vm1273, %v1977, %v1981
        %v1984 = vshrl.u32 %v1782, 16
        %v1986 = vshll.u32 %v1782, 16
        %v1988 = vrot.slane %v1986, 1
        %v1989 = vor.u32 %v1984, %v1988
        %v1991 = vshll.u32 %v1846, 16
        %v1993 = vrot.slane %v1991, 1
        %v1994 = vsel %vm1273, %v1989, %v1993
        %v1996 = vshrl.u32 %v1783, 16
        %v1998 = vshll.u32 %v1783, 16
        %v2000 = vrot.slane %v1998, 1
        %v2001 = vor.u32 %v1996, %v2000
        %v2003 = vshll.u32 %v1847, 16
        %v2005 = vrot.slane %v2003, 1
        %v2006 = vsel %vm1273, %v2001, %v2005
        %v2008 = vshrl.u32 %v1784, 16
        %v2010 = vshll.u32 %v1784, 16
        %v2012 = vrot.slane %v2010, 1
        %v2013 = vor.u32 %v2008, %v2012
        %v2015 = vshll.u32 %v1848, 16
        %v2017 = vrot.slane %v2015, 1
        %v2018 = vsel %vm1273, %v2013, %v2017
        %v2020 = vshrl.u32 %v1785, 16
        %v2022 = vshll.u32 %v1785, 16
        %v2024 = vrot.slane %v2022, 1
        %v2025 = vor.u32 %v2020, %v2024
        %v2027 = vshll.u32 %v1849, 16
        %v2029 = vrot.slane %v2027, 1
        %v2030 = vsel %vm1273, %v2025, %v2029
        %v2032 = vshrl.u32 %v1786, 16
        %v2034 = vshll.u32 %v1786, 16
        %v2036 = vrot.slane %v2034, 1
        %v2037 = vor.u32 %v2032, %v2036
        %v2039 = vshll.u32 %v1850, 16
        %v2041 = vrot.slane %v2039, 1
        %v2042 = vsel %vm1273, %v2037, %v2041
        %v2075 = vunpack.c.l.b16 %v1691
        %v2076 = vunpack.c.l.b16 %v1692
        %v2077 = vunpack.c.l.b16 %v1693
        %v2078 = vunpack.c.l.b16 %v1694
        %v2079 = vunpack.c.l.b16 %v1695
        %v2080 = vunpack.c.l.b16 %v1696
        %v2081 = vunpack.c.l.b16 %v1697
        %v2082 = vunpack.c.l.b16 %v1698
        %v2083 = vunpack.c.l.b16 %v1699
        %v2084 = vunpack.c.l.b16 %v1700
        %v2085 = vunpack.c.l.b16 %v1701
        %v2086 = vunpack.c.l.b16 %v1702
        %v2087 = vunpack.c.l.b16 %v1703
        %v2088 = vunpack.c.l.b16 %v1704
        %v2089 = vunpack.c.l.b16 %v1705
        %v2090 = vunpack.c.l.b16 %v1706
        %v2091 = vpack.c.b16 %v1740, %v2075
        %v2092 = vpack.c.b16 %v1742, %v2076
        %v2093 = vpack.c.b16 %v1744, %v2077
        %v2094 = vpack.c.b16 %v1746, %v2078
        %v2095 = vpack.c.b16 %v1748, %v2079
        %v2096 = vpack.c.b16 %v1750, %v2080
        %v2097 = vpack.c.b16 %v1752, %v2081
        %v2098 = vpack.c.b16 %v1754, %v2082
        %v2099 = vpack.c.b16 %v1756, %v2083
        %v2100 = vpack.c.b16 %v1758, %v2084
        %v2101 = vpack.c.b16 %v1760, %v2085
        %v2102 = vpack.c.b16 %v1762, %v2086
        %v2103 = vpack.c.b16 %v1764, %v2087
        %v2104 = vpack.c.b16 %v1766, %v2088
        %v2105 = vpack.c.b16 %v1768, %v2089
        %v2106 = vpack.c.b16 %v1770, %v2090
        %v2107 = vrot.slane %v2091, 1
        %v2108 = vrot.slane %v1835, 1
        %v2109 = vsel %vm1530, %v2107, %v2108
        %v2110 = vrot.slane %v2092, 1
        %v2111 = vrot.slane %v1836, 1
        %v2112 = vsel %vm1530, %v2110, %v2111
        %v2113 = vrot.slane %v2093, 1
        %v2114 = vrot.slane %v1837, 1
        %v2115 = vsel %vm1530, %v2113, %v2114
        %v2116 = vrot.slane %v2094, 1
        %v2117 = vrot.slane %v1838, 1
        %v2118 = vsel %vm1530, %v2116, %v2117
        %v2119 = vrot.slane %v2095, 1
        %v2120 = vrot.slane %v1839, 1
        %v2121 = vsel %vm1530, %v2119, %v2120
        %v2122 = vrot.slane %v2096, 1
        %v2123 = vrot.slane %v1840, 1
        %v2124 = vsel %vm1530, %v2122, %v2123
        %v2125 = vrot.slane %v2097, 1
        %v2126 = vrot.slane %v1841, 1
        %v2127 = vsel %vm1530, %v2125, %v2126
        %v2128 = vrot.slane %v2098, 1
        %v2129 = vrot.slane %v1842, 1
        %v2130 = vsel %vm1530, %v2128, %v2129
        %v2131 = vrot.slane %v2099, 1
        %v2132 = vrot.slane %v1843, 1
        %v2133 = vsel %vm1530, %v2131, %v2132
        %v2134 = vrot.slane %v2100, 1
        %v2135 = vrot.slane %v1844, 1
        %v2136 = vsel %vm1530, %v2134, %v2135
        %v2137 = vrot.slane %v2101, 1
        %v2138 = vrot.slane %v1845, 1
        %v2139 = vsel %vm1530, %v2137, %v2138
        %v2140 = vrot.slane %v2102, 1
        %v2141 = vrot.slane %v1846, 1
        %v2142 = vsel %vm1530, %v2140, %v2141
        %v2143 = vrot.slane %v2103, 1
        %v2144 = vrot.slane %v1847, 1
        %v2145 = vsel %vm1530, %v2143, %v2144
        %v2146 = vrot.slane %v2104, 1
        %v2147 = vrot.slane %v1848, 1
        %v2148 = vsel %vm1530, %v2146, %v2147
        %v2149 = vrot.slane %v2105, 1
        %v2150 = vrot.slane %v1849, 1
        %v2151 = vsel %vm1530, %v2149, %v2150
        %v2152 = vrot.slane %v2106, 1
        %v2153 = vrot.slane %v1850, 1
        %v2154 = vsel %vm1530, %v2152, %v2153
        %v2171 = vld [vmem:[#allocation9 + $0xc0] sm:$0xf]
        %v2172 = vld [vmem:[#allocation9 + $0xc4] sm:$0xf]
        %v2173 = vld [vmem:[#allocation9 + $0xc8] sm:$0xf]
        %v2174 = vld [vmem:[#allocation9 + $0xcc] sm:$0xf]
        %v2175 = vld [vmem:[#allocation9 + $0xd0] sm:$0xf]
        %v2176 = vld [vmem:[#allocation9 + $0xd4] sm:$0xf]
        %v2177 = vld [vmem:[#allocation9 + $0xd8] sm:$0xf]
        %v2178 = vld [vmem:[#allocation9 + $0xdc] sm:$0xf]
        %v2179 = vld [vmem:[#allocation9 + $0xe0] sm:$0xf]
        %v2180 = vld [vmem:[#allocation9 + $0xe4] sm:$0xf]
        %v2181 = vld [vmem:[#allocation9 + $0xe8] sm:$0xf]
        %v2182 = vld [vmem:[#allocation9 + $0xec] sm:$0xf]
        %v2183 = vld [vmem:[#allocation9 + $0xf0] sm:$0xf]
        %v2184 = vld [vmem:[#allocation9 + $0xf4] sm:$0xf]
        %v2185 = vld [vmem:[#allocation9 + $0xf8] sm:$0xf]
        %v2186 = vld [vmem:[#allocation9 + $0xfc] sm:$0xf]
        %v2187 = vld [vmem:[#allocation9 + $0x100] sm:$0xf]
        %v2188 = vld [vmem:[#allocation9 + $0x104] sm:$0xf]
        %v2189 = vld [vmem:[#allocation9 + $0x108] sm:$0xf]
        %v2190 = vld [vmem:[#allocation9 + $0x10c] sm:$0xf]
        %v2191 = vld [vmem:[#allocation9 + $0x110] sm:$0xf]
        %v2192 = vld [vmem:[#allocation9 + $0x114] sm:$0xf]
        %v2193 = vld [vmem:[#allocation9 + $0x118] sm:$0xf]
        %v2194 = vld [vmem:[#allocation9 + $0x11c] sm:$0xf]
        %v2195 = vld [vmem:[#allocation9 + $0x120] sm:$0xf]
        %v2196 = vld [vmem:[#allocation9 + $0x124] sm:$0xf]
        %v2197 = vld [vmem:[#allocation9 + $0x128] sm:$0xf]
        %v2198 = vld [vmem:[#allocation9 + $0x12c] sm:$0xf]
        %v2199 = vld [vmem:[#allocation9 + $0x130] sm:$0xf]
        %v2200 = vld [vmem:[#allocation9 + $0x134] sm:$0xf]
        %v2201 = vld [vmem:[#allocation9 + $0x138] sm:$0xf]
        %v2202 = vld [vmem:[#allocation9 + $0x13c] sm:$0xf]
        %v2203 = vld [vmem:[#allocation9 + $0x140] sm:$0xf]
        %v2204 = vld [vmem:[#allocation9 + $0x144] sm:$0xf]
        %v2205 = vld [vmem:[#allocation9 + $0x148] sm:$0xf]
        %v2206 = vld [vmem:[#allocation9 + $0x14c] sm:$0xf]
        %v2207 = vld [vmem:[#allocation9 + $0x150] sm:$0xf]
        %v2208 = vld [vmem:[#allocation9 + $0x154] sm:$0xf]
        %v2209 = vld [vmem:[#allocation9 + $0x158] sm:$0xf]
        %v2210 = vld [vmem:[#allocation9 + $0x15c] sm:$0xf]
        %v2211 = vld [vmem:[#allocation9 + $0x160] sm:$0xf]
        %v2212 = vld [vmem:[#allocation9 + $0x164] sm:$0xf]
        %v2213 = vld [vmem:[#allocation9 + $0x168] sm:$0xf]
        %v2214 = vld [vmem:[#allocation9 + $0x16c] sm:$0xf]
        %v2215 = vld [vmem:[#allocation9 + $0x170] sm:$0xf]
        %v2216 = vld [vmem:[#allocation9 + $0x174] sm:$0xf]
        %v2217 = vld [vmem:[#allocation9 + $0x178] sm:$0xf]
        %v2218 = vld [vmem:[#allocation9 + $0x17c] sm:$0xf]
        %v2267 = vunpack.c.l.b16 %v2171
        %v2268 = vunpack.c.l.b16 %v2172
        %v2269 = vunpack.c.l.b16 %v2173
        %v2270 = vunpack.c.l.b16 %v2174
        %v2271 = vunpack.c.l.b16 %v2175
        %v2272 = vunpack.c.l.b16 %v2176
        %v2273 = vunpack.c.l.b16 %v2177
        %v2274 = vunpack.c.l.b16 %v2178
        %v2275 = vunpack.c.l.b16 %v2179
        %v2276 = vunpack.c.l.b16 %v2180
        %v2277 = vunpack.c.l.b16 %v2181
        %v2278 = vunpack.c.l.b16 %v2182
        %v2279 = vunpack.c.l.b16 %v2183
        %v2280 = vunpack.c.l.b16 %v2184
        %v2281 = vunpack.c.l.b16 %v2185
        %v2282 = vunpack.c.l.b16 %v2186
        %v2283 = vunpack.c.l.b16 %v2187
        %v2284 = vunpack.c.l.b16 %v2188
        %v2285 = vunpack.c.l.b16 %v2189
        %v2286 = vunpack.c.l.b16 %v2190
        %v2287 = vunpack.c.l.b16 %v2191
        %v2288 = vunpack.c.l.b16 %v2192
        %v2289 = vunpack.c.l.b16 %v2193
        %v2290 = vunpack.c.l.b16 %v2194
        %v2291 = vunpack.c.l.b16 %v2195
        %v2292 = vunpack.c.l.b16 %v2196
        %v2293 = vunpack.c.l.b16 %v2197
        %v2294 = vunpack.c.l.b16 %v2198
        %v2295 = vunpack.c.l.b16 %v2199
        %v2296 = vunpack.c.l.b16 %v2200
        %v2297 = vunpack.c.l.b16 %v2201
        %v2298 = vunpack.c.l.b16 %v2202
        %v2299 = vunpack.c.l.b16 %v2203
        %v2300 = vunpack.c.l.b16 %v2204
        %v2301 = vunpack.c.l.b16 %v2205
        %v2302 = vunpack.c.l.b16 %v2206
        %v2303 = vunpack.c.l.b16 %v2207
        %v2304 = vunpack.c.l.b16 %v2208
        %v2305 = vunpack.c.l.b16 %v2209
        %v2306 = vunpack.c.l.b16 %v2210
        %v2307 = vunpack.c.l.b16 %v2211
        %v2308 = vunpack.c.l.b16 %v2212
        %v2309 = vunpack.c.l.b16 %v2213
        %v2310 = vunpack.c.l.b16 %v2214
        %v2311 = vunpack.c.l.b16 %v2215
        %v2312 = vunpack.c.l.b16 %v2216
        %v2313 = vunpack.c.l.b16 %v2217
        %v2314 = vunpack.c.l.b16 %v2218
        %v2315 = vpack.c.b16 %v2268, %v2267
        %v2316 = vpack.c.b16 %v2270, %v2269
        %v2317 = vpack.c.b16 %v2272, %v2271
        %v2318 = vpack.c.b16 %v2274, %v2273
        %v2319 = vpack.c.b16 %v2276, %v2275
        %v2320 = vpack.c.b16 %v2278, %v2277
        %v2321 = vpack.c.b16 %v2280, %v2279
        %v2322 = vpack.c.b16 %v2282, %v2281
        %v2323 = vpack.c.b16 %v2284, %v2283
        %v2324 = vpack.c.b16 %v2286, %v2285
        %v2325 = vpack.c.b16 %v2288, %v2287
        %v2326 = vpack.c.b16 %v2290, %v2289
        %v2327 = vpack.c.b16 %v2292, %v2291
        %v2328 = vpack.c.b16 %v2294, %v2293
        %v2329 = vpack.c.b16 %v2296, %v2295
        %v2330 = vpack.c.b16 %v2298, %v2297
        %v2331 = vpack.c.b16 %v2300, %v2299
        %v2332 = vpack.c.b16 %v2302, %v2301
        %v2333 = vpack.c.b16 %v2304, %v2303
        %v2334 = vpack.c.b16 %v2306, %v2305
        %v2335 = vpack.c.b16 %v2308, %v2307
        %v2336 = vpack.c.b16 %v2310, %v2309
        %v2337 = vpack.c.b16 %v2312, %v2311
        %v2338 = vpack.c.b16 %v2314, %v2313
        %2363 = vmatprep.subr.bf16.mxu0 0
        %2364 = vmatpush1.bf16.msra.mxu0 %v2315
        %2365 = vmatprep.subr.bf16.mxu0 0
        %2366 = vmatpush1.bf16.msra.mxu0 %v2316
        %2367 = vmatprep.subr.bf16.mxu0 0
        %2368 = vmatpush1.bf16.msra.mxu0 %v2317
        %2369 = vmatprep.subr.bf16.mxu0 0
        %2370 = vmatpush1.bf16.msra.mxu0 %v2318
        %2371 = vmatprep.subr.bf16.mxu0 0
        %2372 = vmatpush1.bf16.msra.mxu0 %v2319
        %2373 = vmatprep.subr.bf16.mxu0 0
        %2374 = vmatpush1.bf16.msra.mxu0 %v2320
        %2375 = vmatprep.subr.bf16.mxu0 0
        %2376 = vmatpush1.bf16.msra.mxu0 %v2321
        %2377 = vmatprep.subr.bf16.mxu0 0
        %2378 = vmatpush1.bf16.msra.mxu0 %v2322
        %2379 = vmatprep.subr.bf16.mxu0 0
        %2380 = vmatpush1.bf16.msra.mxu0 %v2323
        %2381 = vmatprep.subr.bf16.mxu0 0
        %2382 = vmatpush1.bf16.msra.mxu0 %v2324
        %2383 = vmatprep.subr.bf16.mxu0 0
        %2384 = vmatpush1.bf16.msra.mxu0 %v2325
        %2385 = vmatprep.subr.bf16.mxu0 0
        %2386 = vmatpush1.bf16.msra.mxu0 %v2326
        %2387 = vmatprep.subr.bf16.mxu0 0
        %2388 = vmatpush1.bf16.msra.mxu0 %v2327
        %2389 = vmatprep.subr.bf16.mxu0 0
        %2390 = vmatpush1.bf16.msra.mxu0 %v2328
        %2391 = vmatprep.subr.bf16.mxu0 0
        %2392 = vmatpush1.bf16.msra.mxu0 %v2329
        %2393 = vmatprep.subr.bf16.mxu0 0
        %2394 = vmatpush1.bf16.msra.mxu0 %v2330
        %2395 = vmatprep.mubr.bf16.mxu0 %v1862
        %2396 = vmatmul.mubr.bf16.gmra.mrb[0].mxu0 %v1771
        %v2397 = vpop.f32.mrb[0].mxu0
        %v2398 = vadd.f32 0.0, %v2397
        %v2399 = vpop.f32.mrb[0].mxu0
        %v2400 = vpop.f32.mrb[0].mxu0
        %v2401 = vadd.f32 0.0, %v2400
        %v2402 = vpop.f32.mrb[0].mxu0
        %2403 = vmatprep.mubr.bf16.mxu0 %v1874
        %2404 = vmatmul.mubr.bf16.gmra.mrb[0].mxu0 %v1772
        %v2405 = vpop.f32.mrb[0].mxu0
        %v2406 = vadd.f32 0.0, %v2405
        %v2407 = vpop.f32.mrb[0].mxu0
        %v2408 = vpop.f32.mrb[0].mxu0
        %v2409 = vadd.f32 0.0, %v2408
        %v2410 = vpop.f32.mrb[0].mxu0
        %2411 = vmatprep.mubr.bf16.mxu0 %v1886
        %2412 = vmatmul.mubr.bf16.gmra.mrb[0].mxu0 %v1773
        %v2413 = vpop.f32.mrb[0].mxu0
        %v2414 = vadd.f32 0.0, %v2413
        %v2415 = vpop.f32.mrb[0].mxu0
        %v2416 = vpop.f32.mrb[0].mxu0
        %v2417 = vadd.f32 0.0, %v2416
        %v2418 = vpop.f32.mrb[0].mxu0
        %2419 = vmatprep.mubr.bf16.mxu0 %v1898
        %2420 = vmatmul.mubr.bf16.gmra.mrb[0].mxu0 %v1774
        %v2421 = vpop.f32.mrb[0].mxu0
        %v2422 = vadd.f32 0.0, %v2421
        %v2423 = vpop.f32.mrb[0].mxu0
        %v2424 = vpop.f32.mrb[0].mxu0
        %v2425 = vadd.f32 0.0, %v2424
        %v2426 = vpop.f32.mrb[0].mxu0
        %2427 = vmatprep.mubr.bf16.mxu0 %v1910
        %2428 = vmatmul.mubr.bf16.gmra.mrb[0].mxu0 %v1775
        %v2429 = vpop.f32.mrb[0].mxu0
        %v2430 = vadd.f32 0.0, %v2429
        %v2431 = vpop.f32.mrb[0].mxu0
        %v2432 = vpop.f32.mrb[0].mxu0
        %v2433 = vadd.f32 0.0, %v2432
        %v2434 = vpop.f32.mrb[0].mxu0
        %2435 = vmatprep.mubr.bf16.mxu0 %v1922
        %2436 = vmatmul.mubr.bf16.gmra.mrb[0].mxu0 %v1776
        %v2437 = vpop.f32.mrb[0].mxu0
        %v2438 = vadd.f32 0.0, %v2437
        %v2439 = vpop.f32.mrb[0].mxu0
        %v2440 = vpop.f32.mrb[0].mxu0
        %v2441 = vadd.f32 0.0, %v2440
        %v2442 = vpop.f32.mrb[0].mxu0
        %2443 = vmatprep.mubr.bf16.mxu0 %v1934
        %2444 = vmatmul.mubr.bf16.gmra.mrb[0].mxu0 %v1777
        %v2445 = vpop.f32.mrb[0].mxu0
        %v2446 = vadd.f32 0.0, %v2445
        %v2447 = vpop.f32.mrb[0].mxu0
        %v2448 = vpop.f32.mrb[0].mxu0
        %v2449 = vadd.f32 0.0, %v2448
        %v2450 = vpop.f32.mrb[0].mxu0
        %2451 = vmatprep.mubr.bf16.mxu0 %v1946
        %2452 = vmatmul.mubr.bf16.gmra.mrb[0].mxu0 %v1778
        %v2453 = vpop.f32.mrb[0].mxu0
        %v2454 = vadd.f32 0.0, %v2453
        %v2455 = vpop.f32.mrb[0].mxu0
        %v2456 = vpop.f32.mrb[0].mxu0
        %v2457 = vadd.f32 0.0, %v2456
        %v2458 = vpop.f32.mrb[0].mxu0
        %2459 = vmatprep.mubr.bf16.mxu0 %v1958
        %2460 = vmatmul.mubr.bf16.gmra.mrb[0].mxu0 %v1779
        %v2461 = vpop.f32.mrb[0].mxu0
        %v2462 = vadd.f32 0.0, %v2461
        %v2463 = vpop.f32.mrb[0].mxu0
        %v2464 = vpop.f32.mrb[0].mxu0
        %v2465 = vadd.f32 0.0, %v2464
        %v2466 = vpop.f32.mrb[0].mxu0
        %2467 = vmatprep.mubr.bf16.mxu0 %v1970
        %2468 = vmatmul.mubr.bf16.gmra.mrb[0].mxu0 %v1780
        %v2469 = vpop.f32.mrb[0].mxu0
        %v2470 = vadd.f32 0.0, %v2469
        %v2471 = vpop.f32.mrb[0].mxu0
        %v2472 = vpop.f32.mrb[0].mxu0
        %v2473 = vadd.f32 0.0, %v2472
        %v2474 = vpop.f32.mrb[0].mxu0
        %2475 = vmatprep.mubr.bf16.mxu0 %v1982
        %2476 = vmatmul.mubr.bf16.gmra.mrb[0].mxu0 %v1781
        %v2477 = vpop.f32.mrb[0].mxu0
        %v2478 = vadd.f32 0.0, %v2477
        %v2479 = vpop.f32.mrb[0].mxu0
        %v2480 = vpop.f32.mrb[0].mxu0
        %v2481 = vadd.f32 0.0, %v2480
        %v2482 = vpop.f32.mrb[0].mxu0
        %2483 = vmatprep.mubr.bf16.mxu0 %v1994
        %2484 = vmatmul.mubr.bf16.gmra.mrb[0].mxu0 %v1782
        %v2485 = vpop.f32.mrb[0].mxu0
        %v2486 = vadd.f32 0.0, %v2485
        %v2487 = vpop.f32.mrb[0].mxu0
        %v2488 = vpop.f32.mrb[0].mxu0
        %v2489 = vadd.f32 0.0, %v2488
        %v2490 = vpop.f32.mrb[0].mxu0
        %2491 = vmatprep.mubr.bf16.mxu0 %v2006
        %2492 = vmatmul.mubr.bf16.gmra.mrb[0].mxu0 %v1783
        %v2493 = vpop.f32.mrb[0].mxu0
        %v2494 = vadd.f32 0.0, %v2493
        %v2495 = vpop.f32.mrb[0].mxu0
        %v2496 = vpop.f32.mrb[0].mxu0
        %v2497 = vadd.f32 0.0, %v2496
        %v2498 = vpop.f32.mrb[0].mxu0
        %2499 = vmatprep.mubr.bf16.mxu0 %v2018
        %2500 = vmatmul.mubr.bf16.gmra.mrb[0].mxu0 %v1784
        %v2501 = vpop.f32.mrb[0].mxu0
        %v2502 = vadd.f32 0.0, %v2501
        %v2503 = vpop.f32.mrb[0].mxu0
        %v2504 = vpop.f32.mrb[0].mxu0
        %v2505 = vadd.f32 0.0, %v2504
        %v2506 = vpop.f32.mrb[0].mxu0
        %2507 = vmatprep.mubr.bf16.mxu0 %v2030
        %2508 = vmatmul.mubr.bf16.gmra.mrb[0].mxu0 %v1785
        %v2509 = vpop.f32.mrb[0].mxu0
        %v2510 = vadd.f32 0.0, %v2509
        %v2511 = vpop.f32.mrb[0].mxu0
        %v2512 = vpop.f32.mrb[0].mxu0
        %v2513 = vadd.f32 0.0, %v2512
        %v2514 = vpop.f32.mrb[0].mxu0
        %2515 = vmatprep.mubr.bf16.mxu0 %v2042
        %2516 = vmatmul.mubr.bf16.gmra.mrb[0].mxu0 %v1786
        %v2517 = vpop.f32.mrb[0].mxu0
        %v2518 = vadd.f32 0.0, %v2517
        %v2519 = vpop.f32.mrb[0].mxu0
        %v2520 = vpop.f32.mrb[0].mxu0
        %v2521 = vadd.f32 0.0, %v2520
        %v2522 = vpop.f32.mrb[0].mxu0
        %2523 = vdwg.mxu0
        %2524 = vmatprep.subr.bf16.mxu0 0
        %2525 = vmatpush1.bf16.msra.mxu0 %v2331
        %2526 = vmatprep.subr.bf16.mxu0 0
        %2527 = vmatpush1.bf16.msra.mxu0 %v2332
        %2528 = vmatprep.subr.bf16.mxu0 0
        %2529 = vmatpush1.bf16.msra.mxu0 %v2333
        %2530 = vmatprep.subr.bf16.mxu0 0
        %2531 = vmatpush1.bf16.msra.mxu0 %v2334
        %2532 = vmatprep.subr.bf16.mxu0 0
        %2533 = vmatpush1.bf16.msra.mxu0 %v2335
        %2534 = vmatprep.subr.bf16.mxu0 0
        %2535 = vmatpush1.bf16.msra.mxu0 %v2336
        %2536 = vmatprep.subr.bf16.mxu0 0
        %2537 = vmatpush1.bf16.msra.mxu0 %v2337
        %2538 = vmatprep.subr.bf16.mxu0 0
        %2539 = vmatpush1.bf16.msra.mxu0 %v2338
        %2540 = vmatprep.subr.bf16.mxu0 0
        %2541 = vmatpush1.bf16.msra.mxu0 0
        %2542 = vmatprep.subr.bf16.mxu0 0
        %2543 = vmatpush1.bf16.msra.mxu0 0
        %2544 = vmatprep.subr.bf16.mxu0 0
        %2545 = vmatpush1.bf16.msra.mxu0 0
        %2546 = vmatprep.subr.bf16.mxu0 0
        %2547 = vmatpush1.bf16.msra.mxu0 0
        %2548 = vmatprep.subr.bf16.mxu0 0
        %2549 = vmatpush1.bf16.msra.mxu0 0
        %2550 = vmatprep.subr.bf16.mxu0 0
        %2551 = vmatpush1.bf16.msra.mxu0 0
        %2552 = vmatprep.subr.bf16.mxu0 0
        %2553 = vmatpush1.bf16.msra.mxu0 0
        %2554 = vmatprep.subr.bf16.mxu0 0
        %2555 = vmatpush1.bf16.msra.mxu0 0
        %2556 = vmatprep.mubr.bf16.mxu0 0
        %2557 = vmatmul.mubr.bf16.gmra.mrb[0].mxu0 %v2109
        %v2558 = vpop.f32.mrb[0].mxu0
        %v2559 = vadd.f32 %v2398, %v2558
        %v2560 = vpop.f32.mrb[0].mxu0
        %v2561 = vpop.f32.mrb[0].mxu0
        %v2562 = vadd.f32 %v2401, %v2561
        %v2563 = vpop.f32.mrb[0].mxu0
        %2564 = vmatprep.mubr.bf16.mxu0 0
        %2565 = vmatmul.mubr.bf16.gmra.mrb[0].mxu0 %v2112
        %v2566 = vpop.f32.mrb[0].mxu0
        %v2567 = vadd.f32 %v2406, %v2566
        %v2568 = vpop.f32.mrb[0].mxu0
        %v2569 = vpop.f32.mrb[0].mxu0
        %v2570 = vadd.f32 %v2409, %v2569
        %v2571 = vpop.f32.mrb[0].mxu0
        %2572 = vmatprep.mubr.bf16.mxu0 0
        %2573 = vmatmul.mubr.bf16.gmra.mrb[0].mxu0 %v2115
        %v2574 = vpop.f32.mrb[0].mxu0
        %v2575 = vadd.f32 %v2414, %v2574
        %v2576 = vpop.f32.mrb[0].mxu0
        %v2577 = vpop.f32.mrb[0].mxu0
        %v2578 = vadd.f32 %v2417, %v2577
        %v2579 = vpop.f32.mrb[0].mxu0
        %2580 = vmatprep.mubr.bf16.mxu0 0
        %2581 = vmatmul.mubr.bf16.gmra.mrb[0].mxu0 %v2118
        %v2582 = vpop.f32.mrb[0].mxu0
        %v2583 = vadd.f32 %v2422, %v2582
        %v2584 = vpop.f32.mrb[0].mxu0
        %v2585 = vpop.f32.mrb[0].mxu0
        %v2586 = vadd.f32 %v2425, %v2585
        %v2587 = vpop.f32.mrb[0].mxu0
        %2588 = vmatprep.mubr.bf16.mxu0 0
        %2589 = vmatmul.mubr.bf16.gmra.mrb[0].mxu0 %v2121
        %v2590 = vpop.f32.mrb[0].mxu0
        %v2591 = vadd.f32 %v2430, %v2590
        %v2592 = vpop.f32.mrb[0].mxu0
        %v2593 = vpop.f32.mrb[0].mxu0
        %v2594 = vadd.f32 %v2433, %v2593
        %v2595 = vpop.f32.mrb[0].mxu0
        %2596 = vmatprep.mubr.bf16.mxu0 0
        %2597 = vmatmul.mubr.bf16.gmra.mrb[0].mxu0 %v2124
        %v2598 = vpop.f32.mrb[0].mxu0
        %v2599 = vadd.f32 %v2438, %v2598
        %v2600 = vpop.f32.mrb[0].mxu0
        %v2601 = vpop.f32.mrb[0].mxu0
        %v2602 = vadd.f32 %v2441, %v2601
        %v2603 = vpop.f32.mrb[0].mxu0
        %2604 = vmatprep.mubr.bf16.mxu0 0
        %2605 = vmatmul.mubr.bf16.gmra.mrb[0].mxu0 %v2127
        %v2606 = vpop.f32.mrb[0].mxu0
        %v2607 = vadd.f32 %v2446, %v2606
        %v2608 = vpop.f32.mrb[0].mxu0
        %v2609 = vpop.f32.mrb[0].mxu0
        %v2610 = vadd.f32 %v2449, %v2609
        %v2611 = vpop.f32.mrb[0].mxu0
        %2612 = vmatprep.mubr.bf16.mxu0 0
        %2613 = vmatmul.mubr.bf16.gmra.mrb[0].mxu0 %v2130
        %v2614 = vpop.f32.mrb[0].mxu0
        %v2615 = vadd.f32 %v2454, %v2614
        %v2616 = vpop.f32.mrb[0].mxu0
        %v2617 = vpop.f32.mrb[0].mxu0
        %v2618 = vadd.f32 %v2457, %v2617
        %v2619 = vpop.f32.mrb[0].mxu0
        %2620 = vmatprep.mubr.bf16.mxu0 0
        %2621 = vmatmul.mubr.bf16.gmra.mrb[0].mxu0 %v2133
        %v2622 = vpop.f32.mrb[0].mxu0
        %v2623 = vadd.f32 %v2462, %v2622
        %v2624 = vpop.f32.mrb[0].mxu0
        %v2625 = vpop.f32.mrb[0].mxu0
        %v2626 = vadd.f32 %v2465, %v2625
        %v2627 = vpop.f32.mrb[0].mxu0
        %2628 = vmatprep.mubr.bf16.mxu0 0
        %2629 = vmatmul.mubr.bf16.gmra.mrb[0].mxu0 %v2136
        %v2630 = vpop.f32.mrb[0].mxu0
        %v2631 = vadd.f32 %v2470, %v2630
        %v2632 = vpop.f32.mrb[0].mxu0
        %v2633 = vpop.f32.mrb[0].mxu0
        %v2634 = vadd.f32 %v2473, %v2633
        %v2635 = vpop.f32.mrb[0].mxu0
        %2636 = vmatprep.mubr.bf16.mxu0 0
        %2637 = vmatmul.mubr.bf16.gmra.mrb[0].mxu0 %v2139
        %v2638 = vpop.f32.mrb[0].mxu0
        %v2639 = vadd.f32 %v2478, %v2638
        %v2640 = vpop.f32.mrb[0].mxu0
        %v2641 = vpop.f32.mrb[0].mxu0
        %v2642 = vadd.f32 %v2481, %v2641
        %v2643 = vpop.f32.mrb[0].mxu0
        %2644 = vmatprep.mubr.bf16.mxu0 0
        %2645 = vmatmul.mubr.bf16.gmra.mrb[0].mxu0 %v2142
        %v2646 = vpop.f32.mrb[0].mxu0
        %v2647 = vadd.f32 %v2486, %v2646
        %v2648 = vpop.f32.mrb[0].mxu0
        %v2649 = vpop.f32.mrb[0].mxu0
        %v2650 = vadd.f32 %v2489, %v2649
        %v2651 = vpop.f32.mrb[0].mxu0
        %2652 = vmatprep.mubr.bf16.mxu0 0
        %2653 = vmatmul.mubr.bf16.gmra.mrb[0].mxu0 %v2145
        %v2654 = vpop.f32.mrb[0].mxu0
        %v2655 = vadd.f32 %v2494, %v2654
        %v2656 = vpop.f32.mrb[0].mxu0
        %v2657 = vpop.f32.mrb[0].mxu0
        %v2658 = vadd.f32 %v2497, %v2657
        %v2659 = vpop.f32.mrb[0].mxu0
        %2660 = vmatprep.mubr.bf16.mxu0 0
        %2661 = vmatmul.mubr.bf16.gmra.mrb[0].mxu0 %v2148
        %v2662 = vpop.f32.mrb[0].mxu0
        %v2663 = vadd.f32 %v2502, %v2662
        %v2664 = vpop.f32.mrb[0].mxu0
        %v2665 = vpop.f32.mrb[0].mxu0
        %v2666 = vadd.f32 %v2505, %v2665
        %v2667 = vpop.f32.mrb[0].mxu0
        %2668 = vmatprep.mubr.bf16.mxu0 0
        %2669 = vmatmul.mubr.bf16.gmra.mrb[0].mxu0 %v2151
        %v2670 = vpop.f32.mrb[0].mxu0
        %v2671 = vadd.f32 %v2510, %v2670
        %v2672 = vpop.f32.mrb[0].mxu0
        %v2673 = vpop.f32.mrb[0].mxu0
        %v2674 = vadd.f32 %v2513, %v2673
        %v2675 = vpop.f32.mrb[0].mxu0
        %2676 = vmatprep.mubr.bf16.mxu0 0
        %2677 = vmatmul.mubr.bf16.gmra.mrb[0].mxu0 %v2154
        %v2678 = vpop.f32.mrb[0].mxu0
        %v2679 = vadd.f32 %v2518, %v2678
        %v2680 = vpop.f32.mrb[0].mxu0
        %v2681 = vpop.f32.mrb[0].mxu0
        %v2682 = vadd.f32 %v2521, %v2681
        %v2683 = vpop.f32.mrb[0].mxu0
        %2684 = vdwg.mxu0
        %v2733 = vunpack.c.l.b16 %v1595
        %v2734 = vunpack.c.l.b16 %v1596
        %v2735 = vunpack.c.l.b16 %v1597
        %v2736 = vunpack.c.l.b16 %v1598
        %v2737 = vunpack.c.l.b16 %v1599
        %v2738 = vunpack.c.l.b16 %v1600
        %v2739 = vunpack.c.l.b16 %v1601
        %v2740 = vunpack.c.l.b16 %v1602
        %v2741 = vunpack.c.l.b16 %v1603
        %v2742 = vunpack.c.l.b16 %v1604
        %v2743 = vunpack.c.l.b16 %v1605
        %v2744 = vunpack.c.l.b16 %v1606
        %v2745 = vunpack.c.l.b16 %v1607
        %v2746 = vunpack.c.l.b16 %v1608
        %v2747 = vunpack.c.l.b16 %v1609
        %v2748 = vunpack.c.l.b16 %v1610
        %v2749 = vunpack.c.l.b16 %v1611
        %v2750 = vunpack.c.l.b16 %v1612
        %v2751 = vunpack.c.l.b16 %v1613
        %v2752 = vunpack.c.l.b16 %v1614
        %v2753 = vunpack.c.l.b16 %v1615
        %v2754 = vunpack.c.l.b16 %v1616
        %v2755 = vunpack.c.l.b16 %v1617
        %v2756 = vunpack.c.l.b16 %v1618
        %v2757 = vunpack.c.l.b16 %v1619
        %v2758 = vunpack.c.l.b16 %v1620
        %v2759 = vunpack.c.l.b16 %v1621
        %v2760 = vunpack.c.l.b16 %v1622
        %v2761 = vunpack.c.l.b16 %v1623
        %v2762 = vunpack.c.l.b16 %v1624
        %v2763 = vunpack.c.l.b16 %v1625
        %v2764 = vunpack.c.l.b16 %v1626
        %v2765 = vunpack.c.l.b16 %v1627
        %v2766 = vunpack.c.l.b16 %v1628
        %v2767 = vunpack.c.l.b16 %v1629
        %v2768 = vunpack.c.l.b16 %v1630
        %v2769 = vunpack.c.l.b16 %v1631
        %v2770 = vunpack.c.l.b16 %v1632
        %v2771 = vunpack.c.l.b16 %v1633
        %v2772 = vunpack.c.l.b16 %v1634
        %v2773 = vunpack.c.l.b16 %v1635
        %v2774 = vunpack.c.l.b16 %v1636
        %v2775 = vunpack.c.l.b16 %v1637
        %v2776 = vunpack.c.l.b16 %v1638
        %v2777 = vunpack.c.l.b16 %v1639
        %v2778 = vunpack.c.l.b16 %v1640
        %v2779 = vunpack.c.l.b16 %v1641
        %v2780 = vunpack.c.l.b16 %v1642
        %v2781 = vpack.c.b16 %v2734, %v2733
        %v2782 = vpack.c.b16 %v2736, %v2735
        %v2783 = vpack.c.b16 %v2738, %v2737
        %v2784 = vpack.c.b16 %v2740, %v2739
        %v2785 = vpack.c.b16 %v2742, %v2741
        %v2786 = vpack.c.b16 %v2744, %v2743
        %v2787 = vpack.c.b16 %v2746, %v2745
        %v2788 = vpack.c.b16 %v2748, %v2747
        %v2789 = vpack.c.b16 %v2750, %v2749
        %v2790 = vpack.c.b16 %v2752, %v2751
        %v2791 = vpack.c.b16 %v2754, %v2753
        %v2792 = vpack.c.b16 %v2756, %v2755
        %v2793 = vpack.c.b16 %v2758, %v2757
        %v2794 = vpack.c.b16 %v2760, %v2759
        %v2795 = vpack.c.b16 %v2762, %v2761
        %v2796 = vpack.c.b16 %v2764, %v2763
        %v2797 = vpack.c.b16 %v2766, %v2765
        %v2798 = vpack.c.b16 %v2768, %v2767
        %v2799 = vpack.c.b16 %v2770, %v2769
        %v2800 = vpack.c.b16 %v2772, %v2771
        %v2801 = vpack.c.b16 %v2774, %v2773
        %v2802 = vpack.c.b16 %v2776, %v2775
        %v2803 = vpack.c.b16 %v2778, %v2777
        %v2804 = vpack.c.b16 %v2780, %v2779
        %2829 = vmatprep.subr.bf16.mxu0 0
        %2830 = vmatpush1.bf16.msra.mxu0 %v2781
        %2831 = vmatprep.subr.bf16.mxu0 0
        %2832 = vmatpush1.bf16.msra.mxu0 %v2782
        %2833 = vmatprep.subr.bf16.mxu0 0
        %2834 = vmatpush1.bf16.msra.mxu0 %v2783
        %2835 = vmatprep.subr.bf16.mxu0 0
        %2836 = vmatpush1.bf16.msra.mxu0 %v2784
        %2837 = vmatprep.subr.bf16.mxu0 0
        %2838 = vmatpush1.bf16.msra.mxu0 %v2785
        %2839 = vmatprep.subr.bf16.mxu0 0
        %2840 = vmatpush1.bf16.msra.mxu0 %v2786
        %2841 = vmatprep.subr.bf16.mxu0 0
        %2842 = vmatpush1.bf16.msra.mxu0 %v2787
        %2843 = vmatprep.subr.bf16.mxu0 0
        %2844 = vmatpush1.bf16.msra.mxu0 %v2788
        %2845 = vmatprep.subr.bf16.mxu0 0
        %2846 = vmatpush1.bf16.msra.mxu0 %v2789
        %2847 = vmatprep.subr.bf16.mxu0 0
        %2848 = vmatpush1.bf16.msra.mxu0 %v2790
        %2849 = vmatprep.subr.bf16.mxu0 0
        %2850 = vmatpush1.bf16.msra.mxu0 %v2791
        %2851 = vmatprep.subr.bf16.mxu0 0
        %2852 = vmatpush1.bf16.msra.mxu0 %v2792
        %2853 = vmatprep.subr.bf16.mxu0 0
        %2854 = vmatpush1.bf16.msra.mxu0 %v2793
        %2855 = vmatprep.subr.bf16.mxu0 0
        %2856 = vmatpush1.bf16.msra.mxu0 %v2794
        %2857 = vmatprep.subr.bf16.mxu0 0
        %2858 = vmatpush1.bf16.msra.mxu0 %v2795
        %2859 = vmatprep.subr.bf16.mxu0 0
        %2860 = vmatpush1.bf16.msra.mxu0 %v2796
        %2861 = vmatprep.mubr.bf16.mxu0 %v1285
        %2862 = vmatmul.mubr.bf16.gmra.mrb[0].mxu0 %v1193
        %v2863 = vpop.f32.mrb[0].mxu0
        %v2864 = vadd.f32 %v2559, %v2863
        %v2865 = vpop.f32.mrb[0].mxu0
        %v2866 = vpop.f32.mrb[0].mxu0
        %v2867 = vadd.f32 %v2562, %v2866
        %v2868 = vpop.f32.mrb[0].mxu0
        %2869 = vmatprep.mubr.bf16.mxu0 %v1297
        %2870 = vmatmul.mubr.bf16.gmra.mrb[0].mxu0 %v1194
        %v2871 = vpop.f32.mrb[0].mxu0
        %v2872 = vadd.f32 %v2567, %v2871
        %v2873 = vpop.f32.mrb[0].mxu0
        %v2874 = vpop.f32.mrb[0].mxu0
        %v2875 = vadd.f32 %v2570, %v2874
        %v2876 = vpop.f32.mrb[0].mxu0
        %2877 = vmatprep.mubr.bf16.mxu0 %v1309
        %2878 = vmatmul.mubr.bf16.gmra.mrb[0].mxu0 %v1195
        %v2879 = vpop.f32.mrb[0].mxu0
        %v2880 = vadd.f32 %v2575, %v2879
        %v2881 = vpop.f32.mrb[0].mxu0
        %v2882 = vpop.f32.mrb[0].mxu0
        %v2883 = vadd.f32 %v2578, %v2882
        %v2884 = vpop.f32.mrb[0].mxu0
        %2885 = vmatprep.mubr.bf16.mxu0 %v1321
        %2886 = vmatmul.mubr.bf16.gmra.mrb[0].mxu0 %v1196
        %v2887 = vpop.f32.mrb[0].mxu0
        %v2888 = vadd.f32 %v2583, %v2887
        %v2889 = vpop.f32.mrb[0].mxu0
        %v2890 = vpop.f32.mrb[0].mxu0
        %v2891 = vadd.f32 %v2586, %v2890
        %v2892 = vpop.f32.mrb[0].mxu0
        %2893 = vmatprep.mubr.bf16.mxu0 %v1333
        %2894 = vmatmul.mubr.bf16.gmra.mrb[0].mxu0 %v1197
        %v2895 = vpop.f32.mrb[0].mxu0
        %v2896 = vadd.f32 %v2591, %v2895
        %v2897 = vpop.f32.mrb[0].mxu0
        %v2898 = vpop.f32.mrb[0].mxu0
        %v2899 = vadd.f32 %v2594, %v2898
        %v2900 = vpop.f32.mrb[0].mxu0
        %2901 = vmatprep.mubr.bf16.mxu0 %v1345
        %2902 = vmatmul.mubr.bf16.gmra.mrb[0].mxu0 %v1198
        %v2903 = vpop.f32.mrb[0].mxu0
        %v2904 = vadd.f32 %v2599, %v2903
        %v2905 = vpop.f32.mrb[0].mxu0
        %v2906 = vpop.f32.mrb[0].mxu0
        %v2907 = vadd.f32 %v2602, %v2906
        %v2908 = vpop.f32.mrb[0].mxu0
        %2909 = vmatprep.mubr.bf16.mxu0 %v1357
        %2910 = vmatmul.mubr.bf16.gmra.mrb[0].mxu0 %v1199
        %v2911 = vpop.f32.mrb[0].mxu0
        %v2912 = vadd.f32 %v2607, %v2911
        %v2913 = vpop.f32.mrb[0].mxu0
        %v2914 = vpop.f32.mrb[0].mxu0
        %v2915 = vadd.f32 %v2610, %v2914
        %v2916 = vpop.f32.mrb[0].mxu0
        %2917 = vmatprep.mubr.bf16.mxu0 %v1369
        %2918 = vmatmul.mubr.bf16.gmra.mrb[0].mxu0 %v1200
        %v2919 = vpop.f32.mrb[0].mxu0
        %v2920 = vadd.f32 %v2615, %v2919
        %v2921 = vpop.f32.mrb[0].mxu0
        %v2922 = vpop.f32.mrb[0].mxu0
        %v2923 = vadd.f32 %v2618, %v2922
        %v2924 = vpop.f32.mrb[0].mxu0
        %2925 = vmatprep.mubr.bf16.mxu0 %v1381
        %2926 = vmatmul.mubr.bf16.gmra.mrb[0].mxu0 %v1201
        %v2927 = vpop.f32.mrb[0].mxu0
        %v2928 = vadd.f32 %v2623, %v2927
        %v2929 = vpop.f32.mrb[0].mxu0
        %v2930 = vpop.f32.mrb[0].mxu0
        %v2931 = vadd.f32 %v2626, %v2930
        %v2932 = vpop.f32.mrb[0].mxu0
        %2933 = vmatprep.mubr.bf16.mxu0 %v1393
        %2934 = vmatmul.mubr.bf16.gmra.mrb[0].mxu0 %v1202
        %v2935 = vpop.f32.mrb[0].mxu0
        %v2936 = vadd.f32 %v2631, %v2935
        %v2937 = vpop.f32.mrb[0].mxu0
        %v2938 = vpop.f32.mrb[0].mxu0
        %v2939 = vadd.f32 %v2634, %v2938
        %v2940 = vpop.f32.mrb[0].mxu0
        %2941 = vmatprep.mubr.bf16.mxu0 %v1405
        %2942 = vmatmul.mubr.bf16.gmra.mrb[0].mxu0 %v1203
        %v2943 = vpop.f32.mrb[0].mxu0
        %v2944 = vadd.f32 %v2639, %v2943
        %v2945 = vpop.f32.mrb[0].mxu0
        %v2946 = vpop.f32.mrb[0].mxu0
        %v2947 = vadd.f32 %v2642, %v2946
        %v2948 = vpop.f32.mrb[0].mxu0
        %2949 = vmatprep.mubr.bf16.mxu0 %v1417
        %2950 = vmatmul.mubr.bf16.gmra.mrb[0].mxu0 %v1204
        %v2951 = vpop.f32.mrb[0].mxu0
        %v2952 = vadd.f32 %v2647, %v2951
        %v2953 = vpop.f32.mrb[0].mxu0
        %v2954 = vpop.f32.mrb[0].mxu0
        %v2955 = vadd.f32 %v2650, %v2954
        %v2956 = vpop.f32.mrb[0].mxu0
        %2957 = vmatprep.mubr.bf16.mxu0 %v1429
        %2958 = vmatmul.mubr.bf16.gmra.mrb[0].mxu0 %v1205
        %v2959 = vpop.f32.mrb[0].mxu0
        %v2960 = vadd.f32 %v2655, %v2959
        %v2961 = vpop.f32.mrb[0].mxu0
        %v2962 = vpop.f32.mrb[0].mxu0
        %v2963 = vadd.f32 %v2658, %v2962
        %v2964 = vpop.f32.mrb[0].mxu0
        %2965 = vmatprep.mubr.bf16.mxu0 %v1441
        %2966 = vmatmul.mubr.bf16.gmra.mrb[0].mxu0 %v1206
        %v2967 = vpop.f32.mrb[0].mxu0
        %v2968 = vadd.f32 %v2663, %v2967
        %v2969 = vpop.f32.mrb[0].mxu0
        %v2970 = vpop.f32.mrb[0].mxu0
        %v2971 = vadd.f32 %v2666, %v2970
        %v2972 = vpop.f32.mrb[0].mxu0
        %2973 = vmatprep.mubr.bf16.mxu0 %v1453
        %2974 = vmatmul.mubr.bf16.gmra.mrb[0].mxu0 %v1207
        %v2975 = vpop.f32.mrb[0].mxu0
        %v2976 = vadd.f32 %v2671, %v2975
        %v2977 = vpop.f32.mrb[0].mxu0
        %v2978 = vpop.f32.mrb[0].mxu0
        %v2979 = vadd.f32 %v2674, %v2978
        %v2980 = vpop.f32.mrb[0].mxu0
        %2981 = vmatprep.mubr.bf16.mxu0 %v1465
        %2982 = vmatmul.mubr.bf16.gmra.mrb[0].mxu0 %v1208
        %v2983 = vpop.f32.mrb[0].mxu0
        %v2984 = vadd.f32 %v2679, %v2983
        %v2985 = vpop.f32.mrb[0].mxu0
        %v2986 = vpop.f32.mrb[0].mxu0
        %v2987 = vadd.f32 %v2682, %v2986
        %v2988 = vpop.f32.mrb[0].mxu0
        %2989 = vdwg.mxu0
        %2990 = vmatprep.subr.bf16.mxu0 0
        %2991 = vmatpush1.bf16.msra.mxu0 %v2797
        %2992 = vmatprep.subr.bf16.mxu0 0
        %2993 = vmatpush1.bf16.msra.mxu0 %v2798
        %2994 = vmatprep.subr.bf16.mxu0 0
        %2995 = vmatpush1.bf16.msra.mxu0 %v2799
        %2996 = vmatprep.subr.bf16.mxu0 0
        %2997 = vmatpush1.bf16.msra.mxu0 %v2800
        %2998 = vmatprep.subr.bf16.mxu0 0
        %2999 = vmatpush1.bf16.msra.mxu0 %v2801
        %3000 = vmatprep.subr.bf16.mxu0 0
        %3001 = vmatpush1.bf16.msra.mxu0 %v2802
        %3002 = vmatprep.subr.bf16.mxu0 0
        %3003 = vmatpush1.bf16.msra.mxu0 %v2803
        %3004 = vmatprep.subr.bf16.mxu0 0
        %3005 = vmatpush1.bf16.msra.mxu0 %v2804
        %3006 = vmatprep.subr.bf16.mxu0 0
        %3007 = vmatpush1.bf16.msra.mxu0 0
        %3008 = vmatprep.subr.bf16.mxu0 0
        %3009 = vmatpush1.bf16.msra.mxu0 0
        %3010 = vmatprep.subr.bf16.mxu0 0
        %3011 = vmatpush1.bf16.msra.mxu0 0
        %3012 = vmatprep.subr.bf16.mxu0 0
        %3013 = vmatpush1.bf16.msra.mxu0 0
        %3014 = vmatprep.subr.bf16.mxu0 0
        %3015 = vmatpush1.bf16.msra.mxu0 0
        %3016 = vmatprep.subr.bf16.mxu0 0
        %3017 = vmatpush1.bf16.msra.mxu0 0
        %3018 = vmatprep.subr.bf16.mxu0 0
        %3019 = vmatpush1.bf16.msra.mxu0 0
        %3020 = vmatprep.subr.bf16.mxu0 0
        %3021 = vmatpush1.bf16.msra.mxu0 0
        %3022 = vmatprep.mubr.bf16.mxu0 0
        %3023 = vmatmul.mubr.bf16.gmra.mrb[0].mxu0 %v1533
        %v3024 = vpop.f32.mrb[0].mxu0
        %v3025 = vadd.f32 %v2864, %v3024
        %v3026 = vpop.f32.mrb[0].mxu0
        %v3027 = vpop.f32.mrb[0].mxu0
        %v3028 = vadd.f32 %v2867, %v3027
        %v3029 = vpop.f32.mrb[0].mxu0
        %3030 = vmatprep.mubr.bf16.mxu0 0
        %3031 = vmatmul.mubr.bf16.gmra.mrb[0].mxu0 %v1536
        %v3032 = vpop.f32.mrb[0].mxu0
        %v3033 = vadd.f32 %v2872, %v3032
        %v3034 = vpop.f32.mrb[0].mxu0
        %v3035 = vpop.f32.mrb[0].mxu0
        %v3036 = vadd.f32 %v2875, %v3035
        %v3037 = vpop.f32.mrb[0].mxu0
        %3038 = vmatprep.mubr.bf16.mxu0 0
        %3039 = vmatmul.mubr.bf16.gmra.mrb[0].mxu0 %v1539
        %v3040 = vpop.f32.mrb[0].mxu0
        %v3041 = vadd.f32 %v2880, %v3040
        %v3042 = vpop.f32.mrb[0].mxu0
        %v3043 = vpop.f32.mrb[0].mxu0
        %v3044 = vadd.f32 %v2883, %v3043
        %v3045 = vpop.f32.mrb[0].mxu0
        %3046 = vmatprep.mubr.bf16.mxu0 0
        %3047 = vmatmul.mubr.bf16.gmra.mrb[0].mxu0 %v1542
        %v3048 = vpop.f32.mrb[0].mxu0
        %v3049 = vadd.f32 %v2888, %v3048
        %v3050 = vpop.f32.mrb[0].mxu0
        %v3051 = vpop.f32.mrb[0].mxu0
        %v3052 = vadd.f32 %v2891, %v3051
        %v3053 = vpop.f32.mrb[0].mxu0
        %3054 = vmatprep.mubr.bf16.mxu0 0
        %3055 = vmatmul.mubr.bf16.gmra.mrb[0].mxu0 %v1545
        %v3056 = vpop.f32.mrb[0].mxu0
        %v3057 = vadd.f32 %v2896, %v3056
        %v3058 = vpop.f32.mrb[0].mxu0
        %v3059 = vpop.f32.mrb[0].mxu0
        %v3060 = vadd.f32 %v2899, %v3059
        %v3061 = vpop.f32.mrb[0].mxu0
        %3062 = vmatprep.mubr.bf16.mxu0 0
        %3063 = vmatmul.mubr.bf16.gmra.mrb[0].mxu0 %v1548
        %v3064 = vpop.f32.mrb[0].mxu0
        %v3065 = vadd.f32 %v2904, %v3064
        %v3066 = vpop.f32.mrb[0].mxu0
        %v3067 = vpop.f32.mrb[0].mxu0
        %v3068 = vadd.f32 %v2907, %v3067
        %v3069 = vpop.f32.mrb[0].mxu0
        %3070 = vmatprep.mubr.bf16.mxu0 0
        %3071 = vmatmul.mubr.bf16.gmra.mrb[0].mxu0 %v1551
        %v3072 = vpop.f32.mrb[0].mxu0
        %v3073 = vadd.f32 %v2912, %v3072
        %v3074 = vpop.f32.mrb[0].mxu0
        %v3075 = vpop.f32.mrb[0].mxu0
        %v3076 = vadd.f32 %v2915, %v3075
        %v3077 = vpop.f32.mrb[0].mxu0
        %3078 = vmatprep.mubr.bf16.mxu0 0
        %3079 = vmatmul.mubr.bf16.gmra.mrb[0].mxu0 %v1554
        %v3080 = vpop.f32.mrb[0].mxu0
        %v3081 = vadd.f32 %v2920, %v3080
        %v3082 = vpop.f32.mrb[0].mxu0
        %v3083 = vpop.f32.mrb[0].mxu0
        %v3084 = vadd.f32 %v2923, %v3083
        %v3085 = vpop.f32.mrb[0].mxu0
        %3086 = vmatprep.mubr.bf16.mxu0 0
        %3087 = vmatmul.mubr.bf16.gmra.mrb[0].mxu0 %v1557
        %v3088 = vpop.f32.mrb[0].mxu0
        %v3089 = vadd.f32 %v2928, %v3088
        %v3090 = vpop.f32.mrb[0].mxu0
        %v3091 = vpop.f32.mrb[0].mxu0
        %v3092 = vadd.f32 %v2931, %v3091
        %v3093 = vpop.f32.mrb[0].mxu0
        %3094 = vmatprep.mubr.bf16.mxu0 0
        %3095 = vmatmul.mubr.bf16.gmra.mrb[0].mxu0 %v1560
        %v3096 = vpop.f32.mrb[0].mxu0
        %v3097 = vadd.f32 %v2936, %v3096
        %v3098 = vpop.f32.mrb[0].mxu0
        %v3099 = vpop.f32.mrb[0].mxu0
        %v3100 = vadd.f32 %v2939, %v3099
        %v3101 = vpop.f32.mrb[0].mxu0
        %3102 = vmatprep.mubr.bf16.mxu0 0
        %3103 = vmatmul.mubr.bf16.gmra.mrb[0].mxu0 %v1563
        %v3104 = vpop.f32.mrb[0].mxu0
        %v3105 = vadd.f32 %v2944, %v3104
        %v3106 = vpop.f32.mrb[0].mxu0
        %v3107 = vpop.f32.mrb[0].mxu0
        %v3108 = vadd.f32 %v2947, %v3107
        %v3109 = vpop.f32.mrb[0].mxu0
        %3110 = vmatprep.mubr.bf16.mxu0 0
        %3111 = vmatmul.mubr.bf16.gmra.mrb[0].mxu0 %v1566
        %v3112 = vpop.f32.mrb[0].mxu0
        %v3113 = vadd.f32 %v2952, %v3112
        %v3114 = vpop.f32.mrb[0].mxu0
        %v3115 = vpop.f32.mrb[0].mxu0
        %v3116 = vadd.f32 %v2955, %v3115
        %v3117 = vpop.f32.mrb[0].mxu0
        %3118 = vmatprep.mubr.bf16.mxu0 0
        %3119 = vmatmul.mubr.bf16.gmra.mrb[0].mxu0 %v1569
        %v3120 = vpop.f32.mrb[0].mxu0
        %v3121 = vadd.f32 %v2960, %v3120
        %v3122 = vpop.f32.mrb[0].mxu0
        %v3123 = vpop.f32.mrb[0].mxu0
        %v3124 = vadd.f32 %v2963, %v3123
        %v3125 = vpop.f32.mrb[0].mxu0
        %3126 = vmatprep.mubr.bf16.mxu0 0
        %3127 = vmatmul.mubr.bf16.gmra.mrb[0].mxu0 %v1572
        %v3128 = vpop.f32.mrb[0].mxu0
        %v3129 = vadd.f32 %v2968, %v3128
        %v3130 = vpop.f32.mrb[0].mxu0
        %v3131 = vpop.f32.mrb[0].mxu0
        %v3132 = vadd.f32 %v2971, %v3131
        %v3133 = vpop.f32.mrb[0].mxu0
        %3134 = vmatprep.mubr.bf16.mxu0 0
        %3135 = vmatmul.mubr.bf16.gmra.mrb[0].mxu0 %v1575
        %v3136 = vpop.f32.mrb[0].mxu0
        %v3137 = vadd.f32 %v2976, %v3136
        %v3138 = vpop.f32.mrb[0].mxu0
        %v3139 = vpop.f32.mrb[0].mxu0
        %v3140 = vadd.f32 %v2979, %v3139
        %v3141 = vpop.f32.mrb[0].mxu0
        %3142 = vmatprep.mubr.bf16.mxu0 0
        %3143 = vmatmul.mubr.bf16.gmra.mrb[0].mxu0 %v1578
        %v3144 = vpop.f32.mrb[0].mxu0
        %v3145 = vadd.f32 %v2984, %v3144
        %v3146 = vpop.f32.mrb[0].mxu0
        %v3147 = vpop.f32.mrb[0].mxu0
        %v3148 = vadd.f32 %v2987, %v3147
        %v3149 = vpop.f32.mrb[0].mxu0
        %3150 = vdwg.mxu0
        %s3151 = scalar_lea.vmem [#allocation2], 24
        %v3152 = vld [vmem:[%s3151] sm:$0xf]
        %v3153 = vld [vmem:[%s3151 + $0x4] sm:$0xf]
        %v3154 = vld [vmem:[%s3151 + $0xc] sm:$0xf]
        %v3155 = vld [vmem:[%s3151 + $0x10] sm:$0xf]
        %v3156 = vld [vmem:[%s3151 + $0x18] sm:$0xf]
        %v3157 = vld [vmem:[%s3151 + $0x1c] sm:$0xf]
        %v3158 = vld [vmem:[%s3151 + $0x24] sm:$0xf]
        %v3159 = vld [vmem:[%s3151 + $0x28] sm:$0xf]
        %v3160 = vld [vmem:[%s3151 + $0x30] sm:$0xf]
        %v3161 = vld [vmem:[%s3151 + $0x34] sm:$0xf]
        %v3162 = vld [vmem:[%s3151 + $0x3c] sm:$0xf]
        %v3163 = vld [vmem:[%s3151 + $0x40] sm:$0xf]
        %v3164 = vld [vmem:[%s3151 + $0x48] sm:$0xf]
        %v3165 = vld [vmem:[%s3151 + $0x4c] sm:$0xf]
        %v3166 = vld [vmem:[%s3151 + $0x54] sm:$0xf]
        %v3167 = vld [vmem:[%s3151 + $0x58] sm:$0xf]
        %v3168 = vld [vmem:[%s3151 + $0x60] sm:$0xf]
        %v3169 = vld [vmem:[%s3151 + $0x64] sm:$0xf]
        %v3170 = vld [vmem:[%s3151 + $0x6c] sm:$0xf]
        %v3171 = vld [vmem:[%s3151 + $0x70] sm:$0xf]
        %v3172 = vld [vmem:[%s3151 + $0x78] sm:$0xf]
        %v3173 = vld [vmem:[%s3151 + $0x7c] sm:$0xf]
        %v3174 = vld [vmem:[%s3151 + $0x84] sm:$0xf]
        %v3175 = vld [vmem:[%s3151 + $0x88] sm:$0xf]
        %v3176 = vld [vmem:[%s3151 + $0x90] sm:$0xf]
        %v3177 = vld [vmem:[%s3151 + $0x94] sm:$0xf]
        %v3178 = vld [vmem:[%s3151 + $0x9c] sm:$0xf]
        %v3179 = vld [vmem:[%s3151 + $0xa0] sm:$0xf]
        %v3180 = vld [vmem:[%s3151 + $0xa8] sm:$0xf]
        %v3181 = vld [vmem:[%s3151 + $0xac] sm:$0xf]
        %v3182 = vld [vmem:[%s3151 + $0xb4] sm:$0xf]
        %v3183 = vld [vmem:[%s3151 + $0xb8] sm:$0xf]
        %v3184 = vld [vmem:[%s3151 + $0x8] sm:$0x1]
        %v3185 = vld [vmem:[%s3151 + $0x14] sm:$0x1]
        %v3186 = vld [vmem:[%s3151 + $0x20] sm:$0x1]
        %v3187 = vld [vmem:[%s3151 + $0x2c] sm:$0x1]
        %v3188 = vld [vmem:[%s3151 + $0x38] sm:$0x1]
        %v3189 = vld [vmem:[%s3151 + $0x44] sm:$0x1]
        %v3190 = vld [vmem:[%s3151 + $0x50] sm:$0x1]
        %v3191 = vld [vmem:[%s3151 + $0x5c] sm:$0x1]
        %v3192 = vld [vmem:[%s3151 + $0x68] sm:$0x1]
        %v3193 = vld [vmem:[%s3151 + $0x74] sm:$0x1]
        %v3194 = vld [vmem:[%s3151 + $0x80] sm:$0x1]
        %v3195 = vld [vmem:[%s3151 + $0x8c] sm:$0x1]
        %v3196 = vld [vmem:[%s3151 + $0x98] sm:$0x1]
        %v3197 = vld [vmem:[%s3151 + $0xa4] sm:$0x1]
        %v3198 = vld [vmem:[%s3151 + $0xb0] sm:$0x1]
        %v3199 = vld [vmem:[%s3151 + $0xbc] sm:$0x1]
        %v3200 = vld [vmem:[%s3151] sm:$0xe]
        %v3201 = vld [vmem:[%s3151 + $0xc] sm:$0xe]
        %v3202 = vld [vmem:[%s3151 + $0x18] sm:$0xe]
        %v3203 = vld [vmem:[%s3151 + $0x24] sm:$0xe]
        %v3204 = vld [vmem:[%s3151 + $0x30] sm:$0xe]
        %v3205 = vld [vmem:[%s3151 + $0x3c] sm:$0xe]
        %v3206 = vld [vmem:[%s3151 + $0x48] sm:$0xe]
        %v3207 = vld [vmem:[%s3151 + $0x54] sm:$0xe]
        %v3208 = vld [vmem:[%s3151 + $0x60] sm:$0xe]
        %v3209 = vld [vmem:[%s3151 + $0x6c] sm:$0xe]
        %v3210 = vld [vmem:[%s3151 + $0x78] sm:$0xe]
        %v3211 = vld [vmem:[%s3151 + $0x84] sm:$0xe]
        %v3212 = vld [vmem:[%s3151 + $0x90] sm:$0xe]
        %v3213 = vld [vmem:[%s3151 + $0x9c] sm:$0xe]
        %v3214 = vld [vmem:[%s3151 + $0xa8] sm:$0xe]
        %v3215 = vld [vmem:[%s3151 + $0xb4] sm:$0xe]
        %v3248 = vunpack.c.l.b16 %v3152
        %v3249 = vunpack.c.l.b16 %v3153
        %v3250 = vunpack.c.l.b16 %v3154
        %v3251 = vunpack.c.l.b16 %v3155
        %v3252 = vunpack.c.l.b16 %v3156
        %v3253 = vunpack.c.l.b16 %v3157
        %v3254 = vunpack.c.l.b16 %v3158
        %v3255 = vunpack.c.l.b16 %v3159
        %v3256 = vunpack.c.l.b16 %v3160
        %v3257 = vunpack.c.l.b16 %v3161
        %v3258 = vunpack.c.l.b16 %v3162
        %v3259 = vunpack.c.l.b16 %v3163
        %v3260 = vunpack.c.l.b16 %v3164
        %v3261 = vunpack.c.l.b16 %v3165
        %v3262 = vunpack.c.l.b16 %v3166
        %v3263 = vunpack.c.l.b16 %v3167
        %v3264 = vunpack.c.l.b16 %v3168
        %v3265 = vunpack.c.l.b16 %v3169
        %v3266 = vunpack.c.l.b16 %v3170
        %v3267 = vunpack.c.l.b16 %v3171
        %v3268 = vunpack.c.l.b16 %v3172
        %v3269 = vunpack.c.l.b16 %v3173
        %v3270 = vunpack.c.l.b16 %v3174
        %v3271 = vunpack.c.l.b16 %v3175
        %v3272 = vunpack.c.l.b16 %v3176
        %v3273 = vunpack.c.l.b16 %v3177
        %v3274 = vunpack.c.l.b16 %v3178
        %v3275 = vunpack.c.l.b16 %v3179
        %v3276 = vunpack.c.l.b16 %v3180
        %v3277 = vunpack.c.l.b16 %v3181
        %v3278 = vunpack.c.l.b16 %v3182
        %v3279 = vunpack.c.l.b16 %v3183
        %v3280 = vpack.c.b16 %v3249, %v3248
        %v3281 = vpack.c.b16 %v3251, %v3250
        %v3282 = vpack.c.b16 %v3253, %v3252
        %v3283 = vpack.c.b16 %v3255, %v3254
        %v3284 = vpack.c.b16 %v3257, %v3256
        %v3285 = vpack.c.b16 %v3259, %v3258
        %v3286 = vpack.c.b16 %v3261, %v3260
        %v3287 = vpack.c.b16 %v3263, %v3262
        %v3288 = vpack.c.b16 %v3265, %v3264
        %v3289 = vpack.c.b16 %v3267, %v3266
        %v3290 = vpack.c.b16 %v3269, %v3268
        %v3291 = vpack.c.b16 %v3271, %v3270
        %v3292 = vpack.c.b16 %v3273, %v3272
        %v3293 = vpack.c.b16 %v3275, %v3274
        %v3294 = vpack.c.b16 %v3277, %v3276
        %v3295 = vpack.c.b16 %v3279, %v3278
        %v3328 = vunpack.c.l.b16 %v3184
        %v3329 = vunpack.c.l.b16 %v3185
        %v3330 = vunpack.c.l.b16 %v3186
        %v3331 = vunpack.c.l.b16 %v3187
        %v3332 = vunpack.c.l.b16 %v3188
        %v3333 = vunpack.c.l.b16 %v3189
        %v3334 = vunpack.c.l.b16 %v3190
        %v3335 = vunpack.c.l.b16 %v3191
        %v3336 = vunpack.c.l.b16 %v3192
        %v3337 = vunpack.c.l.b16 %v3193
        %v3338 = vunpack.c.l.b16 %v3194
        %v3339 = vunpack.c.l.b16 %v3195
        %v3340 = vunpack.c.l.b16 %v3196
        %v3341 = vunpack.c.l.b16 %v3197
        %v3342 = vunpack.c.l.b16 %v3198
        %v3343 = vunpack.c.l.b16 %v3199
        %v3344 = vpack.c.b16 %v3328, %v3328
        %v3345 = vpack.c.b16 %v3329, %v3329
        %v3346 = vpack.c.b16 %v3330, %v3330
        %v3347 = vpack.c.b16 %v3331, %v3331
        %v3348 = vpack.c.b16 %v3332, %v3332
        %v3349 = vpack.c.b16 %v3333, %v3333
        %v3350 = vpack.c.b16 %v3334, %v3334
        %v3351 = vpack.c.b16 %v3335, %v3335
        %v3352 = vpack.c.b16 %v3336, %v3336
        %v3353 = vpack.c.b16 %v3337, %v3337
        %v3354 = vpack.c.b16 %v3338, %v3338
        %v3355 = vpack.c.b16 %v3339, %v3339
        %v3356 = vpack.c.b16 %v3340, %v3340
        %v3357 = vpack.c.b16 %v3341, %v3341
        %v3358 = vpack.c.b16 %v3342, %v3342
        %v3359 = vpack.c.b16 %v3343, %v3343
        %v3361 = vshrl.u32 %v3280, 16
        %v3363 = vshll.u32 %v3280, 16
        %v3365 = vrot.slane %v3363, 1
        %v3366 = vor.u32 %v3361, %v3365
        %v3368 = vshll.u32 %v3344, 16
        %v3370 = vrot.slane %v3368, 1
        %v3371 = vsel %vm1273, %v3366, %v3370
        %v3373 = vshrl.u32 %v3281, 16
        %v3375 = vshll.u32 %v3281, 16
        %v3377 = vrot.slane %v3375, 1
        %v3378 = vor.u32 %v3373, %v3377
        %v3380 = vshll.u32 %v3345, 16
        %v3382 = vrot.slane %v3380, 1
        %v3383 = vsel %vm1273, %v3378, %v3382
        %v3385 = vshrl.u32 %v3282, 16
        %v3387 = vshll.u32 %v3282, 16
        %v3389 = vrot.slane %v3387, 1
        %v3390 = vor.u32 %v3385, %v3389
        %v3392 = vshll.u32 %v3346, 16
        %v3394 = vrot.slane %v3392, 1
        %v3395 = vsel %vm1273, %v3390, %v3394
        %v3397 = vshrl.u32 %v3283, 16
        %v3399 = vshll.u32 %v3283, 16
        %v3401 = vrot.slane %v3399, 1
        %v3402 = vor.u32 %v3397, %v3401
        %v3404 = vshll.u32 %v3347, 16
        %v3406 = vrot.slane %v3404, 1
        %v3407 = vsel %vm1273, %v3402, %v3406
        %v3409 = vshrl.u32 %v3284, 16
        %v3411 = vshll.u32 %v3284, 16
        %v3413 = vrot.slane %v3411, 1
        %v3414 = vor.u32 %v3409, %v3413
        %v3416 = vshll.u32 %v3348, 16
        %v3418 = vrot.slane %v3416, 1
        %v3419 = vsel %vm1273, %v3414, %v3418
        %v3421 = vshrl.u32 %v3285, 16
        %v3423 = vshll.u32 %v3285, 16
        %v3425 = vrot.slane %v3423, 1
        %v3426 = vor.u32 %v3421, %v3425
        %v3428 = vshll.u32 %v3349, 16
        %v3430 = vrot.slane %v3428, 1
        %v3431 = vsel %vm1273, %v3426, %v3430
        %v3433 = vshrl.u32 %v3286, 16
        %v3435 = vshll.u32 %v3286, 16
        %v3437 = vrot.slane %v3435, 1
        %v3438 = vor.u32 %v3433, %v3437
        %v3440 = vshll.u32 %v3350, 16
        %v3442 = vrot.slane %v3440, 1
        %v3443 = vsel %vm1273, %v3438, %v3442
        %v3445 = vshrl.u32 %v3287, 16
        %v3447 = vshll.u32 %v3287, 16
        %v3449 = vrot.slane %v3447, 1
        %v3450 = vor.u32 %v3445, %v3449
        %v3452 = vshll.u32 %v3351, 16
        %v3454 = vrot.slane %v3452, 1
        %v3455 = vsel %vm1273, %v3450, %v3454
        %v3457 = vshrl.u32 %v3288, 16
        %v3459 = vshll.u32 %v3288, 16
        %v3461 = vrot.slane %v3459, 1
        %v3462 = vor.u32 %v3457, %v3461
        %v3464 = vshll.u32 %v3352, 16
        %v3466 = vrot.slane %v3464, 1
        %v3467 = vsel %vm1273, %v3462, %v3466
        %v3469 = vshrl.u32 %v3289, 16
        %v3471 = vshll.u32 %v3289, 16
        %v3473 = vrot.slane %v3471, 1
        %v3474 = vor.u32 %v3469, %v3473
        %v3476 = vshll.u32 %v3353, 16
        %v3478 = vrot.slane %v3476, 1
        %v3479 = vsel %vm1273, %v3474, %v3478
        %v3481 = vshrl.u32 %v3290, 16
        %v3483 = vshll.u32 %v3290, 16
        %v3485 = vrot.slane %v3483, 1
        %v3486 = vor.u32 %v3481, %v3485
        %v3488 = vshll.u32 %v3354, 16
        %v3490 = vrot.slane %v3488, 1
        %v3491 = vsel %vm1273, %v3486, %v3490
        %v3493 = vshrl.u32 %v3291, 16
        %v3495 = vshll.u32 %v3291, 16
        %v3497 = vrot.slane %v3495, 1
        %v3498 = vor.u32 %v3493, %v3497
        %v3500 = vshll.u32 %v3355, 16
        %v3502 = vrot.slane %v3500, 1
        %v3503 = vsel %vm1273, %v3498, %v3502
        %v3505 = vshrl.u32 %v3292, 16
        %v3507 = vshll.u32 %v3292, 16
        %v3509 = vrot.slane %v3507, 1
        %v3510 = vor.u32 %v3505, %v3509
        %v3512 = vshll.u32 %v3356, 16
        %v3514 = vrot.slane %v3512, 1
        %v3515 = vsel %vm1273, %v3510, %v3514
        %v3517 = vshrl.u32 %v3293, 16
        %v3519 = vshll.u32 %v3293, 16
        %v3521 = vrot.slane %v3519, 1
        %v3522 = vor.u32 %v3517, %v3521
        %v3524 = vshll.u32 %v3357, 16
        %v3526 = vrot.slane %v3524, 1
        %v3527 = vsel %vm1273, %v3522, %v3526
        %v3529 = vshrl.u32 %v3294, 16
        %v3531 = vshll.u32 %v3294, 16
        %v3533 = vrot.slane %v3531, 1
        %v3534 = vor.u32 %v3529, %v3533
        %v3536 = vshll.u32 %v3358, 16
        %v3538 = vrot.slane %v3536, 1
        %v3539 = vsel %vm1273, %v3534, %v3538
        %v3541 = vshrl.u32 %v3295, 16
        %v3543 = vshll.u32 %v3295, 16
        %v3545 = vrot.slane %v3543, 1
        %v3546 = vor.u32 %v3541, %v3545
        %v3548 = vshll.u32 %v3359, 16
        %v3550 = vrot.slane %v3548, 1
        %v3551 = vsel %vm1273, %v3546, %v3550
        %v3584 = vunpack.c.l.b16 %v3200
        %v3585 = vunpack.c.l.b16 %v3201
        %v3586 = vunpack.c.l.b16 %v3202
        %v3587 = vunpack.c.l.b16 %v3203
        %v3588 = vunpack.c.l.b16 %v3204
        %v3589 = vunpack.c.l.b16 %v3205
        %v3590 = vunpack.c.l.b16 %v3206
        %v3591 = vunpack.c.l.b16 %v3207
        %v3592 = vunpack.c.l.b16 %v3208
        %v3593 = vunpack.c.l.b16 %v3209
        %v3594 = vunpack.c.l.b16 %v3210
        %v3595 = vunpack.c.l.b16 %v3211
        %v3596 = vunpack.c.l.b16 %v3212
        %v3597 = vunpack.c.l.b16 %v3213
        %v3598 = vunpack.c.l.b16 %v3214
        %v3599 = vunpack.c.l.b16 %v3215
        %v3600 = vpack.c.b16 %v3249, %v3584
        %v3601 = vpack.c.b16 %v3251, %v3585
        %v3602 = vpack.c.b16 %v3253, %v3586
        %v3603 = vpack.c.b16 %v3255, %v3587
        %v3604 = vpack.c.b16 %v3257, %v3588
        %v3605 = vpack.c.b16 %v3259, %v3589
        %v3606 = vpack.c.b16 %v3261, %v3590
        %v3607 = vpack.c.b16 %v3263, %v3591
        %v3608 = vpack.c.b16 %v3265, %v3592
        %v3609 = vpack.c.b16 %v3267, %v3593
        %v3610 = vpack.c.b16 %v3269, %v3594
        %v3611 = vpack.c.b16 %v3271, %v3595
        %v3612 = vpack.c.b16 %v3273, %v3596
        %v3613 = vpack.c.b16 %v3275, %v3597
        %v3614 = vpack.c.b16 %v3277, %v3598
        %v3615 = vpack.c.b16 %v3279, %v3599
        %v3616 = vrot.slane %v3600, 1
        %v3617 = vrot.slane %v3344, 1
        %v3618 = vsel %vm1530, %v3616, %v3617
        %v3619 = vrot.slane %v3601, 1
        %v3620 = vrot.slane %v3345, 1
        %v3621 = vsel %vm1530, %v3619, %v3620
        %v3622 = vrot.slane %v3602, 1
        %v3623 = vrot.slane %v3346, 1
        %v3624 = vsel %vm1530, %v3622, %v3623
        %v3625 = vrot.slane %v3603, 1
        %v3626 = vrot.slane %v3347, 1
        %v3627 = vsel %vm1530, %v3625, %v3626
        %v3628 = vrot.slane %v3604, 1
        %v3629 = vrot.slane %v3348, 1
        %v3630 = vsel %vm1530, %v3628, %v3629
        %v3631 = vrot.slane %v3605, 1
        %v3632 = vrot.slane %v3349, 1
        %v3633 = vsel %vm1530, %v3631, %v3632
        %v3634 = vrot.slane %v3606, 1
        %v3635 = vrot.slane %v3350, 1
        %v3636 = vsel %vm1530, %v3634, %v3635
        %v3637 = vrot.slane %v3607, 1
        %v3638 = vrot.slane %v3351, 1
        %v3639 = vsel %vm1530, %v3637, %v3638
        %v3640 = vrot.slane %v3608, 1
        %v3641 = vrot.slane %v3352, 1
        %v3642 = vsel %vm1530, %v3640, %v3641
        %v3643 = vrot.slane %v3609, 1
        %v3644 = vrot.slane %v3353, 1
        %v3645 = vsel %vm1530, %v3643, %v3644
        %v3646 = vrot.slane %v3610, 1
        %v3647 = vrot.slane %v3354, 1
        %v3648 = vsel %vm1530, %v3646, %v3647
        %v3649 = vrot.slane %v3611, 1
        %v3650 = vrot.slane %v3355, 1
        %v3651 = vsel %vm1530, %v3649, %v3650
        %v3652 = vrot.slane %v3612, 1
        %v3653 = vrot.slane %v3356, 1
        %v3654 = vsel %vm1530, %v3652, %v3653
        %v3655 = vrot.slane %v3613, 1
        %v3656 = vrot.slane %v3357, 1
        %v3657 = vsel %vm1530, %v3655, %v3656
        %v3658 = vrot.slane %v3614, 1
        %v3659 = vrot.slane %v3358, 1
        %v3660 = vsel %vm1530, %v3658, %v3659
        %v3661 = vrot.slane %v3615, 1
        %v3662 = vrot.slane %v3359, 1
        %v3663 = vsel %vm1530, %v3661, %v3662
        %v3680 = vld [vmem:[#allocation9 + $0x180] sm:$0xf]
        %v3681 = vld [vmem:[#allocation9 + $0x184] sm:$0xf]
        %v3682 = vld [vmem:[#allocation9 + $0x188] sm:$0xf]
        %v3683 = vld [vmem:[#allocation9 + $0x18c] sm:$0xf]
        %v3684 = vld [vmem:[#allocation9 + $0x190] sm:$0xf]
        %v3685 = vld [vmem:[#allocation9 + $0x194] sm:$0xf]
        %v3686 = vld [vmem:[#allocation9 + $0x198] sm:$0xf]
        %v3687 = vld [vmem:[#allocation9 + $0x19c] sm:$0xf]
        %v3688 = vld [vmem:[#allocation9 + $0x1a0] sm:$0xf]
        %v3689 = vld [vmem:[#allocation9 + $0x1a4] sm:$0xf]
        %v3690 = vld [vmem:[#allocation9 + $0x1a8] sm:$0xf]
        %v3691 = vld [vmem:[#allocation9 + $0x1ac] sm:$0xf]
        %v3692 = vld [vmem:[#allocation9 + $0x1b0] sm:$0xf]
        %v3693 = vld [vmem:[#allocation9 + $0x1b4] sm:$0xf]
        %v3694 = vld [vmem:[#allocation9 + $0x1b8] sm:$0xf]
        %v3695 = vld [vmem:[#allocation9 + $0x1bc] sm:$0xf]
        %v3696 = vld [vmem:[#allocation9 + $0x1c0] sm:$0xf]
        %v3697 = vld [vmem:[#allocation9 + $0x1c4] sm:$0xf]
        %v3698 = vld [vmem:[#allocation9 + $0x1c8] sm:$0xf]
        %v3699 = vld [vmem:[#allocation9 + $0x1cc] sm:$0xf]
        %v3700 = vld [vmem:[#allocation9 + $0x1d0] sm:$0xf]
        %v3701 = vld [vmem:[#allocation9 + $0x1d4] sm:$0xf]
        %v3702 = vld [vmem:[#allocation9 + $0x1d8] sm:$0xf]
        %v3703 = vld [vmem:[#allocation9 + $0x1dc] sm:$0xf]
        %v3704 = vld [vmem:[#allocation9 + $0x1e0] sm:$0xf]
        %v3705 = vld [vmem:[#allocation9 + $0x1e4] sm:$0xf]
        %v3706 = vld [vmem:[#allocation9 + $0x1e8] sm:$0xf]
        %v3707 = vld [vmem:[#allocation9 + $0x1ec] sm:$0xf]
        %v3708 = vld [vmem:[#allocation9 + $0x1f0] sm:$0xf]
        %v3709 = vld [vmem:[#allocation9 + $0x1f4] sm:$0xf]
        %v3710 = vld [vmem:[#allocation9 + $0x1f8] sm:$0xf]
        %v3711 = vld [vmem:[#allocation9 + $0x1fc] sm:$0xf]
        %v3712 = vld [vmem:[#allocation9 + $0x200] sm:$0xf]
        %v3713 = vld [vmem:[#allocation9 + $0x204] sm:$0xf]
        %v3714 = vld [vmem:[#allocation9 + $0x208] sm:$0xf]
        %v3715 = vld [vmem:[#allocation9 + $0x20c] sm:$0xf]
        %v3716 = vld [vmem:[#allocation9 + $0x210] sm:$0xf]
        %v3717 = vld [vmem:[#allocation9 + $0x214] sm:$0xf]
        %v3718 = vld [vmem:[#allocation9 + $0x218] sm:$0xf]
        %v3719 = vld [vmem:[#allocation9 + $0x21c] sm:$0xf]
        %v3720 = vld [vmem:[#allocation9 + $0x220] sm:$0xf]
        %v3721 = vld [vmem:[#allocation9 + $0x224] sm:$0xf]
        %v3722 = vld [vmem:[#allocation9 + $0x228] sm:$0xf]
        %v3723 = vld [vmem:[#allocation9 + $0x22c] sm:$0xf]
        %v3724 = vld [vmem:[#allocation9 + $0x230] sm:$0xf]
        %v3725 = vld [vmem:[#allocation9 + $0x234] sm:$0xf]
        %v3726 = vld [vmem:[#allocation9 + $0x238] sm:$0xf]
        %v3727 = vld [vmem:[#allocation9 + $0x23c] sm:$0xf]
        %v3776 = vunpack.c.l.b16 %v3680
        %v3777 = vunpack.c.l.b16 %v3681
        %v3778 = vunpack.c.l.b16 %v3682
        %v3779 = vunpack.c.l.b16 %v3683
        %v3780 = vunpack.c.l.b16 %v3684
        %v3781 = vunpack.c.l.b16 %v3685
        %v3782 = vunpack.c.l.b16 %v3686
        %v3783 = vunpack.c.l.b16 %v3687
        %v3784 = vunpack.c.l.b16 %v3688
        %v3785 = vunpack.c.l.b16 %v3689
        %v3786 = vunpack.c.l.b16 %v3690
        %v3787 = vunpack.c.l.b16 %v3691
        %v3788 = vunpack.c.l.b16 %v3692
        %v3789 = vunpack.c.l.b16 %v3693
        %v3790 = vunpack.c.l.b16 %v3694
        %v3791 = vunpack.c.l.b16 %v3695
        %v3792 = vunpack.c.l.b16 %v3696
        %v3793 = vunpack.c.l.b16 %v3697
        %v3794 = vunpack.c.l.b16 %v3698
        %v3795 = vunpack.c.l.b16 %v3699
        %v3796 = vunpack.c.l.b16 %v3700
        %v3797 = vunpack.c.l.b16 %v3701
        %v3798 = vunpack.c.l.b16 %v3702
        %v3799 = vunpack.c.l.b16 %v3703
        %v3800 = vunpack.c.l.b16 %v3704
        %v3801 = vunpack.c.l.b16 %v3705
        %v3802 = vunpack.c.l.b16 %v3706
        %v3803 = vunpack.c.l.b16 %v3707
        %v3804 = vunpack.c.l.b16 %v3708
        %v3805 = vunpack.c.l.b16 %v3709
        %v3806 = vunpack.c.l.b16 %v3710
        %v3807 = vunpack.c.l.b16 %v3711
        %v3808 = vunpack.c.l.b16 %v3712
        %v3809 = vunpack.c.l.b16 %v3713
        %v3810 = vunpack.c.l.b16 %v3714
        %v3811 = vunpack.c.l.b16 %v3715
        %v3812 = vunpack.c.l.b16 %v3716
        %v3813 = vunpack.c.l.b16 %v3717
        %v3814 = vunpack.c.l.b16 %v3718
        %v3815 = vunpack.c.l.b16 %v3719
        %v3816 = vunpack.c.l.b16 %v3720
        %v3817 = vunpack.c.l.b16 %v3721
        %v3818 = vunpack.c.l.b16 %v3722
        %v3819 = vunpack.c.l.b16 %v3723
        %v3820 = vunpack.c.l.b16 %v3724
        %v3821 = vunpack.c.l.b16 %v3725
        %v3822 = vunpack.c.l.b16 %v3726
        %v3823 = vunpack.c.l.b16 %v3727
        %v3824 = vpack.c.b16 %v3777, %v3776
        %v3825 = vpack.c.b16 %v3779, %v3778
        %v3826 = vpack.c.b16 %v3781, %v3780
        %v3827 = vpack.c.b16 %v3783, %v3782
        %v3828 = vpack.c.b16 %v3785, %v3784
        %v3829 = vpack.c.b16 %v3787, %v3786
        %v3830 = vpack.c.b16 %v3789, %v3788
        %v3831 = vpack.c.b16 %v3791, %v3790
        %v3832 = vpack.c.b16 %v3793, %v3792
        %v3833 = vpack.c.b16 %v3795, %v3794
        %v3834 = vpack.c.b16 %v3797, %v3796
        %v3835 = vpack.c.b16 %v3799, %v3798
        %v3836 = vpack.c.b16 %v3801, %v3800
        %v3837 = vpack.c.b16 %v3803, %v3802
        %v3838 = vpack.c.b16 %v3805, %v3804
        %v3839 = vpack.c.b16 %v3807, %v3806
        %v3840 = vpack.c.b16 %v3809, %v3808
        %v3841 = vpack.c.b16 %v3811, %v3810
        %v3842 = vpack.c.b16 %v3813, %v3812
        %v3843 = vpack.c.b16 %v3815, %v3814
        %v3844 = vpack.c.b16 %v3817, %v3816
        %v3845 = vpack.c.b16 %v3819, %v3818
        %v3846 = vpack.c.b16 %v3821, %v3820
        %v3847 = vpack.c.b16 %v3823, %v3822
        %3872 = vmatprep.subr.bf16.mxu0 0
        %3873 = vmatpush1.bf16.msra.mxu0 %v3824
        %3874 = vmatprep.subr.bf16.mxu0 0
        %3875 = vmatpush1.bf16.msra.mxu0 %v3825
        %3876 = vmatprep.subr.bf16.mxu0 0
        %3877 = vmatpush1.bf16.msra.mxu0 %v3826
        %3878 = vmatprep.subr.bf16.mxu0 0
        %3879 = vmatpush1.bf16.msra.mxu0 %v3827
        %3880 = vmatprep.subr.bf16.mxu0 0
        %3881 = vmatpush1.bf16.msra.mxu0 %v3828
        %3882 = vmatprep.subr.bf16.mxu0 0
        %3883 = vmatpush1.bf16.msra.mxu0 %v3829
        %3884 = vmatprep.subr.bf16.mxu0 0
        %3885 = vmatpush1.bf16.msra.mxu0 %v3830
        %3886 = vmatprep.subr.bf16.mxu0 0
        %3887 = vmatpush1.bf16.msra.mxu0 %v3831
        %3888 = vmatprep.subr.bf16.mxu0 0
        %3889 = vmatpush1.bf16.msra.mxu0 %v3832
        %3890 = vmatprep.subr.bf16.mxu0 0
        %3891 = vmatpush1.bf16.msra.mxu0 %v3833
        %3892 = vmatprep.subr.bf16.mxu0 0
        %3893 = vmatpush1.bf16.msra.mxu0 %v3834
        %3894 = vmatprep.subr.bf16.mxu0 0
        %3895 = vmatpush1.bf16.msra.mxu0 %v3835
        %3896 = vmatprep.subr.bf16.mxu0 0
        %3897 = vmatpush1.bf16.msra.mxu0 %v3836
        %3898 = vmatprep.subr.bf16.mxu0 0
        %3899 = vmatpush1.bf16.msra.mxu0 %v3837
        %3900 = vmatprep.subr.bf16.mxu0 0
        %3901 = vmatpush1.bf16.msra.mxu0 %v3838
        %3902 = vmatprep.subr.bf16.mxu0 0
        %3903 = vmatpush1.bf16.msra.mxu0 %v3839
        %3904 = vmatprep.mubr.bf16.mxu0 %v3371
        %3905 = vmatmul.mubr.bf16.gmra.mrb[0].mxu0 %v3280
        %v3906 = vpop.f32.mrb[0].mxu0
        %v3907 = vadd.f32 0.0, %v3906
        %v3908 = vpop.f32.mrb[0].mxu0
        %v3909 = vpop.f32.mrb[0].mxu0
        %v3910 = vadd.f32 0.0, %v3909
        %v3911 = vpop.f32.mrb[0].mxu0
        %3912 = vmatprep.mubr.bf16.mxu0 %v3383
        %3913 = vmatmul.mubr.bf16.gmra.mrb[0].mxu0 %v3281
        %v3914 = vpop.f32.mrb[0].mxu0
        %v3915 = vadd.f32 0.0, %v3914
        %v3916 = vpop.f32.mrb[0].mxu0
        %v3917 = vpop.f32.mrb[0].mxu0
        %v3918 = vadd.f32 0.0, %v3917
        %v3919 = vpop.f32.mrb[0].mxu0
        %3920 = vmatprep.mubr.bf16.mxu0 %v3395
        %3921 = vmatmul.mubr.bf16.gmra.mrb[0].mxu0 %v3282
        %v3922 = vpop.f32.mrb[0].mxu0
        %v3923 = vadd.f32 0.0, %v3922
        %v3924 = vpop.f32.mrb[0].mxu0
        %v3925 = vpop.f32.mrb[0].mxu0
        %v3926 = vadd.f32 0.0, %v3925
        %v3927 = vpop.f32.mrb[0].mxu0
        %3928 = vmatprep.mubr.bf16.mxu0 %v3407
        %3929 = vmatmul.mubr.bf16.gmra.mrb[0].mxu0 %v3283
        %v3930 = vpop.f32.mrb[0].mxu0
        %v3931 = vadd.f32 0.0, %v3930
        %v3932 = vpop.f32.mrb[0].mxu0
        %v3933 = vpop.f32.mrb[0].mxu0
        %v3934 = vadd.f32 0.0, %v3933
        %v3935 = vpop.f32.mrb[0].mxu0
        %3936 = vmatprep.mubr.bf16.mxu0 %v3419
        %3937 = vmatmul.mubr.bf16.gmra.mrb[0].mxu0 %v3284
        %v3938 = vpop.f32.mrb[0].mxu0
        %v3939 = vadd.f32 0.0, %v3938
        %v3940 = vpop.f32.mrb[0].mxu0
        %v3941 = vpop.f32.mrb[0].mxu0
        %v3942 = vadd.f32 0.0, %v3941
        %v3943 = vpop.f32.mrb[0].mxu0
        %3944 = vmatprep.mubr.bf16.mxu0 %v3431
        %3945 = vmatmul.mubr.bf16.gmra.mrb[0].mxu0 %v3285
        %v3946 = vpop.f32.mrb[0].mxu0
        %v3947 = vadd.f32 0.0, %v3946
        %v3948 = vpop.f32.mrb[0].mxu0
        %v3949 = vpop.f32.mrb[0].mxu0
        %v3950 = vadd.f32 0.0, %v3949
        %v3951 = vpop.f32.mrb[0].mxu0
        %3952 = vmatprep.mubr.bf16.mxu0 %v3443
        %3953 = vmatmul.mubr.bf16.gmra.mrb[0].mxu0 %v3286
        %v3954 = vpop.f32.mrb[0].mxu0
        %v3955 = vadd.f32 0.0, %v3954
        %v3956 = vpop.f32.mrb[0].mxu0
        %v3957 = vpop.f32.mrb[0].mxu0
        %v3958 = vadd.f32 0.0, %v3957
        %v3959 = vpop.f32.mrb[0].mxu0
        %3960 = vmatprep.mubr.bf16.mxu0 %v3455
        %3961 = vmatmul.mubr.bf16.gmra.mrb[0].mxu0 %v3287
        %v3962 = vpop.f32.mrb[0].mxu0
        %v3963 = vadd.f32 0.0, %v3962
        %v3964 = vpop.f32.mrb[0].mxu0
        %v3965 = vpop.f32.mrb[0].mxu0
        %v3966 = vadd.f32 0.0, %v3965
        %v3967 = vpop.f32.mrb[0].mxu0
        %3968 = vmatprep.mubr.bf16.mxu0 %v3467
        %3969 = vmatmul.mubr.bf16.gmra.mrb[0].mxu0 %v3288
        %v3970 = vpop.f32.mrb[0].mxu0
        %v3971 = vadd.f32 0.0, %v3970
        %v3972 = vpop.f32.mrb[0].mxu0
        %v3973 = vpop.f32.mrb[0].mxu0
        %v3974 = vadd.f32 0.0, %v3973
        %v3975 = vpop.f32.mrb[0].mxu0
        %3976 = vmatprep.mubr.bf16.mxu0 %v3479
        %3977 = vmatmul.mubr.bf16.gmra.mrb[0].mxu0 %v3289
        %v3978 = vpop.f32.mrb[0].mxu0
        %v3979 = vadd.f32 0.0, %v3978
        %v3980 = vpop.f32.mrb[0].mxu0
        %v3981 = vpop.f32.mrb[0].mxu0
        %v3982 = vadd.f32 0.0, %v3981
        %v3983 = vpop.f32.mrb[0].mxu0
        %3984 = vmatprep.mubr.bf16.mxu0 %v3491
        %3985 = vmatmul.mubr.bf16.gmra.mrb[0].mxu0 %v3290
        %v3986 = vpop.f32.mrb[0].mxu0
        %v3987 = vadd.f32 0.0, %v3986
        %v3988 = vpop.f32.mrb[0].mxu0
        %v3989 = vpop.f32.mrb[0].mxu0
        %v3990 = vadd.f32 0.0, %v3989
        %v3991 = vpop.f32.mrb[0].mxu0
        %3992 = vmatprep.mubr.bf16.mxu0 %v3503
        %3993 = vmatmul.mubr.bf16.gmra.mrb[0].mxu0 %v3291
        %v3994 = vpop.f32.mrb[0].mxu0
        %v3995 = vadd.f32 0.0, %v3994
        %v3996 = vpop.f32.mrb[0].mxu0
        %v3997 = vpop.f32.mrb[0].mxu0
        %v3998 = vadd.f32 0.0, %v3997
        %v3999 = vpop.f32.mrb[0].mxu0
        %4000 = vmatprep.mubr.bf16.mxu0 %v3515
        %4001 = vmatmul.mubr.bf16.gmra.mrb[0].mxu0 %v3292
        %v4002 = vpop.f32.mrb[0].mxu0
        %v4003 = vadd.f32 0.0, %v4002
        %v4004 = vpop.f32.mrb[0].mxu0
        %v4005 = vpop.f32.mrb[0].mxu0
        %v4006 = vadd.f32 0.0, %v4005
        %v4007 = vpop.f32.mrb[0].mxu0
        %4008 = vmatprep.mubr.bf16.mxu0 %v3527
        %4009 = vmatmul.mubr.bf16.gmra.mrb[0].mxu0 %v3293
        %v4010 = vpop.f32.mrb[0].mxu0
        %v4011 = vadd.f32 0.0, %v4010
        %v4012 = vpop.f32.mrb[0].mxu0
        %v4013 = vpop.f32.mrb[0].mxu0
        %v4014 = vadd.f32 0.0, %v4013
        %v4015 = vpop.f32.mrb[0].mxu0
        %4016 = vmatprep.mubr.bf16.mxu0 %v3539
        %4017 = vmatmul.mubr.bf16.gmra.mrb[0].mxu0 %v3294
        %v4018 = vpop.f32.mrb[0].mxu0
        %v4019 = vadd.f32 0.0, %v4018
        %v4020 = vpop.f32.mrb[0].mxu0
        %v4021 = vpop.f32.mrb[0].mxu0
        %v4022 = vadd.f32 0.0, %v4021
        %v4023 = vpop.f32.mrb[0].mxu0
        %4024 = vmatprep.mubr.bf16.mxu0 %v3551
        %4025 = vmatmul.mubr.bf16.gmra.mrb[0].mxu0 %v3295
        %v4026 = vpop.f32.mrb[0].mxu0
        %v4027 = vadd.f32 0.0, %v4026
        %v4028 = vpop.f32.mrb[0].mxu0
        %v4029 = vpop.f32.mrb[0].mxu0
        %v4030 = vadd.f32 0.0, %v4029
        %v4031 = vpop.f32.mrb[0].mxu0
        %4032 = vdwg.mxu0
        %4033 = vmatprep.subr.bf16.mxu0 0
        %4034 = vmatpush1.bf16.msra.mxu0 %v3840
        %4035 = vmatprep.subr.bf16.mxu0 0
        %4036 = vmatpush1.bf16.msra.mxu0 %v3841
        %4037 = vmatprep.subr.bf16.mxu0 0
        %4038 = vmatpush1.bf16.msra.mxu0 %v3842
        %4039 = vmatprep.subr.bf16.mxu0 0
        %4040 = vmatpush1.bf16.msra.mxu0 %v3843
        %4041 = vmatprep.subr.bf16.mxu0 0
        %4042 = vmatpush1.bf16.msra.mxu0 %v3844
        %4043 = vmatprep.subr.bf16.mxu0 0
        %4044 = vmatpush1.bf16.msra.mxu0 %v3845
        %4045 = vmatprep.subr.bf16.mxu0 0
        %4046 = vmatpush1.bf16.msra.mxu0 %v3846
        %4047 = vmatprep.subr.bf16.mxu0 0
        %4048 = vmatpush1.bf16.msra.mxu0 %v3847
        %4049 = vmatprep.subr.bf16.mxu0 0
        %4050 = vmatpush1.bf16.msra.mxu0 0
        %4051 = vmatprep.subr.bf16.mxu0 0
        %4052 = vmatpush1.bf16.msra.mxu0 0
        %4053 = vmatprep.subr.bf16.mxu0 0
        %4054 = vmatpush1.bf16.msra.mxu0 0
        %4055 = vmatprep.subr.bf16.mxu0 0
        %4056 = vmatpush1.bf16.msra.mxu0 0
        %4057 = vmatprep.subr.bf16.mxu0 0
        %4058 = vmatpush1.bf16.msra.mxu0 0
        %4059 = vmatprep.subr.bf16.mxu0 0
        %4060 = vmatpush1.bf16.msra.mxu0 0
        %4061 = vmatprep.subr.bf16.mxu0 0
        %4062 = vmatpush1.bf16.msra.mxu0 0
        %4063 = vmatprep.subr.bf16.mxu0 0
        %4064 = vmatpush1.bf16.msra.mxu0 0
        %4065 = vmatprep.mubr.bf16.mxu0 0
        %4066 = vmatmul.mubr.bf16.gmra.mrb[0].mxu0 %v3618
        %v4067 = vpop.f32.mrb[0].mxu0
        %v4068 = vadd.f32 %v3907, %v4067
        %v4069 = vpop.f32.mrb[0].mxu0
        %v4070 = vpop.f32.mrb[0].mxu0
        %v4071 = vadd.f32 %v3910, %v4070
        %v4072 = vpop.f32.mrb[0].mxu0
        %4073 = vmatprep.mubr.bf16.mxu0 0
        %4074 = vmatmul.mubr.bf16.gmra.mrb[0].mxu0 %v3621
        %v4075 = vpop.f32.mrb[0].mxu0
        %v4076 = vadd.f32 %v3915, %v4075
        %v4077 = vpop.f32.mrb[0].mxu0
        %v4078 = vpop.f32.mrb[0].mxu0
        %v4079 = vadd.f32 %v3918, %v4078
        %v4080 = vpop.f32.mrb[0].mxu0
        %4081 = vmatprep.mubr.bf16.mxu0 0
        %4082 = vmatmul.mubr.bf16.gmra.mrb[0].mxu0 %v3624
        %v4083 = vpop.f32.mrb[0].mxu0
        %v4084 = vadd.f32 %v3923, %v4083
        %v4085 = vpop.f32.mrb[0].mxu0
        %v4086 = vpop.f32.mrb[0].mxu0
        %v4087 = vadd.f32 %v3926, %v4086
        %v4088 = vpop.f32.mrb[0].mxu0
        %4089 = vmatprep.mubr.bf16.mxu0 0
        %4090 = vmatmul.mubr.bf16.gmra.mrb[0].mxu0 %v3627
        %v4091 = vpop.f32.mrb[0].mxu0
        %v4092 = vadd.f32 %v3931, %v4091
        %v4093 = vpop.f32.mrb[0].mxu0
        %v4094 = vpop.f32.mrb[0].mxu0
        %v4095 = vadd.f32 %v3934, %v4094
        %v4096 = vpop.f32.mrb[0].mxu0
        %4097 = vmatprep.mubr.bf16.mxu0 0
        %4098 = vmatmul.mubr.bf16.gmra.mrb[0].mxu0 %v3630
        %v4099 = vpop.f32.mrb[0].mxu0
        %v4100 = vadd.f32 %v3939, %v4099
        %v4101 = vpop.f32.mrb[0].mxu0
        %v4102 = vpop.f32.mrb[0].mxu0
        %v4103 = vadd.f32 %v3942, %v4102
        %v4104 = vpop.f32.mrb[0].mxu0
        %4105 = vmatprep.mubr.bf16.mxu0 0
        %4106 = vmatmul.mubr.bf16.gmra.mrb[0].mxu0 %v3633
        %v4107 = vpop.f32.mrb[0].mxu0
        %v4108 = vadd.f32 %v3947, %v4107
        %v4109 = vpop.f32.mrb[0].mxu0
        %v4110 = vpop.f32.mrb[0].mxu0
        %v4111 = vadd.f32 %v3950, %v4110
        %v4112 = vpop.f32.mrb[0].mxu0
        %4113 = vmatprep.mubr.bf16.mxu0 0
        %4114 = vmatmul.mubr.bf16.gmra.mrb[0].mxu0 %v3636
        %v4115 = vpop.f32.mrb[0].mxu0
        %v4116 = vadd.f32 %v3955, %v4115
        %v4117 = vpop.f32.mrb[0].mxu0
        %v4118 = vpop.f32.mrb[0].mxu0
        %v4119 = vadd.f32 %v3958, %v4118
        %v4120 = vpop.f32.mrb[0].mxu0
        %4121 = vmatprep.mubr.bf16.mxu0 0
        %4122 = vmatmul.mubr.bf16.gmra.mrb[0].mxu0 %v3639
        %v4123 = vpop.f32.mrb[0].mxu0
        %v4124 = vadd.f32 %v3963, %v4123
        %v4125 = vpop.f32.mrb[0].mxu0
        %v4126 = vpop.f32.mrb[0].mxu0
        %v4127 = vadd.f32 %v3966, %v4126
        %v4128 = vpop.f32.mrb[0].mxu0
        %4129 = vmatprep.mubr.bf16.mxu0 0
        %4130 = vmatmul.mubr.bf16.gmra.mrb[0].mxu0 %v3642
        %v4131 = vpop.f32.mrb[0].mxu0
        %v4132 = vadd.f32 %v3971, %v4131
        %v4133 = vpop.f32.mrb[0].mxu0
        %v4134 = vpop.f32.mrb[0].mxu0
        %v4135 = vadd.f32 %v3974, %v4134
        %v4136 = vpop.f32.mrb[0].mxu0
        %4137 = vmatprep.mubr.bf16.mxu0 0
        %4138 = vmatmul.mubr.bf16.gmra.mrb[0].mxu0 %v3645
        %v4139 = vpop.f32.mrb[0].mxu0
        %v4140 = vadd.f32 %v3979, %v4139
        %v4141 = vpop.f32.mrb[0].mxu0
        %v4142 = vpop.f32.mrb[0].mxu0
        %v4143 = vadd.f32 %v3982, %v4142
        %v4144 = vpop.f32.mrb[0].mxu0
        %4145 = vmatprep.mubr.bf16.mxu0 0
        %4146 = vmatmul.mubr.bf16.gmra.mrb[0].mxu0 %v3648
        %v4147 = vpop.f32.mrb[0].mxu0
        %v4148 = vadd.f32 %v3987, %v4147
        %v4149 = vpop.f32.mrb[0].mxu0
        %v4150 = vpop.f32.mrb[0].mxu0
        %v4151 = vadd.f32 %v3990, %v4150
        %v4152 = vpop.f32.mrb[0].mxu0
        %4153 = vmatprep.mubr.bf16.mxu0 0
        %4154 = vmatmul.mubr.bf16.gmra.mrb[0].mxu0 %v3651
        %v4155 = vpop.f32.mrb[0].mxu0
        %v4156 = vadd.f32 %v3995, %v4155
        %v4157 = vpop.f32.mrb[0].mxu0
        %v4158 = vpop.f32.mrb[0].mxu0
        %v4159 = vadd.f32 %v3998, %v4158
        %v4160 = vpop.f32.mrb[0].mxu0
        %4161 = vmatprep.mubr.bf16.mxu0 0
        %4162 = vmatmul.mubr.bf16.gmra.mrb[0].mxu0 %v3654
        %v4163 = vpop.f32.mrb[0].mxu0
        %v4164 = vadd.f32 %v4003, %v4163
        %v4165 = vpop.f32.mrb[0].mxu0
        %v4166 = vpop.f32.mrb[0].mxu0
        %v4167 = vadd.f32 %v4006, %v4166
        %v4168 = vpop.f32.mrb[0].mxu0
        %4169 = vmatprep.mubr.bf16.mxu0 0
        %4170 = vmatmul.mubr.bf16.gmra.mrb[0].mxu0 %v3657
        %v4171 = vpop.f32.mrb[0].mxu0
        %v4172 = vadd.f32 %v4011, %v4171
        %v4173 = vpop.f32.mrb[0].mxu0
        %v4174 = vpop.f32.mrb[0].mxu0
        %v4175 = vadd.f32 %v4014, %v4174
        %v4176 = vpop.f32.mrb[0].mxu0
        %4177 = vmatprep.mubr.bf16.mxu0 0
        %4178 = vmatmul.mubr.bf16.gmra.mrb[0].mxu0 %v3660
        %v4179 = vpop.f32.mrb[0].mxu0
        %v4180 = vadd.f32 %v4019, %v4179
        %v4181 = vpop.f32.mrb[0].mxu0
        %v4182 = vpop.f32.mrb[0].mxu0
        %v4183 = vadd.f32 %v4022, %v4182
        %v4184 = vpop.f32.mrb[0].mxu0
        %4185 = vmatprep.mubr.bf16.mxu0 0
        %4186 = vmatmul.mubr.bf16.gmra.mrb[0].mxu0 %v3663
        %v4187 = vpop.f32.mrb[0].mxu0
        %v4188 = vadd.f32 %v4027, %v4187
        %v4189 = vpop.f32.mrb[0].mxu0
        %v4190 = vpop.f32.mrb[0].mxu0
        %v4191 = vadd.f32 %v4030, %v4190
        %v4192 = vpop.f32.mrb[0].mxu0
        %4193 = vdwg.mxu0
        %v4194 = vadd.f32 %v3025, %v4068
        %v4195 = vadd.f32 %v3028, %v4071
        %v4196 = vadd.f32 %v3033, %v4076
        %v4197 = vadd.f32 %v3036, %v4079
        %v4198 = vadd.f32 %v3041, %v4084
        %v4199 = vadd.f32 %v3044, %v4087
        %v4200 = vadd.f32 %v3049, %v4092
        %v4201 = vadd.f32 %v3052, %v4095
        %v4202 = vadd.f32 %v3057, %v4100
        %v4203 = vadd.f32 %v3060, %v4103
        %v4204 = vadd.f32 %v3065, %v4108
        %v4205 = vadd.f32 %v3068, %v4111
        %v4206 = vadd.f32 %v3073, %v4116
        %v4207 = vadd.f32 %v3076, %v4119
        %v4208 = vadd.f32 %v3081, %v4124
        %v4209 = vadd.f32 %v3084, %v4127
        %v4210 = vadd.f32 %v3089, %v4132
        %v4211 = vadd.f32 %v3092, %v4135
        %v4212 = vadd.f32 %v3097, %v4140
        %v4213 = vadd.f32 %v3100, %v4143
        %v4214 = vadd.f32 %v3105, %v4148
        %v4215 = vadd.f32 %v3108, %v4151
        %v4216 = vadd.f32 %v3113, %v4156
        %v4217 = vadd.f32 %v3116, %v4159
        %v4218 = vadd.f32 %v3121, %v4164
        %v4219 = vadd.f32 %v3124, %v4167
        %v4220 = vadd.f32 %v3129, %v4172
        %v4221 = vadd.f32 %v3132, %v4175
        %v4222 = vadd.f32 %v3137, %v4180
        %v4223 = vadd.f32 %v3140, %v4183
        %v4224 = vadd.f32 %v3145, %v4188
        %v4225 = vadd.f32 %v3148, %v4191
        %v4226 = vpack.c.bf16 %v4195, %v4194
        %v4227 = vpack.c.bf16 %v4197, %v4196
        %v4228 = vpack.c.bf16 %v4199, %v4198
        %v4229 = vpack.c.bf16 %v4201, %v4200
        %v4230 = vpack.c.bf16 %v4203, %v4202
        %v4231 = vpack.c.bf16 %v4205, %v4204
        %v4232 = vpack.c.bf16 %v4207, %v4206
        %v4233 = vpack.c.bf16 %v4209, %v4208
        %v4234 = vpack.c.bf16 %v4211, %v4210
        %v4235 = vpack.c.bf16 %v4213, %v4212
        %v4236 = vpack.c.bf16 %v4215, %v4214
        %v4237 = vpack.c.bf16 %v4217, %v4216
        %v4238 = vpack.c.bf16 %v4219, %v4218
        %v4239 = vpack.c.bf16 %v4221, %v4220
        %v4240 = vpack.c.bf16 %v4223, %v4222
        %v4241 = vpack.c.bf16 %v4225, %v4224
        %v4258 = vunpack.c.l.b16 %v4226
        %v4259 = vunpack.c.h.b16 %v4226
        %v4260 = vunpack.c.l.b16 %v4227
        %v4261 = vunpack.c.h.b16 %v4227
        %v4262 = vunpack.c.l.b16 %v4228
        %v4263 = vunpack.c.h.b16 %v4228
        %v4264 = vunpack.c.l.b16 %v4229
        %v4265 = vunpack.c.h.b16 %v4229
        %v4266 = vunpack.c.l.b16 %v4230
        %v4267 = vunpack.c.h.b16 %v4230
        %v4268 = vunpack.c.l.b16 %v4231
        %v4269 = vunpack.c.h.b16 %v4231
        %v4270 = vunpack.c.l.b16 %v4232
        %v4271 = vunpack.c.h.b16 %v4232
        %v4272 = vunpack.c.l.b16 %v4233
        %v4273 = vunpack.c.h.b16 %v4233
        %v4274 = vunpack.c.l.b16 %v4234
        %v4275 = vunpack.c.h.b16 %v4234
        %v4276 = vunpack.c.l.b16 %v4235
        %v4277 = vunpack.c.h.b16 %v4235
        %v4278 = vunpack.c.l.b16 %v4236
        %v4279 = vunpack.c.h.b16 %v4236
        %v4280 = vunpack.c.l.b16 %v4237
        %v4281 = vunpack.c.h.b16 %v4237
        %v4282 = vunpack.c.l.b16 %v4238
        %v4283 = vunpack.c.h.b16 %v4238
        %v4284 = vunpack.c.l.b16 %v4239
        %v4285 = vunpack.c.h.b16 %v4239
        %v4286 = vunpack.c.l.b16 %v4240
        %v4287 = vunpack.c.h.b16 %v4240
        %v4288 = vunpack.c.l.b16 %v4241
        %v4289 = vunpack.c.h.b16 %v4241
        %v4290 = vpack.c.b16 %v4258, %v4258
        %v4291 = vpack.c.b16 %v4259, %v4259
        %v4292 = vpack.c.b16 %v4260, %v4260
        %v4293 = vpack.c.b16 %v4261, %v4261
        %v4294 = vpack.c.b16 %v4262, %v4262
        %v4295 = vpack.c.b16 %v4263, %v4263
        %v4296 = vpack.c.b16 %v4264, %v4264
        %v4297 = vpack.c.b16 %v4265, %v4265
        %v4298 = vpack.c.b16 %v4266, %v4266
        %v4299 = vpack.c.b16 %v4267, %v4267
        %v4300 = vpack.c.b16 %v4268, %v4268
        %v4301 = vpack.c.b16 %v4269, %v4269
        %v4302 = vpack.c.b16 %v4270, %v4270
        %v4303 = vpack.c.b16 %v4271, %v4271
        %v4304 = vpack.c.b16 %v4272, %v4272
        %v4305 = vpack.c.b16 %v4273, %v4273
        %v4306 = vpack.c.b16 %v4274, %v4274
        %v4307 = vpack.c.b16 %v4275, %v4275
        %v4308 = vpack.c.b16 %v4276, %v4276
        %v4309 = vpack.c.b16 %v4277, %v4277
        %v4310 = vpack.c.b16 %v4278, %v4278
        %v4311 = vpack.c.b16 %v4279, %v4279
        %v4312 = vpack.c.b16 %v4280, %v4280
        %v4313 = vpack.c.b16 %v4281, %v4281
        %v4314 = vpack.c.b16 %v4282, %v4282
        %v4315 = vpack.c.b16 %v4283, %v4283
        %v4316 = vpack.c.b16 %v4284, %v4284
        %v4317 = vpack.c.b16 %v4285, %v4285
        %v4318 = vpack.c.b16 %v4286, %v4286
        %v4319 = vpack.c.b16 %v4287, %v4287
        %v4320 = vpack.c.b16 %v4288, %v4288
        %v4321 = vpack.c.b16 %v4289, %v4289
        %4354 = vst [vmem:[%s286] sm:$0xf] %v4290
        %4355 = vst [vmem:[%s286 + $0x4] sm:$0xf] %v4291
        %4356 = vst [vmem:[%s286 + $0x8] sm:$0xf] %v4292
        %4357 = vst [vmem:[%s286 + $0xc] sm:$0xf] %v4293
        %4358 = vst [vmem:[%s286 + $0x10] sm:$0xf] %v4294
        %4359 = vst [vmem:[%s286 + $0x14] sm:$0xf] %v4295
        %4360 = vst [vmem:[%s286 + $0x18] sm:$0xf] %v4296
        %4361 = vst [vmem:[%s286 + $0x1c] sm:$0xf] %v4297
        %4362 = vst [vmem:[%s286 + $0x20] sm:$0xf] %v4298
        %4363 = vst [vmem:[%s286 + $0x24] sm:$0xf] %v4299
        %4364 = vst [vmem:[%s286 + $0x28] sm:$0xf] %v4300
        %4365 = vst [vmem:[%s286 + $0x2c] sm:$0xf] %v4301
        %4366 = vst [vmem:[%s286 + $0x30] sm:$0xf] %v4302
        %4367 = vst [vmem:[%s286 + $0x34] sm:$0xf] %v4303
        %4368 = vst [vmem:[%s286 + $0x38] sm:$0xf] %v4304
        %4369 = vst [vmem:[%s286 + $0x3c] sm:$0xf] %v4305
        %4370 = vst [vmem:[%s286 + $0x40] sm:$0xf] %v4306
        %4371 = vst [vmem:[%s286 + $0x44] sm:$0xf] %v4307
        %4372 = vst [vmem:[%s286 + $0x48] sm:$0xf] %v4308
        %4373 = vst [vmem:[%s286 + $0x4c] sm:$0xf] %v4309
        %4374 = vst [vmem:[%s286 + $0x50] sm:$0xf] %v4310
        %4375 = vst [vmem:[%s286 + $0x54] sm:$0xf] %v4311
        %4376 = vst [vmem:[%s286 + $0x58] sm:$0xf] %v4312
        %4377 = vst [vmem:[%s286 + $0x5c] sm:$0xf] %v4313
        %4378 = vst [vmem:[%s286 + $0x60] sm:$0xf] %v4314
        %4379 = vst [vmem:[%s286 + $0x64] sm:$0xf] %v4315
        %4380 = vst [vmem:[%s286 + $0x68] sm:$0xf] %v4316
        %4381 = vst [vmem:[%s286 + $0x6c] sm:$0xf] %v4317
        %4382 = vst [vmem:[%s286 + $0x70] sm:$0xf] %v4318
        %4383 = vst [vmem:[%s286 + $0x74] sm:$0xf] %v4319
        %4384 = vst [vmem:[%s286 + $0x78] sm:$0xf] %v4320
        %4385 = vst [vmem:[%s286 + $0x7c] sm:$0xf] %v4321
        %v4386 = vadd.f32 %v4194, %v4195
        %v4387 = vadd.f32 %v4386, %v4196
        %v4388 = vadd.f32 %v4387, %v4197
        %v4389 = vadd.f32 %v4388, %v4198
        %v4390 = vadd.f32 %v4389, %v4199
        %v4391 = vadd.f32 %v4390, %v4200
        %v4392 = vadd.f32 %v4391, %v4201
        %v4393 = vadd.f32 %v4392, %v4202
        %v4394 = vadd.f32 %v4393, %v4203
        %v4395 = vadd.f32 %v4394, %v4204
        %v4396 = vadd.f32 %v4395, %v4205
        %v4397 = vadd.f32 %v4396, %v4206
        %v4398 = vadd.f32 %v4397, %v4207
        %v4399 = vadd.f32 %v4398, %v4208
        %v4400 = vadd.f32 %v4399, %v4209
        %v4401 = vadd.f32 %v4400, %v4210
        %v4402 = vadd.f32 %v4401, %v4211
        %v4403 = vadd.f32 %v4402, %v4212
        %v4404 = vadd.f32 %v4403, %v4213
        %v4405 = vadd.f32 %v4404, %v4214
        %v4406 = vadd.f32 %v4405, %v4215
        %v4407 = vadd.f32 %v4406, %v4216
        %v4408 = vadd.f32 %v4407, %v4217
        %v4409 = vadd.f32 %v4408, %v4218
        %v4410 = vadd.f32 %v4409, %v4219
        %v4411 = vadd.f32 %v4410, %v4220
        %v4412 = vadd.f32 %v4411, %v4221
        %v4413 = vadd.f32 %v4412, %v4222
        %v4414 = vadd.f32 %v4413, %v4223
        %v4415 = vadd.f32 %v4414, %v4224
        %v4416 = vadd.f32 %v4415, %v4225
        %v4417 = vrot.slane %v4416, 4
        %v4418 = vadd.f32 %v4416, %v4417
        %v4419 = vrot.slane %v4418, 2
        %v4420 = vadd.f32 %v4418, %v4419
        %v4421 = vrot.slane %v4420, 1
        %v4422 = vadd.f32 %v4420, %v4421
        %v4423 = vmul.f32 %v4194, %v4194
        %v4424 = vmul.f32 %v4195, %v4195
        %v4425 = vmul.f32 %v4196, %v4196
        %v4426 = vmul.f32 %v4197, %v4197
        %v4427 = vmul.f32 %v4198, %v4198
        %v4428 = vmul.f32 %v4199, %v4199
        %v4429 = vmul.f32 %v4200, %v4200
        %v4430 = vmul.f32 %v4201, %v4201
        %v4431 = vmul.f32 %v4202, %v4202
        %v4432 = vmul.f32 %v4203, %v4203
        %v4433 = vmul.f32 %v4204, %v4204
        %v4434 = vmul.f32 %v4205, %v4205
        %v4435 = vmul.f32 %v4206, %v4206
        %v4436 = vmul.f32 %v4207, %v4207
        %v4437 = vmul.f32 %v4208, %v4208
        %v4438 = vmul.f32 %v4209, %v4209
        %v4439 = vmul.f32 %v4210, %v4210
        %v4440 = vmul.f32 %v4211, %v4211
        %v4441 = vmul.f32 %v4212, %v4212
        %v4442 = vmul.f32 %v4213, %v4213
        %v4443 = vmul.f32 %v4214, %v4214
        %v4444 = vmul.f32 %v4215, %v4215
        %v4445 = vmul.f32 %v4216, %v4216
        %v4446 = vmul.f32 %v4217, %v4217
        %v4447 = vmul.f32 %v4218, %v4218
        %v4448 = vmul.f32 %v4219, %v4219
        %v4449 = vmul.f32 %v4220, %v4220
        %v4450 = vmul.f32 %v4221, %v4221
        %v4451 = vmul.f32 %v4222, %v4222
        %v4452 = vmul.f32 %v4223, %v4223
        %v4453 = vmul.f32 %v4224, %v4224
        %v4454 = vmul.f32 %v4225, %v4225
        %v4455 = vadd.f32 %v4423, %v4424
        %v4456 = vadd.f32 %v4455, %v4425
        %v4457 = vadd.f32 %v4456, %v4426
        %v4458 = vadd.f32 %v4457, %v4427
        %v4459 = vadd.f32 %v4458, %v4428
        %v4460 = vadd.f32 %v4459, %v4429
        %v4461 = vadd.f32 %v4460, %v4430
        %v4462 = vadd.f32 %v4461, %v4431
        %v4463 = vadd.f32 %v4462, %v4432
        %v4464 = vadd.f32 %v4463, %v4433
        %v4465 = vadd.f32 %v4464, %v4434
        %v4466 = vadd.f32 %v4465, %v4435
        %v4467 = vadd.f32 %v4466, %v4436
        %v4468 = vadd.f32 %v4467, %v4437
        %v4469 = vadd.f32 %v4468, %v4438
        %v4470 = vadd.f32 %v4469, %v4439
        %v4471 = vadd.f32 %v4470, %v4440
        %v4472 = vadd.f32 %v4471, %v4441
        %v4473 = vadd.f32 %v4472, %v4442
        %v4474 = vadd.f32 %v4473, %v4443
        %v4475 = vadd.f32 %v4474, %v4444
        %v4476 = vadd.f32 %v4475, %v4445
        %v4477 = vadd.f32 %v4476, %v4446
        %v4478 = vadd.f32 %v4477, %v4447
        %v4479 = vadd.f32 %v4478, %v4448
        %v4480 = vadd.f32 %v4479, %v4449
        %v4481 = vadd.f32 %v4480, %v4450
        %v4482 = vadd.f32 %v4481, %v4451
        %v4483 = vadd.f32 %v4482, %v4452
        %v4484 = vadd.f32 %v4483, %v4453
        %v4485 = vadd.f32 %v4484, %v4454
        %v4486 = vrot.slane %v4485, 4
        %v4487 = vadd.f32 %v4485, %v4486
        %v4488 = vrot.slane %v4487, 2
        %v4489 = vadd.f32 %v4487, %v4488
        %v4490 = vrot.slane %v4489, 1
        %v4491 = vadd.f32 %v4489, %v4490
        %vm4492 = vcmask 1040384
        %v4493 = vsel %vm4492, %v4422, %v4491
        %vm4494 = vcmask 1041408
        %v4495 = vsel %vm4494, %v4493, 0.0
        %4496 = vst [vmem:[%s293] sm:$0xff] %v4495
        %s4497 = sand.u32 %s125, 1
        %s4498 = scalar_lea.sflag [#allocation5], %s4497
        %s4499 = sand.u32 %s125, 1
        %s4500 = smul.addr %s4499, 128
        %s4501 = scalar_lea.vmem [#allocation11], %s4500
        %s4502 = sand.u32 %s151, 1
        %s4503 = scalar_lea.sflag [#allocation13], %s4502
        %s4504 = sand.u32 %s151, 1
        %s4505 = smul.addr %s4504, 8
        %s4506 = scalar_lea.vmem [#allocation12], %s4505
        // Predicated region
        $region57: #{bottleneck_forward.5} parent=35 // pred_check
          %p4507 = pneg %p135
        $region58: #{bottleneck_forward.5} parent=35 // pred_check_branch
          %4509 = sbr.rel (%p4507) target = $region60
        $region59: #{bottleneck_forward.5} parent=35 // pred_region
          %s4510 = smul.u32 32, %s28
          %s4512 = ssub.s32 2048, 2048
          %4513 = vsyncadd %s4498, %s4512
          %s4514 = smul.addr %s4510, 64
          %s4515 = scalar_lea.hbm %s4, %s4514
          %s4516 = sshll.u32 %s4501, 4
          %s4517 = int_to_ptr.vmem [resolvable:$true] %s4516
          %4522 = dma.vmem_to_hbm [thread:$0]  %s4517, 2048, %s4515, %s4498, 64, 64, 4
        $region60: #{bottleneck_forward.5} parent=35 // pred_fallthru
          _
        // Predicated region
        $region61: #{bottleneck_forward.5} parent=35 // pred_check
          %p4523 = pneg %p161
        $region62: #{bottleneck_forward.5} parent=35 // pred_check_branch
          %4525 = sbr.rel (%p4523) target = $region64
        $region63: #{bottleneck_forward.5} parent=35 // pred_region
          %s4527 = ssub.s32 128, 128
          %4528 = vsyncadd %s4503, %s4527
          %s4529 = smul.addr %s28, 128
          %s4530 = scalar_lea.hbm %s5, %s4529
          %s4532 = sshll.u32 %s4506, 4
          %s4533 = int_to_ptr.vmem [resolvable:$true] %s4532
          %4535 = dma.vmem_to_hbm [thread:$0]  %s4533, 128, %s4530, %s4503
        $region64: #{bottleneck_forward.5} parent=35 // pred_fallthru
          _
      $region36: #{bottleneck_forward.5} parent=5 // pred_fallthru
        _
      %p4536 = scmp.le.s32.totalorder 2, %s23
      // Predicated region
      $region65: #{bottleneck_forward.5} parent=5 // pred_check
        %p4537 = pneg %p4536
      $region66: #{bottleneck_forward.5} parent=5 // pred_check_branch
        %4539 = sbr.rel (%p4537) target = $region68
      $region67: #{bottleneck_forward.5} parent=5 // pred_region
        %s4540 = ssub.s32 %s23, 2
        // Predicated region
        $region69: #{bottleneck_forward.5} parent=67 // pred_check
          %p4541 = pneg %p141
        $region70: #{bottleneck_forward.5} parent=67 // pred_check_branch
          %4543 = sbr.rel (%p4541) target = $region72
        $region71: #{bottleneck_forward.5} parent=67 // pred_region
          %s4544 = sand.u32 %s126, 1
          %s4545 = scalar_lea.sflag [#allocation5], %s4544
          %s4546 = sand.u32 %s126, 1
          %s4547 = smul.addr %s4546, 128
          %s4548 = scalar_lea.vmem [#allocation11], %s4547
          %4549 = dma.done %s4545, 2048
        $region72: #{bottleneck_forward.5} parent=67 // pred_fallthru
          _
        // Predicated region
        $region73: #{bottleneck_forward.5} parent=67 // pred_check
          %p4550 = pneg %p167
        $region74: #{bottleneck_forward.5} parent=67 // pred_check_branch
          %4552 = sbr.rel (%p4550) target = $region76
        $region75: #{bottleneck_forward.5} parent=67 // pred_region
          %s4553 = sand.u32 %s152, 1
          %s4554 = scalar_lea.sflag [#allocation13], %s4553
          %s4555 = sand.u32 %s152, 1
          %s4556 = smul.addr %s4555, 8
          %s4557 = scalar_lea.vmem [#allocation12], %s4556
          %4558 = dma.done %s4554, 128
        $region76: #{bottleneck_forward.5} parent=67 // pred_fallthru
          _
      $region68: #{bottleneck_forward.5} parent=5 // pred_fallthru
        _
    $region6: #{bottleneck_forward.5} parent=1 // loop_footer
      %s27 = sadd.s32 1, %s23
    $region7: #{bottleneck_forward.5} parent=1 // loop_footer_branch
      %22 = sbr.rel target = $region3
    $region8: #{bottleneck_forward.5} parent=1 // loop_exit
      _
    %4559 = vsyncpa [#allocation4], 1
    %s4560 = scalar_lea.sflag [#allocation4], 1
    %4561 = vsyncpa %s4560, 1
    %4562 = vsyncpa [#allocation7], 1
    %4563 = vsyncpa [#allocation10], 1
    %4564 = vsyncpa [#allocation5], 1
    %s4565 = scalar_lea.sflag [#allocation5], 1
    %4566 = vsyncpa %s4565, 1
    %4567 = vsyncpa [#allocation13], 1
    %s4568 = scalar_lea.sflag [#allocation13], 1
    %4569 = vsyncpa %s4568, 1

</llo_original>
